<compile_context>
chip_gen: v5e
topology: v5e:2x2
jax: 0.10.0
libtpu: 0.0.40
codegen_flags: <defaults>
</compile_context>

<pallas_src>
import numpy as np
import jax
import jax.numpy as jnp
from jax import lax
from jax.experimental import pallas as pl
from jax.experimental.pallas import tpu as pltpu

K0 = 5      # conv0 kernel size
K1 = 7      # conv_spatial kernel size
DIL = 3     # conv_spatial dilation
PAD0 = 2    # conv0 padding
PAD1 = 9    # conv_spatial padding


def _lka_kernel(w0_ref, b0_ref, w1_ref, b1_ref, w2_ref, b2_ref,
                xp_ref, o_ref, pad_ref):
    # Per grid step (one batch element):
    #   xp_ref  : VMEM (1, C, H+2*PAD0, W+2*PAD0)  input zero-padded by 2
    #   w0_ref  : SMEM (C*25,)   b0_ref : SMEM (C,)   depthwise 5x5
    #   w1_ref  : SMEM (C*49,)   b1_ref : SMEM (C,)   depthwise dilated 7x7
    #   w2_ref  : SMEM (C*C,)    b2_ref : SMEM (C,)   pointwise 1x1
    #   o_ref   : VMEM (1, C, H, W)
    #   pad_ref : VMEM (C, H+2*PAD1, W+2*PAD1) scratch: stage-1 result + zero halo
    _, C, H, W = o_ref.shape

    # Zero the stage-1 scratch (only the halo needs zeros; buffer is tiny).
    pad_ref[...] = jnp.zeros_like(pad_ref)

    # ---- stage 1: depthwise 5x5, "same" (input pre-padded by PAD0) ----------
    for c in range(C):
        acc = jnp.zeros((H, W), jnp.float32)
        for ky in range(K0):
            for kx in range(K0):
                wgt = w0_ref[c * K0 * K0 + ky * K0 + kx]
                acc = acc + wgt * xp_ref[0, c, ky:ky + H, kx:kx + W].astype(jnp.float32)
        pad_ref[c, PAD1:PAD1 + H, PAD1:PAD1 + W] = acc + b0_ref[c]

    # ---- stage 2: depthwise 7x7, dilation=3, padding=9 ----------------------
    attn = []
    for c in range(C):
        acc = jnp.zeros((H, W), jnp.float32)
        for ky in range(K1):
            for kx in range(K1):
                wgt = w1_ref[c * K1 * K1 + ky * K1 + kx]
                acc = acc + wgt * pad_ref[c,
                                          ky * DIL:ky * DIL + H,
                                          kx * DIL:kx * DIL + W]
        attn.append(acc + b1_ref[c])

    # ---- stage 3: pointwise 1x1 channel mix; stage 4: gate u * attn ---------
    for o in range(C):
        acc = jnp.zeros((H, W), jnp.float32)
        for c in range(C):
            acc = acc + w2_ref[o * C + c] * attn[c]
        acc = acc + b2_ref[o]
        u = xp_ref[0, o, PAD0:PAD0 + H, PAD0:PAD0 + W].astype(jnp.float32)
        o_ref[0, o, :, :] = (u * acc).astype(o_ref.dtype)


def lka_forward(x, w0, b0, w1, b1, w2, b2):
    """LKA forward.

    x  : (N, C, H, W) NCHW, like PyTorch.
    w0 : (C, 1, 5, 5) depthwise conv0 weight,        b0: (C,)
    w1 : (C, 1, 7, 7) depthwise dilated conv weight, b1: (C,)
    w2 : (C, C, 1, 1) pointwise conv1 weight,        b2: (C,)
    """
    n, c, h, w = x.shape

    # Small weights -> flat f32 SMEM arrays (scalar-indexed in the kernel).
    w0f = jnp.asarray(w0, jnp.float32).reshape(c * K0 * K0)
    w1f = jnp.asarray(w1, jnp.float32).reshape(c * K1 * K1)
    w2f = jnp.asarray(w2, jnp.float32).reshape(c * c)
    b0f = jnp.asarray(b0, jnp.float32).reshape(c)
    b1f = jnp.asarray(b1, jnp.float32).reshape(c)
    b2f = jnp.asarray(b2, jnp.float32).reshape(c)

    # Single cheap host-side zero-pad for conv0's "same" halo; the dilated
    # conv's halo lives in the kernel's VMEM scratch.
    xp = jnp.pad(x, ((0, 0), (0, 0), (PAD0, PAD0), (PAD0, PAD0)))

    return pl.pallas_call(
        _lka_kernel,
        out_shape=jax.ShapeDtypeStruct((n, c, h, w), x.dtype),
        grid=(n,),
        in_specs=[
            pl.BlockSpec(memory_space=pltpu.SMEM),   # w0 (flat)
            pl.BlockSpec(memory_space=pltpu.SMEM),   # b0
            pl.BlockSpec(memory_space=pltpu.SMEM),   # w1 (flat)
            pl.BlockSpec(memory_space=pltpu.SMEM),   # b1
            pl.BlockSpec(memory_space=pltpu.SMEM),   # w2 (flat)
            pl.BlockSpec(memory_space=pltpu.SMEM),   # b2
            pl.BlockSpec((1, c, h + 2 * PAD0, w + 2 * PAD0),
                         lambda i: (i, 0, 0, 0)),    # padded input (also the gate u)
        ],
        out_specs=pl.BlockSpec((1, c, h, w), lambda i: (i, 0, 0, 0)),
        scratch_shapes=[pltpu.VMEM((c, h + 2 * PAD1, w + 2 * PAD1), jnp.float32)],
        compiler_params=pltpu.CompilerParams(
            dimension_semantics=("parallel",)),
    )(w0f, b0f, w1f, b1f, w2f, b2f, xp)


def _lka_reference(x, w0, b0, w1, b1, w2, b2):
    """Pure-JAX reference (mirrors the PyTorch LKA forward)."""
    c = x.shape[1]
    hp = lax.Precision.HIGHEST
    dn = ("NCHW", "OIHW", "NCHW")
    attn = lax.conv_general_dilated(
        x, w0.reshape(c, 1, K0, K0), (1, 1), ((PAD0, PAD0), (PAD0, PAD0)),
        feature_group_count=c, dimension_numbers=dn, precision=hp)
    attn = attn + b0.reshape(1, c, 1, 1)
    attn = lax.conv_general_dilated(
        attn, w1.reshape(c, 1, K1, K1), (1, 1), ((PAD1, PAD1), (PAD1, PAD1)),
        rhs_dilation=(DIL, DIL), feature_group_count=c,
        dimension_numbers=dn, precision=hp)
    attn = attn + b1.reshape(1, c, 1, 1)
    attn = lax.conv_general_dilated(
        attn, w2.reshape(c, c, 1, 1), (1, 1), ((0, 0), (0, 0)),
        dimension_numbers=dn, precision=hp)
    attn = attn + b2.reshape(1, c, 1, 1)
    return x * attn


if __name__ == "__main__":
    key = jax.random.PRNGKey(0)
    kx, k0, kb0, k1, kb1, k2, kb2 = jax.random.split(key, 7)

    N, C, H, W = 2, 4, 16, 16
    x = jax.random.normal(kx, (N, C, H, W), dtype=jnp.float32)
    w0 = jax.random.normal(k0, (C, 1, K0, K0), dtype=jnp.float32) * (1.0 / K0)
    b0 = jax.random.normal(kb0, (C,), dtype=jnp.float32) * 0.01
    w1 = jax.random.normal(k1, (C, 1, K1, K1), dtype=jnp.float32) * (1.0 / K1)
    b1 = jax.random.normal(kb1, (C,), dtype=jnp.float32) * 0.01
    w2 = jax.random.normal(k2, (C, C, 1, 1), dtype=jnp.float32) * (1.0 / np.sqrt(C))
    b2 = jax.random.normal(kb2, (C,), dtype=jnp.float32) * 0.01

    out = lka_forward(x, w0, b0, w1, b1, w2, b2)
    out = jax.block_until_ready(out)

    ref = jax.block_until_ready(_lka_reference(x, w0, b0, w1, b1, w2, b2))
    np.testing.assert_allclose(np.asarray(out), np.asarray(ref),
                               rtol=1e-4, atol=1e-4)

    print("KERNEL_OK")
</pallas_src>

<mosaic_0001>
module attributes {stable_mosaic.version = 11 : i64} {
  func.func @_lka_kernel(%arg0: i32, %arg1: memref<100xf32, #tpu.memory_space<smem>>, %arg2: memref<4xf32, #tpu.memory_space<smem>>, %arg3: memref<196xf32, #tpu.memory_space<smem>>, %arg4: memref<4xf32, #tpu.memory_space<smem>>, %arg5: memref<16xf32, #tpu.memory_space<smem>>, %arg6: memref<4xf32, #tpu.memory_space<smem>>, %arg7: memref<1x4x20x20xf32, #tpu.memory_space<vmem>>, %arg8: memref<1x4x16x16xf32, #tpu.memory_space<vmem>>, %arg9: memref<4x34x34xf32, #tpu.memory_space<vmem>>) attributes {dimension_semantics = [#tpu.dimension_semantics<parallel>], iteration_bounds = array<i64: 2>, scalar_prefetch = 0 : i64, scratch_operands = 1 : i64, tpu.core_type = #tpu.core_type<tc>, window_params = [{transform_indices = @transform_0, window_bounds = array<i64: 100>}, {transform_indices = @transform_1, window_bounds = array<i64: 4>}, {transform_indices = @transform_2, window_bounds = array<i64: 196>}, {transform_indices = @transform_3, window_bounds = array<i64: 4>}, {transform_indices = @transform_4, window_bounds = array<i64: 16>}, {transform_indices = @transform_5, window_bounds = array<i64: 4>}, {transform_indices = @transform_6, window_bounds = array<i64: 1, 4, 20, 20>}, {transform_indices = @transform_7, window_bounds = array<i64: 1, 4, 16, 16>}]} {
    %cst = arith.constant 0.000000e+00 : f32
    %0 = vector.broadcast %cst : f32 to vector<4x34x34xf32>
    %c0 = arith.constant 0 : index
    %c0_0 = arith.constant 0 : index
    %c0_1 = arith.constant 0 : index
    %1 = vector.load %arg9[%c0, %c0_0, %c0_1] : memref<4x34x34xf32, #tpu.memory_space<vmem>>, vector<4x34x34xf32>
    tpu.vector_store %arg9[%c0, %c0_0, %c0_1], %0 {strides = array<i32>} : memref<4x34x34xf32, #tpu.memory_space<vmem>>, vector<4x34x34xf32>,
    %cst_2 = arith.constant 0.000000e+00 : f32
    %2 = vector.broadcast %cst_2 : f32 to vector<16x16xf32>
    %c0_3 = arith.constant 0 : index
    %3 = memref.load %arg1[%c0_3] : memref<100xf32, #tpu.memory_space<smem>>
    %c0_4 = arith.constant 0 : index
    %c0_5 = arith.constant 0 : index
    %c0_6 = arith.constant 0 : index
    %c0_7 = arith.constant 0 : index
    %4 = vector.load %arg7[%c0_4, %c0_5, %c0_6, %c0_7] : memref<1x4x20x20xf32, #tpu.memory_space<vmem>>, vector<1x1x16x16xf32>
    %5 = vector.shape_cast %4 : vector<1x1x16x16xf32> to vector<16x16xf32>
    %6 = vector.broadcast %3 : f32 to vector<16x16xf32>
    %7 = arith.mulf %6, %5 : vector<16x16xf32>
    %8 = arith.addf %2, %7 : vector<16x16xf32>
    %c1 = arith.constant 1 : index
    %9 = memref.load %arg1[%c1] : memref<100xf32, #tpu.memory_space<smem>>
    %c0_8 = arith.constant 0 : index
    %c0_9 = arith.constant 0 : index
    %c0_10 = arith.constant 0 : index
    %c1_11 = arith.constant 1 : index
    %10 = vector.load %arg7[%c0_8, %c0_9, %c0_10, %c1_11] : memref<1x4x20x20xf32, #tpu.memory_space<vmem>>, vector<1x1x16x16xf32>
    %11 = vector.shape_cast %10 : vector<1x1x16x16xf32> to vector<16x16xf32>
    %12 = vector.broadcast %9 : f32 to vector<16x16xf32>
    %13 = arith.mulf %12, %11 : vector<16x16xf32>
    %14 = arith.addf %8, %13 : vector<16x16xf32>
    %c2 = arith.constant 2 : index
    %15 = memref.load %arg1[%c2] : memref<100xf32, #tpu.memory_space<smem>>
    %c0_12 = arith.constant 0 : index
    %c0_13 = arith.constant 0 : index
    %c0_14 = arith.constant 0 : index
    %c2_15 = arith.constant 2 : index
    %16 = vector.load %arg7[%c0_12, %c0_13, %c0_14, %c2_15] : memref<1x4x20x20xf32, #tpu.memory_space<vmem>>, vector<1x1x16x16xf32>
    %17 = vector.shape_cast %16 : vector<1x1x16x16xf32> to vector<16x16xf32>
    %18 = vector.broadcast %15 : f32 to vector<16x16xf32>
    %19 = arith.mulf %18, %17 : vector<16x16xf32>
    %20 = arith.addf %14, %19 : vector<16x16xf32>
    %c3 = arith.constant 3 : index
    %21 = memref.load %arg1[%c3] : memref<100xf32, #tpu.memory_space<smem>>
    %c0_16 = arith.constant 0 : index
    %c0_17 = arith.constant 0 : index
    %c0_18 = arith.constant 0 : index
    %c3_19 = arith.constant 3 : index
    %22 = vector.load %arg7[%c0_16, %c0_17, %c0_18, %c3_19] : memref<1x4x20x20xf32, #tpu.memory_space<vmem>>, vector<1x1x16x16xf32>
    %23 = vector.shape_cast %22 : vector<1x1x16x16xf32> to vector<16x16xf32>
    %24 = vector.broadcast %21 : f32 to vector<16x16xf32>
    %25 = arith.mulf %24, %23 : vector<16x16xf32>
    %26 = arith.addf %20, %25 : vector<16x16xf32>
    %c4 = arith.constant 4 : index
    %27 = memref.load %arg1[%c4] : memref<100xf32, #tpu.memory_space<smem>>
    %c0_20 = arith.constant 0 : index
    %c0_21 = arith.constant 0 : index
    %c0_22 = arith.constant 0 : index
    %c4_23 = arith.constant 4 : index
    %28 = vector.load %arg7[%c0_20, %c0_21, %c0_22, %c4_23] : memref<1x4x20x20xf32, #tpu.memory_space<vmem>>, vector<1x1x16x16xf32>
    %29 = vector.shape_cast %28 : vector<1x1x16x16xf32> to vector<16x16xf32>
    %30 = vector.broadcast %27 : f32 to vector<16x16xf32>
    %31 = arith.mulf %30, %29 : vector<16x16xf32>
    %32 = arith.addf %26, %31 : vector<16x16xf32>
    %c5 = arith.constant 5 : index
    %33 = memref.load %arg1[%c5] : memref<100xf32, #tpu.memory_space<smem>>
    %c0_24 = arith.constant 0 : index
    %c0_25 = arith.constant 0 : index
    %c1_26 = arith.constant 1 : index
    %c0_27 = arith.constant 0 : index
    %34 = vector.load %arg7[%c0_24, %c0_25, %c1_26, %c0_27] : memref<1x4x20x20xf32, #tpu.memory_space<vmem>>, vector<1x1x16x16xf32>
    %35 = vector.shape_cast %34 : vector<1x1x16x16xf32> to vector<16x16xf32>
    %36 = vector.broadcast %33 : f32 to vector<16x16xf32>
    %37 = arith.mulf %36, %35 : vector<16x16xf32>
    %38 = arith.addf %32, %37 : vector<16x16xf32>
    %c6 = arith.constant 6 : index
    %39 = memref.load %arg1[%c6] : memref<100xf32, #tpu.memory_space<smem>>
    %c0_28 = arith.constant 0 : index
    %c0_29 = arith.constant 0 : index
    %c1_30 = arith.constant 1 : index
    %c1_31 = arith.constant 1 : index
    %40 = vector.load %arg7[%c0_28, %c0_29, %c1_30, %c1_31] : memref<1x4x20x20xf32, #tpu.memory_space<vmem>>, vector<1x1x16x16xf32>
    %41 = vector.shape_cast %40 : vector<1x1x16x16xf32> to vector<16x16xf32>
    %42 = vector.broadcast %39 : f32 to vector<16x16xf32>
    %43 = arith.mulf %42, %41 : vector<16x16xf32>
    %44 = arith.addf %38, %43 : vector<16x16xf32>
    %c7 = arith.constant 7 : index
    %45 = memref.load %arg1[%c7] : memref<100xf32, #tpu.memory_space<smem>>
    %c0_32 = arith.constant 0 : index
    %c0_33 = arith.constant 0 : index
    %c1_34 = arith.constant 1 : index
    %c2_35 = arith.constant 2 : index
    %46 = vector.load %arg7[%c0_32, %c0_33, %c1_34, %c2_35] : memref<1x4x20x20xf32, #tpu.memory_space<vmem>>, vector<1x1x16x16xf32>
    %47 = vector.shape_cast %46 : vector<1x1x16x16xf32> to vector<16x16xf32>
    %48 = vector.broadcast %45 : f32 to vector<16x16xf32>
    %49 = arith.mulf %48, %47 : vector<16x16xf32>
    %50 = arith.addf %44, %49 : vector<16x16xf32>
    %c8 = arith.constant 8 : index
    %51 = memref.load %arg1[%c8] : memref<100xf32, #tpu.memory_space<smem>>
    %c0_36 = arith.constant 0 : index
    %c0_37 = arith.constant 0 : index
    %c1_38 = arith.constant 1 : index
    %c3_39 = arith.constant 3 : index
    %52 = vector.load %arg7[%c0_36, %c0_37, %c1_38, %c3_39] : memref<1x4x20x20xf32, #tpu.memory_space<vmem>>, vector<1x1x16x16xf32>
    %53 = vector.shape_cast %52 : vector<1x1x16x16xf32> to vector<16x16xf32>
    %54 = vector.broadcast %51 : f32 to vector<16x16xf32>
    %55 = arith.mulf %54, %53 : vector<16x16xf32>
    %56 = arith.addf %50, %55 : vector<16x16xf32>
    %c9 = arith.constant 9 : index
    %57 = memref.load %arg1[%c9] : memref<100xf32, #tpu.memory_space<smem>>
    %c0_40 = arith.constant 0 : index
    %c0_41 = arith.constant 0 : index
    %c1_42 = arith.constant 1 : index
    %c4_43 = arith.constant 4 : index
    %58 = vector.load %arg7[%c0_40, %c0_41, %c1_42, %c4_43] : memref<1x4x20x20xf32, #tpu.memory_space<vmem>>, vector<1x1x16x16xf32>
    %59 = vector.shape_cast %58 : vector<1x1x16x16xf32> to vector<16x16xf32>
    %60 = vector.broadcast %57 : f32 to vector<16x16xf32>
    %61 = arith.mulf %60, %59 : vector<16x16xf32>
    %62 = arith.addf %56, %61 : vector<16x16xf32>
    %c10 = arith.constant 10 : index
    %63 = memref.load %arg1[%c10] : memref<100xf32, #tpu.memory_space<smem>>
    %c0_44 = arith.constant 0 : index
    %c0_45 = arith.constant 0 : index
    %c2_46 = arith.constant 2 : index
    %c0_47 = arith.constant 0 : index
    %64 = vector.load %arg7[%c0_44, %c0_45, %c2_46, %c0_47] : memref<1x4x20x20xf32, #tpu.memory_space<vmem>>, vector<1x1x16x16xf32>
    %65 = vector.shape_cast %64 : vector<1x1x16x16xf32> to vector<16x16xf32>
    %66 = vector.broadcast %63 : f32 to vector<16x16xf32>
    %67 = arith.mulf %66, %65 : vector<16x16xf32>
    %68 = arith.addf %62, %67 : vector<16x16xf32>
    %c11 = arith.constant 11 : index
    %69 = memref.load %arg1[%c11] : memref<100xf32, #tpu.memory_space<smem>>
    %c0_48 = arith.constant 0 : index
    %c0_49 = arith.constant 0 : index
    %c2_50 = arith.constant 2 : index
    %c1_51 = arith.constant 1 : index
    %70 = vector.load %arg7[%c0_48, %c0_49, %c2_50, %c1_51] : memref<1x4x20x20xf32, #tpu.memory_space<vmem>>, vector<1x1x16x16xf32>
    %71 = vector.shape_cast %70 : vector<1x1x16x16xf32> to vector<16x16xf32>
    %72 = vector.broadcast %69 : f32 to vector<16x16xf32>
    %73 = arith.mulf %72, %71 : vector<16x16xf32>
    %74 = arith.addf %68, %73 : vector<16x16xf32>
    %c12 = arith.constant 12 : index
    %75 = memref.load %arg1[%c12] : memref<100xf32, #tpu.memory_space<smem>>
    %c0_52 = arith.constant 0 : index
    %c0_53 = arith.constant 0 : index
    %c2_54 = arith.constant 2 : index
    %c2_55 = arith.constant 2 : index
    %76 = vector.load %arg7[%c0_52, %c0_53, %c2_54, %c2_55] : memref<1x4x20x20xf32, #tpu.memory_space<vmem>>, vector<1x1x16x16xf32>
    %77 = vector.shape_cast %76 : vector<1x1x16x16xf32> to vector<16x16xf32>
    %78 = vector.broadcast %75 : f32 to vector<16x16xf32>
    %79 = arith.mulf %78, %77 : vector<16x16xf32>
    %80 = arith.addf %74, %79 : vector<16x16xf32>
    %c13 = arith.constant 13 : index
    %81 = memref.load %arg1[%c13] : memref<100xf32, #tpu.memory_space<smem>>
    %c0_56 = arith.constant 0 : index
    %c0_57 = arith.constant 0 : index
    %c2_58 = arith.constant 2 : index
    %c3_59 = arith.constant 3 : index
    %82 = vector.load %arg7[%c0_56, %c0_57, %c2_58, %c3_59] : memref<1x4x20x20xf32, #tpu.memory_space<vmem>>, vector<1x1x16x16xf32>
    %83 = vector.shape_cast %82 : vector<1x1x16x16xf32> to vector<16x16xf32>
    %84 = vector.broadcast %81 : f32 to vector<16x16xf32>
    %85 = arith.mulf %84, %83 : vector<16x16xf32>
    %86 = arith.addf %80, %85 : vector<16x16xf32>
    %c14 = arith.constant 14 : index
    %87 = memref.load %arg1[%c14] : memref<100xf32, #tpu.memory_space<smem>>
    %c0_60 = arith.constant 0 : index
    %c0_61 = arith.constant 0 : index
    %c2_62 = arith.constant 2 : index
    %c4_63 = arith.constant 4 : index
    %88 = vector.load %arg7[%c0_60, %c0_61, %c2_62, %c4_63] : memref<1x4x20x20xf32, #tpu.memory_space<vmem>>, vector<1x1x16x16xf32>
    %89 = vector.shape_cast %88 : vector<1x1x16x16xf32> to vector<16x16xf32>
    %90 = vector.broadcast %87 : f32 to vector<16x16xf32>
    %91 = arith.mulf %90, %89 : vector<16x16xf32>
    %92 = arith.addf %86, %91 : vector<16x16xf32>
    %c15 = arith.constant 15 : index
    %93 = memref.load %arg1[%c15] : memref<100xf32, #tpu.memory_space<smem>>
    %c0_64 = arith.constant 0 : index
    %c0_65 = arith.constant 0 : index
    %c3_66 = arith.constant 3 : index
    %c0_67 = arith.constant 0 : index
    %94 = vector.load %arg7[%c0_64, %c0_65, %c3_66, %c0_67] : memref<1x4x20x20xf32, #tpu.memory_space<vmem>>, vector<1x1x16x16xf32>
    %95 = vector.shape_cast %94 : vector<1x1x16x16xf32> to vector<16x16xf32>
    %96 = vector.broadcast %93 : f32 to vector<16x16xf32>
    %97 = arith.mulf %96, %95 : vector<16x16xf32>
    %98 = arith.addf %92, %97 : vector<16x16xf32>
    %c16 = arith.constant 16 : index
    %99 = memref.load %arg1[%c16] : memref<100xf32, #tpu.memory_space<smem>>
    %c0_68 = arith.constant 0 : index
    %c0_69 = arith.constant 0 : index
    %c3_70 = arith.constant 3 : index
    %c1_71 = arith.constant 1 : index
    %100 = vector.load %arg7[%c0_68, %c0_69, %c3_70, %c1_71] : memref<1x4x20x20xf32, #tpu.memory_space<vmem>>, vector<1x1x16x16xf32>
    %101 = vector.shape_cast %100 : vector<1x1x16x16xf32> to vector<16x16xf32>
    %102 = vector.broadcast %99 : f32 to vector<16x16xf32>
    %103 = arith.mulf %102, %101 : vector<16x16xf32>
    %104 = arith.addf %98, %103 : vector<16x16xf32>
    %c17 = arith.constant 17 : index
    %105 = memref.load %arg1[%c17] : memref<100xf32, #tpu.memory_space<smem>>
    %c0_72 = arith.constant 0 : index
    %c0_73 = arith.constant 0 : index
    %c3_74 = arith.constant 3 : index
    %c2_75 = arith.constant 2 : index
    %106 = vector.load %arg7[%c0_72, %c0_73, %c3_74, %c2_75] : memref<1x4x20x20xf32, #tpu.memory_space<vmem>>, vector<1x1x16x16xf32>
    %107 = vector.shape_cast %106 : vector<1x1x16x16xf32> to vector<16x16xf32>
    %108 = vector.broadcast %105 : f32 to vector<16x16xf32>
    %109 = arith.mulf %108, %107 : vector<16x16xf32>
    %110 = arith.addf %104, %109 : vector<16x16xf32>
    %c18 = arith.constant 18 : index
    %111 = memref.load %arg1[%c18] : memref<100xf32, #tpu.memory_space<smem>>
    %c0_76 = arith.constant 0 : index
    %c0_77 = arith.constant 0 : index
    %c3_78 = arith.constant 3 : index
    %c3_79 = arith.constant 3 : index
    %112 = vector.load %arg7[%c0_76, %c0_77, %c3_78, %c3_79] : memref<1x4x20x20xf32, #tpu.memory_space<vmem>>, vector<1x1x16x16xf32>
    %113 = vector.shape_cast %112 : vector<1x1x16x16xf32> to vector<16x16xf32>
    %114 = vector.broadcast %111 : f32 to vector<16x16xf32>
    %115 = arith.mulf %114, %113 : vector<16x16xf32>
    %116 = arith.addf %110, %115 : vector<16x16xf32>
    %c19 = arith.constant 19 : index
    %117 = memref.load %arg1[%c19] : memref<100xf32, #tpu.memory_space<smem>>
    %c0_80 = arith.constant 0 : index
    %c0_81 = arith.constant 0 : index
    %c3_82 = arith.constant 3 : index
    %c4_83 = arith.constant 4 : index
    %118 = vector.load %arg7[%c0_80, %c0_81, %c3_82, %c4_83] : memref<1x4x20x20xf32, #tpu.memory_space<vmem>>, vector<1x1x16x16xf32>
    %119 = vector.shape_cast %118 : vector<1x1x16x16xf32> to vector<16x16xf32>
    %120 = vector.broadcast %117 : f32 to vector<16x16xf32>
    %121 = arith.mulf %120, %119 : vector<16x16xf32>
    %122 = arith.addf %116, %121 : vector<16x16xf32>
    %c20 = arith.constant 20 : index
    %123 = memref.load %arg1[%c20] : memref<100xf32, #tpu.memory_space<smem>>
    %c0_84 = arith.constant 0 : index
    %c0_85 = arith.constant 0 : index
    %c4_86 = arith.constant 4 : index
    %c0_87 = arith.constant 0 : index
    %124 = vector.load %arg7[%c0_84, %c0_85, %c4_86, %c0_87] : memref<1x4x20x20xf32, #tpu.memory_space<vmem>>, vector<1x1x16x16xf32>
    %125 = vector.shape_cast %124 : vector<1x1x16x16xf32> to vector<16x16xf32>
    %126 = vector.broadcast %123 : f32 to vector<16x16xf32>
    %127 = arith.mulf %126, %125 : vector<16x16xf32>
    %128 = arith.addf %122, %127 : vector<16x16xf32>
    %c21 = arith.constant 21 : index
    %129 = memref.load %arg1[%c21] : memref<100xf32, #tpu.memory_space<smem>>
    %c0_88 = arith.constant 0 : index
    %c0_89 = arith.constant 0 : index
    %c4_90 = arith.constant 4 : index
    %c1_91 = arith.constant 1 : index
    %130 = vector.load %arg7[%c0_88, %c0_89, %c4_90, %c1_91] : memref<1x4x20x20xf32, #tpu.memory_space<vmem>>, vector<1x1x16x16xf32>
    %131 = vector.shape_cast %130 : vector<1x1x16x16xf32> to vector<16x16xf32>
    %132 = vector.broadcast %129 : f32 to vector<16x16xf32>
    %133 = arith.mulf %132, %131 : vector<16x16xf32>
    %134 = arith.addf %128, %133 : vector<16x16xf32>
    %c22 = arith.constant 22 : index
    %135 = memref.load %arg1[%c22] : memref<100xf32, #tpu.memory_space<smem>>
    %c0_92 = arith.constant 0 : index
    %c0_93 = arith.constant 0 : index
    %c4_94 = arith.constant 4 : index
    %c2_95 = arith.constant 2 : index
    %136 = vector.load %arg7[%c0_92, %c0_93, %c4_94, %c2_95] : memref<1x4x20x20xf32, #tpu.memory_space<vmem>>, vector<1x1x16x16xf32>
    %137 = vector.shape_cast %136 : vector<1x1x16x16xf32> to vector<16x16xf32>
    %138 = vector.broadcast %135 : f32 to vector<16x16xf32>
    %139 = arith.mulf %138, %137 : vector<16x16xf32>
    %140 = arith.addf %134, %139 : vector<16x16xf32>
    %c23 = arith.constant 23 : index
    %141 = memref.load %arg1[%c23] : memref<100xf32, #tpu.memory_space<smem>>
    %c0_96 = arith.constant 0 : index
    %c0_97 = arith.constant 0 : index
    %c4_98 = arith.constant 4 : index
    %c3_99 = arith.constant 3 : index
    %142 = vector.load %arg7[%c0_96, %c0_97, %c4_98, %c3_99] : memref<1x4x20x20xf32, #tpu.memory_space<vmem>>, vector<1x1x16x16xf32>
    %143 = vector.shape_cast %142 : vector<1x1x16x16xf32> to vector<16x16xf32>
    %144 = vector.broadcast %141 : f32 to vector<16x16xf32>
    %145 = arith.mulf %144, %143 : vector<16x16xf32>
    %146 = arith.addf %140, %145 : vector<16x16xf32>
    %c24 = arith.constant 24 : index
    %147 = memref.load %arg1[%c24] : memref<100xf32, #tpu.memory_space<smem>>
    %c0_100 = arith.constant 0 : index
    %c0_101 = arith.constant 0 : index
    %c4_102 = arith.constant 4 : index
    %c4_103 = arith.constant 4 : index
    %148 = vector.load %arg7[%c0_100, %c0_101, %c4_102, %c4_103] : memref<1x4x20x20xf32, #tpu.memory_space<vmem>>, vector<1x1x16x16xf32>
    %149 = vector.shape_cast %148 : vector<1x1x16x16xf32> to vector<16x16xf32>
    %150 = vector.broadcast %147 : f32 to vector<16x16xf32>
    %151 = arith.mulf %150, %149 : vector<16x16xf32>
    %152 = arith.addf %146, %151 : vector<16x16xf32>
    %c0_104 = arith.constant 0 : index
    %153 = memref.load %arg2[%c0_104] : memref<4xf32, #tpu.memory_space<smem>>
    %154 = vector.broadcast %153 : f32 to vector<16x16xf32>
    %155 = arith.addf %152, %154 : vector<16x16xf32>
    %c0_105 = arith.constant 0 : index
    %c9_106 = arith.constant 9 : index
    %c9_107 = arith.constant 9 : index
    %156 = vector.load %arg9[%c0_105, %c9_106, %c9_107] : memref<4x34x34xf32, #tpu.memory_space<vmem>>, vector<1x16x16xf32>
    %157 = vector.shape_cast %156 : vector<1x16x16xf32> to vector<16x16xf32>
    %158 = vector.shape_cast %155 : vector<16x16xf32> to vector<1x16x16xf32>
    tpu.vector_store %arg9[%c0_105, %c9_106, %c9_107], %158 {strides = array<i32>} : memref<4x34x34xf32, #tpu.memory_space<vmem>>, vector<1x16x16xf32>,
    %cst_108 = arith.constant 0.000000e+00 : f32
    %159 = vector.broadcast %cst_108 : f32 to vector<16x16xf32>
    %c25 = arith.constant 25 : index
    %160 = memref.load %arg1[%c25] : memref<100xf32, #tpu.memory_space<smem>>
    %c0_109 = arith.constant 0 : index
    %c1_110 = arith.constant 1 : index
    %c0_111 = arith.constant 0 : index
    %c0_112 = arith.constant 0 : index
    %161 = vector.load %arg7[%c0_109, %c1_110, %c0_111, %c0_112] : memref<1x4x20x20xf32, #tpu.memory_space<vmem>>, vector<1x1x16x16xf32>
    %162 = vector.shape_cast %161 : vector<1x1x16x16xf32> to vector<16x16xf32>
    %163 = vector.broadcast %160 : f32 to vector<16x16xf32>
    %164 = arith.mulf %163, %162 : vector<16x16xf32>
    %165 = arith.addf %159, %164 : vector<16x16xf32>
    %c26 = arith.constant 26 : index
    %166 = memref.load %arg1[%c26] : memref<100xf32, #tpu.memory_space<smem>>
    %c0_113 = arith.constant 0 : index
    %c1_114 = arith.constant 1 : index
    %c0_115 = arith.constant 0 : index
    %c1_116 = arith.constant 1 : index
    %167 = vector.load %arg7[%c0_113, %c1_114, %c0_115, %c1_116] : memref<1x4x20x20xf32, #tpu.memory_space<vmem>>, vector<1x1x16x16xf32>
    %168 = vector.shape_cast %167 : vector<1x1x16x16xf32> to vector<16x16xf32>
    %169 = vector.broadcast %166 : f32 to vector<16x16xf32>
    %170 = arith.mulf %169, %168 : vector<16x16xf32>
    %171 = arith.addf %165, %170 : vector<16x16xf32>
    %c27 = arith.constant 27 : index
    %172 = memref.load %arg1[%c27] : memref<100xf32, #tpu.memory_space<smem>>
    %c0_117 = arith.constant 0 : index
    %c1_118 = arith.constant 1 : index
    %c0_119 = arith.constant 0 : index
    %c2_120 = arith.constant 2 : index
    %173 = vector.load %arg7[%c0_117, %c1_118, %c0_119, %c2_120] : memref<1x4x20x20xf32, #tpu.memory_space<vmem>>, vector<1x1x16x16xf32>
    %174 = vector.shape_cast %173 : vector<1x1x16x16xf32> to vector<16x16xf32>
    %175 = vector.broadcast %172 : f32 to vector<16x16xf32>
    %176 = arith.mulf %175, %174 : vector<16x16xf32>
    %177 = arith.addf %171, %176 : vector<16x16xf32>
    %c28 = arith.constant 28 : index
    %178 = memref.load %arg1[%c28] : memref<100xf32, #tpu.memory_space<smem>>
    %c0_121 = arith.constant 0 : index
    %c1_122 = arith.constant 1 : index
    %c0_123 = arith.constant 0 : index
    %c3_124 = arith.constant 3 : index
    %179 = vector.load %arg7[%c0_121, %c1_122, %c0_123, %c3_124] : memref<1x4x20x20xf32, #tpu.memory_space<vmem>>, vector<1x1x16x16xf32>
    %180 = vector.shape_cast %179 : vector<1x1x16x16xf32> to vector<16x16xf32>
    %181 = vector.broadcast %178 : f32 to vector<16x16xf32>
    %182 = arith.mulf %181, %180 : vector<16x16xf32>
    %183 = arith.addf %177, %182 : vector<16x16xf32>
    %c29 = arith.constant 29 : index
    %184 = memref.load %arg1[%c29] : memref<100xf32, #tpu.memory_space<smem>>
    %c0_125 = arith.constant 0 : index
    %c1_126 = arith.constant 1 : index
    %c0_127 = arith.constant 0 : index
    %c4_128 = arith.constant 4 : index
    %185 = vector.load %arg7[%c0_125, %c1_126, %c0_127, %c4_128] : memref<1x4x20x20xf32, #tpu.memory_space<vmem>>, vector<1x1x16x16xf32>
    %186 = vector.shape_cast %185 : vector<1x1x16x16xf32> to vector<16x16xf32>
    %187 = vector.broadcast %184 : f32 to vector<16x16xf32>
    %188 = arith.mulf %187, %186 : vector<16x16xf32>
    %189 = arith.addf %183, %188 : vector<16x16xf32>
    %c30 = arith.constant 30 : index
    %190 = memref.load %arg1[%c30] : memref<100xf32, #tpu.memory_space<smem>>
    %c0_129 = arith.constant 0 : index
    %c1_130 = arith.constant 1 : index
    %c1_131 = arith.constant 1 : index
    %c0_132 = arith.constant 0 : index
    %191 = vector.load %arg7[%c0_129, %c1_130, %c1_131, %c0_132] : memref<1x4x20x20xf32, #tpu.memory_space<vmem>>, vector<1x1x16x16xf32>
    %192 = vector.shape_cast %191 : vector<1x1x16x16xf32> to vector<16x16xf32>
    %193 = vector.broadcast %190 : f32 to vector<16x16xf32>
    %194 = arith.mulf %193, %192 : vector<16x16xf32>
    %195 = arith.addf %189, %194 : vector<16x16xf32>
    %c31 = arith.constant 31 : index
    %196 = memref.load %arg1[%c31] : memref<100xf32, #tpu.memory_space<smem>>
    %c0_133 = arith.constant 0 : index
    %c1_134 = arith.constant 1 : index
    %c1_135 = arith.constant 1 : index
    %c1_136 = arith.constant 1 : index
    %197 = vector.load %arg7[%c0_133, %c1_134, %c1_135, %c1_136] : memref<1x4x20x20xf32, #tpu.memory_space<vmem>>, vector<1x1x16x16xf32>
    %198 = vector.shape_cast %197 : vector<1x1x16x16xf32> to vector<16x16xf32>
    %199 = vector.broadcast %196 : f32 to vector<16x16xf32>
    %200 = arith.mulf %199, %198 : vector<16x16xf32>
    %201 = arith.addf %195, %200 : vector<16x16xf32>
    %c32 = arith.constant 32 : index
    %202 = memref.load %arg1[%c32] : memref<100xf32, #tpu.memory_space<smem>>
    %c0_137 = arith.constant 0 : index
    %c1_138 = arith.constant 1 : index
    %c1_139 = arith.constant 1 : index
    %c2_140 = arith.constant 2 : index
    %203 = vector.load %arg7[%c0_137, %c1_138, %c1_139, %c2_140] : memref<1x4x20x20xf32, #tpu.memory_space<vmem>>, vector<1x1x16x16xf32>
    %204 = vector.shape_cast %203 : vector<1x1x16x16xf32> to vector<16x16xf32>
    %205 = vector.broadcast %202 : f32 to vector<16x16xf32>
    %206 = arith.mulf %205, %204 : vector<16x16xf32>
    %207 = arith.addf %201, %206 : vector<16x16xf32>
    %c33 = arith.constant 33 : index
    %208 = memref.load %arg1[%c33] : memref<100xf32, #tpu.memory_space<smem>>
    %c0_141 = arith.constant 0 : index
    %c1_142 = arith.constant 1 : index
    %c1_143 = arith.constant 1 : index
    %c3_144 = arith.constant 3 : index
    %209 = vector.load %arg7[%c0_141, %c1_142, %c1_143, %c3_144] : memref<1x4x20x20xf32, #tpu.memory_space<vmem>>, vector<1x1x16x16xf32>
    %210 = vector.shape_cast %209 : vector<1x1x16x16xf32> to vector<16x16xf32>
    %211 = vector.broadcast %208 : f32 to vector<16x16xf32>
    %212 = arith.mulf %211, %210 : vector<16x16xf32>
    %213 = arith.addf %207, %212 : vector<16x16xf32>
    %c34 = arith.constant 34 : index
    %214 = memref.load %arg1[%c34] : memref<100xf32, #tpu.memory_space<smem>>
    %c0_145 = arith.constant 0 : index
    %c1_146 = arith.constant 1 : index
    %c1_147 = arith.constant 1 : index
    %c4_148 = arith.constant 4 : index
    %215 = vector.load %arg7[%c0_145, %c1_146, %c1_147, %c4_148] : memref<1x4x20x20xf32, #tpu.memory_space<vmem>>, vector<1x1x16x16xf32>
    %216 = vector.shape_cast %215 : vector<1x1x16x16xf32> to vector<16x16xf32>
    %217 = vector.broadcast %214 : f32 to vector<16x16xf32>
    %218 = arith.mulf %217, %216 : vector<16x16xf32>
    %219 = arith.addf %213, %218 : vector<16x16xf32>
    %c35 = arith.constant 35 : index
    %220 = memref.load %arg1[%c35] : memref<100xf32, #tpu.memory_space<smem>>
    %c0_149 = arith.constant 0 : index
    %c1_150 = arith.constant 1 : index
    %c2_151 = arith.constant 2 : index
    %c0_152 = arith.constant 0 : index
    %221 = vector.load %arg7[%c0_149, %c1_150, %c2_151, %c0_152] : memref<1x4x20x20xf32, #tpu.memory_space<vmem>>, vector<1x1x16x16xf32>
    %222 = vector.shape_cast %221 : vector<1x1x16x16xf32> to vector<16x16xf32>
    %223 = vector.broadcast %220 : f32 to vector<16x16xf32>
    %224 = arith.mulf %223, %222 : vector<16x16xf32>
    %225 = arith.addf %219, %224 : vector<16x16xf32>
    %c36 = arith.constant 36 : index
    %226 = memref.load %arg1[%c36] : memref<100xf32, #tpu.memory_space<smem>>
    %c0_153 = arith.constant 0 : index
    %c1_154 = arith.constant 1 : index
    %c2_155 = arith.constant 2 : index
    %c1_156 = arith.constant 1 : index
    %227 = vector.load %arg7[%c0_153, %c1_154, %c2_155, %c1_156] : memref<1x4x20x20xf32, #tpu.memory_space<vmem>>, vector<1x1x16x16xf32>
    %228 = vector.shape_cast %227 : vector<1x1x16x16xf32> to vector<16x16xf32>
    %229 = vector.broadcast %226 : f32 to vector<16x16xf32>
    %230 = arith.mulf %229, %228 : vector<16x16xf32>
    %231 = arith.addf %225, %230 : vector<16x16xf32>
    %c37 = arith.constant 37 : index
    %232 = memref.load %arg1[%c37] : memref<100xf32, #tpu.memory_space<smem>>
    %c0_157 = arith.constant 0 : index
    %c1_158 = arith.constant 1 : index
    %c2_159 = arith.constant 2 : index
    %c2_160 = arith.constant 2 : index
    %233 = vector.load %arg7[%c0_157, %c1_158, %c2_159, %c2_160] : memref<1x4x20x20xf32, #tpu.memory_space<vmem>>, vector<1x1x16x16xf32>
    %234 = vector.shape_cast %233 : vector<1x1x16x16xf32> to vector<16x16xf32>
    %235 = vector.broadcast %232 : f32 to vector<16x16xf32>
    %236 = arith.mulf %235, %234 : vector<16x16xf32>
    %237 = arith.addf %231, %236 : vector<16x16xf32>
    %c38 = arith.constant 38 : index
    %238 = memref.load %arg1[%c38] : memref<100xf32, #tpu.memory_space<smem>>
    %c0_161 = arith.constant 0 : index
    %c1_162 = arith.constant 1 : index
    %c2_163 = arith.constant 2 : index
    %c3_164 = arith.constant 3 : index
    %239 = vector.load %arg7[%c0_161, %c1_162, %c2_163, %c3_164] : memref<1x4x20x20xf32, #tpu.memory_space<vmem>>, vector<1x1x16x16xf32>
    %240 = vector.shape_cast %239 : vector<1x1x16x16xf32> to vector<16x16xf32>
    %241 = vector.broadcast %238 : f32 to vector<16x16xf32>
    %242 = arith.mulf %241, %240 : vector<16x16xf32>
    %243 = arith.addf %237, %242 : vector<16x16xf32>
    %c39 = arith.constant 39 : index
    %244 = memref.load %arg1[%c39] : memref<100xf32, #tpu.memory_space<smem>>
    %c0_165 = arith.constant 0 : index
    %c1_166 = arith.constant 1 : index
    %c2_167 = arith.constant 2 : index
    %c4_168 = arith.constant 4 : index
    %245 = vector.load %arg7[%c0_165, %c1_166, %c2_167, %c4_168] : memref<1x4x20x20xf32, #tpu.memory_space<vmem>>, vector<1x1x16x16xf32>
    %246 = vector.shape_cast %245 : vector<1x1x16x16xf32> to vector<16x16xf32>
    %247 = vector.broadcast %244 : f32 to vector<16x16xf32>
    %248 = arith.mulf %247, %246 : vector<16x16xf32>
    %249 = arith.addf %243, %248 : vector<16x16xf32>
    %c40 = arith.constant 40 : index
    %250 = memref.load %arg1[%c40] : memref<100xf32, #tpu.memory_space<smem>>
    %c0_169 = arith.constant 0 : index
    %c1_170 = arith.constant 1 : index
    %c3_171 = arith.constant 3 : index
    %c0_172 = arith.constant 0 : index
    %251 = vector.load %arg7[%c0_169, %c1_170, %c3_171, %c0_172] : memref<1x4x20x20xf32, #tpu.memory_space<vmem>>, vector<1x1x16x16xf32>
    %252 = vector.shape_cast %251 : vector<1x1x16x16xf32> to vector<16x16xf32>
    %253 = vector.broadcast %250 : f32 to vector<16x16xf32>
    %254 = arith.mulf %253, %252 : vector<16x16xf32>
    %255 = arith.addf %249, %254 : vector<16x16xf32>
    %c41 = arith.constant 41 : index
    %256 = memref.load %arg1[%c41] : memref<100xf32, #tpu.memory_space<smem>>
    %c0_173 = arith.constant 0 : index
    %c1_174 = arith.constant 1 : index
    %c3_175 = arith.constant 3 : index
    %c1_176 = arith.constant 1 : index
    %257 = vector.load %arg7[%c0_173, %c1_174, %c3_175, %c1_176] : memref<1x4x20x20xf32, #tpu.memory_space<vmem>>, vector<1x1x16x16xf32>
    %258 = vector.shape_cast %257 : vector<1x1x16x16xf32> to vector<16x16xf32>
    %259 = vector.broadcast %256 : f32 to vector<16x16xf32>
    %260 = arith.mulf %259, %258 : vector<16x16xf32>
    %261 = arith.addf %255, %260 : vector<16x16xf32>
    %c42 = arith.constant 42 : index
    %262 = memref.load %arg1[%c42] : memref<100xf32, #tpu.memory_space<smem>>
    %c0_177 = arith.constant 0 : index
    %c1_178 = arith.constant 1 : index
    %c3_179 = arith.constant 3 : index
    %c2_180 = arith.constant 2 : index
    %263 = vector.load %arg7[%c0_177, %c1_178, %c3_179, %c2_180] : memref<1x4x20x20xf32, #tpu.memory_space<vmem>>, vector<1x1x16x16xf32>
    %264 = vector.shape_cast %263 : vector<1x1x16x16xf32> to vector<16x16xf32>
    %265 = vector.broadcast %262 : f32 to vector<16x16xf32>
    %266 = arith.mulf %265, %264 : vector<16x16xf32>
    %267 = arith.addf %261, %266 : vector<16x16xf32>
    %c43 = arith.constant 43 : index
    %268 = memref.load %arg1[%c43] : memref<100xf32, #tpu.memory_space<smem>>
    %c0_181 = arith.constant 0 : index
    %c1_182 = arith.constant 1 : index
    %c3_183 = arith.constant 3 : index
    %c3_184 = arith.constant 3 : index
    %269 = vector.load %arg7[%c0_181, %c1_182, %c3_183, %c3_184] : memref<1x4x20x20xf32, #tpu.memory_space<vmem>>, vector<1x1x16x16xf32>
    %270 = vector.shape_cast %269 : vector<1x1x16x16xf32> to vector<16x16xf32>
    %271 = vector.broadcast %268 : f32 to vector<16x16xf32>
    %272 = arith.mulf %271, %270 : vector<16x16xf32>
    %273 = arith.addf %267, %272 : vector<16x16xf32>
    %c44 = arith.constant 44 : index
    %274 = memref.load %arg1[%c44] : memref<100xf32, #tpu.memory_space<smem>>
    %c0_185 = arith.constant 0 : index
    %c1_186 = arith.constant 1 : index
    %c3_187 = arith.constant 3 : index
    %c4_188 = arith.constant 4 : index
    %275 = vector.load %arg7[%c0_185, %c1_186, %c3_187, %c4_188] : memref<1x4x20x20xf32, #tpu.memory_space<vmem>>, vector<1x1x16x16xf32>
    %276 = vector.shape_cast %275 : vector<1x1x16x16xf32> to vector<16x16xf32>
    %277 = vector.broadcast %274 : f32 to vector<16x16xf32>
    %278 = arith.mulf %277, %276 : vector<16x16xf32>
    %279 = arith.addf %273, %278 : vector<16x16xf32>
    %c45 = arith.constant 45 : index
    %280 = memref.load %arg1[%c45] : memref<100xf32, #tpu.memory_space<smem>>
    %c0_189 = arith.constant 0 : index
    %c1_190 = arith.constant 1 : index
    %c4_191 = arith.constant 4 : index
    %c0_192 = arith.constant 0 : index
    %281 = vector.load %arg7[%c0_189, %c1_190, %c4_191, %c0_192] : memref<1x4x20x20xf32, #tpu.memory_space<vmem>>, vector<1x1x16x16xf32>
    %282 = vector.shape_cast %281 : vector<1x1x16x16xf32> to vector<16x16xf32>
    %283 = vector.broadcast %280 : f32 to vector<16x16xf32>
    %284 = arith.mulf %283, %282 : vector<16x16xf32>
    %285 = arith.addf %279, %284 : vector<16x16xf32>
    %c46 = arith.constant 46 : index
    %286 = memref.load %arg1[%c46] : memref<100xf32, #tpu.memory_space<smem>>
    %c0_193 = arith.constant 0 : index
    %c1_194 = arith.constant 1 : index
    %c4_195 = arith.constant 4 : index
    %c1_196 = arith.constant 1 : index
    %287 = vector.load %arg7[%c0_193, %c1_194, %c4_195, %c1_196] : memref<1x4x20x20xf32, #tpu.memory_space<vmem>>, vector<1x1x16x16xf32>
    %288 = vector.shape_cast %287 : vector<1x1x16x16xf32> to vector<16x16xf32>
    %289 = vector.broadcast %286 : f32 to vector<16x16xf32>
    %290 = arith.mulf %289, %288 : vector<16x16xf32>
    %291 = arith.addf %285, %290 : vector<16x16xf32>
    %c47 = arith.constant 47 : index
    %292 = memref.load %arg1[%c47] : memref<100xf32, #tpu.memory_space<smem>>
    %c0_197 = arith.constant 0 : index
    %c1_198 = arith.constant 1 : index
    %c4_199 = arith.constant 4 : index
    %c2_200 = arith.constant 2 : index
    %293 = vector.load %arg7[%c0_197, %c1_198, %c4_199, %c2_200] : memref<1x4x20x20xf32, #tpu.memory_space<vmem>>, vector<1x1x16x16xf32>
    %294 = vector.shape_cast %293 : vector<1x1x16x16xf32> to vector<16x16xf32>
    %295 = vector.broadcast %292 : f32 to vector<16x16xf32>
    %296 = arith.mulf %295, %294 : vector<16x16xf32>
    %297 = arith.addf %291, %296 : vector<16x16xf32>
    %c48 = arith.constant 48 : index
    %298 = memref.load %arg1[%c48] : memref<100xf32, #tpu.memory_space<smem>>
    %c0_201 = arith.constant 0 : index
    %c1_202 = arith.constant 1 : index
    %c4_203 = arith.constant 4 : index
    %c3_204 = arith.constant 3 : index
    %299 = vector.load %arg7[%c0_201, %c1_202, %c4_203, %c3_204] : memref<1x4x20x20xf32, #tpu.memory_space<vmem>>, vector<1x1x16x16xf32>
    %300 = vector.shape_cast %299 : vector<1x1x16x16xf32> to vector<16x16xf32>
    %301 = vector.broadcast %298 : f32 to vector<16x16xf32>
    %302 = arith.mulf %301, %300 : vector<16x16xf32>
    %303 = arith.addf %297, %302 : vector<16x16xf32>
    %c49 = arith.constant 49 : index
    %304 = memref.load %arg1[%c49] : memref<100xf32, #tpu.memory_space<smem>>
    %c0_205 = arith.constant 0 : index
    %c1_206 = arith.constant 1 : index
    %c4_207 = arith.constant 4 : index
    %c4_208 = arith.constant 4 : index
    %305 = vector.load %arg7[%c0_205, %c1_206, %c4_207, %c4_208] : memref<1x4x20x20xf32, #tpu.memory_space<vmem>>, vector<1x1x16x16xf32>
    %306 = vector.shape_cast %305 : vector<1x1x16x16xf32> to vector<16x16xf32>
    %307 = vector.broadcast %304 : f32 to vector<16x16xf32>
    %308 = arith.mulf %307, %306 : vector<16x16xf32>
    %309 = arith.addf %303, %308 : vector<16x16xf32>
    %c1_209 = arith.constant 1 : index
    %310 = memref.load %arg2[%c1_209] : memref<4xf32, #tpu.memory_space<smem>>
    %311 = vector.broadcast %310 : f32 to vector<16x16xf32>
    %312 = arith.addf %309, %311 : vector<16x16xf32>
    %c1_210 = arith.constant 1 : index
    %c9_211 = arith.constant 9 : index
    %c9_212 = arith.constant 9 : index
    %313 = vector.load %arg9[%c1_210, %c9_211, %c9_212] : memref<4x34x34xf32, #tpu.memory_space<vmem>>, vector<1x16x16xf32>
    %314 = vector.shape_cast %313 : vector<1x16x16xf32> to vector<16x16xf32>
    %315 = vector.shape_cast %312 : vector<16x16xf32> to vector<1x16x16xf32>
    tpu.vector_store %arg9[%c1_210, %c9_211, %c9_212], %315 {strides = array<i32>} : memref<4x34x34xf32, #tpu.memory_space<vmem>>, vector<1x16x16xf32>,
    %cst_213 = arith.constant 0.000000e+00 : f32
    %316 = vector.broadcast %cst_213 : f32 to vector<16x16xf32>
    %c50 = arith.constant 50 : index
    %317 = memref.load %arg1[%c50] : memref<100xf32, #tpu.memory_space<smem>>
    %c0_214 = arith.constant 0 : index
    %c2_215 = arith.constant 2 : index
    %c0_216 = arith.constant 0 : index
    %c0_217 = arith.constant 0 : index
    %318 = vector.load %arg7[%c0_214, %c2_215, %c0_216, %c0_217] : memref<1x4x20x20xf32, #tpu.memory_space<vmem>>, vector<1x1x16x16xf32>
    %319 = vector.shape_cast %318 : vector<1x1x16x16xf32> to vector<16x16xf32>
    %320 = vector.broadcast %317 : f32 to vector<16x16xf32>
    %321 = arith.mulf %320, %319 : vector<16x16xf32>
    %322 = arith.addf %316, %321 : vector<16x16xf32>
    %c51 = arith.constant 51 : index
    %323 = memref.load %arg1[%c51] : memref<100xf32, #tpu.memory_space<smem>>
    %c0_218 = arith.constant 0 : index
    %c2_219 = arith.constant 2 : index
    %c0_220 = arith.constant 0 : index
    %c1_221 = arith.constant 1 : index
    %324 = vector.load %arg7[%c0_218, %c2_219, %c0_220, %c1_221] : memref<1x4x20x20xf32, #tpu.memory_space<vmem>>, vector<1x1x16x16xf32>
    %325 = vector.shape_cast %324 : vector<1x1x16x16xf32> to vector<16x16xf32>
    %326 = vector.broadcast %323 : f32 to vector<16x16xf32>
    %327 = arith.mulf %326, %325 : vector<16x16xf32>
    %328 = arith.addf %322, %327 : vector<16x16xf32>
    %c52 = arith.constant 52 : index
    %329 = memref.load %arg1[%c52] : memref<100xf32, #tpu.memory_space<smem>>
    %c0_222 = arith.constant 0 : index
    %c2_223 = arith.constant 2 : index
    %c0_224 = arith.constant 0 : index
    %c2_225 = arith.constant 2 : index
    %330 = vector.load %arg7[%c0_222, %c2_223, %c0_224, %c2_225] : memref<1x4x20x20xf32, #tpu.memory_space<vmem>>, vector<1x1x16x16xf32>
    %331 = vector.shape_cast %330 : vector<1x1x16x16xf32> to vector<16x16xf32>
    %332 = vector.broadcast %329 : f32 to vector<16x16xf32>
    %333 = arith.mulf %332, %331 : vector<16x16xf32>
    %334 = arith.addf %328, %333 : vector<16x16xf32>
    %c53 = arith.constant 53 : index
    %335 = memref.load %arg1[%c53] : memref<100xf32, #tpu.memory_space<smem>>
    %c0_226 = arith.constant 0 : index
    %c2_227 = arith.constant 2 : index
    %c0_228 = arith.constant 0 : index
    %c3_229 = arith.constant 3 : index
    %336 = vector.load %arg7[%c0_226, %c2_227, %c0_228, %c3_229] : memref<1x4x20x20xf32, #tpu.memory_space<vmem>>, vector<1x1x16x16xf32>
    %337 = vector.shape_cast %336 : vector<1x1x16x16xf32> to vector<16x16xf32>
    %338 = vector.broadcast %335 : f32 to vector<16x16xf32>
    %339 = arith.mulf %338, %337 : vector<16x16xf32>
    %340 = arith.addf %334, %339 : vector<16x16xf32>
    %c54 = arith.constant 54 : index
    %341 = memref.load %arg1[%c54] : memref<100xf32, #tpu.memory_space<smem>>
    %c0_230 = arith.constant 0 : index
    %c2_231 = arith.constant 2 : index
    %c0_232 = arith.constant 0 : index
    %c4_233 = arith.constant 4 : index
    %342 = vector.load %arg7[%c0_230, %c2_231, %c0_232, %c4_233] : memref<1x4x20x20xf32, #tpu.memory_space<vmem>>, vector<1x1x16x16xf32>
    %343 = vector.shape_cast %342 : vector<1x1x16x16xf32> to vector<16x16xf32>
    %344 = vector.broadcast %341 : f32 to vector<16x16xf32>
    %345 = arith.mulf %344, %343 : vector<16x16xf32>
    %346 = arith.addf %340, %345 : vector<16x16xf32>
    %c55 = arith.constant 55 : index
    %347 = memref.load %arg1[%c55] : memref<100xf32, #tpu.memory_space<smem>>
    %c0_234 = arith.constant 0 : index
    %c2_235 = arith.constant 2 : index
    %c1_236 = arith.constant 1 : index
    %c0_237 = arith.constant 0 : index
    %348 = vector.load %arg7[%c0_234, %c2_235, %c1_236, %c0_237] : memref<1x4x20x20xf32, #tpu.memory_space<vmem>>, vector<1x1x16x16xf32>
    %349 = vector.shape_cast %348 : vector<1x1x16x16xf32> to vector<16x16xf32>
    %350 = vector.broadcast %347 : f32 to vector<16x16xf32>
    %351 = arith.mulf %350, %349 : vector<16x16xf32>
    %352 = arith.addf %346, %351 : vector<16x16xf32>
    %c56 = arith.constant 56 : index
    %353 = memref.load %arg1[%c56] : memref<100xf32, #tpu.memory_space<smem>>
    %c0_238 = arith.constant 0 : index
    %c2_239 = arith.constant 2 : index
    %c1_240 = arith.constant 1 : index
    %c1_241 = arith.constant 1 : index
    %354 = vector.load %arg7[%c0_238, %c2_239, %c1_240, %c1_241] : memref<1x4x20x20xf32, #tpu.memory_space<vmem>>, vector<1x1x16x16xf32>
    %355 = vector.shape_cast %354 : vector<1x1x16x16xf32> to vector<16x16xf32>
    %356 = vector.broadcast %353 : f32 to vector<16x16xf32>
    %357 = arith.mulf %356, %355 : vector<16x16xf32>
    %358 = arith.addf %352, %357 : vector<16x16xf32>
    %c57 = arith.constant 57 : index
    %359 = memref.load %arg1[%c57] : memref<100xf32, #tpu.memory_space<smem>>
    %c0_242 = arith.constant 0 : index
    %c2_243 = arith.constant 2 : index
    %c1_244 = arith.constant 1 : index
    %c2_245 = arith.constant 2 : index
    %360 = vector.load %arg7[%c0_242, %c2_243, %c1_244, %c2_245] : memref<1x4x20x20xf32, #tpu.memory_space<vmem>>, vector<1x1x16x16xf32>
    %361 = vector.shape_cast %360 : vector<1x1x16x16xf32> to vector<16x16xf32>
    %362 = vector.broadcast %359 : f32 to vector<16x16xf32>
    %363 = arith.mulf %362, %361 : vector<16x16xf32>
    %364 = arith.addf %358, %363 : vector<16x16xf32>
    %c58 = arith.constant 58 : index
    %365 = memref.load %arg1[%c58] : memref<100xf32, #tpu.memory_space<smem>>
    %c0_246 = arith.constant 0 : index
    %c2_247 = arith.constant 2 : index
    %c1_248 = arith.constant 1 : index
    %c3_249 = arith.constant 3 : index
    %366 = vector.load %arg7[%c0_246, %c2_247, %c1_248, %c3_249] : memref<1x4x20x20xf32, #tpu.memory_space<vmem>>, vector<1x1x16x16xf32>
    %367 = vector.shape_cast %366 : vector<1x1x16x16xf32> to vector<16x16xf32>
    %368 = vector.broadcast %365 : f32 to vector<16x16xf32>
    %369 = arith.mulf %368, %367 : vector<16x16xf32>
    %370 = arith.addf %364, %369 : vector<16x16xf32>
    %c59 = arith.constant 59 : index
    %371 = memref.load %arg1[%c59] : memref<100xf32, #tpu.memory_space<smem>>
    %c0_250 = arith.constant 0 : index
    %c2_251 = arith.constant 2 : index
    %c1_252 = arith.constant 1 : index
    %c4_253 = arith.constant 4 : index
    %372 = vector.load %arg7[%c0_250, %c2_251, %c1_252, %c4_253] : memref<1x4x20x20xf32, #tpu.memory_space<vmem>>, vector<1x1x16x16xf32>
    %373 = vector.shape_cast %372 : vector<1x1x16x16xf32> to vector<16x16xf32>
    %374 = vector.broadcast %371 : f32 to vector<16x16xf32>
    %375 = arith.mulf %374, %373 : vector<16x16xf32>
    %376 = arith.addf %370, %375 : vector<16x16xf32>
    %c60 = arith.constant 60 : index
    %377 = memref.load %arg1[%c60] : memref<100xf32, #tpu.memory_space<smem>>
    %c0_254 = arith.constant 0 : index
    %c2_255 = arith.constant 2 : index
    %c2_256 = arith.constant 2 : index
    %c0_257 = arith.constant 0 : index
    %378 = vector.load %arg7[%c0_254, %c2_255, %c2_256, %c0_257] : memref<1x4x20x20xf32, #tpu.memory_space<vmem>>, vector<1x1x16x16xf32>
    %379 = vector.shape_cast %378 : vector<1x1x16x16xf32> to vector<16x16xf32>
    %380 = vector.broadcast %377 : f32 to vector<16x16xf32>
    %381 = arith.mulf %380, %379 : vector<16x16xf32>
    %382 = arith.addf %376, %381 : vector<16x16xf32>
    %c61 = arith.constant 61 : index
    %383 = memref.load %arg1[%c61] : memref<100xf32, #tpu.memory_space<smem>>
    %c0_258 = arith.constant 0 : index
    %c2_259 = arith.constant 2 : index
    %c2_260 = arith.constant 2 : index
    %c1_261 = arith.constant 1 : index
    %384 = vector.load %arg7[%c0_258, %c2_259, %c2_260, %c1_261] : memref<1x4x20x20xf32, #tpu.memory_space<vmem>>, vector<1x1x16x16xf32>
    %385 = vector.shape_cast %384 : vector<1x1x16x16xf32> to vector<16x16xf32>
    %386 = vector.broadcast %383 : f32 to vector<16x16xf32>
    %387 = arith.mulf %386, %385 : vector<16x16xf32>
    %388 = arith.addf %382, %387 : vector<16x16xf32>
    %c62 = arith.constant 62 : index
    %389 = memref.load %arg1[%c62] : memref<100xf32, #tpu.memory_space<smem>>
    %c0_262 = arith.constant 0 : index
    %c2_263 = arith.constant 2 : index
    %c2_264 = arith.constant 2 : index
    %c2_265 = arith.constant 2 : index
    %390 = vector.load %arg7[%c0_262, %c2_263, %c2_264, %c2_265] : memref<1x4x20x20xf32, #tpu.memory_space<vmem>>, vector<1x1x16x16xf32>
    %391 = vector.shape_cast %390 : vector<1x1x16x16xf32> to vector<16x16xf32>
    %392 = vector.broadcast %389 : f32 to vector<16x16xf32>
    %393 = arith.mulf %392, %391 : vector<16x16xf32>
    %394 = arith.addf %388, %393 : vector<16x16xf32>
    %c63 = arith.constant 63 : index
    %395 = memref.load %arg1[%c63] : memref<100xf32, #tpu.memory_space<smem>>
    %c0_266 = arith.constant 0 : index
    %c2_267 = arith.constant 2 : index
    %c2_268 = arith.constant 2 : index
    %c3_269 = arith.constant 3 : index
    %396 = vector.load %arg7[%c0_266, %c2_267, %c2_268, %c3_269] : memref<1x4x20x20xf32, #tpu.memory_space<vmem>>, vector<1x1x16x16xf32>
    %397 = vector.shape_cast %396 : vector<1x1x16x16xf32> to vector<16x16xf32>
    %398 = vector.broadcast %395 : f32 to vector<16x16xf32>
    %399 = arith.mulf %398, %397 : vector<16x16xf32>
    %400 = arith.addf %394, %399 : vector<16x16xf32>
    %c64 = arith.constant 64 : index
    %401 = memref.load %arg1[%c64] : memref<100xf32, #tpu.memory_space<smem>>
    %c0_270 = arith.constant 0 : index
    %c2_271 = arith.constant 2 : index
    %c2_272 = arith.constant 2 : index
    %c4_273 = arith.constant 4 : index
    %402 = vector.load %arg7[%c0_270, %c2_271, %c2_272, %c4_273] : memref<1x4x20x20xf32, #tpu.memory_space<vmem>>, vector<1x1x16x16xf32>
    %403 = vector.shape_cast %402 : vector<1x1x16x16xf32> to vector<16x16xf32>
    %404 = vector.broadcast %401 : f32 to vector<16x16xf32>
    %405 = arith.mulf %404, %403 : vector<16x16xf32>
    %406 = arith.addf %400, %405 : vector<16x16xf32>
    %c65 = arith.constant 65 : index
    %407 = memref.load %arg1[%c65] : memref<100xf32, #tpu.memory_space<smem>>
    %c0_274 = arith.constant 0 : index
    %c2_275 = arith.constant 2 : index
    %c3_276 = arith.constant 3 : index
    %c0_277 = arith.constant 0 : index
    %408 = vector.load %arg7[%c0_274, %c2_275, %c3_276, %c0_277] : memref<1x4x20x20xf32, #tpu.memory_space<vmem>>, vector<1x1x16x16xf32>
    %409 = vector.shape_cast %408 : vector<1x1x16x16xf32> to vector<16x16xf32>
    %410 = vector.broadcast %407 : f32 to vector<16x16xf32>
    %411 = arith.mulf %410, %409 : vector<16x16xf32>
    %412 = arith.addf %406, %411 : vector<16x16xf32>
    %c66 = arith.constant 66 : index
    %413 = memref.load %arg1[%c66] : memref<100xf32, #tpu.memory_space<smem>>
    %c0_278 = arith.constant 0 : index
    %c2_279 = arith.constant 2 : index
    %c3_280 = arith.constant 3 : index
    %c1_281 = arith.constant 1 : index
    %414 = vector.load %arg7[%c0_278, %c2_279, %c3_280, %c1_281] : memref<1x4x20x20xf32, #tpu.memory_space<vmem>>, vector<1x1x16x16xf32>
    %415 = vector.shape_cast %414 : vector<1x1x16x16xf32> to vector<16x16xf32>
    %416 = vector.broadcast %413 : f32 to vector<16x16xf32>
    %417 = arith.mulf %416, %415 : vector<16x16xf32>
    %418 = arith.addf %412, %417 : vector<16x16xf32>
    %c67 = arith.constant 67 : index
    %419 = memref.load %arg1[%c67] : memref<100xf32, #tpu.memory_space<smem>>
    %c0_282 = arith.constant 0 : index
    %c2_283 = arith.constant 2 : index
    %c3_284 = arith.constant 3 : index
    %c2_285 = arith.constant 2 : index
    %420 = vector.load %arg7[%c0_282, %c2_283, %c3_284, %c2_285] : memref<1x4x20x20xf32, #tpu.memory_space<vmem>>, vector<1x1x16x16xf32>
    %421 = vector.shape_cast %420 : vector<1x1x16x16xf32> to vector<16x16xf32>
    %422 = vector.broadcast %419 : f32 to vector<16x16xf32>
    %423 = arith.mulf %422, %421 : vector<16x16xf32>
    %424 = arith.addf %418, %423 : vector<16x16xf32>
    %c68 = arith.constant 68 : index
    %425 = memref.load %arg1[%c68] : memref<100xf32, #tpu.memory_space<smem>>
    %c0_286 = arith.constant 0 : index
    %c2_287 = arith.constant 2 : index
    %c3_288 = arith.constant 3 : index
    %c3_289 = arith.constant 3 : index
    %426 = vector.load %arg7[%c0_286, %c2_287, %c3_288, %c3_289] : memref<1x4x20x20xf32, #tpu.memory_space<vmem>>, vector<1x1x16x16xf32>
    %427 = vector.shape_cast %426 : vector<1x1x16x16xf32> to vector<16x16xf32>
    %428 = vector.broadcast %425 : f32 to vector<16x16xf32>
    %429 = arith.mulf %428, %427 : vector<16x16xf32>
    %430 = arith.addf %424, %429 : vector<16x16xf32>
    %c69 = arith.constant 69 : index
    %431 = memref.load %arg1[%c69] : memref<100xf32, #tpu.memory_space<smem>>
    %c0_290 = arith.constant 0 : index
    %c2_291 = arith.constant 2 : index
    %c3_292 = arith.constant 3 : index
    %c4_293 = arith.constant 4 : index
    %432 = vector.load %arg7[%c0_290, %c2_291, %c3_292, %c4_293] : memref<1x4x20x20xf32, #tpu.memory_space<vmem>>, vector<1x1x16x16xf32>
    %433 = vector.shape_cast %432 : vector<1x1x16x16xf32> to vector<16x16xf32>
    %434 = vector.broadcast %431 : f32 to vector<16x16xf32>
    %435 = arith.mulf %434, %433 : vector<16x16xf32>
    %436 = arith.addf %430, %435 : vector<16x16xf32>
    %c70 = arith.constant 70 : index
    %437 = memref.load %arg1[%c70] : memref<100xf32, #tpu.memory_space<smem>>
    %c0_294 = arith.constant 0 : index
    %c2_295 = arith.constant 2 : index
    %c4_296 = arith.constant 4 : index
    %c0_297 = arith.constant 0 : index
    %438 = vector.load %arg7[%c0_294, %c2_295, %c4_296, %c0_297] : memref<1x4x20x20xf32, #tpu.memory_space<vmem>>, vector<1x1x16x16xf32>
    %439 = vector.shape_cast %438 : vector<1x1x16x16xf32> to vector<16x16xf32>
    %440 = vector.broadcast %437 : f32 to vector<16x16xf32>
    %441 = arith.mulf %440, %439 : vector<16x16xf32>
    %442 = arith.addf %436, %441 : vector<16x16xf32>
    %c71 = arith.constant 71 : index
    %443 = memref.load %arg1[%c71] : memref<100xf32, #tpu.memory_space<smem>>
    %c0_298 = arith.constant 0 : index
    %c2_299 = arith.constant 2 : index
    %c4_300 = arith.constant 4 : index
    %c1_301 = arith.constant 1 : index
    %444 = vector.load %arg7[%c0_298, %c2_299, %c4_300, %c1_301] : memref<1x4x20x20xf32, #tpu.memory_space<vmem>>, vector<1x1x16x16xf32>
    %445 = vector.shape_cast %444 : vector<1x1x16x16xf32> to vector<16x16xf32>
    %446 = vector.broadcast %443 : f32 to vector<16x16xf32>
    %447 = arith.mulf %446, %445 : vector<16x16xf32>
    %448 = arith.addf %442, %447 : vector<16x16xf32>
    %c72 = arith.constant 72 : index
    %449 = memref.load %arg1[%c72] : memref<100xf32, #tpu.memory_space<smem>>
    %c0_302 = arith.constant 0 : index
    %c2_303 = arith.constant 2 : index
    %c4_304 = arith.constant 4 : index
    %c2_305 = arith.constant 2 : index
    %450 = vector.load %arg7[%c0_302, %c2_303, %c4_304, %c2_305] : memref<1x4x20x20xf32, #tpu.memory_space<vmem>>, vector<1x1x16x16xf32>
    %451 = vector.shape_cast %450 : vector<1x1x16x16xf32> to vector<16x16xf32>
    %452 = vector.broadcast %449 : f32 to vector<16x16xf32>
    %453 = arith.mulf %452, %451 : vector<16x16xf32>
    %454 = arith.addf %448, %453 : vector<16x16xf32>
    %c73 = arith.constant 73 : index
    %455 = memref.load %arg1[%c73] : memref<100xf32, #tpu.memory_space<smem>>
    %c0_306 = arith.constant 0 : index
    %c2_307 = arith.constant 2 : index
    %c4_308 = arith.constant 4 : index
    %c3_309 = arith.constant 3 : index
    %456 = vector.load %arg7[%c0_306, %c2_307, %c4_308, %c3_309] : memref<1x4x20x20xf32, #tpu.memory_space<vmem>>, vector<1x1x16x16xf32>
    %457 = vector.shape_cast %456 : vector<1x1x16x16xf32> to vector<16x16xf32>
    %458 = vector.broadcast %455 : f32 to vector<16x16xf32>
    %459 = arith.mulf %458, %457 : vector<16x16xf32>
    %460 = arith.addf %454, %459 : vector<16x16xf32>
    %c74 = arith.constant 74 : index
    %461 = memref.load %arg1[%c74] : memref<100xf32, #tpu.memory_space<smem>>
    %c0_310 = arith.constant 0 : index
    %c2_311 = arith.constant 2 : index
    %c4_312 = arith.constant 4 : index
    %c4_313 = arith.constant 4 : index
    %462 = vector.load %arg7[%c0_310, %c2_311, %c4_312, %c4_313] : memref<1x4x20x20xf32, #tpu.memory_space<vmem>>, vector<1x1x16x16xf32>
    %463 = vector.shape_cast %462 : vector<1x1x16x16xf32> to vector<16x16xf32>
    %464 = vector.broadcast %461 : f32 to vector<16x16xf32>
    %465 = arith.mulf %464, %463 : vector<16x16xf32>
    %466 = arith.addf %460, %465 : vector<16x16xf32>
    %c2_314 = arith.constant 2 : index
    %467 = memref.load %arg2[%c2_314] : memref<4xf32, #tpu.memory_space<smem>>
    %468 = vector.broadcast %467 : f32 to vector<16x16xf32>
    %469 = arith.addf %466, %468 : vector<16x16xf32>
    %c2_315 = arith.constant 2 : index
    %c9_316 = arith.constant 9 : index
    %c9_317 = arith.constant 9 : index
    %470 = vector.load %arg9[%c2_315, %c9_316, %c9_317] : memref<4x34x34xf32, #tpu.memory_space<vmem>>, vector<1x16x16xf32>
    %471 = vector.shape_cast %470 : vector<1x16x16xf32> to vector<16x16xf32>
    %472 = vector.shape_cast %469 : vector<16x16xf32> to vector<1x16x16xf32>
    tpu.vector_store %arg9[%c2_315, %c9_316, %c9_317], %472 {strides = array<i32>} : memref<4x34x34xf32, #tpu.memory_space<vmem>>, vector<1x16x16xf32>,
    %cst_318 = arith.constant 0.000000e+00 : f32
    %473 = vector.broadcast %cst_318 : f32 to vector<16x16xf32>
    %c75 = arith.constant 75 : index
    %474 = memref.load %arg1[%c75] : memref<100xf32, #tpu.memory_space<smem>>
    %c0_319 = arith.constant 0 : index
    %c3_320 = arith.constant 3 : index
    %c0_321 = arith.constant 0 : index
    %c0_322 = arith.constant 0 : index
    %475 = vector.load %arg7[%c0_319, %c3_320, %c0_321, %c0_322] : memref<1x4x20x20xf32, #tpu.memory_space<vmem>>, vector<1x1x16x16xf32>
    %476 = vector.shape_cast %475 : vector<1x1x16x16xf32> to vector<16x16xf32>
    %477 = vector.broadcast %474 : f32 to vector<16x16xf32>
    %478 = arith.mulf %477, %476 : vector<16x16xf32>
    %479 = arith.addf %473, %478 : vector<16x16xf32>
    %c76 = arith.constant 76 : index
    %480 = memref.load %arg1[%c76] : memref<100xf32, #tpu.memory_space<smem>>
    %c0_323 = arith.constant 0 : index
    %c3_324 = arith.constant 3 : index
    %c0_325 = arith.constant 0 : index
    %c1_326 = arith.constant 1 : index
    %481 = vector.load %arg7[%c0_323, %c3_324, %c0_325, %c1_326] : memref<1x4x20x20xf32, #tpu.memory_space<vmem>>, vector<1x1x16x16xf32>
    %482 = vector.shape_cast %481 : vector<1x1x16x16xf32> to vector<16x16xf32>
    %483 = vector.broadcast %480 : f32 to vector<16x16xf32>
    %484 = arith.mulf %483, %482 : vector<16x16xf32>
    %485 = arith.addf %479, %484 : vector<16x16xf32>
    %c77 = arith.constant 77 : index
    %486 = memref.load %arg1[%c77] : memref<100xf32, #tpu.memory_space<smem>>
    %c0_327 = arith.constant 0 : index
    %c3_328 = arith.constant 3 : index
    %c0_329 = arith.constant 0 : index
    %c2_330 = arith.constant 2 : index
    %487 = vector.load %arg7[%c0_327, %c3_328, %c0_329, %c2_330] : memref<1x4x20x20xf32, #tpu.memory_space<vmem>>, vector<1x1x16x16xf32>
    %488 = vector.shape_cast %487 : vector<1x1x16x16xf32> to vector<16x16xf32>
    %489 = vector.broadcast %486 : f32 to vector<16x16xf32>
    %490 = arith.mulf %489, %488 : vector<16x16xf32>
    %491 = arith.addf %485, %490 : vector<16x16xf32>
    %c78 = arith.constant 78 : index
    %492 = memref.load %arg1[%c78] : memref<100xf32, #tpu.memory_space<smem>>
    %c0_331 = arith.constant 0 : index
    %c3_332 = arith.constant 3 : index
    %c0_333 = arith.constant 0 : index
    %c3_334 = arith.constant 3 : index
    %493 = vector.load %arg7[%c0_331, %c3_332, %c0_333, %c3_334] : memref<1x4x20x20xf32, #tpu.memory_space<vmem>>, vector<1x1x16x16xf32>
    %494 = vector.shape_cast %493 : vector<1x1x16x16xf32> to vector<16x16xf32>
    %495 = vector.broadcast %492 : f32 to vector<16x16xf32>
    %496 = arith.mulf %495, %494 : vector<16x16xf32>
    %497 = arith.addf %491, %496 : vector<16x16xf32>
    %c79 = arith.constant 79 : index
    %498 = memref.load %arg1[%c79] : memref<100xf32, #tpu.memory_space<smem>>
    %c0_335 = arith.constant 0 : index
    %c3_336 = arith.constant 3 : index
    %c0_337 = arith.constant 0 : index
    %c4_338 = arith.constant 4 : index
    %499 = vector.load %arg7[%c0_335, %c3_336, %c0_337, %c4_338] : memref<1x4x20x20xf32, #tpu.memory_space<vmem>>, vector<1x1x16x16xf32>
    %500 = vector.shape_cast %499 : vector<1x1x16x16xf32> to vector<16x16xf32>
    %501 = vector.broadcast %498 : f32 to vector<16x16xf32>
    %502 = arith.mulf %501, %500 : vector<16x16xf32>
    %503 = arith.addf %497, %502 : vector<16x16xf32>
    %c80 = arith.constant 80 : index
    %504 = memref.load %arg1[%c80] : memref<100xf32, #tpu.memory_space<smem>>
    %c0_339 = arith.constant 0 : index
    %c3_340 = arith.constant 3 : index
    %c1_341 = arith.constant 1 : index
    %c0_342 = arith.constant 0 : index
    %505 = vector.load %arg7[%c0_339, %c3_340, %c1_341, %c0_342] : memref<1x4x20x20xf32, #tpu.memory_space<vmem>>, vector<1x1x16x16xf32>
    %506 = vector.shape_cast %505 : vector<1x1x16x16xf32> to vector<16x16xf32>
    %507 = vector.broadcast %504 : f32 to vector<16x16xf32>
    %508 = arith.mulf %507, %506 : vector<16x16xf32>
    %509 = arith.addf %503, %508 : vector<16x16xf32>
    %c81 = arith.constant 81 : index
    %510 = memref.load %arg1[%c81] : memref<100xf32, #tpu.memory_space<smem>>
    %c0_343 = arith.constant 0 : index
    %c3_344 = arith.constant 3 : index
    %c1_345 = arith.constant 1 : index
    %c1_346 = arith.constant 1 : index
    %511 = vector.load %arg7[%c0_343, %c3_344, %c1_345, %c1_346] : memref<1x4x20x20xf32, #tpu.memory_space<vmem>>, vector<1x1x16x16xf32>
    %512 = vector.shape_cast %511 : vector<1x1x16x16xf32> to vector<16x16xf32>
    %513 = vector.broadcast %510 : f32 to vector<16x16xf32>
    %514 = arith.mulf %513, %512 : vector<16x16xf32>
    %515 = arith.addf %509, %514 : vector<16x16xf32>
    %c82 = arith.constant 82 : index
    %516 = memref.load %arg1[%c82] : memref<100xf32, #tpu.memory_space<smem>>
    %c0_347 = arith.constant 0 : index
    %c3_348 = arith.constant 3 : index
    %c1_349 = arith.constant 1 : index
    %c2_350 = arith.constant 2 : index
    %517 = vector.load %arg7[%c0_347, %c3_348, %c1_349, %c2_350] : memref<1x4x20x20xf32, #tpu.memory_space<vmem>>, vector<1x1x16x16xf32>
    %518 = vector.shape_cast %517 : vector<1x1x16x16xf32> to vector<16x16xf32>
    %519 = vector.broadcast %516 : f32 to vector<16x16xf32>
    %520 = arith.mulf %519, %518 : vector<16x16xf32>
    %521 = arith.addf %515, %520 : vector<16x16xf32>
    %c83 = arith.constant 83 : index
    %522 = memref.load %arg1[%c83] : memref<100xf32, #tpu.memory_space<smem>>
    %c0_351 = arith.constant 0 : index
    %c3_352 = arith.constant 3 : index
    %c1_353 = arith.constant 1 : index
    %c3_354 = arith.constant 3 : index
    %523 = vector.load %arg7[%c0_351, %c3_352, %c1_353, %c3_354] : memref<1x4x20x20xf32, #tpu.memory_space<vmem>>, vector<1x1x16x16xf32>
    %524 = vector.shape_cast %523 : vector<1x1x16x16xf32> to vector<16x16xf32>
    %525 = vector.broadcast %522 : f32 to vector<16x16xf32>
    %526 = arith.mulf %525, %524 : vector<16x16xf32>
    %527 = arith.addf %521, %526 : vector<16x16xf32>
    %c84 = arith.constant 84 : index
    %528 = memref.load %arg1[%c84] : memref<100xf32, #tpu.memory_space<smem>>
    %c0_355 = arith.constant 0 : index
    %c3_356 = arith.constant 3 : index
    %c1_357 = arith.constant 1 : index
    %c4_358 = arith.constant 4 : index
    %529 = vector.load %arg7[%c0_355, %c3_356, %c1_357, %c4_358] : memref<1x4x20x20xf32, #tpu.memory_space<vmem>>, vector<1x1x16x16xf32>
    %530 = vector.shape_cast %529 : vector<1x1x16x16xf32> to vector<16x16xf32>
    %531 = vector.broadcast %528 : f32 to vector<16x16xf32>
    %532 = arith.mulf %531, %530 : vector<16x16xf32>
    %533 = arith.addf %527, %532 : vector<16x16xf32>
    %c85 = arith.constant 85 : index
    %534 = memref.load %arg1[%c85] : memref<100xf32, #tpu.memory_space<smem>>
    %c0_359 = arith.constant 0 : index
    %c3_360 = arith.constant 3 : index
    %c2_361 = arith.constant 2 : index
    %c0_362 = arith.constant 0 : index
    %535 = vector.load %arg7[%c0_359, %c3_360, %c2_361, %c0_362] : memref<1x4x20x20xf32, #tpu.memory_space<vmem>>, vector<1x1x16x16xf32>
    %536 = vector.shape_cast %535 : vector<1x1x16x16xf32> to vector<16x16xf32>
    %537 = vector.broadcast %534 : f32 to vector<16x16xf32>
    %538 = arith.mulf %537, %536 : vector<16x16xf32>
    %539 = arith.addf %533, %538 : vector<16x16xf32>
    %c86 = arith.constant 86 : index
    %540 = memref.load %arg1[%c86] : memref<100xf32, #tpu.memory_space<smem>>
    %c0_363 = arith.constant 0 : index
    %c3_364 = arith.constant 3 : index
    %c2_365 = arith.constant 2 : index
    %c1_366 = arith.constant 1 : index
    %541 = vector.load %arg7[%c0_363, %c3_364, %c2_365, %c1_366] : memref<1x4x20x20xf32, #tpu.memory_space<vmem>>, vector<1x1x16x16xf32>
    %542 = vector.shape_cast %541 : vector<1x1x16x16xf32> to vector<16x16xf32>
    %543 = vector.broadcast %540 : f32 to vector<16x16xf32>
    %544 = arith.mulf %543, %542 : vector<16x16xf32>
    %545 = arith.addf %539, %544 : vector<16x16xf32>
    %c87 = arith.constant 87 : index
    %546 = memref.load %arg1[%c87] : memref<100xf32, #tpu.memory_space<smem>>
    %c0_367 = arith.constant 0 : index
    %c3_368 = arith.constant 3 : index
    %c2_369 = arith.constant 2 : index
    %c2_370 = arith.constant 2 : index
    %547 = vector.load %arg7[%c0_367, %c3_368, %c2_369, %c2_370] : memref<1x4x20x20xf32, #tpu.memory_space<vmem>>, vector<1x1x16x16xf32>
    %548 = vector.shape_cast %547 : vector<1x1x16x16xf32> to vector<16x16xf32>
    %549 = vector.broadcast %546 : f32 to vector<16x16xf32>
    %550 = arith.mulf %549, %548 : vector<16x16xf32>
    %551 = arith.addf %545, %550 : vector<16x16xf32>
    %c88 = arith.constant 88 : index
    %552 = memref.load %arg1[%c88] : memref<100xf32, #tpu.memory_space<smem>>
    %c0_371 = arith.constant 0 : index
    %c3_372 = arith.constant 3 : index
    %c2_373 = arith.constant 2 : index
    %c3_374 = arith.constant 3 : index
    %553 = vector.load %arg7[%c0_371, %c3_372, %c2_373, %c3_374] : memref<1x4x20x20xf32, #tpu.memory_space<vmem>>, vector<1x1x16x16xf32>
    %554 = vector.shape_cast %553 : vector<1x1x16x16xf32> to vector<16x16xf32>
    %555 = vector.broadcast %552 : f32 to vector<16x16xf32>
    %556 = arith.mulf %555, %554 : vector<16x16xf32>
    %557 = arith.addf %551, %556 : vector<16x16xf32>
    %c89 = arith.constant 89 : index
    %558 = memref.load %arg1[%c89] : memref<100xf32, #tpu.memory_space<smem>>
    %c0_375 = arith.constant 0 : index
    %c3_376 = arith.constant 3 : index
    %c2_377 = arith.constant 2 : index
    %c4_378 = arith.constant 4 : index
    %559 = vector.load %arg7[%c0_375, %c3_376, %c2_377, %c4_378] : memref<1x4x20x20xf32, #tpu.memory_space<vmem>>, vector<1x1x16x16xf32>
    %560 = vector.shape_cast %559 : vector<1x1x16x16xf32> to vector<16x16xf32>
    %561 = vector.broadcast %558 : f32 to vector<16x16xf32>
    %562 = arith.mulf %561, %560 : vector<16x16xf32>
    %563 = arith.addf %557, %562 : vector<16x16xf32>
    %c90 = arith.constant 90 : index
    %564 = memref.load %arg1[%c90] : memref<100xf32, #tpu.memory_space<smem>>
    %c0_379 = arith.constant 0 : index
    %c3_380 = arith.constant 3 : index
    %c3_381 = arith.constant 3 : index
    %c0_382 = arith.constant 0 : index
    %565 = vector.load %arg7[%c0_379, %c3_380, %c3_381, %c0_382] : memref<1x4x20x20xf32, #tpu.memory_space<vmem>>, vector<1x1x16x16xf32>
    %566 = vector.shape_cast %565 : vector<1x1x16x16xf32> to vector<16x16xf32>
    %567 = vector.broadcast %564 : f32 to vector<16x16xf32>
    %568 = arith.mulf %567, %566 : vector<16x16xf32>
    %569 = arith.addf %563, %568 : vector<16x16xf32>
    %c91 = arith.constant 91 : index
    %570 = memref.load %arg1[%c91] : memref<100xf32, #tpu.memory_space<smem>>
    %c0_383 = arith.constant 0 : index
    %c3_384 = arith.constant 3 : index
    %c3_385 = arith.constant 3 : index
    %c1_386 = arith.constant 1 : index
    %571 = vector.load %arg7[%c0_383, %c3_384, %c3_385, %c1_386] : memref<1x4x20x20xf32, #tpu.memory_space<vmem>>, vector<1x1x16x16xf32>
    %572 = vector.shape_cast %571 : vector<1x1x16x16xf32> to vector<16x16xf32>
    %573 = vector.broadcast %570 : f32 to vector<16x16xf32>
    %574 = arith.mulf %573, %572 : vector<16x16xf32>
    %575 = arith.addf %569, %574 : vector<16x16xf32>
    %c92 = arith.constant 92 : index
    %576 = memref.load %arg1[%c92] : memref<100xf32, #tpu.memory_space<smem>>
    %c0_387 = arith.constant 0 : index
    %c3_388 = arith.constant 3 : index
    %c3_389 = arith.constant 3 : index
    %c2_390 = arith.constant 2 : index
    %577 = vector.load %arg7[%c0_387, %c3_388, %c3_389, %c2_390] : memref<1x4x20x20xf32, #tpu.memory_space<vmem>>, vector<1x1x16x16xf32>
    %578 = vector.shape_cast %577 : vector<1x1x16x16xf32> to vector<16x16xf32>
    %579 = vector.broadcast %576 : f32 to vector<16x16xf32>
    %580 = arith.mulf %579, %578 : vector<16x16xf32>
    %581 = arith.addf %575, %580 : vector<16x16xf32>
    %c93 = arith.constant 93 : index
    %582 = memref.load %arg1[%c93] : memref<100xf32, #tpu.memory_space<smem>>
    %c0_391 = arith.constant 0 : index
    %c3_392 = arith.constant 3 : index
    %c3_393 = arith.constant 3 : index
    %c3_394 = arith.constant 3 : index
    %583 = vector.load %arg7[%c0_391, %c3_392, %c3_393, %c3_394] : memref<1x4x20x20xf32, #tpu.memory_space<vmem>>, vector<1x1x16x16xf32>
    %584 = vector.shape_cast %583 : vector<1x1x16x16xf32> to vector<16x16xf32>
    %585 = vector.broadcast %582 : f32 to vector<16x16xf32>
    %586 = arith.mulf %585, %584 : vector<16x16xf32>
    %587 = arith.addf %581, %586 : vector<16x16xf32>
    %c94 = arith.constant 94 : index
    %588 = memref.load %arg1[%c94] : memref<100xf32, #tpu.memory_space<smem>>
    %c0_395 = arith.constant 0 : index
    %c3_396 = arith.constant 3 : index
    %c3_397 = arith.constant 3 : index
    %c4_398 = arith.constant 4 : index
    %589 = vector.load %arg7[%c0_395, %c3_396, %c3_397, %c4_398] : memref<1x4x20x20xf32, #tpu.memory_space<vmem>>, vector<1x1x16x16xf32>
    %590 = vector.shape_cast %589 : vector<1x1x16x16xf32> to vector<16x16xf32>
    %591 = vector.broadcast %588 : f32 to vector<16x16xf32>
    %592 = arith.mulf %591, %590 : vector<16x16xf32>
    %593 = arith.addf %587, %592 : vector<16x16xf32>
    %c95 = arith.constant 95 : index
    %594 = memref.load %arg1[%c95] : memref<100xf32, #tpu.memory_space<smem>>
    %c0_399 = arith.constant 0 : index
    %c3_400 = arith.constant 3 : index
    %c4_401 = arith.constant 4 : index
    %c0_402 = arith.constant 0 : index
    %595 = vector.load %arg7[%c0_399, %c3_400, %c4_401, %c0_402] : memref<1x4x20x20xf32, #tpu.memory_space<vmem>>, vector<1x1x16x16xf32>
    %596 = vector.shape_cast %595 : vector<1x1x16x16xf32> to vector<16x16xf32>
    %597 = vector.broadcast %594 : f32 to vector<16x16xf32>
    %598 = arith.mulf %597, %596 : vector<16x16xf32>
    %599 = arith.addf %593, %598 : vector<16x16xf32>
    %c96 = arith.constant 96 : index
    %600 = memref.load %arg1[%c96] : memref<100xf32, #tpu.memory_space<smem>>
    %c0_403 = arith.constant 0 : index
    %c3_404 = arith.constant 3 : index
    %c4_405 = arith.constant 4 : index
    %c1_406 = arith.constant 1 : index
    %601 = vector.load %arg7[%c0_403, %c3_404, %c4_405, %c1_406] : memref<1x4x20x20xf32, #tpu.memory_space<vmem>>, vector<1x1x16x16xf32>
    %602 = vector.shape_cast %601 : vector<1x1x16x16xf32> to vector<16x16xf32>
    %603 = vector.broadcast %600 : f32 to vector<16x16xf32>
    %604 = arith.mulf %603, %602 : vector<16x16xf32>
    %605 = arith.addf %599, %604 : vector<16x16xf32>
    %c97 = arith.constant 97 : index
    %606 = memref.load %arg1[%c97] : memref<100xf32, #tpu.memory_space<smem>>
    %c0_407 = arith.constant 0 : index
    %c3_408 = arith.constant 3 : index
    %c4_409 = arith.constant 4 : index
    %c2_410 = arith.constant 2 : index
    %607 = vector.load %arg7[%c0_407, %c3_408, %c4_409, %c2_410] : memref<1x4x20x20xf32, #tpu.memory_space<vmem>>, vector<1x1x16x16xf32>
    %608 = vector.shape_cast %607 : vector<1x1x16x16xf32> to vector<16x16xf32>
    %609 = vector.broadcast %606 : f32 to vector<16x16xf32>
    %610 = arith.mulf %609, %608 : vector<16x16xf32>
    %611 = arith.addf %605, %610 : vector<16x16xf32>
    %c98 = arith.constant 98 : index
    %612 = memref.load %arg1[%c98] : memref<100xf32, #tpu.memory_space<smem>>
    %c0_411 = arith.constant 0 : index
    %c3_412 = arith.constant 3 : index
    %c4_413 = arith.constant 4 : index
    %c3_414 = arith.constant 3 : index
    %613 = vector.load %arg7[%c0_411, %c3_412, %c4_413, %c3_414] : memref<1x4x20x20xf32, #tpu.memory_space<vmem>>, vector<1x1x16x16xf32>
    %614 = vector.shape_cast %613 : vector<1x1x16x16xf32> to vector<16x16xf32>
    %615 = vector.broadcast %612 : f32 to vector<16x16xf32>
    %616 = arith.mulf %615, %614 : vector<16x16xf32>
    %617 = arith.addf %611, %616 : vector<16x16xf32>
    %c99 = arith.constant 99 : index
    %618 = memref.load %arg1[%c99] : memref<100xf32, #tpu.memory_space<smem>>
    %c0_415 = arith.constant 0 : index
    %c3_416 = arith.constant 3 : index
    %c4_417 = arith.constant 4 : index
    %c4_418 = arith.constant 4 : index
    %619 = vector.load %arg7[%c0_415, %c3_416, %c4_417, %c4_418] : memref<1x4x20x20xf32, #tpu.memory_space<vmem>>, vector<1x1x16x16xf32>
    %620 = vector.shape_cast %619 : vector<1x1x16x16xf32> to vector<16x16xf32>
    %621 = vector.broadcast %618 : f32 to vector<16x16xf32>
    %622 = arith.mulf %621, %620 : vector<16x16xf32>
    %623 = arith.addf %617, %622 : vector<16x16xf32>
    %c3_419 = arith.constant 3 : index
    %624 = memref.load %arg2[%c3_419] : memref<4xf32, #tpu.memory_space<smem>>
    %625 = vector.broadcast %624 : f32 to vector<16x16xf32>
    %626 = arith.addf %623, %625 : vector<16x16xf32>
    %c3_420 = arith.constant 3 : index
    %c9_421 = arith.constant 9 : index
    %c9_422 = arith.constant 9 : index
    %627 = vector.load %arg9[%c3_420, %c9_421, %c9_422] : memref<4x34x34xf32, #tpu.memory_space<vmem>>, vector<1x16x16xf32>
    %628 = vector.shape_cast %627 : vector<1x16x16xf32> to vector<16x16xf32>
    %629 = vector.shape_cast %626 : vector<16x16xf32> to vector<1x16x16xf32>
    tpu.vector_store %arg9[%c3_420, %c9_421, %c9_422], %629 {strides = array<i32>} : memref<4x34x34xf32, #tpu.memory_space<vmem>>, vector<1x16x16xf32>,
    %cst_423 = arith.constant 0.000000e+00 : f32
    %630 = vector.broadcast %cst_423 : f32 to vector<16x16xf32>
    %c0_424 = arith.constant 0 : index
    %631 = memref.load %arg3[%c0_424] : memref<196xf32, #tpu.memory_space<smem>>
    %c0_425 = arith.constant 0 : index
    %c0_426 = arith.constant 0 : index
    %c0_427 = arith.constant 0 : index
    %632 = vector.load %arg9[%c0_425, %c0_426, %c0_427] : memref<4x34x34xf32, #tpu.memory_space<vmem>>, vector<1x16x16xf32>
    %633 = vector.shape_cast %632 : vector<1x16x16xf32> to vector<16x16xf32>
    %634 = vector.broadcast %631 : f32 to vector<16x16xf32>
    %635 = arith.mulf %634, %633 : vector<16x16xf32>
    %636 = arith.addf %630, %635 : vector<16x16xf32>
    %c1_428 = arith.constant 1 : index
    %637 = memref.load %arg3[%c1_428] : memref<196xf32, #tpu.memory_space<smem>>
    %c0_429 = arith.constant 0 : index
    %c0_430 = arith.constant 0 : index
    %c3_431 = arith.constant 3 : index
    %638 = vector.load %arg9[%c0_429, %c0_430, %c3_431] : memref<4x34x34xf32, #tpu.memory_space<vmem>>, vector<1x16x16xf32>
    %639 = vector.shape_cast %638 : vector<1x16x16xf32> to vector<16x16xf32>
    %640 = vector.broadcast %637 : f32 to vector<16x16xf32>
    %641 = arith.mulf %640, %639 : vector<16x16xf32>
    %642 = arith.addf %636, %641 : vector<16x16xf32>
    %c2_432 = arith.constant 2 : index
    %643 = memref.load %arg3[%c2_432] : memref<196xf32, #tpu.memory_space<smem>>
    %c0_433 = arith.constant 0 : index
    %c0_434 = arith.constant 0 : index
    %c6_435 = arith.constant 6 : index
    %644 = vector.load %arg9[%c0_433, %c0_434, %c6_435] : memref<4x34x34xf32, #tpu.memory_space<vmem>>, vector<1x16x16xf32>
    %645 = vector.shape_cast %644 : vector<1x16x16xf32> to vector<16x16xf32>
    %646 = vector.broadcast %643 : f32 to vector<16x16xf32>
    %647 = arith.mulf %646, %645 : vector<16x16xf32>
    %648 = arith.addf %642, %647 : vector<16x16xf32>
    %c3_436 = arith.constant 3 : index
    %649 = memref.load %arg3[%c3_436] : memref<196xf32, #tpu.memory_space<smem>>
    %c0_437 = arith.constant 0 : index
    %c0_438 = arith.constant 0 : index
    %c9_439 = arith.constant 9 : index
    %650 = vector.load %arg9[%c0_437, %c0_438, %c9_439] : memref<4x34x34xf32, #tpu.memory_space<vmem>>, vector<1x16x16xf32>
    %651 = vector.shape_cast %650 : vector<1x16x16xf32> to vector<16x16xf32>
    %652 = vector.broadcast %649 : f32 to vector<16x16xf32>
    %653 = arith.mulf %652, %651 : vector<16x16xf32>
    %654 = arith.addf %648, %653 : vector<16x16xf32>
    %c4_440 = arith.constant 4 : index
    %655 = memref.load %arg3[%c4_440] : memref<196xf32, #tpu.memory_space<smem>>
    %c0_441 = arith.constant 0 : index
    %c0_442 = arith.constant 0 : index
    %c12_443 = arith.constant 12 : index
    %656 = vector.load %arg9[%c0_441, %c0_442, %c12_443] : memref<4x34x34xf32, #tpu.memory_space<vmem>>, vector<1x16x16xf32>
    %657 = vector.shape_cast %656 : vector<1x16x16xf32> to vector<16x16xf32>
    %658 = vector.broadcast %655 : f32 to vector<16x16xf32>
    %659 = arith.mulf %658, %657 : vector<16x16xf32>
    %660 = arith.addf %654, %659 : vector<16x16xf32>
    %c5_444 = arith.constant 5 : index
    %661 = memref.load %arg3[%c5_444] : memref<196xf32, #tpu.memory_space<smem>>
    %c0_445 = arith.constant 0 : index
    %c0_446 = arith.constant 0 : index
    %c15_447 = arith.constant 15 : index
    %662 = vector.load %arg9[%c0_445, %c0_446, %c15_447] : memref<4x34x34xf32, #tpu.memory_space<vmem>>, vector<1x16x16xf32>
    %663 = vector.shape_cast %662 : vector<1x16x16xf32> to vector<16x16xf32>
    %664 = vector.broadcast %661 : f32 to vector<16x16xf32>
    %665 = arith.mulf %664, %663 : vector<16x16xf32>
    %666 = arith.addf %660, %665 : vector<16x16xf32>
    %c6_448 = arith.constant 6 : index
    %667 = memref.load %arg3[%c6_448] : memref<196xf32, #tpu.memory_space<smem>>
    %c0_449 = arith.constant 0 : index
    %c0_450 = arith.constant 0 : index
    %c18_451 = arith.constant 18 : index
    %668 = vector.load %arg9[%c0_449, %c0_450, %c18_451] : memref<4x34x34xf32, #tpu.memory_space<vmem>>, vector<1x16x16xf32>
    %669 = vector.shape_cast %668 : vector<1x16x16xf32> to vector<16x16xf32>
    %670 = vector.broadcast %667 : f32 to vector<16x16xf32>
    %671 = arith.mulf %670, %669 : vector<16x16xf32>
    %672 = arith.addf %666, %671 : vector<16x16xf32>
    %c7_452 = arith.constant 7 : index
    %673 = memref.load %arg3[%c7_452] : memref<196xf32, #tpu.memory_space<smem>>
    %c0_453 = arith.constant 0 : index
    %c3_454 = arith.constant 3 : index
    %c0_455 = arith.constant 0 : index
    %674 = vector.load %arg9[%c0_453, %c3_454, %c0_455] : memref<4x34x34xf32, #tpu.memory_space<vmem>>, vector<1x16x16xf32>
    %675 = vector.shape_cast %674 : vector<1x16x16xf32> to vector<16x16xf32>
    %676 = vector.broadcast %673 : f32 to vector<16x16xf32>
    %677 = arith.mulf %676, %675 : vector<16x16xf32>
    %678 = arith.addf %672, %677 : vector<16x16xf32>
    %c8_456 = arith.constant 8 : index
    %679 = memref.load %arg3[%c8_456] : memref<196xf32, #tpu.memory_space<smem>>
    %c0_457 = arith.constant 0 : index
    %c3_458 = arith.constant 3 : index
    %c3_459 = arith.constant 3 : index
    %680 = vector.load %arg9[%c0_457, %c3_458, %c3_459] : memref<4x34x34xf32, #tpu.memory_space<vmem>>, vector<1x16x16xf32>
    %681 = vector.shape_cast %680 : vector<1x16x16xf32> to vector<16x16xf32>
    %682 = vector.broadcast %679 : f32 to vector<16x16xf32>
    %683 = arith.mulf %682, %681 : vector<16x16xf32>
    %684 = arith.addf %678, %683 : vector<16x16xf32>
    %c9_460 = arith.constant 9 : index
    %685 = memref.load %arg3[%c9_460] : memref<196xf32, #tpu.memory_space<smem>>
    %c0_461 = arith.constant 0 : index
    %c3_462 = arith.constant 3 : index
    %c6_463 = arith.constant 6 : index
    %686 = vector.load %arg9[%c0_461, %c3_462, %c6_463] : memref<4x34x34xf32, #tpu.memory_space<vmem>>, vector<1x16x16xf32>
    %687 = vector.shape_cast %686 : vector<1x16x16xf32> to vector<16x16xf32>
    %688 = vector.broadcast %685 : f32 to vector<16x16xf32>
    %689 = arith.mulf %688, %687 : vector<16x16xf32>
    %690 = arith.addf %684, %689 : vector<16x16xf32>
    %c10_464 = arith.constant 10 : index
    %691 = memref.load %arg3[%c10_464] : memref<196xf32, #tpu.memory_space<smem>>
    %c0_465 = arith.constant 0 : index
    %c3_466 = arith.constant 3 : index
    %c9_467 = arith.constant 9 : index
    %692 = vector.load %arg9[%c0_465, %c3_466, %c9_467] : memref<4x34x34xf32, #tpu.memory_space<vmem>>, vector<1x16x16xf32>
    %693 = vector.shape_cast %692 : vector<1x16x16xf32> to vector<16x16xf32>
    %694 = vector.broadcast %691 : f32 to vector<16x16xf32>
    %695 = arith.mulf %694, %693 : vector<16x16xf32>
    %696 = arith.addf %690, %695 : vector<16x16xf32>
    %c11_468 = arith.constant 11 : index
    %697 = memref.load %arg3[%c11_468] : memref<196xf32, #tpu.memory_space<smem>>
    %c0_469 = arith.constant 0 : index
    %c3_470 = arith.constant 3 : index
    %c12_471 = arith.constant 12 : index
    %698 = vector.load %arg9[%c0_469, %c3_470, %c12_471] : memref<4x34x34xf32, #tpu.memory_space<vmem>>, vector<1x16x16xf32>
    %699 = vector.shape_cast %698 : vector<1x16x16xf32> to vector<16x16xf32>
    %700 = vector.broadcast %697 : f32 to vector<16x16xf32>
    %701 = arith.mulf %700, %699 : vector<16x16xf32>
    %702 = arith.addf %696, %701 : vector<16x16xf32>
    %c12_472 = arith.constant 12 : index
    %703 = memref.load %arg3[%c12_472] : memref<196xf32, #tpu.memory_space<smem>>
    %c0_473 = arith.constant 0 : index
    %c3_474 = arith.constant 3 : index
    %c15_475 = arith.constant 15 : index
    %704 = vector.load %arg9[%c0_473, %c3_474, %c15_475] : memref<4x34x34xf32, #tpu.memory_space<vmem>>, vector<1x16x16xf32>
    %705 = vector.shape_cast %704 : vector<1x16x16xf32> to vector<16x16xf32>
    %706 = vector.broadcast %703 : f32 to vector<16x16xf32>
    %707 = arith.mulf %706, %705 : vector<16x16xf32>
    %708 = arith.addf %702, %707 : vector<16x16xf32>
    %c13_476 = arith.constant 13 : index
    %709 = memref.load %arg3[%c13_476] : memref<196xf32, #tpu.memory_space<smem>>
    %c0_477 = arith.constant 0 : index
    %c3_478 = arith.constant 3 : index
    %c18_479 = arith.constant 18 : index
    %710 = vector.load %arg9[%c0_477, %c3_478, %c18_479] : memref<4x34x34xf32, #tpu.memory_space<vmem>>, vector<1x16x16xf32>
    %711 = vector.shape_cast %710 : vector<1x16x16xf32> to vector<16x16xf32>
    %712 = vector.broadcast %709 : f32 to vector<16x16xf32>
    %713 = arith.mulf %712, %711 : vector<16x16xf32>
    %714 = arith.addf %708, %713 : vector<16x16xf32>
    %c14_480 = arith.constant 14 : index
    %715 = memref.load %arg3[%c14_480] : memref<196xf32, #tpu.memory_space<smem>>
    %c0_481 = arith.constant 0 : index
    %c6_482 = arith.constant 6 : index
    %c0_483 = arith.constant 0 : index
    %716 = vector.load %arg9[%c0_481, %c6_482, %c0_483] : memref<4x34x34xf32, #tpu.memory_space<vmem>>, vector<1x16x16xf32>
    %717 = vector.shape_cast %716 : vector<1x16x16xf32> to vector<16x16xf32>
    %718 = vector.broadcast %715 : f32 to vector<16x16xf32>
    %719 = arith.mulf %718, %717 : vector<16x16xf32>
    %720 = arith.addf %714, %719 : vector<16x16xf32>
    %c15_484 = arith.constant 15 : index
    %721 = memref.load %arg3[%c15_484] : memref<196xf32, #tpu.memory_space<smem>>
    %c0_485 = arith.constant 0 : index
    %c6_486 = arith.constant 6 : index
    %c3_487 = arith.constant 3 : index
    %722 = vector.load %arg9[%c0_485, %c6_486, %c3_487] : memref<4x34x34xf32, #tpu.memory_space<vmem>>, vector<1x16x16xf32>
    %723 = vector.shape_cast %722 : vector<1x16x16xf32> to vector<16x16xf32>
    %724 = vector.broadcast %721 : f32 to vector<16x16xf32>
    %725 = arith.mulf %724, %723 : vector<16x16xf32>
    %726 = arith.addf %720, %725 : vector<16x16xf32>
    %c16_488 = arith.constant 16 : index
    %727 = memref.load %arg3[%c16_488] : memref<196xf32, #tpu.memory_space<smem>>
    %c0_489 = arith.constant 0 : index
    %c6_490 = arith.constant 6 : index
    %c6_491 = arith.constant 6 : index
    %728 = vector.load %arg9[%c0_489, %c6_490, %c6_491] : memref<4x34x34xf32, #tpu.memory_space<vmem>>, vector<1x16x16xf32>
    %729 = vector.shape_cast %728 : vector<1x16x16xf32> to vector<16x16xf32>
    %730 = vector.broadcast %727 : f32 to vector<16x16xf32>
    %731 = arith.mulf %730, %729 : vector<16x16xf32>
    %732 = arith.addf %726, %731 : vector<16x16xf32>
    %c17_492 = arith.constant 17 : index
    %733 = memref.load %arg3[%c17_492] : memref<196xf32, #tpu.memory_space<smem>>
    %c0_493 = arith.constant 0 : index
    %c6_494 = arith.constant 6 : index
    %c9_495 = arith.constant 9 : index
    %734 = vector.load %arg9[%c0_493, %c6_494, %c9_495] : memref<4x34x34xf32, #tpu.memory_space<vmem>>, vector<1x16x16xf32>
    %735 = vector.shape_cast %734 : vector<1x16x16xf32> to vector<16x16xf32>
    %736 = vector.broadcast %733 : f32 to vector<16x16xf32>
    %737 = arith.mulf %736, %735 : vector<16x16xf32>
    %738 = arith.addf %732, %737 : vector<16x16xf32>
    %c18_496 = arith.constant 18 : index
    %739 = memref.load %arg3[%c18_496] : memref<196xf32, #tpu.memory_space<smem>>
    %c0_497 = arith.constant 0 : index
    %c6_498 = arith.constant 6 : index
    %c12_499 = arith.constant 12 : index
    %740 = vector.load %arg9[%c0_497, %c6_498, %c12_499] : memref<4x34x34xf32, #tpu.memory_space<vmem>>, vector<1x16x16xf32>
    %741 = vector.shape_cast %740 : vector<1x16x16xf32> to vector<16x16xf32>
    %742 = vector.broadcast %739 : f32 to vector<16x16xf32>
    %743 = arith.mulf %742, %741 : vector<16x16xf32>
    %744 = arith.addf %738, %743 : vector<16x16xf32>
    %c19_500 = arith.constant 19 : index
    %745 = memref.load %arg3[%c19_500] : memref<196xf32, #tpu.memory_space<smem>>
    %c0_501 = arith.constant 0 : index
    %c6_502 = arith.constant 6 : index
    %c15_503 = arith.constant 15 : index
    %746 = vector.load %arg9[%c0_501, %c6_502, %c15_503] : memref<4x34x34xf32, #tpu.memory_space<vmem>>, vector<1x16x16xf32>
    %747 = vector.shape_cast %746 : vector<1x16x16xf32> to vector<16x16xf32>
    %748 = vector.broadcast %745 : f32 to vector<16x16xf32>
    %749 = arith.mulf %748, %747 : vector<16x16xf32>
    %750 = arith.addf %744, %749 : vector<16x16xf32>
    %c20_504 = arith.constant 20 : index
    %751 = memref.load %arg3[%c20_504] : memref<196xf32, #tpu.memory_space<smem>>
    %c0_505 = arith.constant 0 : index
    %c6_506 = arith.constant 6 : index
    %c18_507 = arith.constant 18 : index
    %752 = vector.load %arg9[%c0_505, %c6_506, %c18_507] : memref<4x34x34xf32, #tpu.memory_space<vmem>>, vector<1x16x16xf32>
    %753 = vector.shape_cast %752 : vector<1x16x16xf32> to vector<16x16xf32>
    %754 = vector.broadcast %751 : f32 to vector<16x16xf32>
    %755 = arith.mulf %754, %753 : vector<16x16xf32>
    %756 = arith.addf %750, %755 : vector<16x16xf32>
    %c21_508 = arith.constant 21 : index
    %757 = memref.load %arg3[%c21_508] : memref<196xf32, #tpu.memory_space<smem>>
    %c0_509 = arith.constant 0 : index
    %c9_510 = arith.constant 9 : index
    %c0_511 = arith.constant 0 : index
    %758 = vector.load %arg9[%c0_509, %c9_510, %c0_511] : memref<4x34x34xf32, #tpu.memory_space<vmem>>, vector<1x16x16xf32>
    %759 = vector.shape_cast %758 : vector<1x16x16xf32> to vector<16x16xf32>
    %760 = vector.broadcast %757 : f32 to vector<16x16xf32>
    %761 = arith.mulf %760, %759 : vector<16x16xf32>
    %762 = arith.addf %756, %761 : vector<16x16xf32>
    %c22_512 = arith.constant 22 : index
    %763 = memref.load %arg3[%c22_512] : memref<196xf32, #tpu.memory_space<smem>>
    %c0_513 = arith.constant 0 : index
    %c9_514 = arith.constant 9 : index
    %c3_515 = arith.constant 3 : index
    %764 = vector.load %arg9[%c0_513, %c9_514, %c3_515] : memref<4x34x34xf32, #tpu.memory_space<vmem>>, vector<1x16x16xf32>
    %765 = vector.shape_cast %764 : vector<1x16x16xf32> to vector<16x16xf32>
    %766 = vector.broadcast %763 : f32 to vector<16x16xf32>
    %767 = arith.mulf %766, %765 : vector<16x16xf32>
    %768 = arith.addf %762, %767 : vector<16x16xf32>
    %c23_516 = arith.constant 23 : index
    %769 = memref.load %arg3[%c23_516] : memref<196xf32, #tpu.memory_space<smem>>
    %c0_517 = arith.constant 0 : index
    %c9_518 = arith.constant 9 : index
    %c6_519 = arith.constant 6 : index
    %770 = vector.load %arg9[%c0_517, %c9_518, %c6_519] : memref<4x34x34xf32, #tpu.memory_space<vmem>>, vector<1x16x16xf32>
    %771 = vector.shape_cast %770 : vector<1x16x16xf32> to vector<16x16xf32>
    %772 = vector.broadcast %769 : f32 to vector<16x16xf32>
    %773 = arith.mulf %772, %771 : vector<16x16xf32>
    %774 = arith.addf %768, %773 : vector<16x16xf32>
    %c24_520 = arith.constant 24 : index
    %775 = memref.load %arg3[%c24_520] : memref<196xf32, #tpu.memory_space<smem>>
    %c0_521 = arith.constant 0 : index
    %c9_522 = arith.constant 9 : index
    %c9_523 = arith.constant 9 : index
    %776 = vector.load %arg9[%c0_521, %c9_522, %c9_523] : memref<4x34x34xf32, #tpu.memory_space<vmem>>, vector<1x16x16xf32>
    %777 = vector.shape_cast %776 : vector<1x16x16xf32> to vector<16x16xf32>
    %778 = vector.broadcast %775 : f32 to vector<16x16xf32>
    %779 = arith.mulf %778, %777 : vector<16x16xf32>
    %780 = arith.addf %774, %779 : vector<16x16xf32>
    %c25_524 = arith.constant 25 : index
    %781 = memref.load %arg3[%c25_524] : memref<196xf32, #tpu.memory_space<smem>>
    %c0_525 = arith.constant 0 : index
    %c9_526 = arith.constant 9 : index
    %c12_527 = arith.constant 12 : index
    %782 = vector.load %arg9[%c0_525, %c9_526, %c12_527] : memref<4x34x34xf32, #tpu.memory_space<vmem>>, vector<1x16x16xf32>
    %783 = vector.shape_cast %782 : vector<1x16x16xf32> to vector<16x16xf32>
    %784 = vector.broadcast %781 : f32 to vector<16x16xf32>
    %785 = arith.mulf %784, %783 : vector<16x16xf32>
    %786 = arith.addf %780, %785 : vector<16x16xf32>
    %c26_528 = arith.constant 26 : index
    %787 = memref.load %arg3[%c26_528] : memref<196xf32, #tpu.memory_space<smem>>
    %c0_529 = arith.constant 0 : index
    %c9_530 = arith.constant 9 : index
    %c15_531 = arith.constant 15 : index
    %788 = vector.load %arg9[%c0_529, %c9_530, %c15_531] : memref<4x34x34xf32, #tpu.memory_space<vmem>>, vector<1x16x16xf32>
    %789 = vector.shape_cast %788 : vector<1x16x16xf32> to vector<16x16xf32>
    %790 = vector.broadcast %787 : f32 to vector<16x16xf32>
    %791 = arith.mulf %790, %789 : vector<16x16xf32>
    %792 = arith.addf %786, %791 : vector<16x16xf32>
    %c27_532 = arith.constant 27 : index
    %793 = memref.load %arg3[%c27_532] : memref<196xf32, #tpu.memory_space<smem>>
    %c0_533 = arith.constant 0 : index
    %c9_534 = arith.constant 9 : index
    %c18_535 = arith.constant 18 : index
    %794 = vector.load %arg9[%c0_533, %c9_534, %c18_535] : memref<4x34x34xf32, #tpu.memory_space<vmem>>, vector<1x16x16xf32>
    %795 = vector.shape_cast %794 : vector<1x16x16xf32> to vector<16x16xf32>
    %796 = vector.broadcast %793 : f32 to vector<16x16xf32>
    %797 = arith.mulf %796, %795 : vector<16x16xf32>
    %798 = arith.addf %792, %797 : vector<16x16xf32>
    %c28_536 = arith.constant 28 : index
    %799 = memref.load %arg3[%c28_536] : memref<196xf32, #tpu.memory_space<smem>>
    %c0_537 = arith.constant 0 : index
    %c12_538 = arith.constant 12 : index
    %c0_539 = arith.constant 0 : index
    %800 = vector.load %arg9[%c0_537, %c12_538, %c0_539] : memref<4x34x34xf32, #tpu.memory_space<vmem>>, vector<1x16x16xf32>
    %801 = vector.shape_cast %800 : vector<1x16x16xf32> to vector<16x16xf32>
    %802 = vector.broadcast %799 : f32 to vector<16x16xf32>
    %803 = arith.mulf %802, %801 : vector<16x16xf32>
    %804 = arith.addf %798, %803 : vector<16x16xf32>
    %c29_540 = arith.constant 29 : index
    %805 = memref.load %arg3[%c29_540] : memref<196xf32, #tpu.memory_space<smem>>
    %c0_541 = arith.constant 0 : index
    %c12_542 = arith.constant 12 : index
    %c3_543 = arith.constant 3 : index
    %806 = vector.load %arg9[%c0_541, %c12_542, %c3_543] : memref<4x34x34xf32, #tpu.memory_space<vmem>>, vector<1x16x16xf32>
    %807 = vector.shape_cast %806 : vector<1x16x16xf32> to vector<16x16xf32>
    %808 = vector.broadcast %805 : f32 to vector<16x16xf32>
    %809 = arith.mulf %808, %807 : vector<16x16xf32>
    %810 = arith.addf %804, %809 : vector<16x16xf32>
    %c30_544 = arith.constant 30 : index
    %811 = memref.load %arg3[%c30_544] : memref<196xf32, #tpu.memory_space<smem>>
    %c0_545 = arith.constant 0 : index
    %c12_546 = arith.constant 12 : index
    %c6_547 = arith.constant 6 : index
    %812 = vector.load %arg9[%c0_545, %c12_546, %c6_547] : memref<4x34x34xf32, #tpu.memory_space<vmem>>, vector<1x16x16xf32>
    %813 = vector.shape_cast %812 : vector<1x16x16xf32> to vector<16x16xf32>
    %814 = vector.broadcast %811 : f32 to vector<16x16xf32>
    %815 = arith.mulf %814, %813 : vector<16x16xf32>
    %816 = arith.addf %810, %815 : vector<16x16xf32>
    %c31_548 = arith.constant 31 : index
    %817 = memref.load %arg3[%c31_548] : memref<196xf32, #tpu.memory_space<smem>>
    %c0_549 = arith.constant 0 : index
    %c12_550 = arith.constant 12 : index
    %c9_551 = arith.constant 9 : index
    %818 = vector.load %arg9[%c0_549, %c12_550, %c9_551] : memref<4x34x34xf32, #tpu.memory_space<vmem>>, vector<1x16x16xf32>
    %819 = vector.shape_cast %818 : vector<1x16x16xf32> to vector<16x16xf32>
    %820 = vector.broadcast %817 : f32 to vector<16x16xf32>
    %821 = arith.mulf %820, %819 : vector<16x16xf32>
    %822 = arith.addf %816, %821 : vector<16x16xf32>
    %c32_552 = arith.constant 32 : index
    %823 = memref.load %arg3[%c32_552] : memref<196xf32, #tpu.memory_space<smem>>
    %c0_553 = arith.constant 0 : index
    %c12_554 = arith.constant 12 : index
    %c12_555 = arith.constant 12 : index
    %824 = vector.load %arg9[%c0_553, %c12_554, %c12_555] : memref<4x34x34xf32, #tpu.memory_space<vmem>>, vector<1x16x16xf32>
    %825 = vector.shape_cast %824 : vector<1x16x16xf32> to vector<16x16xf32>
    %826 = vector.broadcast %823 : f32 to vector<16x16xf32>
    %827 = arith.mulf %826, %825 : vector<16x16xf32>
    %828 = arith.addf %822, %827 : vector<16x16xf32>
    %c33_556 = arith.constant 33 : index
    %829 = memref.load %arg3[%c33_556] : memref<196xf32, #tpu.memory_space<smem>>
    %c0_557 = arith.constant 0 : index
    %c12_558 = arith.constant 12 : index
    %c15_559 = arith.constant 15 : index
    %830 = vector.load %arg9[%c0_557, %c12_558, %c15_559] : memref<4x34x34xf32, #tpu.memory_space<vmem>>, vector<1x16x16xf32>
    %831 = vector.shape_cast %830 : vector<1x16x16xf32> to vector<16x16xf32>
    %832 = vector.broadcast %829 : f32 to vector<16x16xf32>
    %833 = arith.mulf %832, %831 : vector<16x16xf32>
    %834 = arith.addf %828, %833 : vector<16x16xf32>
    %c34_560 = arith.constant 34 : index
    %835 = memref.load %arg3[%c34_560] : memref<196xf32, #tpu.memory_space<smem>>
    %c0_561 = arith.constant 0 : index
    %c12_562 = arith.constant 12 : index
    %c18_563 = arith.constant 18 : index
    %836 = vector.load %arg9[%c0_561, %c12_562, %c18_563] : memref<4x34x34xf32, #tpu.memory_space<vmem>>, vector<1x16x16xf32>
    %837 = vector.shape_cast %836 : vector<1x16x16xf32> to vector<16x16xf32>
    %838 = vector.broadcast %835 : f32 to vector<16x16xf32>
    %839 = arith.mulf %838, %837 : vector<16x16xf32>
    %840 = arith.addf %834, %839 : vector<16x16xf32>
    %c35_564 = arith.constant 35 : index
    %841 = memref.load %arg3[%c35_564] : memref<196xf32, #tpu.memory_space<smem>>
    %c0_565 = arith.constant 0 : index
    %c15_566 = arith.constant 15 : index
    %c0_567 = arith.constant 0 : index
    %842 = vector.load %arg9[%c0_565, %c15_566, %c0_567] : memref<4x34x34xf32, #tpu.memory_space<vmem>>, vector<1x16x16xf32>
    %843 = vector.shape_cast %842 : vector<1x16x16xf32> to vector<16x16xf32>
    %844 = vector.broadcast %841 : f32 to vector<16x16xf32>
    %845 = arith.mulf %844, %843 : vector<16x16xf32>
    %846 = arith.addf %840, %845 : vector<16x16xf32>
    %c36_568 = arith.constant 36 : index
    %847 = memref.load %arg3[%c36_568] : memref<196xf32, #tpu.memory_space<smem>>
    %c0_569 = arith.constant 0 : index
    %c15_570 = arith.constant 15 : index
    %c3_571 = arith.constant 3 : index
    %848 = vector.load %arg9[%c0_569, %c15_570, %c3_571] : memref<4x34x34xf32, #tpu.memory_space<vmem>>, vector<1x16x16xf32>
    %849 = vector.shape_cast %848 : vector<1x16x16xf32> to vector<16x16xf32>
    %850 = vector.broadcast %847 : f32 to vector<16x16xf32>
    %851 = arith.mulf %850, %849 : vector<16x16xf32>
    %852 = arith.addf %846, %851 : vector<16x16xf32>
    %c37_572 = arith.constant 37 : index
    %853 = memref.load %arg3[%c37_572] : memref<196xf32, #tpu.memory_space<smem>>
    %c0_573 = arith.constant 0 : index
    %c15_574 = arith.constant 15 : index
    %c6_575 = arith.constant 6 : index
    %854 = vector.load %arg9[%c0_573, %c15_574, %c6_575] : memref<4x34x34xf32, #tpu.memory_space<vmem>>, vector<1x16x16xf32>
    %855 = vector.shape_cast %854 : vector<1x16x16xf32> to vector<16x16xf32>
    %856 = vector.broadcast %853 : f32 to vector<16x16xf32>
    %857 = arith.mulf %856, %855 : vector<16x16xf32>
    %858 = arith.addf %852, %857 : vector<16x16xf32>
    %c38_576 = arith.constant 38 : index
    %859 = memref.load %arg3[%c38_576] : memref<196xf32, #tpu.memory_space<smem>>
    %c0_577 = arith.constant 0 : index
    %c15_578 = arith.constant 15 : index
    %c9_579 = arith.constant 9 : index
    %860 = vector.load %arg9[%c0_577, %c15_578, %c9_579] : memref<4x34x34xf32, #tpu.memory_space<vmem>>, vector<1x16x16xf32>
    %861 = vector.shape_cast %860 : vector<1x16x16xf32> to vector<16x16xf32>
    %862 = vector.broadcast %859 : f32 to vector<16x16xf32>
    %863 = arith.mulf %862, %861 : vector<16x16xf32>
    %864 = arith.addf %858, %863 : vector<16x16xf32>
    %c39_580 = arith.constant 39 : index
    %865 = memref.load %arg3[%c39_580] : memref<196xf32, #tpu.memory_space<smem>>
    %c0_581 = arith.constant 0 : index
    %c15_582 = arith.constant 15 : index
    %c12_583 = arith.constant 12 : index
    %866 = vector.load %arg9[%c0_581, %c15_582, %c12_583] : memref<4x34x34xf32, #tpu.memory_space<vmem>>, vector<1x16x16xf32>
    %867 = vector.shape_cast %866 : vector<1x16x16xf32> to vector<16x16xf32>
    %868 = vector.broadcast %865 : f32 to vector<16x16xf32>
    %869 = arith.mulf %868, %867 : vector<16x16xf32>
    %870 = arith.addf %864, %869 : vector<16x16xf32>
    %c40_584 = arith.constant 40 : index
    %871 = memref.load %arg3[%c40_584] : memref<196xf32, #tpu.memory_space<smem>>
    %c0_585 = arith.constant 0 : index
    %c15_586 = arith.constant 15 : index
    %c15_587 = arith.constant 15 : index
    %872 = vector.load %arg9[%c0_585, %c15_586, %c15_587] : memref<4x34x34xf32, #tpu.memory_space<vmem>>, vector<1x16x16xf32>
    %873 = vector.shape_cast %872 : vector<1x16x16xf32> to vector<16x16xf32>
    %874 = vector.broadcast %871 : f32 to vector<16x16xf32>
    %875 = arith.mulf %874, %873 : vector<16x16xf32>
    %876 = arith.addf %870, %875 : vector<16x16xf32>
    %c41_588 = arith.constant 41 : index
    %877 = memref.load %arg3[%c41_588] : memref<196xf32, #tpu.memory_space<smem>>
    %c0_589 = arith.constant 0 : index
    %c15_590 = arith.constant 15 : index
    %c18_591 = arith.constant 18 : index
    %878 = vector.load %arg9[%c0_589, %c15_590, %c18_591] : memref<4x34x34xf32, #tpu.memory_space<vmem>>, vector<1x16x16xf32>
    %879 = vector.shape_cast %878 : vector<1x16x16xf32> to vector<16x16xf32>
    %880 = vector.broadcast %877 : f32 to vector<16x16xf32>
    %881 = arith.mulf %880, %879 : vector<16x16xf32>
    %882 = arith.addf %876, %881 : vector<16x16xf32>
    %c42_592 = arith.constant 42 : index
    %883 = memref.load %arg3[%c42_592] : memref<196xf32, #tpu.memory_space<smem>>
    %c0_593 = arith.constant 0 : index
    %c18_594 = arith.constant 18 : index
    %c0_595 = arith.constant 0 : index
    %884 = vector.load %arg9[%c0_593, %c18_594, %c0_595] : memref<4x34x34xf32, #tpu.memory_space<vmem>>, vector<1x16x16xf32>
    %885 = vector.shape_cast %884 : vector<1x16x16xf32> to vector<16x16xf32>
    %886 = vector.broadcast %883 : f32 to vector<16x16xf32>
    %887 = arith.mulf %886, %885 : vector<16x16xf32>
    %888 = arith.addf %882, %887 : vector<16x16xf32>
    %c43_596 = arith.constant 43 : index
    %889 = memref.load %arg3[%c43_596] : memref<196xf32, #tpu.memory_space<smem>>
    %c0_597 = arith.constant 0 : index
    %c18_598 = arith.constant 18 : index
    %c3_599 = arith.constant 3 : index
    %890 = vector.load %arg9[%c0_597, %c18_598, %c3_599] : memref<4x34x34xf32, #tpu.memory_space<vmem>>, vector<1x16x16xf32>
    %891 = vector.shape_cast %890 : vector<1x16x16xf32> to vector<16x16xf32>
    %892 = vector.broadcast %889 : f32 to vector<16x16xf32>
    %893 = arith.mulf %892, %891 : vector<16x16xf32>
    %894 = arith.addf %888, %893 : vector<16x16xf32>
    %c44_600 = arith.constant 44 : index
    %895 = memref.load %arg3[%c44_600] : memref<196xf32, #tpu.memory_space<smem>>
    %c0_601 = arith.constant 0 : index
    %c18_602 = arith.constant 18 : index
    %c6_603 = arith.constant 6 : index
    %896 = vector.load %arg9[%c0_601, %c18_602, %c6_603] : memref<4x34x34xf32, #tpu.memory_space<vmem>>, vector<1x16x16xf32>
    %897 = vector.shape_cast %896 : vector<1x16x16xf32> to vector<16x16xf32>
    %898 = vector.broadcast %895 : f32 to vector<16x16xf32>
    %899 = arith.mulf %898, %897 : vector<16x16xf32>
    %900 = arith.addf %894, %899 : vector<16x16xf32>
    %c45_604 = arith.constant 45 : index
    %901 = memref.load %arg3[%c45_604] : memref<196xf32, #tpu.memory_space<smem>>
    %c0_605 = arith.constant 0 : index
    %c18_606 = arith.constant 18 : index
    %c9_607 = arith.constant 9 : index
    %902 = vector.load %arg9[%c0_605, %c18_606, %c9_607] : memref<4x34x34xf32, #tpu.memory_space<vmem>>, vector<1x16x16xf32>
    %903 = vector.shape_cast %902 : vector<1x16x16xf32> to vector<16x16xf32>
    %904 = vector.broadcast %901 : f32 to vector<16x16xf32>
    %905 = arith.mulf %904, %903 : vector<16x16xf32>
    %906 = arith.addf %900, %905 : vector<16x16xf32>
    %c46_608 = arith.constant 46 : index
    %907 = memref.load %arg3[%c46_608] : memref<196xf32, #tpu.memory_space<smem>>
    %c0_609 = arith.constant 0 : index
    %c18_610 = arith.constant 18 : index
    %c12_611 = arith.constant 12 : index
    %908 = vector.load %arg9[%c0_609, %c18_610, %c12_611] : memref<4x34x34xf32, #tpu.memory_space<vmem>>, vector<1x16x16xf32>
    %909 = vector.shape_cast %908 : vector<1x16x16xf32> to vector<16x16xf32>
    %910 = vector.broadcast %907 : f32 to vector<16x16xf32>
    %911 = arith.mulf %910, %909 : vector<16x16xf32>
    %912 = arith.addf %906, %911 : vector<16x16xf32>
    %c47_612 = arith.constant 47 : index
    %913 = memref.load %arg3[%c47_612] : memref<196xf32, #tpu.memory_space<smem>>
    %c0_613 = arith.constant 0 : index
    %c18_614 = arith.constant 18 : index
    %c15_615 = arith.constant 15 : index
    %914 = vector.load %arg9[%c0_613, %c18_614, %c15_615] : memref<4x34x34xf32, #tpu.memory_space<vmem>>, vector<1x16x16xf32>
    %915 = vector.shape_cast %914 : vector<1x16x16xf32> to vector<16x16xf32>
    %916 = vector.broadcast %913 : f32 to vector<16x16xf32>
    %917 = arith.mulf %916, %915 : vector<16x16xf32>
    %918 = arith.addf %912, %917 : vector<16x16xf32>
    %c48_616 = arith.constant 48 : index
    %919 = memref.load %arg3[%c48_616] : memref<196xf32, #tpu.memory_space<smem>>
    %c0_617 = arith.constant 0 : index
    %c18_618 = arith.constant 18 : index
    %c18_619 = arith.constant 18 : index
    %920 = vector.load %arg9[%c0_617, %c18_618, %c18_619] : memref<4x34x34xf32, #tpu.memory_space<vmem>>, vector<1x16x16xf32>
    %921 = vector.shape_cast %920 : vector<1x16x16xf32> to vector<16x16xf32>
    %922 = vector.broadcast %919 : f32 to vector<16x16xf32>
    %923 = arith.mulf %922, %921 : vector<16x16xf32>
    %924 = arith.addf %918, %923 : vector<16x16xf32>
    %c0_620 = arith.constant 0 : index
    %925 = memref.load %arg4[%c0_620] : memref<4xf32, #tpu.memory_space<smem>>
    %926 = vector.broadcast %925 : f32 to vector<16x16xf32>
    %927 = arith.addf %924, %926 : vector<16x16xf32>
    %cst_621 = arith.constant 0.000000e+00 : f32
    %928 = vector.broadcast %cst_621 : f32 to vector<16x16xf32>
    %c49_622 = arith.constant 49 : index
    %929 = memref.load %arg3[%c49_622] : memref<196xf32, #tpu.memory_space<smem>>
    %c1_623 = arith.constant 1 : index
    %c0_624 = arith.constant 0 : index
    %c0_625 = arith.constant 0 : index
    %930 = vector.load %arg9[%c1_623, %c0_624, %c0_625] : memref<4x34x34xf32, #tpu.memory_space<vmem>>, vector<1x16x16xf32>
    %931 = vector.shape_cast %930 : vector<1x16x16xf32> to vector<16x16xf32>
    %932 = vector.broadcast %929 : f32 to vector<16x16xf32>
    %933 = arith.mulf %932, %931 : vector<16x16xf32>
    %934 = arith.addf %928, %933 : vector<16x16xf32>
    %c50_626 = arith.constant 50 : index
    %935 = memref.load %arg3[%c50_626] : memref<196xf32, #tpu.memory_space<smem>>
    %c1_627 = arith.constant 1 : index
    %c0_628 = arith.constant 0 : index
    %c3_629 = arith.constant 3 : index
    %936 = vector.load %arg9[%c1_627, %c0_628, %c3_629] : memref<4x34x34xf32, #tpu.memory_space<vmem>>, vector<1x16x16xf32>
    %937 = vector.shape_cast %936 : vector<1x16x16xf32> to vector<16x16xf32>
    %938 = vector.broadcast %935 : f32 to vector<16x16xf32>
    %939 = arith.mulf %938, %937 : vector<16x16xf32>
    %940 = arith.addf %934, %939 : vector<16x16xf32>
    %c51_630 = arith.constant 51 : index
    %941 = memref.load %arg3[%c51_630] : memref<196xf32, #tpu.memory_space<smem>>
    %c1_631 = arith.constant 1 : index
    %c0_632 = arith.constant 0 : index
    %c6_633 = arith.constant 6 : index
    %942 = vector.load %arg9[%c1_631, %c0_632, %c6_633] : memref<4x34x34xf32, #tpu.memory_space<vmem>>, vector<1x16x16xf32>
    %943 = vector.shape_cast %942 : vector<1x16x16xf32> to vector<16x16xf32>
    %944 = vector.broadcast %941 : f32 to vector<16x16xf32>
    %945 = arith.mulf %944, %943 : vector<16x16xf32>
    %946 = arith.addf %940, %945 : vector<16x16xf32>
    %c52_634 = arith.constant 52 : index
    %947 = memref.load %arg3[%c52_634] : memref<196xf32, #tpu.memory_space<smem>>
    %c1_635 = arith.constant 1 : index
    %c0_636 = arith.constant 0 : index
    %c9_637 = arith.constant 9 : index
    %948 = vector.load %arg9[%c1_635, %c0_636, %c9_637] : memref<4x34x34xf32, #tpu.memory_space<vmem>>, vector<1x16x16xf32>
    %949 = vector.shape_cast %948 : vector<1x16x16xf32> to vector<16x16xf32>
    %950 = vector.broadcast %947 : f32 to vector<16x16xf32>
    %951 = arith.mulf %950, %949 : vector<16x16xf32>
    %952 = arith.addf %946, %951 : vector<16x16xf32>
    %c53_638 = arith.constant 53 : index
    %953 = memref.load %arg3[%c53_638] : memref<196xf32, #tpu.memory_space<smem>>
    %c1_639 = arith.constant 1 : index
    %c0_640 = arith.constant 0 : index
    %c12_641 = arith.constant 12 : index
    %954 = vector.load %arg9[%c1_639, %c0_640, %c12_641] : memref<4x34x34xf32, #tpu.memory_space<vmem>>, vector<1x16x16xf32>
    %955 = vector.shape_cast %954 : vector<1x16x16xf32> to vector<16x16xf32>
    %956 = vector.broadcast %953 : f32 to vector<16x16xf32>
    %957 = arith.mulf %956, %955 : vector<16x16xf32>
    %958 = arith.addf %952, %957 : vector<16x16xf32>
    %c54_642 = arith.constant 54 : index
    %959 = memref.load %arg3[%c54_642] : memref<196xf32, #tpu.memory_space<smem>>
    %c1_643 = arith.constant 1 : index
    %c0_644 = arith.constant 0 : index
    %c15_645 = arith.constant 15 : index
    %960 = vector.load %arg9[%c1_643, %c0_644, %c15_645] : memref<4x34x34xf32, #tpu.memory_space<vmem>>, vector<1x16x16xf32>
    %961 = vector.shape_cast %960 : vector<1x16x16xf32> to vector<16x16xf32>
    %962 = vector.broadcast %959 : f32 to vector<16x16xf32>
    %963 = arith.mulf %962, %961 : vector<16x16xf32>
    %964 = arith.addf %958, %963 : vector<16x16xf32>
    %c55_646 = arith.constant 55 : index
    %965 = memref.load %arg3[%c55_646] : memref<196xf32, #tpu.memory_space<smem>>
    %c1_647 = arith.constant 1 : index
    %c0_648 = arith.constant 0 : index
    %c18_649 = arith.constant 18 : index
    %966 = vector.load %arg9[%c1_647, %c0_648, %c18_649] : memref<4x34x34xf32, #tpu.memory_space<vmem>>, vector<1x16x16xf32>
    %967 = vector.shape_cast %966 : vector<1x16x16xf32> to vector<16x16xf32>
    %968 = vector.broadcast %965 : f32 to vector<16x16xf32>
    %969 = arith.mulf %968, %967 : vector<16x16xf32>
    %970 = arith.addf %964, %969 : vector<16x16xf32>
    %c56_650 = arith.constant 56 : index
    %971 = memref.load %arg3[%c56_650] : memref<196xf32, #tpu.memory_space<smem>>
    %c1_651 = arith.constant 1 : index
    %c3_652 = arith.constant 3 : index
    %c0_653 = arith.constant 0 : index
    %972 = vector.load %arg9[%c1_651, %c3_652, %c0_653] : memref<4x34x34xf32, #tpu.memory_space<vmem>>, vector<1x16x16xf32>
    %973 = vector.shape_cast %972 : vector<1x16x16xf32> to vector<16x16xf32>
    %974 = vector.broadcast %971 : f32 to vector<16x16xf32>
    %975 = arith.mulf %974, %973 : vector<16x16xf32>
    %976 = arith.addf %970, %975 : vector<16x16xf32>
    %c57_654 = arith.constant 57 : index
    %977 = memref.load %arg3[%c57_654] : memref<196xf32, #tpu.memory_space<smem>>
    %c1_655 = arith.constant 1 : index
    %c3_656 = arith.constant 3 : index
    %c3_657 = arith.constant 3 : index
    %978 = vector.load %arg9[%c1_655, %c3_656, %c3_657] : memref<4x34x34xf32, #tpu.memory_space<vmem>>, vector<1x16x16xf32>
    %979 = vector.shape_cast %978 : vector<1x16x16xf32> to vector<16x16xf32>
    %980 = vector.broadcast %977 : f32 to vector<16x16xf32>
    %981 = arith.mulf %980, %979 : vector<16x16xf32>
    %982 = arith.addf %976, %981 : vector<16x16xf32>
    %c58_658 = arith.constant 58 : index
    %983 = memref.load %arg3[%c58_658] : memref<196xf32, #tpu.memory_space<smem>>
    %c1_659 = arith.constant 1 : index
    %c3_660 = arith.constant 3 : index
    %c6_661 = arith.constant 6 : index
    %984 = vector.load %arg9[%c1_659, %c3_660, %c6_661] : memref<4x34x34xf32, #tpu.memory_space<vmem>>, vector<1x16x16xf32>
    %985 = vector.shape_cast %984 : vector<1x16x16xf32> to vector<16x16xf32>
    %986 = vector.broadcast %983 : f32 to vector<16x16xf32>
    %987 = arith.mulf %986, %985 : vector<16x16xf32>
    %988 = arith.addf %982, %987 : vector<16x16xf32>
    %c59_662 = arith.constant 59 : index
    %989 = memref.load %arg3[%c59_662] : memref<196xf32, #tpu.memory_space<smem>>
    %c1_663 = arith.constant 1 : index
    %c3_664 = arith.constant 3 : index
    %c9_665 = arith.constant 9 : index
    %990 = vector.load %arg9[%c1_663, %c3_664, %c9_665] : memref<4x34x34xf32, #tpu.memory_space<vmem>>, vector<1x16x16xf32>
    %991 = vector.shape_cast %990 : vector<1x16x16xf32> to vector<16x16xf32>
    %992 = vector.broadcast %989 : f32 to vector<16x16xf32>
    %993 = arith.mulf %992, %991 : vector<16x16xf32>
    %994 = arith.addf %988, %993 : vector<16x16xf32>
    %c60_666 = arith.constant 60 : index
    %995 = memref.load %arg3[%c60_666] : memref<196xf32, #tpu.memory_space<smem>>
    %c1_667 = arith.constant 1 : index
    %c3_668 = arith.constant 3 : index
    %c12_669 = arith.constant 12 : index
    %996 = vector.load %arg9[%c1_667, %c3_668, %c12_669] : memref<4x34x34xf32, #tpu.memory_space<vmem>>, vector<1x16x16xf32>
    %997 = vector.shape_cast %996 : vector<1x16x16xf32> to vector<16x16xf32>
    %998 = vector.broadcast %995 : f32 to vector<16x16xf32>
    %999 = arith.mulf %998, %997 : vector<16x16xf32>
    %1000 = arith.addf %994, %999 : vector<16x16xf32>
    %c61_670 = arith.constant 61 : index
    %1001 = memref.load %arg3[%c61_670] : memref<196xf32, #tpu.memory_space<smem>>
    %c1_671 = arith.constant 1 : index
    %c3_672 = arith.constant 3 : index
    %c15_673 = arith.constant 15 : index
    %1002 = vector.load %arg9[%c1_671, %c3_672, %c15_673] : memref<4x34x34xf32, #tpu.memory_space<vmem>>, vector<1x16x16xf32>
    %1003 = vector.shape_cast %1002 : vector<1x16x16xf32> to vector<16x16xf32>
    %1004 = vector.broadcast %1001 : f32 to vector<16x16xf32>
    %1005 = arith.mulf %1004, %1003 : vector<16x16xf32>
    %1006 = arith.addf %1000, %1005 : vector<16x16xf32>
    %c62_674 = arith.constant 62 : index
    %1007 = memref.load %arg3[%c62_674] : memref<196xf32, #tpu.memory_space<smem>>
    %c1_675 = arith.constant 1 : index
    %c3_676 = arith.constant 3 : index
    %c18_677 = arith.constant 18 : index
    %1008 = vector.load %arg9[%c1_675, %c3_676, %c18_677] : memref<4x34x34xf32, #tpu.memory_space<vmem>>, vector<1x16x16xf32>
    %1009 = vector.shape_cast %1008 : vector<1x16x16xf32> to vector<16x16xf32>
    %1010 = vector.broadcast %1007 : f32 to vector<16x16xf32>
    %1011 = arith.mulf %1010, %1009 : vector<16x16xf32>
    %1012 = arith.addf %1006, %1011 : vector<16x16xf32>
    %c63_678 = arith.constant 63 : index
    %1013 = memref.load %arg3[%c63_678] : memref<196xf32, #tpu.memory_space<smem>>
    %c1_679 = arith.constant 1 : index
    %c6_680 = arith.constant 6 : index
    %c0_681 = arith.constant 0 : index
    %1014 = vector.load %arg9[%c1_679, %c6_680, %c0_681] : memref<4x34x34xf32, #tpu.memory_space<vmem>>, vector<1x16x16xf32>
    %1015 = vector.shape_cast %1014 : vector<1x16x16xf32> to vector<16x16xf32>
    %1016 = vector.broadcast %1013 : f32 to vector<16x16xf32>
    %1017 = arith.mulf %1016, %1015 : vector<16x16xf32>
    %1018 = arith.addf %1012, %1017 : vector<16x16xf32>
    %c64_682 = arith.constant 64 : index
    %1019 = memref.load %arg3[%c64_682] : memref<196xf32, #tpu.memory_space<smem>>
    %c1_683 = arith.constant 1 : index
    %c6_684 = arith.constant 6 : index
    %c3_685 = arith.constant 3 : index
    %1020 = vector.load %arg9[%c1_683, %c6_684, %c3_685] : memref<4x34x34xf32, #tpu.memory_space<vmem>>, vector<1x16x16xf32>
    %1021 = vector.shape_cast %1020 : vector<1x16x16xf32> to vector<16x16xf32>
    %1022 = vector.broadcast %1019 : f32 to vector<16x16xf32>
    %1023 = arith.mulf %1022, %1021 : vector<16x16xf32>
    %1024 = arith.addf %1018, %1023 : vector<16x16xf32>
    %c65_686 = arith.constant 65 : index
    %1025 = memref.load %arg3[%c65_686] : memref<196xf32, #tpu.memory_space<smem>>
    %c1_687 = arith.constant 1 : index
    %c6_688 = arith.constant 6 : index
    %c6_689 = arith.constant 6 : index
    %1026 = vector.load %arg9[%c1_687, %c6_688, %c6_689] : memref<4x34x34xf32, #tpu.memory_space<vmem>>, vector<1x16x16xf32>
    %1027 = vector.shape_cast %1026 : vector<1x16x16xf32> to vector<16x16xf32>
    %1028 = vector.broadcast %1025 : f32 to vector<16x16xf32>
    %1029 = arith.mulf %1028, %1027 : vector<16x16xf32>
    %1030 = arith.addf %1024, %1029 : vector<16x16xf32>
    %c66_690 = arith.constant 66 : index
    %1031 = memref.load %arg3[%c66_690] : memref<196xf32, #tpu.memory_space<smem>>
    %c1_691 = arith.constant 1 : index
    %c6_692 = arith.constant 6 : index
    %c9_693 = arith.constant 9 : index
    %1032 = vector.load %arg9[%c1_691, %c6_692, %c9_693] : memref<4x34x34xf32, #tpu.memory_space<vmem>>, vector<1x16x16xf32>
    %1033 = vector.shape_cast %1032 : vector<1x16x16xf32> to vector<16x16xf32>
    %1034 = vector.broadcast %1031 : f32 to vector<16x16xf32>
    %1035 = arith.mulf %1034, %1033 : vector<16x16xf32>
    %1036 = arith.addf %1030, %1035 : vector<16x16xf32>
    %c67_694 = arith.constant 67 : index
    %1037 = memref.load %arg3[%c67_694] : memref<196xf32, #tpu.memory_space<smem>>
    %c1_695 = arith.constant 1 : index
    %c6_696 = arith.constant 6 : index
    %c12_697 = arith.constant 12 : index
    %1038 = vector.load %arg9[%c1_695, %c6_696, %c12_697] : memref<4x34x34xf32, #tpu.memory_space<vmem>>, vector<1x16x16xf32>
    %1039 = vector.shape_cast %1038 : vector<1x16x16xf32> to vector<16x16xf32>
    %1040 = vector.broadcast %1037 : f32 to vector<16x16xf32>
    %1041 = arith.mulf %1040, %1039 : vector<16x16xf32>
    %1042 = arith.addf %1036, %1041 : vector<16x16xf32>
    %c68_698 = arith.constant 68 : index
    %1043 = memref.load %arg3[%c68_698] : memref<196xf32, #tpu.memory_space<smem>>
    %c1_699 = arith.constant 1 : index
    %c6_700 = arith.constant 6 : index
    %c15_701 = arith.constant 15 : index
    %1044 = vector.load %arg9[%c1_699, %c6_700, %c15_701] : memref<4x34x34xf32, #tpu.memory_space<vmem>>, vector<1x16x16xf32>
    %1045 = vector.shape_cast %1044 : vector<1x16x16xf32> to vector<16x16xf32>
    %1046 = vector.broadcast %1043 : f32 to vector<16x16xf32>
    %1047 = arith.mulf %1046, %1045 : vector<16x16xf32>
    %1048 = arith.addf %1042, %1047 : vector<16x16xf32>
    %c69_702 = arith.constant 69 : index
    %1049 = memref.load %arg3[%c69_702] : memref<196xf32, #tpu.memory_space<smem>>
    %c1_703 = arith.constant 1 : index
    %c6_704 = arith.constant 6 : index
    %c18_705 = arith.constant 18 : index
    %1050 = vector.load %arg9[%c1_703, %c6_704, %c18_705] : memref<4x34x34xf32, #tpu.memory_space<vmem>>, vector<1x16x16xf32>
    %1051 = vector.shape_cast %1050 : vector<1x16x16xf32> to vector<16x16xf32>
    %1052 = vector.broadcast %1049 : f32 to vector<16x16xf32>
    %1053 = arith.mulf %1052, %1051 : vector<16x16xf32>
    %1054 = arith.addf %1048, %1053 : vector<16x16xf32>
    %c70_706 = arith.constant 70 : index
    %1055 = memref.load %arg3[%c70_706] : memref<196xf32, #tpu.memory_space<smem>>
    %c1_707 = arith.constant 1 : index
    %c9_708 = arith.constant 9 : index
    %c0_709 = arith.constant 0 : index
    %1056 = vector.load %arg9[%c1_707, %c9_708, %c0_709] : memref<4x34x34xf32, #tpu.memory_space<vmem>>, vector<1x16x16xf32>
    %1057 = vector.shape_cast %1056 : vector<1x16x16xf32> to vector<16x16xf32>
    %1058 = vector.broadcast %1055 : f32 to vector<16x16xf32>
    %1059 = arith.mulf %1058, %1057 : vector<16x16xf32>
    %1060 = arith.addf %1054, %1059 : vector<16x16xf32>
    %c71_710 = arith.constant 71 : index
    %1061 = memref.load %arg3[%c71_710] : memref<196xf32, #tpu.memory_space<smem>>
    %c1_711 = arith.constant 1 : index
    %c9_712 = arith.constant 9 : index
    %c3_713 = arith.constant 3 : index
    %1062 = vector.load %arg9[%c1_711, %c9_712, %c3_713] : memref<4x34x34xf32, #tpu.memory_space<vmem>>, vector<1x16x16xf32>
    %1063 = vector.shape_cast %1062 : vector<1x16x16xf32> to vector<16x16xf32>
    %1064 = vector.broadcast %1061 : f32 to vector<16x16xf32>
    %1065 = arith.mulf %1064, %1063 : vector<16x16xf32>
    %1066 = arith.addf %1060, %1065 : vector<16x16xf32>
    %c72_714 = arith.constant 72 : index
    %1067 = memref.load %arg3[%c72_714] : memref<196xf32, #tpu.memory_space<smem>>
    %c1_715 = arith.constant 1 : index
    %c9_716 = arith.constant 9 : index
    %c6_717 = arith.constant 6 : index
    %1068 = vector.load %arg9[%c1_715, %c9_716, %c6_717] : memref<4x34x34xf32, #tpu.memory_space<vmem>>, vector<1x16x16xf32>
    %1069 = vector.shape_cast %1068 : vector<1x16x16xf32> to vector<16x16xf32>
    %1070 = vector.broadcast %1067 : f32 to vector<16x16xf32>
    %1071 = arith.mulf %1070, %1069 : vector<16x16xf32>
    %1072 = arith.addf %1066, %1071 : vector<16x16xf32>
    %c73_718 = arith.constant 73 : index
    %1073 = memref.load %arg3[%c73_718] : memref<196xf32, #tpu.memory_space<smem>>
    %c1_719 = arith.constant 1 : index
    %c9_720 = arith.constant 9 : index
    %c9_721 = arith.constant 9 : index
    %1074 = vector.load %arg9[%c1_719, %c9_720, %c9_721] : memref<4x34x34xf32, #tpu.memory_space<vmem>>, vector<1x16x16xf32>
    %1075 = vector.shape_cast %1074 : vector<1x16x16xf32> to vector<16x16xf32>
    %1076 = vector.broadcast %1073 : f32 to vector<16x16xf32>
    %1077 = arith.mulf %1076, %1075 : vector<16x16xf32>
    %1078 = arith.addf %1072, %1077 : vector<16x16xf32>
    %c74_722 = arith.constant 74 : index
    %1079 = memref.load %arg3[%c74_722] : memref<196xf32, #tpu.memory_space<smem>>
    %c1_723 = arith.constant 1 : index
    %c9_724 = arith.constant 9 : index
    %c12_725 = arith.constant 12 : index
    %1080 = vector.load %arg9[%c1_723, %c9_724, %c12_725] : memref<4x34x34xf32, #tpu.memory_space<vmem>>, vector<1x16x16xf32>
    %1081 = vector.shape_cast %1080 : vector<1x16x16xf32> to vector<16x16xf32>
    %1082 = vector.broadcast %1079 : f32 to vector<16x16xf32>
    %1083 = arith.mulf %1082, %1081 : vector<16x16xf32>
    %1084 = arith.addf %1078, %1083 : vector<16x16xf32>
    %c75_726 = arith.constant 75 : index
    %1085 = memref.load %arg3[%c75_726] : memref<196xf32, #tpu.memory_space<smem>>
    %c1_727 = arith.constant 1 : index
    %c9_728 = arith.constant 9 : index
    %c15_729 = arith.constant 15 : index
    %1086 = vector.load %arg9[%c1_727, %c9_728, %c15_729] : memref<4x34x34xf32, #tpu.memory_space<vmem>>, vector<1x16x16xf32>
    %1087 = vector.shape_cast %1086 : vector<1x16x16xf32> to vector<16x16xf32>
    %1088 = vector.broadcast %1085 : f32 to vector<16x16xf32>
    %1089 = arith.mulf %1088, %1087 : vector<16x16xf32>
    %1090 = arith.addf %1084, %1089 : vector<16x16xf32>
    %c76_730 = arith.constant 76 : index
    %1091 = memref.load %arg3[%c76_730] : memref<196xf32, #tpu.memory_space<smem>>
    %c1_731 = arith.constant 1 : index
    %c9_732 = arith.constant 9 : index
    %c18_733 = arith.constant 18 : index
    %1092 = vector.load %arg9[%c1_731, %c9_732, %c18_733] : memref<4x34x34xf32, #tpu.memory_space<vmem>>, vector<1x16x16xf32>
    %1093 = vector.shape_cast %1092 : vector<1x16x16xf32> to vector<16x16xf32>
    %1094 = vector.broadcast %1091 : f32 to vector<16x16xf32>
    %1095 = arith.mulf %1094, %1093 : vector<16x16xf32>
    %1096 = arith.addf %1090, %1095 : vector<16x16xf32>
    %c77_734 = arith.constant 77 : index
    %1097 = memref.load %arg3[%c77_734] : memref<196xf32, #tpu.memory_space<smem>>
    %c1_735 = arith.constant 1 : index
    %c12_736 = arith.constant 12 : index
    %c0_737 = arith.constant 0 : index
    %1098 = vector.load %arg9[%c1_735, %c12_736, %c0_737] : memref<4x34x34xf32, #tpu.memory_space<vmem>>, vector<1x16x16xf32>
    %1099 = vector.shape_cast %1098 : vector<1x16x16xf32> to vector<16x16xf32>
    %1100 = vector.broadcast %1097 : f32 to vector<16x16xf32>
    %1101 = arith.mulf %1100, %1099 : vector<16x16xf32>
    %1102 = arith.addf %1096, %1101 : vector<16x16xf32>
    %c78_738 = arith.constant 78 : index
    %1103 = memref.load %arg3[%c78_738] : memref<196xf32, #tpu.memory_space<smem>>
    %c1_739 = arith.constant 1 : index
    %c12_740 = arith.constant 12 : index
    %c3_741 = arith.constant 3 : index
    %1104 = vector.load %arg9[%c1_739, %c12_740, %c3_741] : memref<4x34x34xf32, #tpu.memory_space<vmem>>, vector<1x16x16xf32>
    %1105 = vector.shape_cast %1104 : vector<1x16x16xf32> to vector<16x16xf32>
    %1106 = vector.broadcast %1103 : f32 to vector<16x16xf32>
    %1107 = arith.mulf %1106, %1105 : vector<16x16xf32>
    %1108 = arith.addf %1102, %1107 : vector<16x16xf32>
    %c79_742 = arith.constant 79 : index
    %1109 = memref.load %arg3[%c79_742] : memref<196xf32, #tpu.memory_space<smem>>
    %c1_743 = arith.constant 1 : index
    %c12_744 = arith.constant 12 : index
    %c6_745 = arith.constant 6 : index
    %1110 = vector.load %arg9[%c1_743, %c12_744, %c6_745] : memref<4x34x34xf32, #tpu.memory_space<vmem>>, vector<1x16x16xf32>
    %1111 = vector.shape_cast %1110 : vector<1x16x16xf32> to vector<16x16xf32>
    %1112 = vector.broadcast %1109 : f32 to vector<16x16xf32>
    %1113 = arith.mulf %1112, %1111 : vector<16x16xf32>
    %1114 = arith.addf %1108, %1113 : vector<16x16xf32>
    %c80_746 = arith.constant 80 : index
    %1115 = memref.load %arg3[%c80_746] : memref<196xf32, #tpu.memory_space<smem>>
    %c1_747 = arith.constant 1 : index
    %c12_748 = arith.constant 12 : index
    %c9_749 = arith.constant 9 : index
    %1116 = vector.load %arg9[%c1_747, %c12_748, %c9_749] : memref<4x34x34xf32, #tpu.memory_space<vmem>>, vector<1x16x16xf32>
    %1117 = vector.shape_cast %1116 : vector<1x16x16xf32> to vector<16x16xf32>
    %1118 = vector.broadcast %1115 : f32 to vector<16x16xf32>
    %1119 = arith.mulf %1118, %1117 : vector<16x16xf32>
    %1120 = arith.addf %1114, %1119 : vector<16x16xf32>
    %c81_750 = arith.constant 81 : index
    %1121 = memref.load %arg3[%c81_750] : memref<196xf32, #tpu.memory_space<smem>>
    %c1_751 = arith.constant 1 : index
    %c12_752 = arith.constant 12 : index
    %c12_753 = arith.constant 12 : index
    %1122 = vector.load %arg9[%c1_751, %c12_752, %c12_753] : memref<4x34x34xf32, #tpu.memory_space<vmem>>, vector<1x16x16xf32>
    %1123 = vector.shape_cast %1122 : vector<1x16x16xf32> to vector<16x16xf32>
    %1124 = vector.broadcast %1121 : f32 to vector<16x16xf32>
    %1125 = arith.mulf %1124, %1123 : vector<16x16xf32>
    %1126 = arith.addf %1120, %1125 : vector<16x16xf32>
    %c82_754 = arith.constant 82 : index
    %1127 = memref.load %arg3[%c82_754] : memref<196xf32, #tpu.memory_space<smem>>
    %c1_755 = arith.constant 1 : index
    %c12_756 = arith.constant 12 : index
    %c15_757 = arith.constant 15 : index
    %1128 = vector.load %arg9[%c1_755, %c12_756, %c15_757] : memref<4x34x34xf32, #tpu.memory_space<vmem>>, vector<1x16x16xf32>
    %1129 = vector.shape_cast %1128 : vector<1x16x16xf32> to vector<16x16xf32>
    %1130 = vector.broadcast %1127 : f32 to vector<16x16xf32>
    %1131 = arith.mulf %1130, %1129 : vector<16x16xf32>
    %1132 = arith.addf %1126, %1131 : vector<16x16xf32>
    %c83_758 = arith.constant 83 : index
    %1133 = memref.load %arg3[%c83_758] : memref<196xf32, #tpu.memory_space<smem>>
    %c1_759 = arith.constant 1 : index
    %c12_760 = arith.constant 12 : index
    %c18_761 = arith.constant 18 : index
    %1134 = vector.load %arg9[%c1_759, %c12_760, %c18_761] : memref<4x34x34xf32, #tpu.memory_space<vmem>>, vector<1x16x16xf32>
    %1135 = vector.shape_cast %1134 : vector<1x16x16xf32> to vector<16x16xf32>
    %1136 = vector.broadcast %1133 : f32 to vector<16x16xf32>
    %1137 = arith.mulf %1136, %1135 : vector<16x16xf32>
    %1138 = arith.addf %1132, %1137 : vector<16x16xf32>
    %c84_762 = arith.constant 84 : index
    %1139 = memref.load %arg3[%c84_762] : memref<196xf32, #tpu.memory_space<smem>>
    %c1_763 = arith.constant 1 : index
    %c15_764 = arith.constant 15 : index
    %c0_765 = arith.constant 0 : index
    %1140 = vector.load %arg9[%c1_763, %c15_764, %c0_765] : memref<4x34x34xf32, #tpu.memory_space<vmem>>, vector<1x16x16xf32>
    %1141 = vector.shape_cast %1140 : vector<1x16x16xf32> to vector<16x16xf32>
    %1142 = vector.broadcast %1139 : f32 to vector<16x16xf32>
    %1143 = arith.mulf %1142, %1141 : vector<16x16xf32>
    %1144 = arith.addf %1138, %1143 : vector<16x16xf32>
    %c85_766 = arith.constant 85 : index
    %1145 = memref.load %arg3[%c85_766] : memref<196xf32, #tpu.memory_space<smem>>
    %c1_767 = arith.constant 1 : index
    %c15_768 = arith.constant 15 : index
    %c3_769 = arith.constant 3 : index
    %1146 = vector.load %arg9[%c1_767, %c15_768, %c3_769] : memref<4x34x34xf32, #tpu.memory_space<vmem>>, vector<1x16x16xf32>
    %1147 = vector.shape_cast %1146 : vector<1x16x16xf32> to vector<16x16xf32>
    %1148 = vector.broadcast %1145 : f32 to vector<16x16xf32>
    %1149 = arith.mulf %1148, %1147 : vector<16x16xf32>
    %1150 = arith.addf %1144, %1149 : vector<16x16xf32>
    %c86_770 = arith.constant 86 : index
    %1151 = memref.load %arg3[%c86_770] : memref<196xf32, #tpu.memory_space<smem>>
    %c1_771 = arith.constant 1 : index
    %c15_772 = arith.constant 15 : index
    %c6_773 = arith.constant 6 : index
    %1152 = vector.load %arg9[%c1_771, %c15_772, %c6_773] : memref<4x34x34xf32, #tpu.memory_space<vmem>>, vector<1x16x16xf32>
    %1153 = vector.shape_cast %1152 : vector<1x16x16xf32> to vector<16x16xf32>
    %1154 = vector.broadcast %1151 : f32 to vector<16x16xf32>
    %1155 = arith.mulf %1154, %1153 : vector<16x16xf32>
    %1156 = arith.addf %1150, %1155 : vector<16x16xf32>
    %c87_774 = arith.constant 87 : index
    %1157 = memref.load %arg3[%c87_774] : memref<196xf32, #tpu.memory_space<smem>>
    %c1_775 = arith.constant 1 : index
    %c15_776 = arith.constant 15 : index
    %c9_777 = arith.constant 9 : index
    %1158 = vector.load %arg9[%c1_775, %c15_776, %c9_777] : memref<4x34x34xf32, #tpu.memory_space<vmem>>, vector<1x16x16xf32>
    %1159 = vector.shape_cast %1158 : vector<1x16x16xf32> to vector<16x16xf32>
    %1160 = vector.broadcast %1157 : f32 to vector<16x16xf32>
    %1161 = arith.mulf %1160, %1159 : vector<16x16xf32>
    %1162 = arith.addf %1156, %1161 : vector<16x16xf32>
    %c88_778 = arith.constant 88 : index
    %1163 = memref.load %arg3[%c88_778] : memref<196xf32, #tpu.memory_space<smem>>
    %c1_779 = arith.constant 1 : index
    %c15_780 = arith.constant 15 : index
    %c12_781 = arith.constant 12 : index
    %1164 = vector.load %arg9[%c1_779, %c15_780, %c12_781] : memref<4x34x34xf32, #tpu.memory_space<vmem>>, vector<1x16x16xf32>
    %1165 = vector.shape_cast %1164 : vector<1x16x16xf32> to vector<16x16xf32>
    %1166 = vector.broadcast %1163 : f32 to vector<16x16xf32>
    %1167 = arith.mulf %1166, %1165 : vector<16x16xf32>
    %1168 = arith.addf %1162, %1167 : vector<16x16xf32>
    %c89_782 = arith.constant 89 : index
    %1169 = memref.load %arg3[%c89_782] : memref<196xf32, #tpu.memory_space<smem>>
    %c1_783 = arith.constant 1 : index
    %c15_784 = arith.constant 15 : index
    %c15_785 = arith.constant 15 : index
    %1170 = vector.load %arg9[%c1_783, %c15_784, %c15_785] : memref<4x34x34xf32, #tpu.memory_space<vmem>>, vector<1x16x16xf32>
    %1171 = vector.shape_cast %1170 : vector<1x16x16xf32> to vector<16x16xf32>
    %1172 = vector.broadcast %1169 : f32 to vector<16x16xf32>
    %1173 = arith.mulf %1172, %1171 : vector<16x16xf32>
    %1174 = arith.addf %1168, %1173 : vector<16x16xf32>
    %c90_786 = arith.constant 90 : index
    %1175 = memref.load %arg3[%c90_786] : memref<196xf32, #tpu.memory_space<smem>>
    %c1_787 = arith.constant 1 : index
    %c15_788 = arith.constant 15 : index
    %c18_789 = arith.constant 18 : index
    %1176 = vector.load %arg9[%c1_787, %c15_788, %c18_789] : memref<4x34x34xf32, #tpu.memory_space<vmem>>, vector<1x16x16xf32>
    %1177 = vector.shape_cast %1176 : vector<1x16x16xf32> to vector<16x16xf32>
    %1178 = vector.broadcast %1175 : f32 to vector<16x16xf32>
    %1179 = arith.mulf %1178, %1177 : vector<16x16xf32>
    %1180 = arith.addf %1174, %1179 : vector<16x16xf32>
    %c91_790 = arith.constant 91 : index
    %1181 = memref.load %arg3[%c91_790] : memref<196xf32, #tpu.memory_space<smem>>
    %c1_791 = arith.constant 1 : index
    %c18_792 = arith.constant 18 : index
    %c0_793 = arith.constant 0 : index
    %1182 = vector.load %arg9[%c1_791, %c18_792, %c0_793] : memref<4x34x34xf32, #tpu.memory_space<vmem>>, vector<1x16x16xf32>
    %1183 = vector.shape_cast %1182 : vector<1x16x16xf32> to vector<16x16xf32>
    %1184 = vector.broadcast %1181 : f32 to vector<16x16xf32>
    %1185 = arith.mulf %1184, %1183 : vector<16x16xf32>
    %1186 = arith.addf %1180, %1185 : vector<16x16xf32>
    %c92_794 = arith.constant 92 : index
    %1187 = memref.load %arg3[%c92_794] : memref<196xf32, #tpu.memory_space<smem>>
    %c1_795 = arith.constant 1 : index
    %c18_796 = arith.constant 18 : index
    %c3_797 = arith.constant 3 : index
    %1188 = vector.load %arg9[%c1_795, %c18_796, %c3_797] : memref<4x34x34xf32, #tpu.memory_space<vmem>>, vector<1x16x16xf32>
    %1189 = vector.shape_cast %1188 : vector<1x16x16xf32> to vector<16x16xf32>
    %1190 = vector.broadcast %1187 : f32 to vector<16x16xf32>
    %1191 = arith.mulf %1190, %1189 : vector<16x16xf32>
    %1192 = arith.addf %1186, %1191 : vector<16x16xf32>
    %c93_798 = arith.constant 93 : index
    %1193 = memref.load %arg3[%c93_798] : memref<196xf32, #tpu.memory_space<smem>>
    %c1_799 = arith.constant 1 : index
    %c18_800 = arith.constant 18 : index
    %c6_801 = arith.constant 6 : index
    %1194 = vector.load %arg9[%c1_799, %c18_800, %c6_801] : memref<4x34x34xf32, #tpu.memory_space<vmem>>, vector<1x16x16xf32>
    %1195 = vector.shape_cast %1194 : vector<1x16x16xf32> to vector<16x16xf32>
    %1196 = vector.broadcast %1193 : f32 to vector<16x16xf32>
    %1197 = arith.mulf %1196, %1195 : vector<16x16xf32>
    %1198 = arith.addf %1192, %1197 : vector<16x16xf32>
    %c94_802 = arith.constant 94 : index
    %1199 = memref.load %arg3[%c94_802] : memref<196xf32, #tpu.memory_space<smem>>
    %c1_803 = arith.constant 1 : index
    %c18_804 = arith.constant 18 : index
    %c9_805 = arith.constant 9 : index
    %1200 = vector.load %arg9[%c1_803, %c18_804, %c9_805] : memref<4x34x34xf32, #tpu.memory_space<vmem>>, vector<1x16x16xf32>
    %1201 = vector.shape_cast %1200 : vector<1x16x16xf32> to vector<16x16xf32>
    %1202 = vector.broadcast %1199 : f32 to vector<16x16xf32>
    %1203 = arith.mulf %1202, %1201 : vector<16x16xf32>
    %1204 = arith.addf %1198, %1203 : vector<16x16xf32>
    %c95_806 = arith.constant 95 : index
    %1205 = memref.load %arg3[%c95_806] : memref<196xf32, #tpu.memory_space<smem>>
    %c1_807 = arith.constant 1 : index
    %c18_808 = arith.constant 18 : index
    %c12_809 = arith.constant 12 : index
    %1206 = vector.load %arg9[%c1_807, %c18_808, %c12_809] : memref<4x34x34xf32, #tpu.memory_space<vmem>>, vector<1x16x16xf32>
    %1207 = vector.shape_cast %1206 : vector<1x16x16xf32> to vector<16x16xf32>
    %1208 = vector.broadcast %1205 : f32 to vector<16x16xf32>
    %1209 = arith.mulf %1208, %1207 : vector<16x16xf32>
    %1210 = arith.addf %1204, %1209 : vector<16x16xf32>
    %c96_810 = arith.constant 96 : index
    %1211 = memref.load %arg3[%c96_810] : memref<196xf32, #tpu.memory_space<smem>>
    %c1_811 = arith.constant 1 : index
    %c18_812 = arith.constant 18 : index
    %c15_813 = arith.constant 15 : index
    %1212 = vector.load %arg9[%c1_811, %c18_812, %c15_813] : memref<4x34x34xf32, #tpu.memory_space<vmem>>, vector<1x16x16xf32>
    %1213 = vector.shape_cast %1212 : vector<1x16x16xf32> to vector<16x16xf32>
    %1214 = vector.broadcast %1211 : f32 to vector<16x16xf32>
    %1215 = arith.mulf %1214, %1213 : vector<16x16xf32>
    %1216 = arith.addf %1210, %1215 : vector<16x16xf32>
    %c97_814 = arith.constant 97 : index
    %1217 = memref.load %arg3[%c97_814] : memref<196xf32, #tpu.memory_space<smem>>
    %c1_815 = arith.constant 1 : index
    %c18_816 = arith.constant 18 : index
    %c18_817 = arith.constant 18 : index
    %1218 = vector.load %arg9[%c1_815, %c18_816, %c18_817] : memref<4x34x34xf32, #tpu.memory_space<vmem>>, vector<1x16x16xf32>
    %1219 = vector.shape_cast %1218 : vector<1x16x16xf32> to vector<16x16xf32>
    %1220 = vector.broadcast %1217 : f32 to vector<16x16xf32>
    %1221 = arith.mulf %1220, %1219 : vector<16x16xf32>
    %1222 = arith.addf %1216, %1221 : vector<16x16xf32>
    %c1_818 = arith.constant 1 : index
    %1223 = memref.load %arg4[%c1_818] : memref<4xf32, #tpu.memory_space<smem>>
    %1224 = vector.broadcast %1223 : f32 to vector<16x16xf32>
    %1225 = arith.addf %1222, %1224 : vector<16x16xf32>
    %cst_819 = arith.constant 0.000000e+00 : f32
    %1226 = vector.broadcast %cst_819 : f32 to vector<16x16xf32>
    %c98_820 = arith.constant 98 : index
    %1227 = memref.load %arg3[%c98_820] : memref<196xf32, #tpu.memory_space<smem>>
    %c2_821 = arith.constant 2 : index
    %c0_822 = arith.constant 0 : index
    %c0_823 = arith.constant 0 : index
    %1228 = vector.load %arg9[%c2_821, %c0_822, %c0_823] : memref<4x34x34xf32, #tpu.memory_space<vmem>>, vector<1x16x16xf32>
    %1229 = vector.shape_cast %1228 : vector<1x16x16xf32> to vector<16x16xf32>
    %1230 = vector.broadcast %1227 : f32 to vector<16x16xf32>
    %1231 = arith.mulf %1230, %1229 : vector<16x16xf32>
    %1232 = arith.addf %1226, %1231 : vector<16x16xf32>
    %c99_824 = arith.constant 99 : index
    %1233 = memref.load %arg3[%c99_824] : memref<196xf32, #tpu.memory_space<smem>>
    %c2_825 = arith.constant 2 : index
    %c0_826 = arith.constant 0 : index
    %c3_827 = arith.constant 3 : index
    %1234 = vector.load %arg9[%c2_825, %c0_826, %c3_827] : memref<4x34x34xf32, #tpu.memory_space<vmem>>, vector<1x16x16xf32>
    %1235 = vector.shape_cast %1234 : vector<1x16x16xf32> to vector<16x16xf32>
    %1236 = vector.broadcast %1233 : f32 to vector<16x16xf32>
    %1237 = arith.mulf %1236, %1235 : vector<16x16xf32>
    %1238 = arith.addf %1232, %1237 : vector<16x16xf32>
    %c100 = arith.constant 100 : index
    %1239 = memref.load %arg3[%c100] : memref<196xf32, #tpu.memory_space<smem>>
    %c2_828 = arith.constant 2 : index
    %c0_829 = arith.constant 0 : index
    %c6_830 = arith.constant 6 : index
    %1240 = vector.load %arg9[%c2_828, %c0_829, %c6_830] : memref<4x34x34xf32, #tpu.memory_space<vmem>>, vector<1x16x16xf32>
    %1241 = vector.shape_cast %1240 : vector<1x16x16xf32> to vector<16x16xf32>
    %1242 = vector.broadcast %1239 : f32 to vector<16x16xf32>
    %1243 = arith.mulf %1242, %1241 : vector<16x16xf32>
    %1244 = arith.addf %1238, %1243 : vector<16x16xf32>
    %c101 = arith.constant 101 : index
    %1245 = memref.load %arg3[%c101] : memref<196xf32, #tpu.memory_space<smem>>
    %c2_831 = arith.constant 2 : index
    %c0_832 = arith.constant 0 : index
    %c9_833 = arith.constant 9 : index
    %1246 = vector.load %arg9[%c2_831, %c0_832, %c9_833] : memref<4x34x34xf32, #tpu.memory_space<vmem>>, vector<1x16x16xf32>
    %1247 = vector.shape_cast %1246 : vector<1x16x16xf32> to vector<16x16xf32>
    %1248 = vector.broadcast %1245 : f32 to vector<16x16xf32>
    %1249 = arith.mulf %1248, %1247 : vector<16x16xf32>
    %1250 = arith.addf %1244, %1249 : vector<16x16xf32>
    %c102 = arith.constant 102 : index
    %1251 = memref.load %arg3[%c102] : memref<196xf32, #tpu.memory_space<smem>>
    %c2_834 = arith.constant 2 : index
    %c0_835 = arith.constant 0 : index
    %c12_836 = arith.constant 12 : index
    %1252 = vector.load %arg9[%c2_834, %c0_835, %c12_836] : memref<4x34x34xf32, #tpu.memory_space<vmem>>, vector<1x16x16xf32>
    %1253 = vector.shape_cast %1252 : vector<1x16x16xf32> to vector<16x16xf32>
    %1254 = vector.broadcast %1251 : f32 to vector<16x16xf32>
    %1255 = arith.mulf %1254, %1253 : vector<16x16xf32>
    %1256 = arith.addf %1250, %1255 : vector<16x16xf32>
    %c103 = arith.constant 103 : index
    %1257 = memref.load %arg3[%c103] : memref<196xf32, #tpu.memory_space<smem>>
    %c2_837 = arith.constant 2 : index
    %c0_838 = arith.constant 0 : index
    %c15_839 = arith.constant 15 : index
    %1258 = vector.load %arg9[%c2_837, %c0_838, %c15_839] : memref<4x34x34xf32, #tpu.memory_space<vmem>>, vector<1x16x16xf32>
    %1259 = vector.shape_cast %1258 : vector<1x16x16xf32> to vector<16x16xf32>
    %1260 = vector.broadcast %1257 : f32 to vector<16x16xf32>
    %1261 = arith.mulf %1260, %1259 : vector<16x16xf32>
    %1262 = arith.addf %1256, %1261 : vector<16x16xf32>
    %c104 = arith.constant 104 : index
    %1263 = memref.load %arg3[%c104] : memref<196xf32, #tpu.memory_space<smem>>
    %c2_840 = arith.constant 2 : index
    %c0_841 = arith.constant 0 : index
    %c18_842 = arith.constant 18 : index
    %1264 = vector.load %arg9[%c2_840, %c0_841, %c18_842] : memref<4x34x34xf32, #tpu.memory_space<vmem>>, vector<1x16x16xf32>
    %1265 = vector.shape_cast %1264 : vector<1x16x16xf32> to vector<16x16xf32>
    %1266 = vector.broadcast %1263 : f32 to vector<16x16xf32>
    %1267 = arith.mulf %1266, %1265 : vector<16x16xf32>
    %1268 = arith.addf %1262, %1267 : vector<16x16xf32>
    %c105 = arith.constant 105 : index
    %1269 = memref.load %arg3[%c105] : memref<196xf32, #tpu.memory_space<smem>>
    %c2_843 = arith.constant 2 : index
    %c3_844 = arith.constant 3 : index
    %c0_845 = arith.constant 0 : index
    %1270 = vector.load %arg9[%c2_843, %c3_844, %c0_845] : memref<4x34x34xf32, #tpu.memory_space<vmem>>, vector<1x16x16xf32>
    %1271 = vector.shape_cast %1270 : vector<1x16x16xf32> to vector<16x16xf32>
    %1272 = vector.broadcast %1269 : f32 to vector<16x16xf32>
    %1273 = arith.mulf %1272, %1271 : vector<16x16xf32>
    %1274 = arith.addf %1268, %1273 : vector<16x16xf32>
    %c106 = arith.constant 106 : index
    %1275 = memref.load %arg3[%c106] : memref<196xf32, #tpu.memory_space<smem>>
    %c2_846 = arith.constant 2 : index
    %c3_847 = arith.constant 3 : index
    %c3_848 = arith.constant 3 : index
    %1276 = vector.load %arg9[%c2_846, %c3_847, %c3_848] : memref<4x34x34xf32, #tpu.memory_space<vmem>>, vector<1x16x16xf32>
    %1277 = vector.shape_cast %1276 : vector<1x16x16xf32> to vector<16x16xf32>
    %1278 = vector.broadcast %1275 : f32 to vector<16x16xf32>
    %1279 = arith.mulf %1278, %1277 : vector<16x16xf32>
    %1280 = arith.addf %1274, %1279 : vector<16x16xf32>
    %c107 = arith.constant 107 : index
    %1281 = memref.load %arg3[%c107] : memref<196xf32, #tpu.memory_space<smem>>
    %c2_849 = arith.constant 2 : index
    %c3_850 = arith.constant 3 : index
    %c6_851 = arith.constant 6 : index
    %1282 = vector.load %arg9[%c2_849, %c3_850, %c6_851] : memref<4x34x34xf32, #tpu.memory_space<vmem>>, vector<1x16x16xf32>
    %1283 = vector.shape_cast %1282 : vector<1x16x16xf32> to vector<16x16xf32>
    %1284 = vector.broadcast %1281 : f32 to vector<16x16xf32>
    %1285 = arith.mulf %1284, %1283 : vector<16x16xf32>
    %1286 = arith.addf %1280, %1285 : vector<16x16xf32>
    %c108 = arith.constant 108 : index
    %1287 = memref.load %arg3[%c108] : memref<196xf32, #tpu.memory_space<smem>>
    %c2_852 = arith.constant 2 : index
    %c3_853 = arith.constant 3 : index
    %c9_854 = arith.constant 9 : index
    %1288 = vector.load %arg9[%c2_852, %c3_853, %c9_854] : memref<4x34x34xf32, #tpu.memory_space<vmem>>, vector<1x16x16xf32>
    %1289 = vector.shape_cast %1288 : vector<1x16x16xf32> to vector<16x16xf32>
    %1290 = vector.broadcast %1287 : f32 to vector<16x16xf32>
    %1291 = arith.mulf %1290, %1289 : vector<16x16xf32>
    %1292 = arith.addf %1286, %1291 : vector<16x16xf32>
    %c109 = arith.constant 109 : index
    %1293 = memref.load %arg3[%c109] : memref<196xf32, #tpu.memory_space<smem>>
    %c2_855 = arith.constant 2 : index
    %c3_856 = arith.constant 3 : index
    %c12_857 = arith.constant 12 : index
    %1294 = vector.load %arg9[%c2_855, %c3_856, %c12_857] : memref<4x34x34xf32, #tpu.memory_space<vmem>>, vector<1x16x16xf32>
    %1295 = vector.shape_cast %1294 : vector<1x16x16xf32> to vector<16x16xf32>
    %1296 = vector.broadcast %1293 : f32 to vector<16x16xf32>
    %1297 = arith.mulf %1296, %1295 : vector<16x16xf32>
    %1298 = arith.addf %1292, %1297 : vector<16x16xf32>
    %c110 = arith.constant 110 : index
    %1299 = memref.load %arg3[%c110] : memref<196xf32, #tpu.memory_space<smem>>
    %c2_858 = arith.constant 2 : index
    %c3_859 = arith.constant 3 : index
    %c15_860 = arith.constant 15 : index
    %1300 = vector.load %arg9[%c2_858, %c3_859, %c15_860] : memref<4x34x34xf32, #tpu.memory_space<vmem>>, vector<1x16x16xf32>
    %1301 = vector.shape_cast %1300 : vector<1x16x16xf32> to vector<16x16xf32>
    %1302 = vector.broadcast %1299 : f32 to vector<16x16xf32>
    %1303 = arith.mulf %1302, %1301 : vector<16x16xf32>
    %1304 = arith.addf %1298, %1303 : vector<16x16xf32>
    %c111 = arith.constant 111 : index
    %1305 = memref.load %arg3[%c111] : memref<196xf32, #tpu.memory_space<smem>>
    %c2_861 = arith.constant 2 : index
    %c3_862 = arith.constant 3 : index
    %c18_863 = arith.constant 18 : index
    %1306 = vector.load %arg9[%c2_861, %c3_862, %c18_863] : memref<4x34x34xf32, #tpu.memory_space<vmem>>, vector<1x16x16xf32>
    %1307 = vector.shape_cast %1306 : vector<1x16x16xf32> to vector<16x16xf32>
    %1308 = vector.broadcast %1305 : f32 to vector<16x16xf32>
    %1309 = arith.mulf %1308, %1307 : vector<16x16xf32>
    %1310 = arith.addf %1304, %1309 : vector<16x16xf32>
    %c112 = arith.constant 112 : index
    %1311 = memref.load %arg3[%c112] : memref<196xf32, #tpu.memory_space<smem>>
    %c2_864 = arith.constant 2 : index
    %c6_865 = arith.constant 6 : index
    %c0_866 = arith.constant 0 : index
    %1312 = vector.load %arg9[%c2_864, %c6_865, %c0_866] : memref<4x34x34xf32, #tpu.memory_space<vmem>>, vector<1x16x16xf32>
    %1313 = vector.shape_cast %1312 : vector<1x16x16xf32> to vector<16x16xf32>
    %1314 = vector.broadcast %1311 : f32 to vector<16x16xf32>
    %1315 = arith.mulf %1314, %1313 : vector<16x16xf32>
    %1316 = arith.addf %1310, %1315 : vector<16x16xf32>
    %c113 = arith.constant 113 : index
    %1317 = memref.load %arg3[%c113] : memref<196xf32, #tpu.memory_space<smem>>
    %c2_867 = arith.constant 2 : index
    %c6_868 = arith.constant 6 : index
    %c3_869 = arith.constant 3 : index
    %1318 = vector.load %arg9[%c2_867, %c6_868, %c3_869] : memref<4x34x34xf32, #tpu.memory_space<vmem>>, vector<1x16x16xf32>
    %1319 = vector.shape_cast %1318 : vector<1x16x16xf32> to vector<16x16xf32>
    %1320 = vector.broadcast %1317 : f32 to vector<16x16xf32>
    %1321 = arith.mulf %1320, %1319 : vector<16x16xf32>
    %1322 = arith.addf %1316, %1321 : vector<16x16xf32>
    %c114 = arith.constant 114 : index
    %1323 = memref.load %arg3[%c114] : memref<196xf32, #tpu.memory_space<smem>>
    %c2_870 = arith.constant 2 : index
    %c6_871 = arith.constant 6 : index
    %c6_872 = arith.constant 6 : index
    %1324 = vector.load %arg9[%c2_870, %c6_871, %c6_872] : memref<4x34x34xf32, #tpu.memory_space<vmem>>, vector<1x16x16xf32>
    %1325 = vector.shape_cast %1324 : vector<1x16x16xf32> to vector<16x16xf32>
    %1326 = vector.broadcast %1323 : f32 to vector<16x16xf32>
    %1327 = arith.mulf %1326, %1325 : vector<16x16xf32>
    %1328 = arith.addf %1322, %1327 : vector<16x16xf32>
    %c115 = arith.constant 115 : index
    %1329 = memref.load %arg3[%c115] : memref<196xf32, #tpu.memory_space<smem>>
    %c2_873 = arith.constant 2 : index
    %c6_874 = arith.constant 6 : index
    %c9_875 = arith.constant 9 : index
    %1330 = vector.load %arg9[%c2_873, %c6_874, %c9_875] : memref<4x34x34xf32, #tpu.memory_space<vmem>>, vector<1x16x16xf32>
    %1331 = vector.shape_cast %1330 : vector<1x16x16xf32> to vector<16x16xf32>
    %1332 = vector.broadcast %1329 : f32 to vector<16x16xf32>
    %1333 = arith.mulf %1332, %1331 : vector<16x16xf32>
    %1334 = arith.addf %1328, %1333 : vector<16x16xf32>
    %c116 = arith.constant 116 : index
    %1335 = memref.load %arg3[%c116] : memref<196xf32, #tpu.memory_space<smem>>
    %c2_876 = arith.constant 2 : index
    %c6_877 = arith.constant 6 : index
    %c12_878 = arith.constant 12 : index
    %1336 = vector.load %arg9[%c2_876, %c6_877, %c12_878] : memref<4x34x34xf32, #tpu.memory_space<vmem>>, vector<1x16x16xf32>
    %1337 = vector.shape_cast %1336 : vector<1x16x16xf32> to vector<16x16xf32>
    %1338 = vector.broadcast %1335 : f32 to vector<16x16xf32>
    %1339 = arith.mulf %1338, %1337 : vector<16x16xf32>
    %1340 = arith.addf %1334, %1339 : vector<16x16xf32>
    %c117 = arith.constant 117 : index
    %1341 = memref.load %arg3[%c117] : memref<196xf32, #tpu.memory_space<smem>>
    %c2_879 = arith.constant 2 : index
    %c6_880 = arith.constant 6 : index
    %c15_881 = arith.constant 15 : index
    %1342 = vector.load %arg9[%c2_879, %c6_880, %c15_881] : memref<4x34x34xf32, #tpu.memory_space<vmem>>, vector<1x16x16xf32>
    %1343 = vector.shape_cast %1342 : vector<1x16x16xf32> to vector<16x16xf32>
    %1344 = vector.broadcast %1341 : f32 to vector<16x16xf32>
    %1345 = arith.mulf %1344, %1343 : vector<16x16xf32>
    %1346 = arith.addf %1340, %1345 : vector<16x16xf32>
    %c118 = arith.constant 118 : index
    %1347 = memref.load %arg3[%c118] : memref<196xf32, #tpu.memory_space<smem>>
    %c2_882 = arith.constant 2 : index
    %c6_883 = arith.constant 6 : index
    %c18_884 = arith.constant 18 : index
    %1348 = vector.load %arg9[%c2_882, %c6_883, %c18_884] : memref<4x34x34xf32, #tpu.memory_space<vmem>>, vector<1x16x16xf32>
    %1349 = vector.shape_cast %1348 : vector<1x16x16xf32> to vector<16x16xf32>
    %1350 = vector.broadcast %1347 : f32 to vector<16x16xf32>
    %1351 = arith.mulf %1350, %1349 : vector<16x16xf32>
    %1352 = arith.addf %1346, %1351 : vector<16x16xf32>
    %c119 = arith.constant 119 : index
    %1353 = memref.load %arg3[%c119] : memref<196xf32, #tpu.memory_space<smem>>
    %c2_885 = arith.constant 2 : index
    %c9_886 = arith.constant 9 : index
    %c0_887 = arith.constant 0 : index
    %1354 = vector.load %arg9[%c2_885, %c9_886, %c0_887] : memref<4x34x34xf32, #tpu.memory_space<vmem>>, vector<1x16x16xf32>
    %1355 = vector.shape_cast %1354 : vector<1x16x16xf32> to vector<16x16xf32>
    %1356 = vector.broadcast %1353 : f32 to vector<16x16xf32>
    %1357 = arith.mulf %1356, %1355 : vector<16x16xf32>
    %1358 = arith.addf %1352, %1357 : vector<16x16xf32>
    %c120 = arith.constant 120 : index
    %1359 = memref.load %arg3[%c120] : memref<196xf32, #tpu.memory_space<smem>>
    %c2_888 = arith.constant 2 : index
    %c9_889 = arith.constant 9 : index
    %c3_890 = arith.constant 3 : index
    %1360 = vector.load %arg9[%c2_888, %c9_889, %c3_890] : memref<4x34x34xf32, #tpu.memory_space<vmem>>, vector<1x16x16xf32>
    %1361 = vector.shape_cast %1360 : vector<1x16x16xf32> to vector<16x16xf32>
    %1362 = vector.broadcast %1359 : f32 to vector<16x16xf32>
    %1363 = arith.mulf %1362, %1361 : vector<16x16xf32>
    %1364 = arith.addf %1358, %1363 : vector<16x16xf32>
    %c121 = arith.constant 121 : index
    %1365 = memref.load %arg3[%c121] : memref<196xf32, #tpu.memory_space<smem>>
    %c2_891 = arith.constant 2 : index
    %c9_892 = arith.constant 9 : index
    %c6_893 = arith.constant 6 : index
    %1366 = vector.load %arg9[%c2_891, %c9_892, %c6_893] : memref<4x34x34xf32, #tpu.memory_space<vmem>>, vector<1x16x16xf32>
    %1367 = vector.shape_cast %1366 : vector<1x16x16xf32> to vector<16x16xf32>
    %1368 = vector.broadcast %1365 : f32 to vector<16x16xf32>
    %1369 = arith.mulf %1368, %1367 : vector<16x16xf32>
    %1370 = arith.addf %1364, %1369 : vector<16x16xf32>
    %c122 = arith.constant 122 : index
    %1371 = memref.load %arg3[%c122] : memref<196xf32, #tpu.memory_space<smem>>
    %c2_894 = arith.constant 2 : index
    %c9_895 = arith.constant 9 : index
    %c9_896 = arith.constant 9 : index
    %1372 = vector.load %arg9[%c2_894, %c9_895, %c9_896] : memref<4x34x34xf32, #tpu.memory_space<vmem>>, vector<1x16x16xf32>
    %1373 = vector.shape_cast %1372 : vector<1x16x16xf32> to vector<16x16xf32>
    %1374 = vector.broadcast %1371 : f32 to vector<16x16xf32>
    %1375 = arith.mulf %1374, %1373 : vector<16x16xf32>
    %1376 = arith.addf %1370, %1375 : vector<16x16xf32>
    %c123 = arith.constant 123 : index
    %1377 = memref.load %arg3[%c123] : memref<196xf32, #tpu.memory_space<smem>>
    %c2_897 = arith.constant 2 : index
    %c9_898 = arith.constant 9 : index
    %c12_899 = arith.constant 12 : index
    %1378 = vector.load %arg9[%c2_897, %c9_898, %c12_899] : memref<4x34x34xf32, #tpu.memory_space<vmem>>, vector<1x16x16xf32>
    %1379 = vector.shape_cast %1378 : vector<1x16x16xf32> to vector<16x16xf32>
    %1380 = vector.broadcast %1377 : f32 to vector<16x16xf32>
    %1381 = arith.mulf %1380, %1379 : vector<16x16xf32>
    %1382 = arith.addf %1376, %1381 : vector<16x16xf32>
    %c124 = arith.constant 124 : index
    %1383 = memref.load %arg3[%c124] : memref<196xf32, #tpu.memory_space<smem>>
    %c2_900 = arith.constant 2 : index
    %c9_901 = arith.constant 9 : index
    %c15_902 = arith.constant 15 : index
    %1384 = vector.load %arg9[%c2_900, %c9_901, %c15_902] : memref<4x34x34xf32, #tpu.memory_space<vmem>>, vector<1x16x16xf32>
    %1385 = vector.shape_cast %1384 : vector<1x16x16xf32> to vector<16x16xf32>
    %1386 = vector.broadcast %1383 : f32 to vector<16x16xf32>
    %1387 = arith.mulf %1386, %1385 : vector<16x16xf32>
    %1388 = arith.addf %1382, %1387 : vector<16x16xf32>
    %c125 = arith.constant 125 : index
    %1389 = memref.load %arg3[%c125] : memref<196xf32, #tpu.memory_space<smem>>
    %c2_903 = arith.constant 2 : index
    %c9_904 = arith.constant 9 : index
    %c18_905 = arith.constant 18 : index
    %1390 = vector.load %arg9[%c2_903, %c9_904, %c18_905] : memref<4x34x34xf32, #tpu.memory_space<vmem>>, vector<1x16x16xf32>
    %1391 = vector.shape_cast %1390 : vector<1x16x16xf32> to vector<16x16xf32>
    %1392 = vector.broadcast %1389 : f32 to vector<16x16xf32>
    %1393 = arith.mulf %1392, %1391 : vector<16x16xf32>
    %1394 = arith.addf %1388, %1393 : vector<16x16xf32>
    %c126 = arith.constant 126 : index
    %1395 = memref.load %arg3[%c126] : memref<196xf32, #tpu.memory_space<smem>>
    %c2_906 = arith.constant 2 : index
    %c12_907 = arith.constant 12 : index
    %c0_908 = arith.constant 0 : index
    %1396 = vector.load %arg9[%c2_906, %c12_907, %c0_908] : memref<4x34x34xf32, #tpu.memory_space<vmem>>, vector<1x16x16xf32>
    %1397 = vector.shape_cast %1396 : vector<1x16x16xf32> to vector<16x16xf32>
    %1398 = vector.broadcast %1395 : f32 to vector<16x16xf32>
    %1399 = arith.mulf %1398, %1397 : vector<16x16xf32>
    %1400 = arith.addf %1394, %1399 : vector<16x16xf32>
    %c127 = arith.constant 127 : index
    %1401 = memref.load %arg3[%c127] : memref<196xf32, #tpu.memory_space<smem>>
    %c2_909 = arith.constant 2 : index
    %c12_910 = arith.constant 12 : index
    %c3_911 = arith.constant 3 : index
    %1402 = vector.load %arg9[%c2_909, %c12_910, %c3_911] : memref<4x34x34xf32, #tpu.memory_space<vmem>>, vector<1x16x16xf32>
    %1403 = vector.shape_cast %1402 : vector<1x16x16xf32> to vector<16x16xf32>
    %1404 = vector.broadcast %1401 : f32 to vector<16x16xf32>
    %1405 = arith.mulf %1404, %1403 : vector<16x16xf32>
    %1406 = arith.addf %1400, %1405 : vector<16x16xf32>
    %c128 = arith.constant 128 : index
    %1407 = memref.load %arg3[%c128] : memref<196xf32, #tpu.memory_space<smem>>
    %c2_912 = arith.constant 2 : index
    %c12_913 = arith.constant 12 : index
    %c6_914 = arith.constant 6 : index
    %1408 = vector.load %arg9[%c2_912, %c12_913, %c6_914] : memref<4x34x34xf32, #tpu.memory_space<vmem>>, vector<1x16x16xf32>
    %1409 = vector.shape_cast %1408 : vector<1x16x16xf32> to vector<16x16xf32>
    %1410 = vector.broadcast %1407 : f32 to vector<16x16xf32>
    %1411 = arith.mulf %1410, %1409 : vector<16x16xf32>
    %1412 = arith.addf %1406, %1411 : vector<16x16xf32>
    %c129 = arith.constant 129 : index
    %1413 = memref.load %arg3[%c129] : memref<196xf32, #tpu.memory_space<smem>>
    %c2_915 = arith.constant 2 : index
    %c12_916 = arith.constant 12 : index
    %c9_917 = arith.constant 9 : index
    %1414 = vector.load %arg9[%c2_915, %c12_916, %c9_917] : memref<4x34x34xf32, #tpu.memory_space<vmem>>, vector<1x16x16xf32>
    %1415 = vector.shape_cast %1414 : vector<1x16x16xf32> to vector<16x16xf32>
    %1416 = vector.broadcast %1413 : f32 to vector<16x16xf32>
    %1417 = arith.mulf %1416, %1415 : vector<16x16xf32>
    %1418 = arith.addf %1412, %1417 : vector<16x16xf32>
    %c130 = arith.constant 130 : index
    %1419 = memref.load %arg3[%c130] : memref<196xf32, #tpu.memory_space<smem>>
    %c2_918 = arith.constant 2 : index
    %c12_919 = arith.constant 12 : index
    %c12_920 = arith.constant 12 : index
    %1420 = vector.load %arg9[%c2_918, %c12_919, %c12_920] : memref<4x34x34xf32, #tpu.memory_space<vmem>>, vector<1x16x16xf32>
    %1421 = vector.shape_cast %1420 : vector<1x16x16xf32> to vector<16x16xf32>
    %1422 = vector.broadcast %1419 : f32 to vector<16x16xf32>
    %1423 = arith.mulf %1422, %1421 : vector<16x16xf32>
    %1424 = arith.addf %1418, %1423 : vector<16x16xf32>
    %c131 = arith.constant 131 : index
    %1425 = memref.load %arg3[%c131] : memref<196xf32, #tpu.memory_space<smem>>
    %c2_921 = arith.constant 2 : index
    %c12_922 = arith.constant 12 : index
    %c15_923 = arith.constant 15 : index
    %1426 = vector.load %arg9[%c2_921, %c12_922, %c15_923] : memref<4x34x34xf32, #tpu.memory_space<vmem>>, vector<1x16x16xf32>
    %1427 = vector.shape_cast %1426 : vector<1x16x16xf32> to vector<16x16xf32>
    %1428 = vector.broadcast %1425 : f32 to vector<16x16xf32>
    %1429 = arith.mulf %1428, %1427 : vector<16x16xf32>
    %1430 = arith.addf %1424, %1429 : vector<16x16xf32>
    %c132 = arith.constant 132 : index
    %1431 = memref.load %arg3[%c132] : memref<196xf32, #tpu.memory_space<smem>>
    %c2_924 = arith.constant 2 : index
    %c12_925 = arith.constant 12 : index
    %c18_926 = arith.constant 18 : index
    %1432 = vector.load %arg9[%c2_924, %c12_925, %c18_926] : memref<4x34x34xf32, #tpu.memory_space<vmem>>, vector<1x16x16xf32>
    %1433 = vector.shape_cast %1432 : vector<1x16x16xf32> to vector<16x16xf32>
    %1434 = vector.broadcast %1431 : f32 to vector<16x16xf32>
    %1435 = arith.mulf %1434, %1433 : vector<16x16xf32>
    %1436 = arith.addf %1430, %1435 : vector<16x16xf32>
    %c133 = arith.constant 133 : index
    %1437 = memref.load %arg3[%c133] : memref<196xf32, #tpu.memory_space<smem>>
    %c2_927 = arith.constant 2 : index
    %c15_928 = arith.constant 15 : index
    %c0_929 = arith.constant 0 : index
    %1438 = vector.load %arg9[%c2_927, %c15_928, %c0_929] : memref<4x34x34xf32, #tpu.memory_space<vmem>>, vector<1x16x16xf32>
    %1439 = vector.shape_cast %1438 : vector<1x16x16xf32> to vector<16x16xf32>
    %1440 = vector.broadcast %1437 : f32 to vector<16x16xf32>
    %1441 = arith.mulf %1440, %1439 : vector<16x16xf32>
    %1442 = arith.addf %1436, %1441 : vector<16x16xf32>
    %c134 = arith.constant 134 : index
    %1443 = memref.load %arg3[%c134] : memref<196xf32, #tpu.memory_space<smem>>
    %c2_930 = arith.constant 2 : index
    %c15_931 = arith.constant 15 : index
    %c3_932 = arith.constant 3 : index
    %1444 = vector.load %arg9[%c2_930, %c15_931, %c3_932] : memref<4x34x34xf32, #tpu.memory_space<vmem>>, vector<1x16x16xf32>
    %1445 = vector.shape_cast %1444 : vector<1x16x16xf32> to vector<16x16xf32>
    %1446 = vector.broadcast %1443 : f32 to vector<16x16xf32>
    %1447 = arith.mulf %1446, %1445 : vector<16x16xf32>
    %1448 = arith.addf %1442, %1447 : vector<16x16xf32>
    %c135 = arith.constant 135 : index
    %1449 = memref.load %arg3[%c135] : memref<196xf32, #tpu.memory_space<smem>>
    %c2_933 = arith.constant 2 : index
    %c15_934 = arith.constant 15 : index
    %c6_935 = arith.constant 6 : index
    %1450 = vector.load %arg9[%c2_933, %c15_934, %c6_935] : memref<4x34x34xf32, #tpu.memory_space<vmem>>, vector<1x16x16xf32>
    %1451 = vector.shape_cast %1450 : vector<1x16x16xf32> to vector<16x16xf32>
    %1452 = vector.broadcast %1449 : f32 to vector<16x16xf32>
    %1453 = arith.mulf %1452, %1451 : vector<16x16xf32>
    %1454 = arith.addf %1448, %1453 : vector<16x16xf32>
    %c136 = arith.constant 136 : index
    %1455 = memref.load %arg3[%c136] : memref<196xf32, #tpu.memory_space<smem>>
    %c2_936 = arith.constant 2 : index
    %c15_937 = arith.constant 15 : index
    %c9_938 = arith.constant 9 : index
    %1456 = vector.load %arg9[%c2_936, %c15_937, %c9_938] : memref<4x34x34xf32, #tpu.memory_space<vmem>>, vector<1x16x16xf32>
    %1457 = vector.shape_cast %1456 : vector<1x16x16xf32> to vector<16x16xf32>
    %1458 = vector.broadcast %1455 : f32 to vector<16x16xf32>
    %1459 = arith.mulf %1458, %1457 : vector<16x16xf32>
    %1460 = arith.addf %1454, %1459 : vector<16x16xf32>
    %c137 = arith.constant 137 : index
    %1461 = memref.load %arg3[%c137] : memref<196xf32, #tpu.memory_space<smem>>
    %c2_939 = arith.constant 2 : index
    %c15_940 = arith.constant 15 : index
    %c12_941 = arith.constant 12 : index
    %1462 = vector.load %arg9[%c2_939, %c15_940, %c12_941] : memref<4x34x34xf32, #tpu.memory_space<vmem>>, vector<1x16x16xf32>
    %1463 = vector.shape_cast %1462 : vector<1x16x16xf32> to vector<16x16xf32>
    %1464 = vector.broadcast %1461 : f32 to vector<16x16xf32>
    %1465 = arith.mulf %1464, %1463 : vector<16x16xf32>
    %1466 = arith.addf %1460, %1465 : vector<16x16xf32>
    %c138 = arith.constant 138 : index
    %1467 = memref.load %arg3[%c138] : memref<196xf32, #tpu.memory_space<smem>>
    %c2_942 = arith.constant 2 : index
    %c15_943 = arith.constant 15 : index
    %c15_944 = arith.constant 15 : index
    %1468 = vector.load %arg9[%c2_942, %c15_943, %c15_944] : memref<4x34x34xf32, #tpu.memory_space<vmem>>, vector<1x16x16xf32>
    %1469 = vector.shape_cast %1468 : vector<1x16x16xf32> to vector<16x16xf32>
    %1470 = vector.broadcast %1467 : f32 to vector<16x16xf32>
    %1471 = arith.mulf %1470, %1469 : vector<16x16xf32>
    %1472 = arith.addf %1466, %1471 : vector<16x16xf32>
    %c139 = arith.constant 139 : index
    %1473 = memref.load %arg3[%c139] : memref<196xf32, #tpu.memory_space<smem>>
    %c2_945 = arith.constant 2 : index
    %c15_946 = arith.constant 15 : index
    %c18_947 = arith.constant 18 : index
    %1474 = vector.load %arg9[%c2_945, %c15_946, %c18_947] : memref<4x34x34xf32, #tpu.memory_space<vmem>>, vector<1x16x16xf32>
    %1475 = vector.shape_cast %1474 : vector<1x16x16xf32> to vector<16x16xf32>
    %1476 = vector.broadcast %1473 : f32 to vector<16x16xf32>
    %1477 = arith.mulf %1476, %1475 : vector<16x16xf32>
    %1478 = arith.addf %1472, %1477 : vector<16x16xf32>
    %c140 = arith.constant 140 : index
    %1479 = memref.load %arg3[%c140] : memref<196xf32, #tpu.memory_space<smem>>
    %c2_948 = arith.constant 2 : index
    %c18_949 = arith.constant 18 : index
    %c0_950 = arith.constant 0 : index
    %1480 = vector.load %arg9[%c2_948, %c18_949, %c0_950] : memref<4x34x34xf32, #tpu.memory_space<vmem>>, vector<1x16x16xf32>
    %1481 = vector.shape_cast %1480 : vector<1x16x16xf32> to vector<16x16xf32>
    %1482 = vector.broadcast %1479 : f32 to vector<16x16xf32>
    %1483 = arith.mulf %1482, %1481 : vector<16x16xf32>
    %1484 = arith.addf %1478, %1483 : vector<16x16xf32>
    %c141 = arith.constant 141 : index
    %1485 = memref.load %arg3[%c141] : memref<196xf32, #tpu.memory_space<smem>>
    %c2_951 = arith.constant 2 : index
    %c18_952 = arith.constant 18 : index
    %c3_953 = arith.constant 3 : index
    %1486 = vector.load %arg9[%c2_951, %c18_952, %c3_953] : memref<4x34x34xf32, #tpu.memory_space<vmem>>, vector<1x16x16xf32>
    %1487 = vector.shape_cast %1486 : vector<1x16x16xf32> to vector<16x16xf32>
    %1488 = vector.broadcast %1485 : f32 to vector<16x16xf32>
    %1489 = arith.mulf %1488, %1487 : vector<16x16xf32>
    %1490 = arith.addf %1484, %1489 : vector<16x16xf32>
    %c142 = arith.constant 142 : index
    %1491 = memref.load %arg3[%c142] : memref<196xf32, #tpu.memory_space<smem>>
    %c2_954 = arith.constant 2 : index
    %c18_955 = arith.constant 18 : index
    %c6_956 = arith.constant 6 : index
    %1492 = vector.load %arg9[%c2_954, %c18_955, %c6_956] : memref<4x34x34xf32, #tpu.memory_space<vmem>>, vector<1x16x16xf32>
    %1493 = vector.shape_cast %1492 : vector<1x16x16xf32> to vector<16x16xf32>
    %1494 = vector.broadcast %1491 : f32 to vector<16x16xf32>
    %1495 = arith.mulf %1494, %1493 : vector<16x16xf32>
    %1496 = arith.addf %1490, %1495 : vector<16x16xf32>
    %c143 = arith.constant 143 : index
    %1497 = memref.load %arg3[%c143] : memref<196xf32, #tpu.memory_space<smem>>
    %c2_957 = arith.constant 2 : index
    %c18_958 = arith.constant 18 : index
    %c9_959 = arith.constant 9 : index
    %1498 = vector.load %arg9[%c2_957, %c18_958, %c9_959] : memref<4x34x34xf32, #tpu.memory_space<vmem>>, vector<1x16x16xf32>
    %1499 = vector.shape_cast %1498 : vector<1x16x16xf32> to vector<16x16xf32>
    %1500 = vector.broadcast %1497 : f32 to vector<16x16xf32>
    %1501 = arith.mulf %1500, %1499 : vector<16x16xf32>
    %1502 = arith.addf %1496, %1501 : vector<16x16xf32>
    %c144 = arith.constant 144 : index
    %1503 = memref.load %arg3[%c144] : memref<196xf32, #tpu.memory_space<smem>>
    %c2_960 = arith.constant 2 : index
    %c18_961 = arith.constant 18 : index
    %c12_962 = arith.constant 12 : index
    %1504 = vector.load %arg9[%c2_960, %c18_961, %c12_962] : memref<4x34x34xf32, #tpu.memory_space<vmem>>, vector<1x16x16xf32>
    %1505 = vector.shape_cast %1504 : vector<1x16x16xf32> to vector<16x16xf32>
    %1506 = vector.broadcast %1503 : f32 to vector<16x16xf32>
    %1507 = arith.mulf %1506, %1505 : vector<16x16xf32>
    %1508 = arith.addf %1502, %1507 : vector<16x16xf32>
    %c145 = arith.constant 145 : index
    %1509 = memref.load %arg3[%c145] : memref<196xf32, #tpu.memory_space<smem>>
    %c2_963 = arith.constant 2 : index
    %c18_964 = arith.constant 18 : index
    %c15_965 = arith.constant 15 : index
    %1510 = vector.load %arg9[%c2_963, %c18_964, %c15_965] : memref<4x34x34xf32, #tpu.memory_space<vmem>>, vector<1x16x16xf32>
    %1511 = vector.shape_cast %1510 : vector<1x16x16xf32> to vector<16x16xf32>
    %1512 = vector.broadcast %1509 : f32 to vector<16x16xf32>
    %1513 = arith.mulf %1512, %1511 : vector<16x16xf32>
    %1514 = arith.addf %1508, %1513 : vector<16x16xf32>
    %c146 = arith.constant 146 : index
    %1515 = memref.load %arg3[%c146] : memref<196xf32, #tpu.memory_space<smem>>
    %c2_966 = arith.constant 2 : index
    %c18_967 = arith.constant 18 : index
    %c18_968 = arith.constant 18 : index
    %1516 = vector.load %arg9[%c2_966, %c18_967, %c18_968] : memref<4x34x34xf32, #tpu.memory_space<vmem>>, vector<1x16x16xf32>
    %1517 = vector.shape_cast %1516 : vector<1x16x16xf32> to vector<16x16xf32>
    %1518 = vector.broadcast %1515 : f32 to vector<16x16xf32>
    %1519 = arith.mulf %1518, %1517 : vector<16x16xf32>
    %1520 = arith.addf %1514, %1519 : vector<16x16xf32>
    %c2_969 = arith.constant 2 : index
    %1521 = memref.load %arg4[%c2_969] : memref<4xf32, #tpu.memory_space<smem>>
    %1522 = vector.broadcast %1521 : f32 to vector<16x16xf32>
    %1523 = arith.addf %1520, %1522 : vector<16x16xf32>
    %cst_970 = arith.constant 0.000000e+00 : f32
    %1524 = vector.broadcast %cst_970 : f32 to vector<16x16xf32>
    %c147 = arith.constant 147 : index
    %1525 = memref.load %arg3[%c147] : memref<196xf32, #tpu.memory_space<smem>>
    %c3_971 = arith.constant 3 : index
    %c0_972 = arith.constant 0 : index
    %c0_973 = arith.constant 0 : index
    %1526 = vector.load %arg9[%c3_971, %c0_972, %c0_973] : memref<4x34x34xf32, #tpu.memory_space<vmem>>, vector<1x16x16xf32>
    %1527 = vector.shape_cast %1526 : vector<1x16x16xf32> to vector<16x16xf32>
    %1528 = vector.broadcast %1525 : f32 to vector<16x16xf32>
    %1529 = arith.mulf %1528, %1527 : vector<16x16xf32>
    %1530 = arith.addf %1524, %1529 : vector<16x16xf32>
    %c148 = arith.constant 148 : index
    %1531 = memref.load %arg3[%c148] : memref<196xf32, #tpu.memory_space<smem>>
    %c3_974 = arith.constant 3 : index
    %c0_975 = arith.constant 0 : index
    %c3_976 = arith.constant 3 : index
    %1532 = vector.load %arg9[%c3_974, %c0_975, %c3_976] : memref<4x34x34xf32, #tpu.memory_space<vmem>>, vector<1x16x16xf32>
    %1533 = vector.shape_cast %1532 : vector<1x16x16xf32> to vector<16x16xf32>
    %1534 = vector.broadcast %1531 : f32 to vector<16x16xf32>
    %1535 = arith.mulf %1534, %1533 : vector<16x16xf32>
    %1536 = arith.addf %1530, %1535 : vector<16x16xf32>
    %c149 = arith.constant 149 : index
    %1537 = memref.load %arg3[%c149] : memref<196xf32, #tpu.memory_space<smem>>
    %c3_977 = arith.constant 3 : index
    %c0_978 = arith.constant 0 : index
    %c6_979 = arith.constant 6 : index
    %1538 = vector.load %arg9[%c3_977, %c0_978, %c6_979] : memref<4x34x34xf32, #tpu.memory_space<vmem>>, vector<1x16x16xf32>
    %1539 = vector.shape_cast %1538 : vector<1x16x16xf32> to vector<16x16xf32>
    %1540 = vector.broadcast %1537 : f32 to vector<16x16xf32>
    %1541 = arith.mulf %1540, %1539 : vector<16x16xf32>
    %1542 = arith.addf %1536, %1541 : vector<16x16xf32>
    %c150 = arith.constant 150 : index
    %1543 = memref.load %arg3[%c150] : memref<196xf32, #tpu.memory_space<smem>>
    %c3_980 = arith.constant 3 : index
    %c0_981 = arith.constant 0 : index
    %c9_982 = arith.constant 9 : index
    %1544 = vector.load %arg9[%c3_980, %c0_981, %c9_982] : memref<4x34x34xf32, #tpu.memory_space<vmem>>, vector<1x16x16xf32>
    %1545 = vector.shape_cast %1544 : vector<1x16x16xf32> to vector<16x16xf32>
    %1546 = vector.broadcast %1543 : f32 to vector<16x16xf32>
    %1547 = arith.mulf %1546, %1545 : vector<16x16xf32>
    %1548 = arith.addf %1542, %1547 : vector<16x16xf32>
    %c151 = arith.constant 151 : index
    %1549 = memref.load %arg3[%c151] : memref<196xf32, #tpu.memory_space<smem>>
    %c3_983 = arith.constant 3 : index
    %c0_984 = arith.constant 0 : index
    %c12_985 = arith.constant 12 : index
    %1550 = vector.load %arg9[%c3_983, %c0_984, %c12_985] : memref<4x34x34xf32, #tpu.memory_space<vmem>>, vector<1x16x16xf32>
    %1551 = vector.shape_cast %1550 : vector<1x16x16xf32> to vector<16x16xf32>
    %1552 = vector.broadcast %1549 : f32 to vector<16x16xf32>
    %1553 = arith.mulf %1552, %1551 : vector<16x16xf32>
    %1554 = arith.addf %1548, %1553 : vector<16x16xf32>
    %c152 = arith.constant 152 : index
    %1555 = memref.load %arg3[%c152] : memref<196xf32, #tpu.memory_space<smem>>
    %c3_986 = arith.constant 3 : index
    %c0_987 = arith.constant 0 : index
    %c15_988 = arith.constant 15 : index
    %1556 = vector.load %arg9[%c3_986, %c0_987, %c15_988] : memref<4x34x34xf32, #tpu.memory_space<vmem>>, vector<1x16x16xf32>
    %1557 = vector.shape_cast %1556 : vector<1x16x16xf32> to vector<16x16xf32>
    %1558 = vector.broadcast %1555 : f32 to vector<16x16xf32>
    %1559 = arith.mulf %1558, %1557 : vector<16x16xf32>
    %1560 = arith.addf %1554, %1559 : vector<16x16xf32>
    %c153 = arith.constant 153 : index
    %1561 = memref.load %arg3[%c153] : memref<196xf32, #tpu.memory_space<smem>>
    %c3_989 = arith.constant 3 : index
    %c0_990 = arith.constant 0 : index
    %c18_991 = arith.constant 18 : index
    %1562 = vector.load %arg9[%c3_989, %c0_990, %c18_991] : memref<4x34x34xf32, #tpu.memory_space<vmem>>, vector<1x16x16xf32>
    %1563 = vector.shape_cast %1562 : vector<1x16x16xf32> to vector<16x16xf32>
    %1564 = vector.broadcast %1561 : f32 to vector<16x16xf32>
    %1565 = arith.mulf %1564, %1563 : vector<16x16xf32>
    %1566 = arith.addf %1560, %1565 : vector<16x16xf32>
    %c154 = arith.constant 154 : index
    %1567 = memref.load %arg3[%c154] : memref<196xf32, #tpu.memory_space<smem>>
    %c3_992 = arith.constant 3 : index
    %c3_993 = arith.constant 3 : index
    %c0_994 = arith.constant 0 : index
    %1568 = vector.load %arg9[%c3_992, %c3_993, %c0_994] : memref<4x34x34xf32, #tpu.memory_space<vmem>>, vector<1x16x16xf32>
    %1569 = vector.shape_cast %1568 : vector<1x16x16xf32> to vector<16x16xf32>
    %1570 = vector.broadcast %1567 : f32 to vector<16x16xf32>
    %1571 = arith.mulf %1570, %1569 : vector<16x16xf32>
    %1572 = arith.addf %1566, %1571 : vector<16x16xf32>
    %c155 = arith.constant 155 : index
    %1573 = memref.load %arg3[%c155] : memref<196xf32, #tpu.memory_space<smem>>
    %c3_995 = arith.constant 3 : index
    %c3_996 = arith.constant 3 : index
    %c3_997 = arith.constant 3 : index
    %1574 = vector.load %arg9[%c3_995, %c3_996, %c3_997] : memref<4x34x34xf32, #tpu.memory_space<vmem>>, vector<1x16x16xf32>
    %1575 = vector.shape_cast %1574 : vector<1x16x16xf32> to vector<16x16xf32>
    %1576 = vector.broadcast %1573 : f32 to vector<16x16xf32>
    %1577 = arith.mulf %1576, %1575 : vector<16x16xf32>
    %1578 = arith.addf %1572, %1577 : vector<16x16xf32>
    %c156 = arith.constant 156 : index
    %1579 = memref.load %arg3[%c156] : memref<196xf32, #tpu.memory_space<smem>>
    %c3_998 = arith.constant 3 : index
    %c3_999 = arith.constant 3 : index
    %c6_1000 = arith.constant 6 : index
    %1580 = vector.load %arg9[%c3_998, %c3_999, %c6_1000] : memref<4x34x34xf32, #tpu.memory_space<vmem>>, vector<1x16x16xf32>
    %1581 = vector.shape_cast %1580 : vector<1x16x16xf32> to vector<16x16xf32>
    %1582 = vector.broadcast %1579 : f32 to vector<16x16xf32>
    %1583 = arith.mulf %1582, %1581 : vector<16x16xf32>
    %1584 = arith.addf %1578, %1583 : vector<16x16xf32>
    %c157 = arith.constant 157 : index
    %1585 = memref.load %arg3[%c157] : memref<196xf32, #tpu.memory_space<smem>>
    %c3_1001 = arith.constant 3 : index
    %c3_1002 = arith.constant 3 : index
    %c9_1003 = arith.constant 9 : index
    %1586 = vector.load %arg9[%c3_1001, %c3_1002, %c9_1003] : memref<4x34x34xf32, #tpu.memory_space<vmem>>, vector<1x16x16xf32>
    %1587 = vector.shape_cast %1586 : vector<1x16x16xf32> to vector<16x16xf32>
    %1588 = vector.broadcast %1585 : f32 to vector<16x16xf32>
    %1589 = arith.mulf %1588, %1587 : vector<16x16xf32>
    %1590 = arith.addf %1584, %1589 : vector<16x16xf32>
    %c158 = arith.constant 158 : index
    %1591 = memref.load %arg3[%c158] : memref<196xf32, #tpu.memory_space<smem>>
    %c3_1004 = arith.constant 3 : index
    %c3_1005 = arith.constant 3 : index
    %c12_1006 = arith.constant 12 : index
    %1592 = vector.load %arg9[%c3_1004, %c3_1005, %c12_1006] : memref<4x34x34xf32, #tpu.memory_space<vmem>>, vector<1x16x16xf32>
    %1593 = vector.shape_cast %1592 : vector<1x16x16xf32> to vector<16x16xf32>
    %1594 = vector.broadcast %1591 : f32 to vector<16x16xf32>
    %1595 = arith.mulf %1594, %1593 : vector<16x16xf32>
    %1596 = arith.addf %1590, %1595 : vector<16x16xf32>
    %c159 = arith.constant 159 : index
    %1597 = memref.load %arg3[%c159] : memref<196xf32, #tpu.memory_space<smem>>
    %c3_1007 = arith.constant 3 : index
    %c3_1008 = arith.constant 3 : index
    %c15_1009 = arith.constant 15 : index
    %1598 = vector.load %arg9[%c3_1007, %c3_1008, %c15_1009] : memref<4x34x34xf32, #tpu.memory_space<vmem>>, vector<1x16x16xf32>
    %1599 = vector.shape_cast %1598 : vector<1x16x16xf32> to vector<16x16xf32>
    %1600 = vector.broadcast %1597 : f32 to vector<16x16xf32>
    %1601 = arith.mulf %1600, %1599 : vector<16x16xf32>
    %1602 = arith.addf %1596, %1601 : vector<16x16xf32>
    %c160 = arith.constant 160 : index
    %1603 = memref.load %arg3[%c160] : memref<196xf32, #tpu.memory_space<smem>>
    %c3_1010 = arith.constant 3 : index
    %c3_1011 = arith.constant 3 : index
    %c18_1012 = arith.constant 18 : index
    %1604 = vector.load %arg9[%c3_1010, %c3_1011, %c18_1012] : memref<4x34x34xf32, #tpu.memory_space<vmem>>, vector<1x16x16xf32>
    %1605 = vector.shape_cast %1604 : vector<1x16x16xf32> to vector<16x16xf32>
    %1606 = vector.broadcast %1603 : f32 to vector<16x16xf32>
    %1607 = arith.mulf %1606, %1605 : vector<16x16xf32>
    %1608 = arith.addf %1602, %1607 : vector<16x16xf32>
    %c161 = arith.constant 161 : index
    %1609 = memref.load %arg3[%c161] : memref<196xf32, #tpu.memory_space<smem>>
    %c3_1013 = arith.constant 3 : index
    %c6_1014 = arith.constant 6 : index
    %c0_1015 = arith.constant 0 : index
    %1610 = vector.load %arg9[%c3_1013, %c6_1014, %c0_1015] : memref<4x34x34xf32, #tpu.memory_space<vmem>>, vector<1x16x16xf32>
    %1611 = vector.shape_cast %1610 : vector<1x16x16xf32> to vector<16x16xf32>
    %1612 = vector.broadcast %1609 : f32 to vector<16x16xf32>
    %1613 = arith.mulf %1612, %1611 : vector<16x16xf32>
    %1614 = arith.addf %1608, %1613 : vector<16x16xf32>
    %c162 = arith.constant 162 : index
    %1615 = memref.load %arg3[%c162] : memref<196xf32, #tpu.memory_space<smem>>
    %c3_1016 = arith.constant 3 : index
    %c6_1017 = arith.constant 6 : index
    %c3_1018 = arith.constant 3 : index
    %1616 = vector.load %arg9[%c3_1016, %c6_1017, %c3_1018] : memref<4x34x34xf32, #tpu.memory_space<vmem>>, vector<1x16x16xf32>
    %1617 = vector.shape_cast %1616 : vector<1x16x16xf32> to vector<16x16xf32>
    %1618 = vector.broadcast %1615 : f32 to vector<16x16xf32>
    %1619 = arith.mulf %1618, %1617 : vector<16x16xf32>
    %1620 = arith.addf %1614, %1619 : vector<16x16xf32>
    %c163 = arith.constant 163 : index
    %1621 = memref.load %arg3[%c163] : memref<196xf32, #tpu.memory_space<smem>>
    %c3_1019 = arith.constant 3 : index
    %c6_1020 = arith.constant 6 : index
    %c6_1021 = arith.constant 6 : index
    %1622 = vector.load %arg9[%c3_1019, %c6_1020, %c6_1021] : memref<4x34x34xf32, #tpu.memory_space<vmem>>, vector<1x16x16xf32>
    %1623 = vector.shape_cast %1622 : vector<1x16x16xf32> to vector<16x16xf32>
    %1624 = vector.broadcast %1621 : f32 to vector<16x16xf32>
    %1625 = arith.mulf %1624, %1623 : vector<16x16xf32>
    %1626 = arith.addf %1620, %1625 : vector<16x16xf32>
    %c164 = arith.constant 164 : index
    %1627 = memref.load %arg3[%c164] : memref<196xf32, #tpu.memory_space<smem>>
    %c3_1022 = arith.constant 3 : index
    %c6_1023 = arith.constant 6 : index
    %c9_1024 = arith.constant 9 : index
    %1628 = vector.load %arg9[%c3_1022, %c6_1023, %c9_1024] : memref<4x34x34xf32, #tpu.memory_space<vmem>>, vector<1x16x16xf32>
    %1629 = vector.shape_cast %1628 : vector<1x16x16xf32> to vector<16x16xf32>
    %1630 = vector.broadcast %1627 : f32 to vector<16x16xf32>
    %1631 = arith.mulf %1630, %1629 : vector<16x16xf32>
    %1632 = arith.addf %1626, %1631 : vector<16x16xf32>
    %c165 = arith.constant 165 : index
    %1633 = memref.load %arg3[%c165] : memref<196xf32, #tpu.memory_space<smem>>
    %c3_1025 = arith.constant 3 : index
    %c6_1026 = arith.constant 6 : index
    %c12_1027 = arith.constant 12 : index
    %1634 = vector.load %arg9[%c3_1025, %c6_1026, %c12_1027] : memref<4x34x34xf32, #tpu.memory_space<vmem>>, vector<1x16x16xf32>
    %1635 = vector.shape_cast %1634 : vector<1x16x16xf32> to vector<16x16xf32>
    %1636 = vector.broadcast %1633 : f32 to vector<16x16xf32>
    %1637 = arith.mulf %1636, %1635 : vector<16x16xf32>
    %1638 = arith.addf %1632, %1637 : vector<16x16xf32>
    %c166 = arith.constant 166 : index
    %1639 = memref.load %arg3[%c166] : memref<196xf32, #tpu.memory_space<smem>>
    %c3_1028 = arith.constant 3 : index
    %c6_1029 = arith.constant 6 : index
    %c15_1030 = arith.constant 15 : index
    %1640 = vector.load %arg9[%c3_1028, %c6_1029, %c15_1030] : memref<4x34x34xf32, #tpu.memory_space<vmem>>, vector<1x16x16xf32>
    %1641 = vector.shape_cast %1640 : vector<1x16x16xf32> to vector<16x16xf32>
    %1642 = vector.broadcast %1639 : f32 to vector<16x16xf32>
    %1643 = arith.mulf %1642, %1641 : vector<16x16xf32>
    %1644 = arith.addf %1638, %1643 : vector<16x16xf32>
    %c167 = arith.constant 167 : index
    %1645 = memref.load %arg3[%c167] : memref<196xf32, #tpu.memory_space<smem>>
    %c3_1031 = arith.constant 3 : index
    %c6_1032 = arith.constant 6 : index
    %c18_1033 = arith.constant 18 : index
    %1646 = vector.load %arg9[%c3_1031, %c6_1032, %c18_1033] : memref<4x34x34xf32, #tpu.memory_space<vmem>>, vector<1x16x16xf32>
    %1647 = vector.shape_cast %1646 : vector<1x16x16xf32> to vector<16x16xf32>
    %1648 = vector.broadcast %1645 : f32 to vector<16x16xf32>
    %1649 = arith.mulf %1648, %1647 : vector<16x16xf32>
    %1650 = arith.addf %1644, %1649 : vector<16x16xf32>
    %c168 = arith.constant 168 : index
    %1651 = memref.load %arg3[%c168] : memref<196xf32, #tpu.memory_space<smem>>
    %c3_1034 = arith.constant 3 : index
    %c9_1035 = arith.constant 9 : index
    %c0_1036 = arith.constant 0 : index
    %1652 = vector.load %arg9[%c3_1034, %c9_1035, %c0_1036] : memref<4x34x34xf32, #tpu.memory_space<vmem>>, vector<1x16x16xf32>
    %1653 = vector.shape_cast %1652 : vector<1x16x16xf32> to vector<16x16xf32>
    %1654 = vector.broadcast %1651 : f32 to vector<16x16xf32>
    %1655 = arith.mulf %1654, %1653 : vector<16x16xf32>
    %1656 = arith.addf %1650, %1655 : vector<16x16xf32>
    %c169 = arith.constant 169 : index
    %1657 = memref.load %arg3[%c169] : memref<196xf32, #tpu.memory_space<smem>>
    %c3_1037 = arith.constant 3 : index
    %c9_1038 = arith.constant 9 : index
    %c3_1039 = arith.constant 3 : index
    %1658 = vector.load %arg9[%c3_1037, %c9_1038, %c3_1039] : memref<4x34x34xf32, #tpu.memory_space<vmem>>, vector<1x16x16xf32>
    %1659 = vector.shape_cast %1658 : vector<1x16x16xf32> to vector<16x16xf32>
    %1660 = vector.broadcast %1657 : f32 to vector<16x16xf32>
    %1661 = arith.mulf %1660, %1659 : vector<16x16xf32>
    %1662 = arith.addf %1656, %1661 : vector<16x16xf32>
    %c170 = arith.constant 170 : index
    %1663 = memref.load %arg3[%c170] : memref<196xf32, #tpu.memory_space<smem>>
    %c3_1040 = arith.constant 3 : index
    %c9_1041 = arith.constant 9 : index
    %c6_1042 = arith.constant 6 : index
    %1664 = vector.load %arg9[%c3_1040, %c9_1041, %c6_1042] : memref<4x34x34xf32, #tpu.memory_space<vmem>>, vector<1x16x16xf32>
    %1665 = vector.shape_cast %1664 : vector<1x16x16xf32> to vector<16x16xf32>
    %1666 = vector.broadcast %1663 : f32 to vector<16x16xf32>
    %1667 = arith.mulf %1666, %1665 : vector<16x16xf32>
    %1668 = arith.addf %1662, %1667 : vector<16x16xf32>
    %c171 = arith.constant 171 : index
    %1669 = memref.load %arg3[%c171] : memref<196xf32, #tpu.memory_space<smem>>
    %c3_1043 = arith.constant 3 : index
    %c9_1044 = arith.constant 9 : index
    %c9_1045 = arith.constant 9 : index
    %1670 = vector.load %arg9[%c3_1043, %c9_1044, %c9_1045] : memref<4x34x34xf32, #tpu.memory_space<vmem>>, vector<1x16x16xf32>
    %1671 = vector.shape_cast %1670 : vector<1x16x16xf32> to vector<16x16xf32>
    %1672 = vector.broadcast %1669 : f32 to vector<16x16xf32>
    %1673 = arith.mulf %1672, %1671 : vector<16x16xf32>
    %1674 = arith.addf %1668, %1673 : vector<16x16xf32>
    %c172 = arith.constant 172 : index
    %1675 = memref.load %arg3[%c172] : memref<196xf32, #tpu.memory_space<smem>>
    %c3_1046 = arith.constant 3 : index
    %c9_1047 = arith.constant 9 : index
    %c12_1048 = arith.constant 12 : index
    %1676 = vector.load %arg9[%c3_1046, %c9_1047, %c12_1048] : memref<4x34x34xf32, #tpu.memory_space<vmem>>, vector<1x16x16xf32>
    %1677 = vector.shape_cast %1676 : vector<1x16x16xf32> to vector<16x16xf32>
    %1678 = vector.broadcast %1675 : f32 to vector<16x16xf32>
    %1679 = arith.mulf %1678, %1677 : vector<16x16xf32>
    %1680 = arith.addf %1674, %1679 : vector<16x16xf32>
    %c173 = arith.constant 173 : index
    %1681 = memref.load %arg3[%c173] : memref<196xf32, #tpu.memory_space<smem>>
    %c3_1049 = arith.constant 3 : index
    %c9_1050 = arith.constant 9 : index
    %c15_1051 = arith.constant 15 : index
    %1682 = vector.load %arg9[%c3_1049, %c9_1050, %c15_1051] : memref<4x34x34xf32, #tpu.memory_space<vmem>>, vector<1x16x16xf32>
    %1683 = vector.shape_cast %1682 : vector<1x16x16xf32> to vector<16x16xf32>
    %1684 = vector.broadcast %1681 : f32 to vector<16x16xf32>
    %1685 = arith.mulf %1684, %1683 : vector<16x16xf32>
    %1686 = arith.addf %1680, %1685 : vector<16x16xf32>
    %c174 = arith.constant 174 : index
    %1687 = memref.load %arg3[%c174] : memref<196xf32, #tpu.memory_space<smem>>
    %c3_1052 = arith.constant 3 : index
    %c9_1053 = arith.constant 9 : index
    %c18_1054 = arith.constant 18 : index
    %1688 = vector.load %arg9[%c3_1052, %c9_1053, %c18_1054] : memref<4x34x34xf32, #tpu.memory_space<vmem>>, vector<1x16x16xf32>
    %1689 = vector.shape_cast %1688 : vector<1x16x16xf32> to vector<16x16xf32>
    %1690 = vector.broadcast %1687 : f32 to vector<16x16xf32>
    %1691 = arith.mulf %1690, %1689 : vector<16x16xf32>
    %1692 = arith.addf %1686, %1691 : vector<16x16xf32>
    %c175 = arith.constant 175 : index
    %1693 = memref.load %arg3[%c175] : memref<196xf32, #tpu.memory_space<smem>>
    %c3_1055 = arith.constant 3 : index
    %c12_1056 = arith.constant 12 : index
    %c0_1057 = arith.constant 0 : index
    %1694 = vector.load %arg9[%c3_1055, %c12_1056, %c0_1057] : memref<4x34x34xf32, #tpu.memory_space<vmem>>, vector<1x16x16xf32>
    %1695 = vector.shape_cast %1694 : vector<1x16x16xf32> to vector<16x16xf32>
    %1696 = vector.broadcast %1693 : f32 to vector<16x16xf32>
    %1697 = arith.mulf %1696, %1695 : vector<16x16xf32>
    %1698 = arith.addf %1692, %1697 : vector<16x16xf32>
    %c176 = arith.constant 176 : index
    %1699 = memref.load %arg3[%c176] : memref<196xf32, #tpu.memory_space<smem>>
    %c3_1058 = arith.constant 3 : index
    %c12_1059 = arith.constant 12 : index
    %c3_1060 = arith.constant 3 : index
    %1700 = vector.load %arg9[%c3_1058, %c12_1059, %c3_1060] : memref<4x34x34xf32, #tpu.memory_space<vmem>>, vector<1x16x16xf32>
    %1701 = vector.shape_cast %1700 : vector<1x16x16xf32> to vector<16x16xf32>
    %1702 = vector.broadcast %1699 : f32 to vector<16x16xf32>
    %1703 = arith.mulf %1702, %1701 : vector<16x16xf32>
    %1704 = arith.addf %1698, %1703 : vector<16x16xf32>
    %c177 = arith.constant 177 : index
    %1705 = memref.load %arg3[%c177] : memref<196xf32, #tpu.memory_space<smem>>
    %c3_1061 = arith.constant 3 : index
    %c12_1062 = arith.constant 12 : index
    %c6_1063 = arith.constant 6 : index
    %1706 = vector.load %arg9[%c3_1061, %c12_1062, %c6_1063] : memref<4x34x34xf32, #tpu.memory_space<vmem>>, vector<1x16x16xf32>
    %1707 = vector.shape_cast %1706 : vector<1x16x16xf32> to vector<16x16xf32>
    %1708 = vector.broadcast %1705 : f32 to vector<16x16xf32>
    %1709 = arith.mulf %1708, %1707 : vector<16x16xf32>
    %1710 = arith.addf %1704, %1709 : vector<16x16xf32>
    %c178 = arith.constant 178 : index
    %1711 = memref.load %arg3[%c178] : memref<196xf32, #tpu.memory_space<smem>>
    %c3_1064 = arith.constant 3 : index
    %c12_1065 = arith.constant 12 : index
    %c9_1066 = arith.constant 9 : index
    %1712 = vector.load %arg9[%c3_1064, %c12_1065, %c9_1066] : memref<4x34x34xf32, #tpu.memory_space<vmem>>, vector<1x16x16xf32>
    %1713 = vector.shape_cast %1712 : vector<1x16x16xf32> to vector<16x16xf32>
    %1714 = vector.broadcast %1711 : f32 to vector<16x16xf32>
    %1715 = arith.mulf %1714, %1713 : vector<16x16xf32>
    %1716 = arith.addf %1710, %1715 : vector<16x16xf32>
    %c179 = arith.constant 179 : index
    %1717 = memref.load %arg3[%c179] : memref<196xf32, #tpu.memory_space<smem>>
    %c3_1067 = arith.constant 3 : index
    %c12_1068 = arith.constant 12 : index
    %c12_1069 = arith.constant 12 : index
    %1718 = vector.load %arg9[%c3_1067, %c12_1068, %c12_1069] : memref<4x34x34xf32, #tpu.memory_space<vmem>>, vector<1x16x16xf32>
    %1719 = vector.shape_cast %1718 : vector<1x16x16xf32> to vector<16x16xf32>
    %1720 = vector.broadcast %1717 : f32 to vector<16x16xf32>
    %1721 = arith.mulf %1720, %1719 : vector<16x16xf32>
    %1722 = arith.addf %1716, %1721 : vector<16x16xf32>
    %c180 = arith.constant 180 : index
    %1723 = memref.load %arg3[%c180] : memref<196xf32, #tpu.memory_space<smem>>
    %c3_1070 = arith.constant 3 : index
    %c12_1071 = arith.constant 12 : index
    %c15_1072 = arith.constant 15 : index
    %1724 = vector.load %arg9[%c3_1070, %c12_1071, %c15_1072] : memref<4x34x34xf32, #tpu.memory_space<vmem>>, vector<1x16x16xf32>
    %1725 = vector.shape_cast %1724 : vector<1x16x16xf32> to vector<16x16xf32>
    %1726 = vector.broadcast %1723 : f32 to vector<16x16xf32>
    %1727 = arith.mulf %1726, %1725 : vector<16x16xf32>
    %1728 = arith.addf %1722, %1727 : vector<16x16xf32>
    %c181 = arith.constant 181 : index
    %1729 = memref.load %arg3[%c181] : memref<196xf32, #tpu.memory_space<smem>>
    %c3_1073 = arith.constant 3 : index
    %c12_1074 = arith.constant 12 : index
    %c18_1075 = arith.constant 18 : index
    %1730 = vector.load %arg9[%c3_1073, %c12_1074, %c18_1075] : memref<4x34x34xf32, #tpu.memory_space<vmem>>, vector<1x16x16xf32>
    %1731 = vector.shape_cast %1730 : vector<1x16x16xf32> to vector<16x16xf32>
    %1732 = vector.broadcast %1729 : f32 to vector<16x16xf32>
    %1733 = arith.mulf %1732, %1731 : vector<16x16xf32>
    %1734 = arith.addf %1728, %1733 : vector<16x16xf32>
    %c182 = arith.constant 182 : index
    %1735 = memref.load %arg3[%c182] : memref<196xf32, #tpu.memory_space<smem>>
    %c3_1076 = arith.constant 3 : index
    %c15_1077 = arith.constant 15 : index
    %c0_1078 = arith.constant 0 : index
    %1736 = vector.load %arg9[%c3_1076, %c15_1077, %c0_1078] : memref<4x34x34xf32, #tpu.memory_space<vmem>>, vector<1x16x16xf32>
    %1737 = vector.shape_cast %1736 : vector<1x16x16xf32> to vector<16x16xf32>
    %1738 = vector.broadcast %1735 : f32 to vector<16x16xf32>
    %1739 = arith.mulf %1738, %1737 : vector<16x16xf32>
    %1740 = arith.addf %1734, %1739 : vector<16x16xf32>
    %c183 = arith.constant 183 : index
    %1741 = memref.load %arg3[%c183] : memref<196xf32, #tpu.memory_space<smem>>
    %c3_1079 = arith.constant 3 : index
    %c15_1080 = arith.constant 15 : index
    %c3_1081 = arith.constant 3 : index
    %1742 = vector.load %arg9[%c3_1079, %c15_1080, %c3_1081] : memref<4x34x34xf32, #tpu.memory_space<vmem>>, vector<1x16x16xf32>
    %1743 = vector.shape_cast %1742 : vector<1x16x16xf32> to vector<16x16xf32>
    %1744 = vector.broadcast %1741 : f32 to vector<16x16xf32>
    %1745 = arith.mulf %1744, %1743 : vector<16x16xf32>
    %1746 = arith.addf %1740, %1745 : vector<16x16xf32>
    %c184 = arith.constant 184 : index
    %1747 = memref.load %arg3[%c184] : memref<196xf32, #tpu.memory_space<smem>>
    %c3_1082 = arith.constant 3 : index
    %c15_1083 = arith.constant 15 : index
    %c6_1084 = arith.constant 6 : index
    %1748 = vector.load %arg9[%c3_1082, %c15_1083, %c6_1084] : memref<4x34x34xf32, #tpu.memory_space<vmem>>, vector<1x16x16xf32>
    %1749 = vector.shape_cast %1748 : vector<1x16x16xf32> to vector<16x16xf32>
    %1750 = vector.broadcast %1747 : f32 to vector<16x16xf32>
    %1751 = arith.mulf %1750, %1749 : vector<16x16xf32>
    %1752 = arith.addf %1746, %1751 : vector<16x16xf32>
    %c185 = arith.constant 185 : index
    %1753 = memref.load %arg3[%c185] : memref<196xf32, #tpu.memory_space<smem>>
    %c3_1085 = arith.constant 3 : index
    %c15_1086 = arith.constant 15 : index
    %c9_1087 = arith.constant 9 : index
    %1754 = vector.load %arg9[%c3_1085, %c15_1086, %c9_1087] : memref<4x34x34xf32, #tpu.memory_space<vmem>>, vector<1x16x16xf32>
    %1755 = vector.shape_cast %1754 : vector<1x16x16xf32> to vector<16x16xf32>
    %1756 = vector.broadcast %1753 : f32 to vector<16x16xf32>
    %1757 = arith.mulf %1756, %1755 : vector<16x16xf32>
    %1758 = arith.addf %1752, %1757 : vector<16x16xf32>
    %c186 = arith.constant 186 : index
    %1759 = memref.load %arg3[%c186] : memref<196xf32, #tpu.memory_space<smem>>
    %c3_1088 = arith.constant 3 : index
    %c15_1089 = arith.constant 15 : index
    %c12_1090 = arith.constant 12 : index
    %1760 = vector.load %arg9[%c3_1088, %c15_1089, %c12_1090] : memref<4x34x34xf32, #tpu.memory_space<vmem>>, vector<1x16x16xf32>
    %1761 = vector.shape_cast %1760 : vector<1x16x16xf32> to vector<16x16xf32>
    %1762 = vector.broadcast %1759 : f32 to vector<16x16xf32>
    %1763 = arith.mulf %1762, %1761 : vector<16x16xf32>
    %1764 = arith.addf %1758, %1763 : vector<16x16xf32>
    %c187 = arith.constant 187 : index
    %1765 = memref.load %arg3[%c187] : memref<196xf32, #tpu.memory_space<smem>>
    %c3_1091 = arith.constant 3 : index
    %c15_1092 = arith.constant 15 : index
    %c15_1093 = arith.constant 15 : index
    %1766 = vector.load %arg9[%c3_1091, %c15_1092, %c15_1093] : memref<4x34x34xf32, #tpu.memory_space<vmem>>, vector<1x16x16xf32>
    %1767 = vector.shape_cast %1766 : vector<1x16x16xf32> to vector<16x16xf32>
    %1768 = vector.broadcast %1765 : f32 to vector<16x16xf32>
    %1769 = arith.mulf %1768, %1767 : vector<16x16xf32>
    %1770 = arith.addf %1764, %1769 : vector<16x16xf32>
    %c188 = arith.constant 188 : index
    %1771 = memref.load %arg3[%c188] : memref<196xf32, #tpu.memory_space<smem>>
    %c3_1094 = arith.constant 3 : index
    %c15_1095 = arith.constant 15 : index
    %c18_1096 = arith.constant 18 : index
    %1772 = vector.load %arg9[%c3_1094, %c15_1095, %c18_1096] : memref<4x34x34xf32, #tpu.memory_space<vmem>>, vector<1x16x16xf32>
    %1773 = vector.shape_cast %1772 : vector<1x16x16xf32> to vector<16x16xf32>
    %1774 = vector.broadcast %1771 : f32 to vector<16x16xf32>
    %1775 = arith.mulf %1774, %1773 : vector<16x16xf32>
    %1776 = arith.addf %1770, %1775 : vector<16x16xf32>
    %c189 = arith.constant 189 : index
    %1777 = memref.load %arg3[%c189] : memref<196xf32, #tpu.memory_space<smem>>
    %c3_1097 = arith.constant 3 : index
    %c18_1098 = arith.constant 18 : index
    %c0_1099 = arith.constant 0 : index
    %1778 = vector.load %arg9[%c3_1097, %c18_1098, %c0_1099] : memref<4x34x34xf32, #tpu.memory_space<vmem>>, vector<1x16x16xf32>
    %1779 = vector.shape_cast %1778 : vector<1x16x16xf32> to vector<16x16xf32>
    %1780 = vector.broadcast %1777 : f32 to vector<16x16xf32>
    %1781 = arith.mulf %1780, %1779 : vector<16x16xf32>
    %1782 = arith.addf %1776, %1781 : vector<16x16xf32>
    %c190 = arith.constant 190 : index
    %1783 = memref.load %arg3[%c190] : memref<196xf32, #tpu.memory_space<smem>>
    %c3_1100 = arith.constant 3 : index
    %c18_1101 = arith.constant 18 : index
    %c3_1102 = arith.constant 3 : index
    %1784 = vector.load %arg9[%c3_1100, %c18_1101, %c3_1102] : memref<4x34x34xf32, #tpu.memory_space<vmem>>, vector<1x16x16xf32>
    %1785 = vector.shape_cast %1784 : vector<1x16x16xf32> to vector<16x16xf32>
    %1786 = vector.broadcast %1783 : f32 to vector<16x16xf32>
    %1787 = arith.mulf %1786, %1785 : vector<16x16xf32>
    %1788 = arith.addf %1782, %1787 : vector<16x16xf32>
    %c191 = arith.constant 191 : index
    %1789 = memref.load %arg3[%c191] : memref<196xf32, #tpu.memory_space<smem>>
    %c3_1103 = arith.constant 3 : index
    %c18_1104 = arith.constant 18 : index
    %c6_1105 = arith.constant 6 : index
    %1790 = vector.load %arg9[%c3_1103, %c18_1104, %c6_1105] : memref<4x34x34xf32, #tpu.memory_space<vmem>>, vector<1x16x16xf32>
    %1791 = vector.shape_cast %1790 : vector<1x16x16xf32> to vector<16x16xf32>
    %1792 = vector.broadcast %1789 : f32 to vector<16x16xf32>
    %1793 = arith.mulf %1792, %1791 : vector<16x16xf32>
    %1794 = arith.addf %1788, %1793 : vector<16x16xf32>
    %c192 = arith.constant 192 : index
    %1795 = memref.load %arg3[%c192] : memref<196xf32, #tpu.memory_space<smem>>
    %c3_1106 = arith.constant 3 : index
    %c18_1107 = arith.constant 18 : index
    %c9_1108 = arith.constant 9 : index
    %1796 = vector.load %arg9[%c3_1106, %c18_1107, %c9_1108] : memref<4x34x34xf32, #tpu.memory_space<vmem>>, vector<1x16x16xf32>
    %1797 = vector.shape_cast %1796 : vector<1x16x16xf32> to vector<16x16xf32>
    %1798 = vector.broadcast %1795 : f32 to vector<16x16xf32>
    %1799 = arith.mulf %1798, %1797 : vector<16x16xf32>
    %1800 = arith.addf %1794, %1799 : vector<16x16xf32>
    %c193 = arith.constant 193 : index
    %1801 = memref.load %arg3[%c193] : memref<196xf32, #tpu.memory_space<smem>>
    %c3_1109 = arith.constant 3 : index
    %c18_1110 = arith.constant 18 : index
    %c12_1111 = arith.constant 12 : index
    %1802 = vector.load %arg9[%c3_1109, %c18_1110, %c12_1111] : memref<4x34x34xf32, #tpu.memory_space<vmem>>, vector<1x16x16xf32>
    %1803 = vector.shape_cast %1802 : vector<1x16x16xf32> to vector<16x16xf32>
    %1804 = vector.broadcast %1801 : f32 to vector<16x16xf32>
    %1805 = arith.mulf %1804, %1803 : vector<16x16xf32>
    %1806 = arith.addf %1800, %1805 : vector<16x16xf32>
    %c194 = arith.constant 194 : index
    %1807 = memref.load %arg3[%c194] : memref<196xf32, #tpu.memory_space<smem>>
    %c3_1112 = arith.constant 3 : index
    %c18_1113 = arith.constant 18 : index
    %c15_1114 = arith.constant 15 : index
    %1808 = vector.load %arg9[%c3_1112, %c18_1113, %c15_1114] : memref<4x34x34xf32, #tpu.memory_space<vmem>>, vector<1x16x16xf32>
    %1809 = vector.shape_cast %1808 : vector<1x16x16xf32> to vector<16x16xf32>
    %1810 = vector.broadcast %1807 : f32 to vector<16x16xf32>
    %1811 = arith.mulf %1810, %1809 : vector<16x16xf32>
    %1812 = arith.addf %1806, %1811 : vector<16x16xf32>
    %c195 = arith.constant 195 : index
    %1813 = memref.load %arg3[%c195] : memref<196xf32, #tpu.memory_space<smem>>
    %c3_1115 = arith.constant 3 : index
    %c18_1116 = arith.constant 18 : index
    %c18_1117 = arith.constant 18 : index
    %1814 = vector.load %arg9[%c3_1115, %c18_1116, %c18_1117] : memref<4x34x34xf32, #tpu.memory_space<vmem>>, vector<1x16x16xf32>
    %1815 = vector.shape_cast %1814 : vector<1x16x16xf32> to vector<16x16xf32>
    %1816 = vector.broadcast %1813 : f32 to vector<16x16xf32>
    %1817 = arith.mulf %1816, %1815 : vector<16x16xf32>
    %1818 = arith.addf %1812, %1817 : vector<16x16xf32>
    %c3_1118 = arith.constant 3 : index
    %1819 = memref.load %arg4[%c3_1118] : memref<4xf32, #tpu.memory_space<smem>>
    %1820 = vector.broadcast %1819 : f32 to vector<16x16xf32>
    %1821 = arith.addf %1818, %1820 : vector<16x16xf32>
    %cst_1119 = arith.constant 0.000000e+00 : f32
    %1822 = vector.broadcast %cst_1119 : f32 to vector<16x16xf32>
    %c0_1120 = arith.constant 0 : index
    %1823 = memref.load %arg5[%c0_1120] : memref<16xf32, #tpu.memory_space<smem>>
    %1824 = vector.broadcast %1823 : f32 to vector<16x16xf32>
    %1825 = arith.mulf %1824, %927 : vector<16x16xf32>
    %1826 = arith.addf %1822, %1825 : vector<16x16xf32>
    %c1_1121 = arith.constant 1 : index
    %1827 = memref.load %arg5[%c1_1121] : memref<16xf32, #tpu.memory_space<smem>>
    %1828 = vector.broadcast %1827 : f32 to vector<16x16xf32>
    %1829 = arith.mulf %1828, %1225 : vector<16x16xf32>
    %1830 = arith.addf %1826, %1829 : vector<16x16xf32>
    %c2_1122 = arith.constant 2 : index
    %1831 = memref.load %arg5[%c2_1122] : memref<16xf32, #tpu.memory_space<smem>>
    %1832 = vector.broadcast %1831 : f32 to vector<16x16xf32>
    %1833 = arith.mulf %1832, %1523 : vector<16x16xf32>
    %1834 = arith.addf %1830, %1833 : vector<16x16xf32>
    %c3_1123 = arith.constant 3 : index
    %1835 = memref.load %arg5[%c3_1123] : memref<16xf32, #tpu.memory_space<smem>>
    %1836 = vector.broadcast %1835 : f32 to vector<16x16xf32>
    %1837 = arith.mulf %1836, %1821 : vector<16x16xf32>
    %1838 = arith.addf %1834, %1837 : vector<16x16xf32>
    %c0_1124 = arith.constant 0 : index
    %1839 = memref.load %arg6[%c0_1124] : memref<4xf32, #tpu.memory_space<smem>>
    %1840 = vector.broadcast %1839 : f32 to vector<16x16xf32>
    %1841 = arith.addf %1838, %1840 : vector<16x16xf32>
    %c0_1125 = arith.constant 0 : index
    %c0_1126 = arith.constant 0 : index
    %c2_1127 = arith.constant 2 : index
    %c2_1128 = arith.constant 2 : index
    %1842 = vector.load %arg7[%c0_1125, %c0_1126, %c2_1127, %c2_1128] : memref<1x4x20x20xf32, #tpu.memory_space<vmem>>, vector<1x1x16x16xf32>
    %1843 = vector.shape_cast %1842 : vector<1x1x16x16xf32> to vector<16x16xf32>
    %1844 = arith.mulf %1843, %1841 : vector<16x16xf32>
    %c0_1129 = arith.constant 0 : index
    %c0_1130 = arith.constant 0 : index
    %c0_1131 = arith.constant 0 : index
    %c0_1132 = arith.constant 0 : index
    %1845 = vector.load %arg8[%c0_1129, %c0_1130, %c0_1131, %c0_1132] : memref<1x4x16x16xf32, #tpu.memory_space<vmem>>, vector<1x1x16x16xf32>
    %1846 = vector.shape_cast %1845 : vector<1x1x16x16xf32> to vector<16x16xf32>
    %1847 = vector.shape_cast %1844 : vector<16x16xf32> to vector<1x1x16x16xf32>
    tpu.vector_store %arg8[%c0_1129, %c0_1130, %c0_1131, %c0_1132], %1847 {strides = array<i32>} : memref<1x4x16x16xf32, #tpu.memory_space<vmem>>, vector<1x1x16x16xf32>,
    %cst_1133 = arith.constant 0.000000e+00 : f32
    %1848 = vector.broadcast %cst_1133 : f32 to vector<16x16xf32>
    %c4_1134 = arith.constant 4 : index
    %1849 = memref.load %arg5[%c4_1134] : memref<16xf32, #tpu.memory_space<smem>>
    %1850 = vector.broadcast %1849 : f32 to vector<16x16xf32>
    %1851 = arith.mulf %1850, %927 : vector<16x16xf32>
    %1852 = arith.addf %1848, %1851 : vector<16x16xf32>
    %c5_1135 = arith.constant 5 : index
    %1853 = memref.load %arg5[%c5_1135] : memref<16xf32, #tpu.memory_space<smem>>
    %1854 = vector.broadcast %1853 : f32 to vector<16x16xf32>
    %1855 = arith.mulf %1854, %1225 : vector<16x16xf32>
    %1856 = arith.addf %1852, %1855 : vector<16x16xf32>
    %c6_1136 = arith.constant 6 : index
    %1857 = memref.load %arg5[%c6_1136] : memref<16xf32, #tpu.memory_space<smem>>
    %1858 = vector.broadcast %1857 : f32 to vector<16x16xf32>
    %1859 = arith.mulf %1858, %1523 : vector<16x16xf32>
    %1860 = arith.addf %1856, %1859 : vector<16x16xf32>
    %c7_1137 = arith.constant 7 : index
    %1861 = memref.load %arg5[%c7_1137] : memref<16xf32, #tpu.memory_space<smem>>
    %1862 = vector.broadcast %1861 : f32 to vector<16x16xf32>
    %1863 = arith.mulf %1862, %1821 : vector<16x16xf32>
    %1864 = arith.addf %1860, %1863 : vector<16x16xf32>
    %c1_1138 = arith.constant 1 : index
    %1865 = memref.load %arg6[%c1_1138] : memref<4xf32, #tpu.memory_space<smem>>
    %1866 = vector.broadcast %1865 : f32 to vector<16x16xf32>
    %1867 = arith.addf %1864, %1866 : vector<16x16xf32>
    %c0_1139 = arith.constant 0 : index
    %c1_1140 = arith.constant 1 : index
    %c2_1141 = arith.constant 2 : index
    %c2_1142 = arith.constant 2 : index
    %1868 = vector.load %arg7[%c0_1139, %c1_1140, %c2_1141, %c2_1142] : memref<1x4x20x20xf32, #tpu.memory_space<vmem>>, vector<1x1x16x16xf32>
    %1869 = vector.shape_cast %1868 : vector<1x1x16x16xf32> to vector<16x16xf32>
    %1870 = arith.mulf %1869, %1867 : vector<16x16xf32>
    %c0_1143 = arith.constant 0 : index
    %c1_1144 = arith.constant 1 : index
    %c0_1145 = arith.constant 0 : index
    %c0_1146 = arith.constant 0 : index
    %1871 = vector.load %arg8[%c0_1143, %c1_1144, %c0_1145, %c0_1146] : memref<1x4x16x16xf32, #tpu.memory_space<vmem>>, vector<1x1x16x16xf32>
    %1872 = vector.shape_cast %1871 : vector<1x1x16x16xf32> to vector<16x16xf32>
    %1873 = vector.shape_cast %1870 : vector<16x16xf32> to vector<1x1x16x16xf32>
    tpu.vector_store %arg8[%c0_1143, %c1_1144, %c0_1145, %c0_1146], %1873 {strides = array<i32>} : memref<1x4x16x16xf32, #tpu.memory_space<vmem>>, vector<1x1x16x16xf32>,
    %cst_1147 = arith.constant 0.000000e+00 : f32
    %1874 = vector.broadcast %cst_1147 : f32 to vector<16x16xf32>
    %c8_1148 = arith.constant 8 : index
    %1875 = memref.load %arg5[%c8_1148] : memref<16xf32, #tpu.memory_space<smem>>
    %1876 = vector.broadcast %1875 : f32 to vector<16x16xf32>
    %1877 = arith.mulf %1876, %927 : vector<16x16xf32>
    %1878 = arith.addf %1874, %1877 : vector<16x16xf32>
    %c9_1149 = arith.constant 9 : index
    %1879 = memref.load %arg5[%c9_1149] : memref<16xf32, #tpu.memory_space<smem>>
    %1880 = vector.broadcast %1879 : f32 to vector<16x16xf32>
    %1881 = arith.mulf %1880, %1225 : vector<16x16xf32>
    %1882 = arith.addf %1878, %1881 : vector<16x16xf32>
    %c10_1150 = arith.constant 10 : index
    %1883 = memref.load %arg5[%c10_1150] : memref<16xf32, #tpu.memory_space<smem>>
    %1884 = vector.broadcast %1883 : f32 to vector<16x16xf32>
    %1885 = arith.mulf %1884, %1523 : vector<16x16xf32>
    %1886 = arith.addf %1882, %1885 : vector<16x16xf32>
    %c11_1151 = arith.constant 11 : index
    %1887 = memref.load %arg5[%c11_1151] : memref<16xf32, #tpu.memory_space<smem>>
    %1888 = vector.broadcast %1887 : f32 to vector<16x16xf32>
    %1889 = arith.mulf %1888, %1821 : vector<16x16xf32>
    %1890 = arith.addf %1886, %1889 : vector<16x16xf32>
    %c2_1152 = arith.constant 2 : index
    %1891 = memref.load %arg6[%c2_1152] : memref<4xf32, #tpu.memory_space<smem>>
    %1892 = vector.broadcast %1891 : f32 to vector<16x16xf32>
    %1893 = arith.addf %1890, %1892 : vector<16x16xf32>
    %c0_1153 = arith.constant 0 : index
    %c2_1154 = arith.constant 2 : index
    %c2_1155 = arith.constant 2 : index
    %c2_1156 = arith.constant 2 : index
    %1894 = vector.load %arg7[%c0_1153, %c2_1154, %c2_1155, %c2_1156] : memref<1x4x20x20xf32, #tpu.memory_space<vmem>>, vector<1x1x16x16xf32>
    %1895 = vector.shape_cast %1894 : vector<1x1x16x16xf32> to vector<16x16xf32>
    %1896 = arith.mulf %1895, %1893 : vector<16x16xf32>
    %c0_1157 = arith.constant 0 : index
    %c2_1158 = arith.constant 2 : index
    %c0_1159 = arith.constant 0 : index
    %c0_1160 = arith.constant 0 : index
    %1897 = vector.load %arg8[%c0_1157, %c2_1158, %c0_1159, %c0_1160] : memref<1x4x16x16xf32, #tpu.memory_space<vmem>>, vector<1x1x16x16xf32>
    %1898 = vector.shape_cast %1897 : vector<1x1x16x16xf32> to vector<16x16xf32>
    %1899 = vector.shape_cast %1896 : vector<16x16xf32> to vector<1x1x16x16xf32>
    tpu.vector_store %arg8[%c0_1157, %c2_1158, %c0_1159, %c0_1160], %1899 {strides = array<i32>} : memref<1x4x16x16xf32, #tpu.memory_space<vmem>>, vector<1x1x16x16xf32>,
    %cst_1161 = arith.constant 0.000000e+00 : f32
    %1900 = vector.broadcast %cst_1161 : f32 to vector<16x16xf32>
    %c12_1162 = arith.constant 12 : index
    %1901 = memref.load %arg5[%c12_1162] : memref<16xf32, #tpu.memory_space<smem>>
    %1902 = vector.broadcast %1901 : f32 to vector<16x16xf32>
    %1903 = arith.mulf %1902, %927 : vector<16x16xf32>
    %1904 = arith.addf %1900, %1903 : vector<16x16xf32>
    %c13_1163 = arith.constant 13 : index
    %1905 = memref.load %arg5[%c13_1163] : memref<16xf32, #tpu.memory_space<smem>>
    %1906 = vector.broadcast %1905 : f32 to vector<16x16xf32>
    %1907 = arith.mulf %1906, %1225 : vector<16x16xf32>
    %1908 = arith.addf %1904, %1907 : vector<16x16xf32>
    %c14_1164 = arith.constant 14 : index
    %1909 = memref.load %arg5[%c14_1164] : memref<16xf32, #tpu.memory_space<smem>>
    %1910 = vector.broadcast %1909 : f32 to vector<16x16xf32>
    %1911 = arith.mulf %1910, %1523 : vector<16x16xf32>
    %1912 = arith.addf %1908, %1911 : vector<16x16xf32>
    %c15_1165 = arith.constant 15 : index
    %1913 = memref.load %arg5[%c15_1165] : memref<16xf32, #tpu.memory_space<smem>>
    %1914 = vector.broadcast %1913 : f32 to vector<16x16xf32>
    %1915 = arith.mulf %1914, %1821 : vector<16x16xf32>
    %1916 = arith.addf %1912, %1915 : vector<16x16xf32>
    %c3_1166 = arith.constant 3 : index
    %1917 = memref.load %arg6[%c3_1166] : memref<4xf32, #tpu.memory_space<smem>>
    %1918 = vector.broadcast %1917 : f32 to vector<16x16xf32>
    %1919 = arith.addf %1916, %1918 : vector<16x16xf32>
    %c0_1167 = arith.constant 0 : index
    %c3_1168 = arith.constant 3 : index
    %c2_1169 = arith.constant 2 : index
    %c2_1170 = arith.constant 2 : index
    %1920 = vector.load %arg7[%c0_1167, %c3_1168, %c2_1169, %c2_1170] : memref<1x4x20x20xf32, #tpu.memory_space<vmem>>, vector<1x1x16x16xf32>
    %1921 = vector.shape_cast %1920 : vector<1x1x16x16xf32> to vector<16x16xf32>
    %1922 = arith.mulf %1921, %1919 : vector<16x16xf32>
    %c0_1171 = arith.constant 0 : index
    %c3_1172 = arith.constant 3 : index
    %c0_1173 = arith.constant 0 : index
    %c0_1174 = arith.constant 0 : index
    %1923 = vector.load %arg8[%c0_1171, %c3_1172, %c0_1173, %c0_1174] : memref<1x4x16x16xf32, #tpu.memory_space<vmem>>, vector<1x1x16x16xf32>
    %1924 = vector.shape_cast %1923 : vector<1x1x16x16xf32> to vector<16x16xf32>
    %1925 = vector.shape_cast %1922 : vector<16x16xf32> to vector<1x1x16x16xf32>
    tpu.vector_store %arg8[%c0_1171, %c3_1172, %c0_1173, %c0_1174], %1925 {strides = array<i32>} : memref<1x4x16x16xf32, #tpu.memory_space<vmem>>, vector<1x1x16x16xf32>,
    return
  }
  func.func @transform_0(%arg0: i32) -> i32 {
    %c0_i32 = arith.constant 0 : i32
    %c0_i32_0 = arith.constant 0 : i32
    return %c0_i32 : i32
  }
  func.func @transform_1(%arg0: i32) -> i32 {
    %c0_i32 = arith.constant 0 : i32
    %c0_i32_0 = arith.constant 0 : i32
    return %c0_i32 : i32
  }
  func.func @transform_2(%arg0: i32) -> i32 {
    %c0_i32 = arith.constant 0 : i32
    %c0_i32_0 = arith.constant 0 : i32
    return %c0_i32 : i32
  }
  func.func @transform_3(%arg0: i32) -> i32 {
    %c0_i32 = arith.constant 0 : i32
    %c0_i32_0 = arith.constant 0 : i32
    return %c0_i32 : i32
  }
  func.func @transform_4(%arg0: i32) -> i32 {
    %c0_i32 = arith.constant 0 : i32
    %c0_i32_0 = arith.constant 0 : i32
    return %c0_i32 : i32
  }
  func.func @transform_5(%arg0: i32) -> i32 {
    %c0_i32 = arith.constant 0 : i32
    %c0_i32_0 = arith.constant 0 : i32
    return %c0_i32 : i32
  }
  func.func @transform_6(%arg0: i32) -> (i32, i32, i32, i32) {
    %c0_i32 = arith.constant 0 : i32
    %c0_i32_0 = arith.constant 0 : i32
    %c0_i32_1 = arith.constant 0 : i32
    %c0_i32_2 = arith.constant 0 : i32
    return %arg0, %c0_i32, %c0_i32_0, %c0_i32_1 : i32, i32, i32, i32
  }
  func.func @transform_7(%arg0: i32) -> (i32, i32, i32, i32) {
    %c0_i32 = arith.constant 0 : i32
    %c0_i32_0 = arith.constant 0 : i32
    %c0_i32_1 = arith.constant 0 : i32
    %c0_i32_2 = arith.constant 0 : i32
    return %arg0, %c0_i32, %c0_i32_0, %c0_i32_1 : i32, i32, i32, i32
  }
}

</mosaic_0001>

<llo_original>
// kernel: tpu_custom_call.1
$region0: #{tpu_custom_call.1}
  #allocation0 [shape = 'u32[]', space=smem, size = 0x4, offset = 0x4, fixed_abs, tag = 'smem constant byte address 0x4 - core index']
  #allocation1 [shape = 'u32[72,128]{1,0:T(1,128)}', space=vmem, size = 0x9000, scoped, tag = 'internal scratch']
  #allocation2 [shape = 'f32[4,34,34]{2,1,0:T(8,128)}', space=vmem, size = 0x14000, scoped, tag = 'scratch operand']
  %s0 = inlined_call_operand.vmem [shape: f32[100], index: 0, kind: input, shape index: {}]
  %s1 = inlined_call_operand.vmem [shape: f32[4], index: 1, kind: input, shape index: {}]
  %s2 = inlined_call_operand.vmem [shape: f32[196], index: 2, kind: input, shape index: {}]
  %s3 = inlined_call_operand.vmem [shape: f32[4], index: 3, kind: input, shape index: {}]
  %s4 = inlined_call_operand.vmem [shape: f32[16], index: 4, kind: input, shape index: {}]
  %s5 = inlined_call_operand.vmem [shape: f32[4], index: 5, kind: input, shape index: {}]
  %s6 = inlined_call_operand.vmem [shape: f32[2,4,20,20], index: 6, kind: input, shape index: {}]
  %s7 = inlined_call_operand.hbm [shape: f32[2,4,16,16], index: 7, kind: output, shape index: {}]
  %s8 = sld [smem:[#allocation0]]
  $region85: #{tpu_custom_call.1} parent=0
    _
  %s10 = ssub.s32 1, %s8
  %s11 = scalar_select 0, %s10, %s8
  $region1: #{tpu_custom_call.1} parent=0
    #allocation3 [shape = 'u8[512]{0}', space=smem, size = 0x200, scoped, tag = 'input window, operand 0, single buffered']
    #allocation4 [shape = 's32[2]{0}', space=sflag, size = 0x8, scoped, tag = 'scoped memory for tpu_custom_call.1']
    #allocation5 [shape = 's32[2]{0}', space=sflag, size = 0x8, scoped, tag = 'scoped memory for tpu_custom_call.1']
    #allocation6 [shape = 'u8[512]{0}', space=smem, size = 0x200, scoped, tag = 'input window, operand 1, single buffered']
    #allocation7 [shape = 's32[1]{0}', space=sflag, size = 0x4, scoped, tag = 'scoped memory for tpu_custom_call.1']
    #allocation8 [shape = 'u8[1024]{0}', space=smem, size = 0x400, scoped, tag = 'input window, operand 2, single buffered']
    #allocation9 [shape = 'u8[512]{0}', space=smem, size = 0x200, scoped, tag = 'input window, operand 3, single buffered']
    #allocation10 [shape = 's32[1]{0}', space=sflag, size = 0x4, scoped, tag = 'scoped memory for tpu_custom_call.1']
    #allocation11 [shape = 'u8[512]{0}', space=smem, size = 0x200, scoped, tag = 'input window, operand 4, single buffered']
    #allocation12 [shape = 'u8[512]{0}', space=smem, size = 0x200, scoped, tag = 'input window, operand 5, single buffered']
    #allocation13 [shape = 's32[1]{0}', space=sflag, size = 0x4, scoped, tag = 'scoped memory for tpu_custom_call.1']
    #allocation14 [shape = 'u8[65536]{0}', space=vmem, size = 0x10000, scoped, tag = 'output window, operand 0']
    %12 = vsyncpa [#allocation5], 0
    %13 = vsyncpa [#allocation7], 0
    %14 = vsyncpa [#allocation10], 0
    %15 = vsyncpa [#allocation13], 0
    %16 = vsyncpa [#allocation4], 0
    %s17 = scalar_lea.sflag [#allocation4], 1
    %18 = vsyncpa %s17, 0
    loop: start=0, step=1, limit=4
    $region2: #{tpu_custom_call.1} parent=1 // loop_pre_header
      _
    $region3: #{tpu_custom_call.1} parent=1 // loop_header
      %s20 = sphi 0, %s24
      %p21 = scmp.ge.s32.totalorder %s20, 4
      %s28 = sphi 0, %s28
      %s30 = sphi 0, %s28
      %s31 = sphi 0, %s30
      %s45 = sphi 0, %s31
      %s49 = sphi 0, %s49
      %s51 = sphi 0, %s49
      %s52 = sphi 0, %s51
      %s66 = sphi 0, %s52
      %s70 = sphi 0, %s70
      %s72 = sphi 0, %s70
      %s73 = sphi 0, %s72
      %s87 = sphi 0, %s73
      %s91 = sphi 0, %s91
      %s93 = sphi 0, %s91
      %s94 = sphi 0, %s93
      %s108 = sphi 0, %s94
      %s112 = sphi 0, %s112
      %s114 = sphi 0, %s112
      %s115 = sphi 0, %s114
      %s129 = sphi 0, %s115
      %s133 = sphi 0, %s133
      %s135 = sphi 0, %s133
      %s136 = sphi 0, %s135
      %s150 = sphi 0, %s136
      %s156 = sphi 0, %s158
      %s159 = sphi 0, %s156
      %s160 = sphi 0, %s159
      %s176 = sphi 0, %s160
      %s182 = sphi 0, %s184
      %s185 = sphi 0, %s182
      %s186 = sphi 0, %s185
      %s202 = sphi 0, %s186
    $region4: #{tpu_custom_call.1} parent=1 // loop_header_branch
      %23 = sbr.rel (%p21) target = $region8
    $region5: #{tpu_custom_call.1} parent=1 // loop_body
      %s25 = ssub.s32 %s20, 1
      %s26 = ssub.s32 %s20, 2
      %s27 = sadd.s32 %s20, 1
      %s29 = sadd.s32 %s28, 1
      %p32 = scmp.eq.s32.totalorder %s20, 1
      %p33 = scmp.ne.s32.totalorder %s28, %s30
      %p34 = scmp.eq.s32.totalorder %s20, 0
      %p35 = por %p33, %p34
      %p36 = scmp.ne.s32.totalorder %s28, %s30
      %p37 = scmp.eq.s32.totalorder %s25, 1
      %p38 = por %p36, %p37
      %p39 = scmp.ne.s32.totalorder %s30, %s31
      %p40 = scmp.eq.s32.totalorder %s25, 0
      %p41 = por %p39, %p40
      %p42 = scmp.ne.s32.totalorder %s30, %s31
      %p43 = scmp.eq.s32.totalorder %s26, 1
      %p44 = por %p42, %p43
      %p46 = scmp.ne.s32.totalorder %s31, %s45
      %p47 = scmp.eq.s32.totalorder %s26, 0
      %p48 = por %p46, %p47
      %s50 = sadd.s32 %s49, 1
      %p53 = scmp.eq.s32.totalorder %s20, 1
      %p54 = scmp.ne.s32.totalorder %s49, %s51
      %p55 = scmp.eq.s32.totalorder %s20, 0
      %p56 = por %p54, %p55
      %p57 = scmp.ne.s32.totalorder %s49, %s51
      %p58 = scmp.eq.s32.totalorder %s25, 1
      %p59 = por %p57, %p58
      %p60 = scmp.ne.s32.totalorder %s51, %s52
      %p61 = scmp.eq.s32.totalorder %s25, 0
      %p62 = por %p60, %p61
      %p63 = scmp.ne.s32.totalorder %s51, %s52
      %p64 = scmp.eq.s32.totalorder %s26, 1
      %p65 = por %p63, %p64
      %p67 = scmp.ne.s32.totalorder %s52, %s66
      %p68 = scmp.eq.s32.totalorder %s26, 0
      %p69 = por %p67, %p68
      %s71 = sadd.s32 %s70, 1
      %p74 = scmp.eq.s32.totalorder %s20, 1
      %p75 = scmp.ne.s32.totalorder %s70, %s72
      %p76 = scmp.eq.s32.totalorder %s20, 0
      %p77 = por %p75, %p76
      %p78 = scmp.ne.s32.totalorder %s70, %s72
      %p79 = scmp.eq.s32.totalorder %s25, 1
      %p80 = por %p78, %p79
      %p81 = scmp.ne.s32.totalorder %s72, %s73
      %p82 = scmp.eq.s32.totalorder %s25, 0
      %p83 = por %p81, %p82
      %p84 = scmp.ne.s32.totalorder %s72, %s73
      %p85 = scmp.eq.s32.totalorder %s26, 1
      %p86 = por %p84, %p85
      %p88 = scmp.ne.s32.totalorder %s73, %s87
      %p89 = scmp.eq.s32.totalorder %s26, 0
      %p90 = por %p88, %p89
      %s92 = sadd.s32 %s91, 1
      %p95 = scmp.eq.s32.totalorder %s20, 1
      %p96 = scmp.ne.s32.totalorder %s91, %s93
      %p97 = scmp.eq.s32.totalorder %s20, 0
      %p98 = por %p96, %p97
      %p99 = scmp.ne.s32.totalorder %s91, %s93
      %p100 = scmp.eq.s32.totalorder %s25, 1
      %p101 = por %p99, %p100
      %p102 = scmp.ne.s32.totalorder %s93, %s94
      %p103 = scmp.eq.s32.totalorder %s25, 0
      %p104 = por %p102, %p103
      %p105 = scmp.ne.s32.totalorder %s93, %s94
      %p106 = scmp.eq.s32.totalorder %s26, 1
      %p107 = por %p105, %p106
      %p109 = scmp.ne.s32.totalorder %s94, %s108
      %p110 = scmp.eq.s32.totalorder %s26, 0
      %p111 = por %p109, %p110
      %s113 = sadd.s32 %s112, 1
      %p116 = scmp.eq.s32.totalorder %s20, 1
      %p117 = scmp.ne.s32.totalorder %s112, %s114
      %p118 = scmp.eq.s32.totalorder %s20, 0
      %p119 = por %p117, %p118
      %p120 = scmp.ne.s32.totalorder %s112, %s114
      %p121 = scmp.eq.s32.totalorder %s25, 1
      %p122 = por %p120, %p121
      %p123 = scmp.ne.s32.totalorder %s114, %s115
      %p124 = scmp.eq.s32.totalorder %s25, 0
      %p125 = por %p123, %p124
      %p126 = scmp.ne.s32.totalorder %s114, %s115
      %p127 = scmp.eq.s32.totalorder %s26, 1
      %p128 = por %p126, %p127
      %p130 = scmp.ne.s32.totalorder %s115, %s129
      %p131 = scmp.eq.s32.totalorder %s26, 0
      %p132 = por %p130, %p131
      %s134 = sadd.s32 %s133, 1
      %p137 = scmp.eq.s32.totalorder %s20, 1
      %p138 = scmp.ne.s32.totalorder %s133, %s135
      %p139 = scmp.eq.s32.totalorder %s20, 0
      %p140 = por %p138, %p139
      %p141 = scmp.ne.s32.totalorder %s133, %s135
      %p142 = scmp.eq.s32.totalorder %s25, 1
      %p143 = por %p141, %p142
      %p144 = scmp.ne.s32.totalorder %s135, %s136
      %p145 = scmp.eq.s32.totalorder %s25, 0
      %p146 = por %p144, %p145
      %p147 = scmp.ne.s32.totalorder %s135, %s136
      %p148 = scmp.eq.s32.totalorder %s26, 1
      %p149 = por %p147, %p148
      %p151 = scmp.ne.s32.totalorder %s136, %s150
      %p152 = scmp.eq.s32.totalorder %s26, 0
      %p153 = por %p151, %p152
      %s154 = ssub.s32 %s20, %s27
      %p155 = scmp.eq.s32.totalorder %s154, 0
      %s157 = sadd.s32 %s156, 1
      %s158 = scalar_select %p155, %s156, %s157
      %p161 = pneg %p155
      %p162 = scmp.eq.s32.totalorder %s20, 1
      %p163 = por %p161, %p162
      %p164 = scmp.ne.s32.totalorder %s156, %s159
      %p165 = scmp.eq.s32.totalorder %s20, 0
      %p166 = por %p164, %p165
      %p167 = scmp.ne.s32.totalorder %s156, %s159
      %p168 = scmp.eq.s32.totalorder %s25, 1
      %p169 = por %p167, %p168
      %p170 = scmp.ne.s32.totalorder %s159, %s160
      %p171 = scmp.eq.s32.totalorder %s25, 0
      %p172 = por %p170, %p171
      %p173 = scmp.ne.s32.totalorder %s159, %s160
      %p174 = scmp.eq.s32.totalorder %s26, 1
      %p175 = por %p173, %p174
      %p177 = scmp.ne.s32.totalorder %s160, %s176
      %p178 = scmp.eq.s32.totalorder %s26, 0
      %p179 = por %p177, %p178
      %s180 = ssub.s32 %s20, %s27
      %p181 = scmp.eq.s32.totalorder %s180, 0
      %s183 = sadd.s32 %s182, 1
      %s184 = scalar_select %p181, %s182, %s183
      %p187 = pneg %p181
      %p188 = scmp.eq.s32.totalorder %s20, 1
      %p189 = por %p187, %p188
      %p190 = scmp.ne.s32.totalorder %s182, %s185
      %p191 = scmp.eq.s32.totalorder %s20, 0
      %p192 = por %p190, %p191
      %p193 = scmp.ne.s32.totalorder %s182, %s185
      %p194 = scmp.eq.s32.totalorder %s25, 1
      %p195 = por %p193, %p194
      %p196 = scmp.ne.s32.totalorder %s185, %s186
      %p197 = scmp.eq.s32.totalorder %s25, 0
      %p198 = por %p196, %p197
      %p199 = scmp.ne.s32.totalorder %s185, %s186
      %p200 = scmp.eq.s32.totalorder %s26, 1
      %p201 = por %p199, %p200
      %p203 = scmp.ne.s32.totalorder %s186, %s202
      %p204 = scmp.eq.s32.totalorder %s26, 0
      %p205 = por %p203, %p204
      %p206 = scmp.le.s32.totalorder 1, %s20
      %p207 = scmp.lt.s32.totalorder %s20, 3
      %p208 = pnand %p206, %p207
      %p209 = pneg %p208
      // Predicated region
      $region9: #{tpu_custom_call.1} parent=5 // pred_check
        _
      $region10: #{tpu_custom_call.1} parent=5 // pred_check_branch
        %211 = sbr.rel (%p208) target = $region12
      $region11: #{tpu_custom_call.1} parent=5 // pred_region
        %s212 = ssub.s32 %s20, 1
        // Predicated region
        $region13: #{tpu_custom_call.1} parent=11 // pred_check
          %p213 = pneg %p41
        $region14: #{tpu_custom_call.1} parent=11 // pred_check_branch
          %215 = sbr.rel (%p213) target = $region16
        $region15: #{tpu_custom_call.1} parent=11 // pred_region
          %217 = vsyncadd [#allocation5], 0
          %s219 = sshll.u32 %s0, 4
          %s220 = int_to_ptr.vmem [resolvable:$true] %s219
          %222 = dma.vmem_to_smem %s220, 16, [#allocation3], [#allocation5]
        $region16: #{tpu_custom_call.1} parent=11 // pred_fallthru
          _
        // Predicated region
        $region17: #{tpu_custom_call.1} parent=11 // pred_check
          %p223 = pneg %p62
        $region18: #{tpu_custom_call.1} parent=11 // pred_check_branch
          %225 = sbr.rel (%p223) target = $region20
        $region19: #{tpu_custom_call.1} parent=11 // pred_region
          %227 = vsyncadd [#allocation7], 0
          %s229 = sshll.u32 %s1, 4
          %s230 = int_to_ptr.vmem [resolvable:$true] %s229
          %232 = dma.vmem_to_smem %s230, 16, [#allocation6], [#allocation7]
        $region20: #{tpu_custom_call.1} parent=11 // pred_fallthru
          _
        // Predicated region
        $region21: #{tpu_custom_call.1} parent=11 // pred_check
          %p233 = pneg %p83
        $region22: #{tpu_custom_call.1} parent=11 // pred_check_branch
          %235 = sbr.rel (%p233) target = $region24
        $region23: #{tpu_custom_call.1} parent=11 // pred_region
          %237 = vsyncadd [#allocation7], 0
          %s239 = sshll.u32 %s2, 4
          %s240 = int_to_ptr.vmem [resolvable:$true] %s239
          %242 = dma.vmem_to_smem %s240, 32, [#allocation8], [#allocation7]
        $region24: #{tpu_custom_call.1} parent=11 // pred_fallthru
          _
        // Predicated region
        $region25: #{tpu_custom_call.1} parent=11 // pred_check
          %p243 = pneg %p104
        $region26: #{tpu_custom_call.1} parent=11 // pred_check_branch
          %245 = sbr.rel (%p243) target = $region28
        $region27: #{tpu_custom_call.1} parent=11 // pred_region
          %247 = vsyncadd [#allocation10], 0
          %s249 = sshll.u32 %s3, 4
          %s250 = int_to_ptr.vmem [resolvable:$true] %s249
          %252 = dma.vmem_to_smem %s250, 16, [#allocation9], [#allocation10]
        $region28: #{tpu_custom_call.1} parent=11 // pred_fallthru
          _
        // Predicated region
        $region29: #{tpu_custom_call.1} parent=11 // pred_check
          %p253 = pneg %p125
        $region30: #{tpu_custom_call.1} parent=11 // pred_check_branch
          %255 = sbr.rel (%p253) target = $region32
        $region31: #{tpu_custom_call.1} parent=11 // pred_region
          %257 = vsyncadd [#allocation10], 0
          %s259 = sshll.u32 %s4, 4
          %s260 = int_to_ptr.vmem [resolvable:$true] %s259
          %262 = dma.vmem_to_smem %s260, 16, [#allocation11], [#allocation10]
        $region32: #{tpu_custom_call.1} parent=11 // pred_fallthru
          _
        // Predicated region
        $region33: #{tpu_custom_call.1} parent=11 // pred_check
          %p263 = pneg %p146
        $region34: #{tpu_custom_call.1} parent=11 // pred_check_branch
          %265 = sbr.rel (%p263) target = $region36
        $region35: #{tpu_custom_call.1} parent=11 // pred_region
          %267 = vsyncadd [#allocation13], 0
          %s269 = sshll.u32 %s5, 4
          %s270 = int_to_ptr.vmem [resolvable:$true] %s269
          %272 = dma.vmem_to_smem %s270, 16, [#allocation12], [#allocation13]
        $region36: #{tpu_custom_call.1} parent=11 // pred_fallthru
          _
      $region12: #{tpu_custom_call.1} parent=5 // pred_fallthru
        _
      %p273 = scmp.lt.s32.totalorder %s20, 2
      // Predicated region
      $region37: #{tpu_custom_call.1} parent=5 // pred_check
        %p274 = pneg %p273
      $region38: #{tpu_custom_call.1} parent=5 // pred_check_branch
        %276 = sbr.rel (%p274) target = $region40
      $region39: #{tpu_custom_call.1} parent=5 // pred_region
        // Predicated region
        $region41: #{tpu_custom_call.1} parent=39 // pred_check
          %p277 = pneg %p166
        $region42: #{tpu_custom_call.1} parent=39 // pred_check_branch
          %279 = sbr.rel (%p277) target = $region44
        $region43: #{tpu_custom_call.1} parent=39 // pred_region
          %p280 = scmp.lt.s32.totalorder %s20, 1
          %s281 = scalar_select %p280, %s20, 1
          %s282 = smul.addr %s281, 12
          %s283 = smul.addr %s282, 8
          %s284 = scalar_lea.vmem %s6, %s283
        $region44: #{tpu_custom_call.1} parent=39 // pred_fallthru
          _
      $region40: #{tpu_custom_call.1} parent=5 // pred_fallthru
        _
      %p285 = scmp.le.s32.totalorder 1, %s20
      %p286 = scmp.lt.s32.totalorder %s20, 3
      %p287 = pnand %p285, %p286
      %p288 = pneg %p287
      // Predicated region
      $region45: #{tpu_custom_call.1} parent=5 // pred_check
        _
      $region46: #{tpu_custom_call.1} parent=5 // pred_check_branch
        %290 = sbr.rel (%p287) target = $region48
      $region47: #{tpu_custom_call.1} parent=5 // pred_region
        %s291 = ssub.s32 %s20, 1
        // Predicated region
        $region49: #{tpu_custom_call.1} parent=47 // pred_check
          %p292 = pneg %p41
        $region50: #{tpu_custom_call.1} parent=47 // pred_check_branch
          %294 = sbr.rel (%p292) target = $region52
        $region51: #{tpu_custom_call.1} parent=47 // pred_region
          %296 = dma.done [#allocation5], 16
        $region52: #{tpu_custom_call.1} parent=47 // pred_fallthru
          _
        // Predicated region
        $region53: #{tpu_custom_call.1} parent=47 // pred_check
          %p297 = pneg %p62
        $region54: #{tpu_custom_call.1} parent=47 // pred_check_branch
          %299 = sbr.rel (%p297) target = $region56
        $region55: #{tpu_custom_call.1} parent=47 // pred_region
          %301 = dma.done [#allocation7], 16
        $region56: #{tpu_custom_call.1} parent=47 // pred_fallthru
          _
        // Predicated region
        $region57: #{tpu_custom_call.1} parent=47 // pred_check
          %p302 = pneg %p83
        $region58: #{tpu_custom_call.1} parent=47 // pred_check_branch
          %304 = sbr.rel (%p302) target = $region60
        $region59: #{tpu_custom_call.1} parent=47 // pred_region
          %306 = dma.done [#allocation7], 32
        $region60: #{tpu_custom_call.1} parent=47 // pred_fallthru
          _
        // Predicated region
        $region61: #{tpu_custom_call.1} parent=47 // pred_check
          %p307 = pneg %p104
        $region62: #{tpu_custom_call.1} parent=47 // pred_check_branch
          %309 = sbr.rel (%p307) target = $region64
        $region63: #{tpu_custom_call.1} parent=47 // pred_region
          %311 = dma.done [#allocation10], 16
        $region64: #{tpu_custom_call.1} parent=47 // pred_fallthru
          _
        // Predicated region
        $region65: #{tpu_custom_call.1} parent=47 // pred_check
          %p312 = pneg %p125
        $region66: #{tpu_custom_call.1} parent=47 // pred_check_branch
          %314 = sbr.rel (%p312) target = $region68
        $region67: #{tpu_custom_call.1} parent=47 // pred_region
          %316 = dma.done [#allocation10], 16
        $region68: #{tpu_custom_call.1} parent=47 // pred_fallthru
          _
        // Predicated region
        $region69: #{tpu_custom_call.1} parent=47 // pred_check
          %p317 = pneg %p146
        $region70: #{tpu_custom_call.1} parent=47 // pred_check_branch
          %319 = sbr.rel (%p317) target = $region72
        $region71: #{tpu_custom_call.1} parent=47 // pred_region
          %321 = dma.done [#allocation13], 16
        $region72: #{tpu_custom_call.1} parent=47 // pred_fallthru
          _
        %322 = sfence
        %p323 = pneg %p41
        %p324 = pneg %p38
        %p325 = pneg %p62
        %p326 = pneg %p59
        %p327 = pneg %p83
        %p328 = pneg %p80
        %p329 = pneg %p104
        %p330 = pneg %p101
        %p331 = pneg %p125
        %p332 = pneg %p122
        %p333 = pneg %p146
        %p334 = pneg %p143
        %p335 = scmp.lt.s32.totalorder %s25, 1
        %s336 = scalar_select %p335, %s25, 1
        %s337 = smul.addr %s336, 12
        %s338 = smul.addr %s337, 8
        %s339 = scalar_lea.vmem %s6, %s338
        %p340 = pneg %p172
        %p341 = pneg %p169
        %p342 = pneg %p198
        %p343 = pneg %p195
        %s344 = sand.u32 %s185, 1
        %s345 = scalar_lea.sflag [#allocation4], %s344
        %s346 = sand.u32 %s185, 1
        %s347 = smul.addr %s346, 64
        %s348 = scalar_lea.vmem [#allocation14], %s347
        %p349 = scmp.lt.s32.totalorder %s25, 1
        %s350 = scalar_select %p349, %s25, 1
        %s351 = smul.addr %s350, 12
        %s352 = smul.addr %s351, 8
        %s353 = scalar_lea.vmem %s6, %s352
        %vm354 = vcmask 277504
        %355 = vst.msk [vmem:[#allocation2] sm:$0xff] %vm354, 0.0
        %356 = vst.msk [vmem:[#allocation2 + $0x8] sm:$0xff] %vm354, 0.0
        %357 = vst.msk [vmem:[#allocation2 + $0x10] sm:$0xff] %vm354, 0.0
        %358 = vst.msk [vmem:[#allocation2 + $0x18] sm:$0xff] %vm354, 0.0
        %vm359 = vcmask 271360
        %360 = vst.msk [vmem:[#allocation2 + $0x20] sm:$0x3] %vm359, 0.0
        %361 = vst.msk [vmem:[#allocation2 + $0x28] sm:$0xff] %vm354, 0.0
        %362 = vst.msk [vmem:[#allocation2 + $0x30] sm:$0xff] %vm354, 0.0
        %363 = vst.msk [vmem:[#allocation2 + $0x38] sm:$0xff] %vm354, 0.0
        %364 = vst.msk [vmem:[#allocation2 + $0x40] sm:$0xff] %vm354, 0.0
        %365 = vst.msk [vmem:[#allocation2 + $0x48] sm:$0x3] %vm359, 0.0
        %366 = vst.msk [vmem:[#allocation2 + $0x50] sm:$0xff] %vm354, 0.0
        %367 = vst.msk [vmem:[#allocation2 + $0x58] sm:$0xff] %vm354, 0.0
        %368 = vst.msk [vmem:[#allocation2 + $0x60] sm:$0xff] %vm354, 0.0
        %369 = vst.msk [vmem:[#allocation2 + $0x68] sm:$0xff] %vm354, 0.0
        %370 = vst.msk [vmem:[#allocation2 + $0x70] sm:$0x3] %vm359, 0.0
        %371 = vst.msk [vmem:[#allocation2 + $0x78] sm:$0xff] %vm354, 0.0
        %372 = vst.msk [vmem:[#allocation2 + $0x80] sm:$0xff] %vm354, 0.0
        %373 = vst.msk [vmem:[#allocation2 + $0x88] sm:$0xff] %vm354, 0.0
        %374 = vst.msk [vmem:[#allocation2 + $0x90] sm:$0xff] %vm354, 0.0
        %375 = vst.msk [vmem:[#allocation2 + $0x98] sm:$0x3] %vm359, 0.0
        %s376 = sld [smem:[#allocation3]]
        %v377 = vld [vmem:[%s353] sm:$0xff]
        %v378 = vld [vmem:[%s353 + $0x8] sm:$0xff]
        %v379 = vstv %s376
        %v380 = vmul.f32 %v379, %v377
        %v381 = vmul.f32 %v379, %v378
        %v382 = vadd.f32 %v380, 0.0
        %v383 = vadd.f32 %v381, 0.0
        %s384 = sld [smem:[#allocation3 + $0x1]]
        %v385 = vstv %s384
        %v386 = vmul.f32 %v385, %v377
        %v387 = vmul.f32 %v385, %v378
        %390 = vrot.lane.b32.xlu0 %v386, 127
        %v391 = vpop.permute.xlu0 %390
        %392 = vrot.lane.b32.xlu0 %v387, 127
        %v393 = vpop.permute.xlu0 %392
        %v396 = vadd.f32 %v382, %v391
        %v397 = vadd.f32 %v383, %v393
        %s398 = sld [smem:[#allocation3 + $0x2]]
        %v399 = vstv %s398
        %v400 = vmul.f32 %v399, %v377
        %v401 = vmul.f32 %v399, %v378
        %404 = vrot.lane.b32.xlu0 %v400, 126
        %v405 = vpop.permute.xlu0 %404
        %406 = vrot.lane.b32.xlu0 %v401, 126
        %v407 = vpop.permute.xlu0 %406
        %v410 = vadd.f32 %v396, %v405
        %v411 = vadd.f32 %v397, %v407
        %s412 = sld [smem:[#allocation3 + $0x3]]
        %v413 = vstv %s412
        %v414 = vmul.f32 %v413, %v377
        %v415 = vmul.f32 %v413, %v378
        %418 = vrot.lane.b32.xlu0 %v414, 125
        %v419 = vpop.permute.xlu0 %418
        %420 = vrot.lane.b32.xlu0 %v415, 125
        %v421 = vpop.permute.xlu0 %420
        %v424 = vadd.f32 %v410, %v419
        %v425 = vadd.f32 %v411, %v421
        %s426 = sld [smem:[#allocation3 + $0x4]]
        %v427 = vstv %s426
        %v428 = vmul.f32 %v427, %v377
        %v429 = vmul.f32 %v427, %v378
        %432 = vrot.lane.b32.xlu0 %v428, 124
        %v433 = vpop.permute.xlu0 %432
        %434 = vrot.lane.b32.xlu0 %v429, 124
        %v435 = vpop.permute.xlu0 %434
        %v438 = vadd.f32 %v424, %v433
        %v439 = vadd.f32 %v425, %v435
        %s440 = sld [smem:[#allocation3 + $0x5]]
        %v441 = vld [vmem:[%s353 + $0x1] sm:$0xff]
        %v442 = vld [vmem:[%s353 + $0x9] sm:$0xff]
        %v443 = vstv %s440
        %v444 = vmul.f32 %v443, %v441
        %v445 = vmul.f32 %v443, %v442
        %v446 = vadd.f32 %v438, %v444
        %v447 = vadd.f32 %v439, %v445
        %s448 = sld [smem:[#allocation3 + $0x6]]
        %v449 = vstv %s448
        %v450 = vmul.f32 %v449, %v441
        %v451 = vmul.f32 %v449, %v442
        %454 = vrot.lane.b32.xlu0 %v450, 127
        %v455 = vpop.permute.xlu0 %454
        %456 = vrot.lane.b32.xlu0 %v451, 127
        %v457 = vpop.permute.xlu0 %456
        %v460 = vadd.f32 %v446, %v455
        %v461 = vadd.f32 %v447, %v457
        %s462 = sld [smem:[#allocation3 + $0x7]]
        %v463 = vstv %s462
        %v464 = vmul.f32 %v463, %v441
        %v465 = vmul.f32 %v463, %v442
        %468 = vrot.lane.b32.xlu0 %v464, 126
        %v469 = vpop.permute.xlu0 %468
        %470 = vrot.lane.b32.xlu0 %v465, 126
        %v471 = vpop.permute.xlu0 %470
        %v474 = vadd.f32 %v460, %v469
        %v475 = vadd.f32 %v461, %v471
        %s476 = sld [smem:[#allocation3 + $0x8]]
        %v477 = vstv %s476
        %v478 = vmul.f32 %v477, %v441
        %v479 = vmul.f32 %v477, %v442
        %482 = vrot.lane.b32.xlu0 %v478, 125
        %v483 = vpop.permute.xlu0 %482
        %484 = vrot.lane.b32.xlu0 %v479, 125
        %v485 = vpop.permute.xlu0 %484
        %v488 = vadd.f32 %v474, %v483
        %v489 = vadd.f32 %v475, %v485
        %s490 = sld [smem:[#allocation3 + $0x9]]
        %v491 = vstv %s490
        %v492 = vmul.f32 %v491, %v441
        %v493 = vmul.f32 %v491, %v442
        %496 = vrot.lane.b32.xlu0 %v492, 124
        %v497 = vpop.permute.xlu0 %496
        %498 = vrot.lane.b32.xlu0 %v493, 124
        %v499 = vpop.permute.xlu0 %498
        %v502 = vadd.f32 %v488, %v497
        %v503 = vadd.f32 %v489, %v499
        %s504 = sld [smem:[#allocation3 + $0xa]]
        %v505 = vld [vmem:[%s353 + $0x2] sm:$0xff]
        %v506 = vld [vmem:[%s353 + $0xa] sm:$0xff]
        %v507 = vstv %s504
        %v508 = vmul.f32 %v507, %v505
        %v509 = vmul.f32 %v507, %v506
        %v510 = vadd.f32 %v502, %v508
        %v511 = vadd.f32 %v503, %v509
        %s512 = sld [smem:[#allocation3 + $0xb]]
        %v513 = vstv %s512
        %v514 = vmul.f32 %v513, %v505
        %v515 = vmul.f32 %v513, %v506
        %518 = vrot.lane.b32.xlu0 %v514, 127
        %v519 = vpop.permute.xlu0 %518
        %520 = vrot.lane.b32.xlu0 %v515, 127
        %v521 = vpop.permute.xlu0 %520
        %v524 = vadd.f32 %v510, %v519
        %v525 = vadd.f32 %v511, %v521
        %s526 = sld [smem:[#allocation3 + $0xc]]
        %v527 = vstv %s526
        %v528 = vmul.f32 %v527, %v505
        %v529 = vmul.f32 %v527, %v506
        %532 = vrot.lane.b32.xlu0 %v528, 126
        %v533 = vpop.permute.xlu0 %532
        %534 = vrot.lane.b32.xlu0 %v529, 126
        %v535 = vpop.permute.xlu0 %534
        %v538 = vadd.f32 %v524, %v533
        %v539 = vadd.f32 %v525, %v535
        %s540 = sld [smem:[#allocation3 + $0xd]]
        %v541 = vstv %s540
        %v542 = vmul.f32 %v541, %v505
        %v543 = vmul.f32 %v541, %v506
        %546 = vrot.lane.b32.xlu0 %v542, 125
        %v547 = vpop.permute.xlu0 %546
        %548 = vrot.lane.b32.xlu0 %v543, 125
        %v549 = vpop.permute.xlu0 %548
        %v552 = vadd.f32 %v538, %v547
        %v553 = vadd.f32 %v539, %v549
        %s554 = sld [smem:[#allocation3 + $0xe]]
        %v555 = vstv %s554
        %v556 = vmul.f32 %v555, %v505
        %v557 = vmul.f32 %v555, %v506
        %560 = vrot.lane.b32.xlu0 %v556, 124
        %v561 = vpop.permute.xlu0 %560
        %562 = vrot.lane.b32.xlu0 %v557, 124
        %v563 = vpop.permute.xlu0 %562
        %v566 = vadd.f32 %v552, %v561
        %v567 = vadd.f32 %v553, %v563
        %s568 = sld [smem:[#allocation3 + $0xf]]
        %v569 = vld [vmem:[%s353 + $0x3] sm:$0xff]
        %v570 = vld [vmem:[%s353 + $0xb] sm:$0xff]
        %v571 = vstv %s568
        %v572 = vmul.f32 %v571, %v569
        %v573 = vmul.f32 %v571, %v570
        %v574 = vadd.f32 %v566, %v572
        %v575 = vadd.f32 %v567, %v573
        %s576 = sld [smem:[#allocation3 + $0x10]]
        %v577 = vstv %s576
        %v578 = vmul.f32 %v577, %v569
        %v579 = vmul.f32 %v577, %v570
        %582 = vrot.lane.b32.xlu0 %v578, 127
        %v583 = vpop.permute.xlu0 %582
        %584 = vrot.lane.b32.xlu0 %v579, 127
        %v585 = vpop.permute.xlu0 %584
        %v588 = vadd.f32 %v574, %v583
        %v589 = vadd.f32 %v575, %v585
        %s590 = sld [smem:[#allocation3 + $0x11]]
        %v591 = vstv %s590
        %v592 = vmul.f32 %v591, %v569
        %v593 = vmul.f32 %v591, %v570
        %596 = vrot.lane.b32.xlu0 %v592, 126
        %v597 = vpop.permute.xlu0 %596
        %598 = vrot.lane.b32.xlu0 %v593, 126
        %v599 = vpop.permute.xlu0 %598
        %v602 = vadd.f32 %v588, %v597
        %v603 = vadd.f32 %v589, %v599
        %s604 = sld [smem:[#allocation3 + $0x12]]
        %v605 = vstv %s604
        %v606 = vmul.f32 %v605, %v569
        %v607 = vmul.f32 %v605, %v570
        %610 = vrot.lane.b32.xlu0 %v606, 125
        %v611 = vpop.permute.xlu0 %610
        %612 = vrot.lane.b32.xlu0 %v607, 125
        %v613 = vpop.permute.xlu0 %612
        %v616 = vadd.f32 %v602, %v611
        %v617 = vadd.f32 %v603, %v613
        %s618 = sld [smem:[#allocation3 + $0x13]]
        %v619 = vstv %s618
        %v620 = vmul.f32 %v619, %v569
        %v621 = vmul.f32 %v619, %v570
        %624 = vrot.lane.b32.xlu0 %v620, 124
        %v625 = vpop.permute.xlu0 %624
        %626 = vrot.lane.b32.xlu0 %v621, 124
        %v627 = vpop.permute.xlu0 %626
        %v630 = vadd.f32 %v616, %v625
        %v631 = vadd.f32 %v617, %v627
        %s632 = sld [smem:[#allocation3 + $0x14]]
        %v633 = vld [vmem:[%s353 + $0x4] sm:$0xff]
        %v634 = vld [vmem:[%s353 + $0xc] sm:$0xff]
        %v635 = vstv %s632
        %v636 = vmul.f32 %v635, %v633
        %v637 = vmul.f32 %v635, %v634
        %v638 = vadd.f32 %v630, %v636
        %v639 = vadd.f32 %v631, %v637
        %s640 = sld [smem:[#allocation3 + $0x15]]
        %v641 = vstv %s640
        %v642 = vmul.f32 %v641, %v633
        %v643 = vmul.f32 %v641, %v634
        %646 = vrot.lane.b32.xlu0 %v642, 127
        %v647 = vpop.permute.xlu0 %646
        %648 = vrot.lane.b32.xlu0 %v643, 127
        %v649 = vpop.permute.xlu0 %648
        %v652 = vadd.f32 %v638, %v647
        %v653 = vadd.f32 %v639, %v649
        %s654 = sld [smem:[#allocation3 + $0x16]]
        %v655 = vstv %s654
        %v656 = vmul.f32 %v655, %v633
        %v657 = vmul.f32 %v655, %v634
        %660 = vrot.lane.b32.xlu0 %v656, 126
        %v661 = vpop.permute.xlu0 %660
        %662 = vrot.lane.b32.xlu0 %v657, 126
        %v663 = vpop.permute.xlu0 %662
        %v666 = vadd.f32 %v652, %v661
        %v667 = vadd.f32 %v653, %v663
        %s668 = sld [smem:[#allocation3 + $0x17]]
        %v669 = vstv %s668
        %v670 = vmul.f32 %v669, %v633
        %v671 = vmul.f32 %v669, %v634
        %674 = vrot.lane.b32.xlu0 %v670, 125
        %v675 = vpop.permute.xlu0 %674
        %676 = vrot.lane.b32.xlu0 %v671, 125
        %v677 = vpop.permute.xlu0 %676
        %v680 = vadd.f32 %v666, %v675
        %v681 = vadd.f32 %v667, %v677
        %s682 = sld [smem:[#allocation3 + $0x18]]
        %v683 = vstv %s682
        %v684 = vmul.f32 %v683, %v633
        %v685 = vmul.f32 %v683, %v634
        %688 = vrot.lane.b32.xlu0 %v684, 124
        %v689 = vpop.permute.xlu0 %688
        %690 = vrot.lane.b32.xlu0 %v685, 124
        %v691 = vpop.permute.xlu0 %690
        %v694 = vadd.f32 %v680, %v689
        %v695 = vadd.f32 %v681, %v691
        %s696 = sld [smem:[#allocation6]]
        %v697 = vstv %s696
        %v698 = vadd.f32 %v694, %v697
        %v699 = vadd.f32 %v695, %v697
        %702 = vrot.lane.b32.xlu0 %v698, 9
        %v703 = vpop.permute.xlu0 %702
        %704 = vrot.lane.b32.xlu0 %v699, 9
        %v705 = vpop.permute.xlu0 %704
        %vm708 = vcmask 203848
        %709 = vst.msk [vmem:[#allocation2 + $0x9] sm:$0xff] %vm708, %v703
        %710 = vst.msk [vmem:[#allocation2 + $0x11] sm:$0xff] %vm708, %v705
        %s711 = sld [smem:[#allocation3 + $0x19]]
        %s712 = scalar_lea.vmem %s353, 24
        %v713 = vld [vmem:[%s712] sm:$0xff]
        %v714 = vld [vmem:[%s712 + $0x8] sm:$0xff]
        %v715 = vstv %s711
        %v716 = vmul.f32 %v715, %v713
        %v717 = vmul.f32 %v715, %v714
        %v718 = vadd.f32 %v716, 0.0
        %v719 = vadd.f32 %v717, 0.0
        %s720 = sld [smem:[#allocation3 + $0x1a]]
        %v721 = vstv %s720
        %v722 = vmul.f32 %v721, %v713
        %v723 = vmul.f32 %v721, %v714
        %726 = vrot.lane.b32.xlu0 %v722, 127
        %v727 = vpop.permute.xlu0 %726
        %728 = vrot.lane.b32.xlu0 %v723, 127
        %v729 = vpop.permute.xlu0 %728
        %v732 = vadd.f32 %v718, %v727
        %v733 = vadd.f32 %v719, %v729
        %s734 = sld [smem:[#allocation3 + $0x1b]]
        %v735 = vstv %s734
        %v736 = vmul.f32 %v735, %v713
        %v737 = vmul.f32 %v735, %v714
        %740 = vrot.lane.b32.xlu0 %v736, 126
        %v741 = vpop.permute.xlu0 %740
        %742 = vrot.lane.b32.xlu0 %v737, 126
        %v743 = vpop.permute.xlu0 %742
        %v746 = vadd.f32 %v732, %v741
        %v747 = vadd.f32 %v733, %v743
        %s748 = sld [smem:[#allocation3 + $0x1c]]
        %v749 = vstv %s748
        %v750 = vmul.f32 %v749, %v713
        %v751 = vmul.f32 %v749, %v714
        %754 = vrot.lane.b32.xlu0 %v750, 125
        %v755 = vpop.permute.xlu0 %754
        %756 = vrot.lane.b32.xlu0 %v751, 125
        %v757 = vpop.permute.xlu0 %756
        %v760 = vadd.f32 %v746, %v755
        %v761 = vadd.f32 %v747, %v757
        %s762 = sld [smem:[#allocation3 + $0x1d]]
        %v763 = vstv %s762
        %v764 = vmul.f32 %v763, %v713
        %v765 = vmul.f32 %v763, %v714
        %768 = vrot.lane.b32.xlu0 %v764, 124
        %v769 = vpop.permute.xlu0 %768
        %770 = vrot.lane.b32.xlu0 %v765, 124
        %v771 = vpop.permute.xlu0 %770
        %v774 = vadd.f32 %v760, %v769
        %v775 = vadd.f32 %v761, %v771
        %s776 = sld [smem:[#allocation3 + $0x1e]]
        %v777 = vld [vmem:[%s712 + $0x1] sm:$0xff]
        %v778 = vld [vmem:[%s712 + $0x9] sm:$0xff]
        %v779 = vstv %s776
        %v780 = vmul.f32 %v779, %v777
        %v781 = vmul.f32 %v779, %v778
        %v782 = vadd.f32 %v774, %v780
        %v783 = vadd.f32 %v775, %v781
        %s784 = sld [smem:[#allocation3 + $0x1f]]
        %v785 = vstv %s784
        %v786 = vmul.f32 %v785, %v777
        %v787 = vmul.f32 %v785, %v778
        %790 = vrot.lane.b32.xlu0 %v786, 127
        %v791 = vpop.permute.xlu0 %790
        %792 = vrot.lane.b32.xlu0 %v787, 127
        %v793 = vpop.permute.xlu0 %792
        %v796 = vadd.f32 %v782, %v791
        %v797 = vadd.f32 %v783, %v793
        %s798 = sld [smem:[#allocation3 + $0x20]]
        %v799 = vstv %s798
        %v800 = vmul.f32 %v799, %v777
        %v801 = vmul.f32 %v799, %v778
        %804 = vrot.lane.b32.xlu0 %v800, 126
        %v805 = vpop.permute.xlu0 %804
        %806 = vrot.lane.b32.xlu0 %v801, 126
        %v807 = vpop.permute.xlu0 %806
        %v810 = vadd.f32 %v796, %v805
        %v811 = vadd.f32 %v797, %v807
        %s812 = sld [smem:[#allocation3 + $0x21]]
        %v813 = vstv %s812
        %v814 = vmul.f32 %v813, %v777
        %v815 = vmul.f32 %v813, %v778
        %818 = vrot.lane.b32.xlu0 %v814, 125
        %v819 = vpop.permute.xlu0 %818
        %820 = vrot.lane.b32.xlu0 %v815, 125
        %v821 = vpop.permute.xlu0 %820
        %v824 = vadd.f32 %v810, %v819
        %v825 = vadd.f32 %v811, %v821
        %s826 = sld [smem:[#allocation3 + $0x22]]
        %v827 = vstv %s826
        %v828 = vmul.f32 %v827, %v777
        %v829 = vmul.f32 %v827, %v778
        %832 = vrot.lane.b32.xlu0 %v828, 124
        %v833 = vpop.permute.xlu0 %832
        %834 = vrot.lane.b32.xlu0 %v829, 124
        %v835 = vpop.permute.xlu0 %834
        %v838 = vadd.f32 %v824, %v833
        %v839 = vadd.f32 %v825, %v835
        %s840 = sld [smem:[#allocation3 + $0x23]]
        %v841 = vld [vmem:[%s712 + $0x2] sm:$0xff]
        %v842 = vld [vmem:[%s712 + $0xa] sm:$0xff]
        %v843 = vstv %s840
        %v844 = vmul.f32 %v843, %v841
        %v845 = vmul.f32 %v843, %v842
        %v846 = vadd.f32 %v838, %v844
        %v847 = vadd.f32 %v839, %v845
        %s848 = sld [smem:[#allocation3 + $0x24]]
        %v849 = vstv %s848
        %v850 = vmul.f32 %v849, %v841
        %v851 = vmul.f32 %v849, %v842
        %854 = vrot.lane.b32.xlu0 %v850, 127
        %v855 = vpop.permute.xlu0 %854
        %856 = vrot.lane.b32.xlu0 %v851, 127
        %v857 = vpop.permute.xlu0 %856
        %v860 = vadd.f32 %v846, %v855
        %v861 = vadd.f32 %v847, %v857
        %s862 = sld [smem:[#allocation3 + $0x25]]
        %v863 = vstv %s862
        %v864 = vmul.f32 %v863, %v841
        %v865 = vmul.f32 %v863, %v842
        %868 = vrot.lane.b32.xlu0 %v864, 126
        %v869 = vpop.permute.xlu0 %868
        %870 = vrot.lane.b32.xlu0 %v865, 126
        %v871 = vpop.permute.xlu0 %870
        %v874 = vadd.f32 %v860, %v869
        %v875 = vadd.f32 %v861, %v871
        %s876 = sld [smem:[#allocation3 + $0x26]]
        %v877 = vstv %s876
        %v878 = vmul.f32 %v877, %v841
        %v879 = vmul.f32 %v877, %v842
        %882 = vrot.lane.b32.xlu0 %v878, 125
        %v883 = vpop.permute.xlu0 %882
        %884 = vrot.lane.b32.xlu0 %v879, 125
        %v885 = vpop.permute.xlu0 %884
        %v888 = vadd.f32 %v874, %v883
        %v889 = vadd.f32 %v875, %v885
        %s890 = sld [smem:[#allocation3 + $0x27]]
        %v891 = vstv %s890
        %v892 = vmul.f32 %v891, %v841
        %v893 = vmul.f32 %v891, %v842
        %896 = vrot.lane.b32.xlu0 %v892, 124
        %v897 = vpop.permute.xlu0 %896
        %898 = vrot.lane.b32.xlu0 %v893, 124
        %v899 = vpop.permute.xlu0 %898
        %v902 = vadd.f32 %v888, %v897
        %v903 = vadd.f32 %v889, %v899
        %s904 = sld [smem:[#allocation3 + $0x28]]
        %v905 = vld [vmem:[%s712 + $0x3] sm:$0xff]
        %v906 = vld [vmem:[%s712 + $0xb] sm:$0xff]
        %v907 = vstv %s904
        %v908 = vmul.f32 %v907, %v905
        %v909 = vmul.f32 %v907, %v906
        %v910 = vadd.f32 %v902, %v908
        %v911 = vadd.f32 %v903, %v909
        %s912 = sld [smem:[#allocation3 + $0x29]]
        %v913 = vstv %s912
        %v914 = vmul.f32 %v913, %v905
        %v915 = vmul.f32 %v913, %v906
        %918 = vrot.lane.b32.xlu0 %v914, 127
        %v919 = vpop.permute.xlu0 %918
        %920 = vrot.lane.b32.xlu0 %v915, 127
        %v921 = vpop.permute.xlu0 %920
        %v924 = vadd.f32 %v910, %v919
        %v925 = vadd.f32 %v911, %v921
        %s926 = sld [smem:[#allocation3 + $0x2a]]
        %v927 = vstv %s926
        %v928 = vmul.f32 %v927, %v905
        %v929 = vmul.f32 %v927, %v906
        %932 = vrot.lane.b32.xlu0 %v928, 126
        %v933 = vpop.permute.xlu0 %932
        %934 = vrot.lane.b32.xlu0 %v929, 126
        %v935 = vpop.permute.xlu0 %934
        %v938 = vadd.f32 %v924, %v933
        %v939 = vadd.f32 %v925, %v935
        %s940 = sld [smem:[#allocation3 + $0x2b]]
        %v941 = vstv %s940
        %v942 = vmul.f32 %v941, %v905
        %v943 = vmul.f32 %v941, %v906
        %946 = vrot.lane.b32.xlu0 %v942, 125
        %v947 = vpop.permute.xlu0 %946
        %948 = vrot.lane.b32.xlu0 %v943, 125
        %v949 = vpop.permute.xlu0 %948
        %v952 = vadd.f32 %v938, %v947
        %v953 = vadd.f32 %v939, %v949
        %s954 = sld [smem:[#allocation3 + $0x2c]]
        %v955 = vstv %s954
        %v956 = vmul.f32 %v955, %v905
        %v957 = vmul.f32 %v955, %v906
        %960 = vrot.lane.b32.xlu0 %v956, 124
        %v961 = vpop.permute.xlu0 %960
        %962 = vrot.lane.b32.xlu0 %v957, 124
        %v963 = vpop.permute.xlu0 %962
        %v966 = vadd.f32 %v952, %v961
        %v967 = vadd.f32 %v953, %v963
        %s968 = sld [smem:[#allocation3 + $0x2d]]
        %v969 = vld [vmem:[%s712 + $0x4] sm:$0xff]
        %v970 = vld [vmem:[%s712 + $0xc] sm:$0xff]
        %v971 = vstv %s968
        %v972 = vmul.f32 %v971, %v969
        %v973 = vmul.f32 %v971, %v970
        %v974 = vadd.f32 %v966, %v972
        %v975 = vadd.f32 %v967, %v973
        %s976 = sld [smem:[#allocation3 + $0x2e]]
        %v977 = vstv %s976
        %v978 = vmul.f32 %v977, %v969
        %v979 = vmul.f32 %v977, %v970
        %982 = vrot.lane.b32.xlu0 %v978, 127
        %v983 = vpop.permute.xlu0 %982
        %984 = vrot.lane.b32.xlu0 %v979, 127
        %v985 = vpop.permute.xlu0 %984
        %v988 = vadd.f32 %v974, %v983
        %v989 = vadd.f32 %v975, %v985
        %s990 = sld [smem:[#allocation3 + $0x2f]]
        %v991 = vstv %s990
        %v992 = vmul.f32 %v991, %v969
        %v993 = vmul.f32 %v991, %v970
        %996 = vrot.lane.b32.xlu0 %v992, 126
        %v997 = vpop.permute.xlu0 %996
        %998 = vrot.lane.b32.xlu0 %v993, 126
        %v999 = vpop.permute.xlu0 %998
        %v1002 = vadd.f32 %v988, %v997
        %v1003 = vadd.f32 %v989, %v999
        %s1004 = sld [smem:[#allocation3 + $0x30]]
        %v1005 = vstv %s1004
        %v1006 = vmul.f32 %v1005, %v969
        %v1007 = vmul.f32 %v1005, %v970
        %1010 = vrot.lane.b32.xlu0 %v1006, 125
        %v1011 = vpop.permute.xlu0 %1010
        %1012 = vrot.lane.b32.xlu0 %v1007, 125
        %v1013 = vpop.permute.xlu0 %1012
        %v1016 = vadd.f32 %v1002, %v1011
        %v1017 = vadd.f32 %v1003, %v1013
        %s1018 = sld [smem:[#allocation3 + $0x31]]
        %v1019 = vstv %s1018
        %v1020 = vmul.f32 %v1019, %v969
        %v1021 = vmul.f32 %v1019, %v970
        %1024 = vrot.lane.b32.xlu0 %v1020, 124
        %v1025 = vpop.permute.xlu0 %1024
        %1026 = vrot.lane.b32.xlu0 %v1021, 124
        %v1027 = vpop.permute.xlu0 %1026
        %v1030 = vadd.f32 %v1016, %v1025
        %v1031 = vadd.f32 %v1017, %v1027
        %s1032 = sld [smem:[#allocation6 + $0x1]]
        %v1033 = vstv %s1032
        %v1034 = vadd.f32 %v1030, %v1033
        %v1035 = vadd.f32 %v1031, %v1033
        %1038 = vrot.lane.b32.xlu0 %v1034, 9
        %v1039 = vpop.permute.xlu0 %1038
        %1040 = vrot.lane.b32.xlu0 %v1035, 9
        %v1041 = vpop.permute.xlu0 %1040
        %s1044 = scalar_lea.vmem [#allocation2], 40
        %1045 = vst.msk [vmem:[%s1044 + $0x9] sm:$0xff] %vm708, %v1039
        %1046 = vst.msk [vmem:[%s1044 + $0x11] sm:$0xff] %vm708, %v1041
        %s1047 = sld [smem:[#allocation3 + $0x32]]
        %s1048 = scalar_lea.vmem %s353, 48
        %v1049 = vld [vmem:[%s1048] sm:$0xff]
        %v1050 = vld [vmem:[%s1048 + $0x8] sm:$0xff]
        %v1051 = vstv %s1047
        %v1052 = vmul.f32 %v1051, %v1049
        %v1053 = vmul.f32 %v1051, %v1050
        %v1054 = vadd.f32 %v1052, 0.0
        %v1055 = vadd.f32 %v1053, 0.0
        %s1056 = sld [smem:[#allocation3 + $0x33]]
        %v1057 = vstv %s1056
        %v1058 = vmul.f32 %v1057, %v1049
        %v1059 = vmul.f32 %v1057, %v1050
        %1062 = vrot.lane.b32.xlu0 %v1058, 127
        %v1063 = vpop.permute.xlu0 %1062
        %1064 = vrot.lane.b32.xlu0 %v1059, 127
        %v1065 = vpop.permute.xlu0 %1064
        %v1068 = vadd.f32 %v1054, %v1063
        %v1069 = vadd.f32 %v1055, %v1065
        %s1070 = sld [smem:[#allocation3 + $0x34]]
        %v1071 = vstv %s1070
        %v1072 = vmul.f32 %v1071, %v1049
        %v1073 = vmul.f32 %v1071, %v1050
        %1076 = vrot.lane.b32.xlu0 %v1072, 126
        %v1077 = vpop.permute.xlu0 %1076
        %1078 = vrot.lane.b32.xlu0 %v1073, 126
        %v1079 = vpop.permute.xlu0 %1078
        %v1082 = vadd.f32 %v1068, %v1077
        %v1083 = vadd.f32 %v1069, %v1079
        %s1084 = sld [smem:[#allocation3 + $0x35]]
        %v1085 = vstv %s1084
        %v1086 = vmul.f32 %v1085, %v1049
        %v1087 = vmul.f32 %v1085, %v1050
        %1090 = vrot.lane.b32.xlu0 %v1086, 125
        %v1091 = vpop.permute.xlu0 %1090
        %1092 = vrot.lane.b32.xlu0 %v1087, 125
        %v1093 = vpop.permute.xlu0 %1092
        %v1096 = vadd.f32 %v1082, %v1091
        %v1097 = vadd.f32 %v1083, %v1093
        %s1098 = sld [smem:[#allocation3 + $0x36]]
        %v1099 = vstv %s1098
        %v1100 = vmul.f32 %v1099, %v1049
        %v1101 = vmul.f32 %v1099, %v1050
        %1104 = vrot.lane.b32.xlu0 %v1100, 124
        %v1105 = vpop.permute.xlu0 %1104
        %1106 = vrot.lane.b32.xlu0 %v1101, 124
        %v1107 = vpop.permute.xlu0 %1106
        %v1110 = vadd.f32 %v1096, %v1105
        %v1111 = vadd.f32 %v1097, %v1107
        %s1112 = sld [smem:[#allocation3 + $0x37]]
        %v1113 = vld [vmem:[%s1048 + $0x1] sm:$0xff]
        %v1114 = vld [vmem:[%s1048 + $0x9] sm:$0xff]
        %v1115 = vstv %s1112
        %v1116 = vmul.f32 %v1115, %v1113
        %v1117 = vmul.f32 %v1115, %v1114
        %v1118 = vadd.f32 %v1110, %v1116
        %v1119 = vadd.f32 %v1111, %v1117
        %s1120 = sld [smem:[#allocation3 + $0x38]]
        %v1121 = vstv %s1120
        %v1122 = vmul.f32 %v1121, %v1113
        %v1123 = vmul.f32 %v1121, %v1114
        %1126 = vrot.lane.b32.xlu0 %v1122, 127
        %v1127 = vpop.permute.xlu0 %1126
        %1128 = vrot.lane.b32.xlu0 %v1123, 127
        %v1129 = vpop.permute.xlu0 %1128
        %v1132 = vadd.f32 %v1118, %v1127
        %v1133 = vadd.f32 %v1119, %v1129
        %s1134 = sld [smem:[#allocation3 + $0x39]]
        %v1135 = vstv %s1134
        %v1136 = vmul.f32 %v1135, %v1113
        %v1137 = vmul.f32 %v1135, %v1114
        %1140 = vrot.lane.b32.xlu0 %v1136, 126
        %v1141 = vpop.permute.xlu0 %1140
        %1142 = vrot.lane.b32.xlu0 %v1137, 126
        %v1143 = vpop.permute.xlu0 %1142
        %v1146 = vadd.f32 %v1132, %v1141
        %v1147 = vadd.f32 %v1133, %v1143
        %s1148 = sld [smem:[#allocation3 + $0x3a]]
        %v1149 = vstv %s1148
        %v1150 = vmul.f32 %v1149, %v1113
        %v1151 = vmul.f32 %v1149, %v1114
        %1154 = vrot.lane.b32.xlu0 %v1150, 125
        %v1155 = vpop.permute.xlu0 %1154
        %1156 = vrot.lane.b32.xlu0 %v1151, 125
        %v1157 = vpop.permute.xlu0 %1156
        %v1160 = vadd.f32 %v1146, %v1155
        %v1161 = vadd.f32 %v1147, %v1157
        %s1162 = sld [smem:[#allocation3 + $0x3b]]
        %v1163 = vstv %s1162
        %v1164 = vmul.f32 %v1163, %v1113
        %v1165 = vmul.f32 %v1163, %v1114
        %1168 = vrot.lane.b32.xlu0 %v1164, 124
        %v1169 = vpop.permute.xlu0 %1168
        %1170 = vrot.lane.b32.xlu0 %v1165, 124
        %v1171 = vpop.permute.xlu0 %1170
        %v1174 = vadd.f32 %v1160, %v1169
        %v1175 = vadd.f32 %v1161, %v1171
        %s1176 = sld [smem:[#allocation3 + $0x3c]]
        %v1177 = vld [vmem:[%s1048 + $0x2] sm:$0xff]
        %v1178 = vld [vmem:[%s1048 + $0xa] sm:$0xff]
        %v1179 = vstv %s1176
        %v1180 = vmul.f32 %v1179, %v1177
        %v1181 = vmul.f32 %v1179, %v1178
        %v1182 = vadd.f32 %v1174, %v1180
        %v1183 = vadd.f32 %v1175, %v1181
        %s1184 = sld [smem:[#allocation3 + $0x3d]]
        %v1185 = vstv %s1184
        %v1186 = vmul.f32 %v1185, %v1177
        %v1187 = vmul.f32 %v1185, %v1178
        %1190 = vrot.lane.b32.xlu0 %v1186, 127
        %v1191 = vpop.permute.xlu0 %1190
        %1192 = vrot.lane.b32.xlu0 %v1187, 127
        %v1193 = vpop.permute.xlu0 %1192
        %v1196 = vadd.f32 %v1182, %v1191
        %v1197 = vadd.f32 %v1183, %v1193
        %s1198 = sld [smem:[#allocation3 + $0x3e]]
        %v1199 = vstv %s1198
        %v1200 = vmul.f32 %v1199, %v1177
        %v1201 = vmul.f32 %v1199, %v1178
        %1204 = vrot.lane.b32.xlu0 %v1200, 126
        %v1205 = vpop.permute.xlu0 %1204
        %1206 = vrot.lane.b32.xlu0 %v1201, 126
        %v1207 = vpop.permute.xlu0 %1206
        %v1210 = vadd.f32 %v1196, %v1205
        %v1211 = vadd.f32 %v1197, %v1207
        %s1212 = sld [smem:[#allocation3 + $0x3f]]
        %v1213 = vstv %s1212
        %v1214 = vmul.f32 %v1213, %v1177
        %v1215 = vmul.f32 %v1213, %v1178
        %1218 = vrot.lane.b32.xlu0 %v1214, 125
        %v1219 = vpop.permute.xlu0 %1218
        %1220 = vrot.lane.b32.xlu0 %v1215, 125
        %v1221 = vpop.permute.xlu0 %1220
        %v1224 = vadd.f32 %v1210, %v1219
        %v1225 = vadd.f32 %v1211, %v1221
        %s1226 = sld [smem:[#allocation3 + $0x40]]
        %v1227 = vstv %s1226
        %v1228 = vmul.f32 %v1227, %v1177
        %v1229 = vmul.f32 %v1227, %v1178
        %1232 = vrot.lane.b32.xlu0 %v1228, 124
        %v1233 = vpop.permute.xlu0 %1232
        %1234 = vrot.lane.b32.xlu0 %v1229, 124
        %v1235 = vpop.permute.xlu0 %1234
        %v1238 = vadd.f32 %v1224, %v1233
        %v1239 = vadd.f32 %v1225, %v1235
        %s1240 = sld [smem:[#allocation3 + $0x41]]
        %v1241 = vld [vmem:[%s1048 + $0x3] sm:$0xff]
        %v1242 = vld [vmem:[%s1048 + $0xb] sm:$0xff]
        %v1243 = vstv %s1240
        %v1244 = vmul.f32 %v1243, %v1241
        %v1245 = vmul.f32 %v1243, %v1242
        %v1246 = vadd.f32 %v1238, %v1244
        %v1247 = vadd.f32 %v1239, %v1245
        %s1248 = sld [smem:[#allocation3 + $0x42]]
        %v1249 = vstv %s1248
        %v1250 = vmul.f32 %v1249, %v1241
        %v1251 = vmul.f32 %v1249, %v1242
        %1254 = vrot.lane.b32.xlu0 %v1250, 127
        %v1255 = vpop.permute.xlu0 %1254
        %1256 = vrot.lane.b32.xlu0 %v1251, 127
        %v1257 = vpop.permute.xlu0 %1256
        %v1260 = vadd.f32 %v1246, %v1255
        %v1261 = vadd.f32 %v1247, %v1257
        %s1262 = sld [smem:[#allocation3 + $0x43]]
        %v1263 = vstv %s1262
        %v1264 = vmul.f32 %v1263, %v1241
        %v1265 = vmul.f32 %v1263, %v1242
        %1268 = vrot.lane.b32.xlu0 %v1264, 126
        %v1269 = vpop.permute.xlu0 %1268
        %1270 = vrot.lane.b32.xlu0 %v1265, 126
        %v1271 = vpop.permute.xlu0 %1270
        %v1274 = vadd.f32 %v1260, %v1269
        %v1275 = vadd.f32 %v1261, %v1271
        %s1276 = sld [smem:[#allocation3 + $0x44]]
        %v1277 = vstv %s1276
        %v1278 = vmul.f32 %v1277, %v1241
        %v1279 = vmul.f32 %v1277, %v1242
        %1282 = vrot.lane.b32.xlu0 %v1278, 125
        %v1283 = vpop.permute.xlu0 %1282
        %1284 = vrot.lane.b32.xlu0 %v1279, 125
        %v1285 = vpop.permute.xlu0 %1284
        %v1288 = vadd.f32 %v1274, %v1283
        %v1289 = vadd.f32 %v1275, %v1285
        %s1290 = sld [smem:[#allocation3 + $0x45]]
        %v1291 = vstv %s1290
        %v1292 = vmul.f32 %v1291, %v1241
        %v1293 = vmul.f32 %v1291, %v1242
        %1296 = vrot.lane.b32.xlu0 %v1292, 124
        %v1297 = vpop.permute.xlu0 %1296
        %1298 = vrot.lane.b32.xlu0 %v1293, 124
        %v1299 = vpop.permute.xlu0 %1298
        %v1302 = vadd.f32 %v1288, %v1297
        %v1303 = vadd.f32 %v1289, %v1299
        %s1304 = sld [smem:[#allocation3 + $0x46]]
        %v1305 = vld [vmem:[%s1048 + $0x4] sm:$0xff]
        %v1306 = vld [vmem:[%s1048 + $0xc] sm:$0xff]
        %v1307 = vstv %s1304
        %v1308 = vmul.f32 %v1307, %v1305
        %v1309 = vmul.f32 %v1307, %v1306
        %v1310 = vadd.f32 %v1302, %v1308
        %v1311 = vadd.f32 %v1303, %v1309
        %s1312 = sld [smem:[#allocation3 + $0x47]]
        %v1313 = vstv %s1312
        %v1314 = vmul.f32 %v1313, %v1305
        %v1315 = vmul.f32 %v1313, %v1306
        %1318 = vrot.lane.b32.xlu0 %v1314, 127
        %v1319 = vpop.permute.xlu0 %1318
        %1320 = vrot.lane.b32.xlu0 %v1315, 127
        %v1321 = vpop.permute.xlu0 %1320
        %v1324 = vadd.f32 %v1310, %v1319
        %v1325 = vadd.f32 %v1311, %v1321
        %s1326 = sld [smem:[#allocation3 + $0x48]]
        %v1327 = vstv %s1326
        %v1328 = vmul.f32 %v1327, %v1305
        %v1329 = vmul.f32 %v1327, %v1306
        %1332 = vrot.lane.b32.xlu0 %v1328, 126
        %v1333 = vpop.permute.xlu0 %1332
        %1334 = vrot.lane.b32.xlu0 %v1329, 126
        %v1335 = vpop.permute.xlu0 %1334
        %v1338 = vadd.f32 %v1324, %v1333
        %v1339 = vadd.f32 %v1325, %v1335
        %s1340 = sld [smem:[#allocation3 + $0x49]]
        %v1341 = vstv %s1340
        %v1342 = vmul.f32 %v1341, %v1305
        %v1343 = vmul.f32 %v1341, %v1306
        %1346 = vrot.lane.b32.xlu0 %v1342, 125
        %v1347 = vpop.permute.xlu0 %1346
        %1348 = vrot.lane.b32.xlu0 %v1343, 125
        %v1349 = vpop.permute.xlu0 %1348
        %v1352 = vadd.f32 %v1338, %v1347
        %v1353 = vadd.f32 %v1339, %v1349
        %s1354 = sld [smem:[#allocation3 + $0x4a]]
        %v1355 = vstv %s1354
        %v1356 = vmul.f32 %v1355, %v1305
        %v1357 = vmul.f32 %v1355, %v1306
        %1360 = vrot.lane.b32.xlu0 %v1356, 124
        %v1361 = vpop.permute.xlu0 %1360
        %1362 = vrot.lane.b32.xlu0 %v1357, 124
        %v1363 = vpop.permute.xlu0 %1362
        %v1366 = vadd.f32 %v1352, %v1361
        %v1367 = vadd.f32 %v1353, %v1363
        %s1368 = sld [smem:[#allocation6 + $0x2]]
        %v1369 = vstv %s1368
        %v1370 = vadd.f32 %v1366, %v1369
        %v1371 = vadd.f32 %v1367, %v1369
        %1374 = vrot.lane.b32.xlu0 %v1370, 9
        %v1375 = vpop.permute.xlu0 %1374
        %1376 = vrot.lane.b32.xlu0 %v1371, 9
        %v1377 = vpop.permute.xlu0 %1376
        %s1380 = scalar_lea.vmem [#allocation2], 80
        %1381 = vst.msk [vmem:[%s1380 + $0x9] sm:$0xff] %vm708, %v1375
        %1382 = vst.msk [vmem:[%s1380 + $0x11] sm:$0xff] %vm708, %v1377
        %s1383 = sld [smem:[#allocation3 + $0x4b]]
        %s1384 = scalar_lea.vmem %s353, 72
        %v1385 = vld [vmem:[%s1384] sm:$0xff]
        %v1386 = vld [vmem:[%s1384 + $0x8] sm:$0xff]
        %v1387 = vstv %s1383
        %v1388 = vmul.f32 %v1387, %v1385
        %v1389 = vmul.f32 %v1387, %v1386
        %v1390 = vadd.f32 %v1388, 0.0
        %v1391 = vadd.f32 %v1389, 0.0
        %s1392 = sld [smem:[#allocation3 + $0x4c]]
        %v1393 = vstv %s1392
        %v1394 = vmul.f32 %v1393, %v1385
        %v1395 = vmul.f32 %v1393, %v1386
        %1398 = vrot.lane.b32.xlu0 %v1394, 127
        %v1399 = vpop.permute.xlu0 %1398
        %1400 = vrot.lane.b32.xlu0 %v1395, 127
        %v1401 = vpop.permute.xlu0 %1400
        %v1404 = vadd.f32 %v1390, %v1399
        %v1405 = vadd.f32 %v1391, %v1401
        %s1406 = sld [smem:[#allocation3 + $0x4d]]
        %v1407 = vstv %s1406
        %v1408 = vmul.f32 %v1407, %v1385
        %v1409 = vmul.f32 %v1407, %v1386
        %1412 = vrot.lane.b32.xlu0 %v1408, 126
        %v1413 = vpop.permute.xlu0 %1412
        %1414 = vrot.lane.b32.xlu0 %v1409, 126
        %v1415 = vpop.permute.xlu0 %1414
        %v1418 = vadd.f32 %v1404, %v1413
        %v1419 = vadd.f32 %v1405, %v1415
        %s1420 = sld [smem:[#allocation3 + $0x4e]]
        %v1421 = vstv %s1420
        %v1422 = vmul.f32 %v1421, %v1385
        %v1423 = vmul.f32 %v1421, %v1386
        %1426 = vrot.lane.b32.xlu0 %v1422, 125
        %v1427 = vpop.permute.xlu0 %1426
        %1428 = vrot.lane.b32.xlu0 %v1423, 125
        %v1429 = vpop.permute.xlu0 %1428
        %v1432 = vadd.f32 %v1418, %v1427
        %v1433 = vadd.f32 %v1419, %v1429
        %s1434 = sld [smem:[#allocation3 + $0x4f]]
        %v1435 = vstv %s1434
        %v1436 = vmul.f32 %v1435, %v1385
        %v1437 = vmul.f32 %v1435, %v1386
        %1440 = vrot.lane.b32.xlu0 %v1436, 124
        %v1441 = vpop.permute.xlu0 %1440
        %1442 = vrot.lane.b32.xlu0 %v1437, 124
        %v1443 = vpop.permute.xlu0 %1442
        %v1446 = vadd.f32 %v1432, %v1441
        %v1447 = vadd.f32 %v1433, %v1443
        %s1448 = sld [smem:[#allocation3 + $0x50]]
        %v1449 = vld [vmem:[%s1384 + $0x1] sm:$0xff]
        %v1450 = vld [vmem:[%s1384 + $0x9] sm:$0xff]
        %v1451 = vstv %s1448
        %v1452 = vmul.f32 %v1451, %v1449
        %v1453 = vmul.f32 %v1451, %v1450
        %v1454 = vadd.f32 %v1446, %v1452
        %v1455 = vadd.f32 %v1447, %v1453
        %s1456 = sld [smem:[#allocation3 + $0x51]]
        %v1457 = vstv %s1456
        %v1458 = vmul.f32 %v1457, %v1449
        %v1459 = vmul.f32 %v1457, %v1450
        %1462 = vrot.lane.b32.xlu0 %v1458, 127
        %v1463 = vpop.permute.xlu0 %1462
        %1464 = vrot.lane.b32.xlu0 %v1459, 127
        %v1465 = vpop.permute.xlu0 %1464
        %v1468 = vadd.f32 %v1454, %v1463
        %v1469 = vadd.f32 %v1455, %v1465
        %s1470 = sld [smem:[#allocation3 + $0x52]]
        %v1471 = vstv %s1470
        %v1472 = vmul.f32 %v1471, %v1449
        %v1473 = vmul.f32 %v1471, %v1450
        %1476 = vrot.lane.b32.xlu0 %v1472, 126
        %v1477 = vpop.permute.xlu0 %1476
        %1478 = vrot.lane.b32.xlu0 %v1473, 126
        %v1479 = vpop.permute.xlu0 %1478
        %v1482 = vadd.f32 %v1468, %v1477
        %v1483 = vadd.f32 %v1469, %v1479
        %s1484 = sld [smem:[#allocation3 + $0x53]]
        %v1485 = vstv %s1484
        %v1486 = vmul.f32 %v1485, %v1449
        %v1487 = vmul.f32 %v1485, %v1450
        %1490 = vrot.lane.b32.xlu0 %v1486, 125
        %v1491 = vpop.permute.xlu0 %1490
        %1492 = vrot.lane.b32.xlu0 %v1487, 125
        %v1493 = vpop.permute.xlu0 %1492
        %v1496 = vadd.f32 %v1482, %v1491
        %v1497 = vadd.f32 %v1483, %v1493
        %s1498 = sld [smem:[#allocation3 + $0x54]]
        %v1499 = vstv %s1498
        %v1500 = vmul.f32 %v1499, %v1449
        %v1501 = vmul.f32 %v1499, %v1450
        %1504 = vrot.lane.b32.xlu0 %v1500, 124
        %v1505 = vpop.permute.xlu0 %1504
        %1506 = vrot.lane.b32.xlu0 %v1501, 124
        %v1507 = vpop.permute.xlu0 %1506
        %v1510 = vadd.f32 %v1496, %v1505
        %v1511 = vadd.f32 %v1497, %v1507
        %s1512 = sld [smem:[#allocation3 + $0x55]]
        %v1513 = vld [vmem:[%s1384 + $0x2] sm:$0xff]
        %v1514 = vld [vmem:[%s1384 + $0xa] sm:$0xff]
        %v1515 = vstv %s1512
        %v1516 = vmul.f32 %v1515, %v1513
        %v1517 = vmul.f32 %v1515, %v1514
        %v1518 = vadd.f32 %v1510, %v1516
        %v1519 = vadd.f32 %v1511, %v1517
        %s1520 = sld [smem:[#allocation3 + $0x56]]
        %v1521 = vstv %s1520
        %v1522 = vmul.f32 %v1521, %v1513
        %v1523 = vmul.f32 %v1521, %v1514
        %1526 = vrot.lane.b32.xlu0 %v1522, 127
        %v1527 = vpop.permute.xlu0 %1526
        %1528 = vrot.lane.b32.xlu0 %v1523, 127
        %v1529 = vpop.permute.xlu0 %1528
        %v1532 = vadd.f32 %v1518, %v1527
        %v1533 = vadd.f32 %v1519, %v1529
        %s1534 = sld [smem:[#allocation3 + $0x57]]
        %v1535 = vstv %s1534
        %v1536 = vmul.f32 %v1535, %v1513
        %v1537 = vmul.f32 %v1535, %v1514
        %1540 = vrot.lane.b32.xlu0 %v1536, 126
        %v1541 = vpop.permute.xlu0 %1540
        %1542 = vrot.lane.b32.xlu0 %v1537, 126
        %v1543 = vpop.permute.xlu0 %1542
        %v1546 = vadd.f32 %v1532, %v1541
        %v1547 = vadd.f32 %v1533, %v1543
        %s1548 = sld [smem:[#allocation3 + $0x58]]
        %v1549 = vstv %s1548
        %v1550 = vmul.f32 %v1549, %v1513
        %v1551 = vmul.f32 %v1549, %v1514
        %1554 = vrot.lane.b32.xlu0 %v1550, 125
        %v1555 = vpop.permute.xlu0 %1554
        %1556 = vrot.lane.b32.xlu0 %v1551, 125
        %v1557 = vpop.permute.xlu0 %1556
        %v1560 = vadd.f32 %v1546, %v1555
        %v1561 = vadd.f32 %v1547, %v1557
        %s1562 = sld [smem:[#allocation3 + $0x59]]
        %v1563 = vstv %s1562
        %v1564 = vmul.f32 %v1563, %v1513
        %v1565 = vmul.f32 %v1563, %v1514
        %1568 = vrot.lane.b32.xlu0 %v1564, 124
        %v1569 = vpop.permute.xlu0 %1568
        %1570 = vrot.lane.b32.xlu0 %v1565, 124
        %v1571 = vpop.permute.xlu0 %1570
        %v1574 = vadd.f32 %v1560, %v1569
        %v1575 = vadd.f32 %v1561, %v1571
        %s1576 = sld [smem:[#allocation3 + $0x5a]]
        %v1577 = vld [vmem:[%s1384 + $0x3] sm:$0xff]
        %v1578 = vld [vmem:[%s1384 + $0xb] sm:$0xff]
        %v1579 = vstv %s1576
        %v1580 = vmul.f32 %v1579, %v1577
        %v1581 = vmul.f32 %v1579, %v1578
        %v1582 = vadd.f32 %v1574, %v1580
        %v1583 = vadd.f32 %v1575, %v1581
        %s1584 = sld [smem:[#allocation3 + $0x5b]]
        %v1585 = vstv %s1584
        %v1586 = vmul.f32 %v1585, %v1577
        %v1587 = vmul.f32 %v1585, %v1578
        %1590 = vrot.lane.b32.xlu0 %v1586, 127
        %v1591 = vpop.permute.xlu0 %1590
        %1592 = vrot.lane.b32.xlu0 %v1587, 127
        %v1593 = vpop.permute.xlu0 %1592
        %v1596 = vadd.f32 %v1582, %v1591
        %v1597 = vadd.f32 %v1583, %v1593
        %s1598 = sld [smem:[#allocation3 + $0x5c]]
        %v1599 = vstv %s1598
        %v1600 = vmul.f32 %v1599, %v1577
        %v1601 = vmul.f32 %v1599, %v1578
        %1604 = vrot.lane.b32.xlu0 %v1600, 126
        %v1605 = vpop.permute.xlu0 %1604
        %1606 = vrot.lane.b32.xlu0 %v1601, 126
        %v1607 = vpop.permute.xlu0 %1606
        %v1610 = vadd.f32 %v1596, %v1605
        %v1611 = vadd.f32 %v1597, %v1607
        %s1612 = sld [smem:[#allocation3 + $0x5d]]
        %v1613 = vstv %s1612
        %v1614 = vmul.f32 %v1613, %v1577
        %v1615 = vmul.f32 %v1613, %v1578
        %1618 = vrot.lane.b32.xlu0 %v1614, 125
        %v1619 = vpop.permute.xlu0 %1618
        %1620 = vrot.lane.b32.xlu0 %v1615, 125
        %v1621 = vpop.permute.xlu0 %1620
        %v1624 = vadd.f32 %v1610, %v1619
        %v1625 = vadd.f32 %v1611, %v1621
        %s1626 = sld [smem:[#allocation3 + $0x5e]]
        %v1627 = vstv %s1626
        %v1628 = vmul.f32 %v1627, %v1577
        %v1629 = vmul.f32 %v1627, %v1578
        %1632 = vrot.lane.b32.xlu0 %v1628, 124
        %v1633 = vpop.permute.xlu0 %1632
        %1634 = vrot.lane.b32.xlu0 %v1629, 124
        %v1635 = vpop.permute.xlu0 %1634
        %v1638 = vadd.f32 %v1624, %v1633
        %v1639 = vadd.f32 %v1625, %v1635
        %s1640 = sld [smem:[#allocation3 + $0x5f]]
        %v1641 = vld [vmem:[%s1384 + $0x4] sm:$0xff]
        %v1642 = vld [vmem:[%s1384 + $0xc] sm:$0xff]
        %v1643 = vstv %s1640
        %v1644 = vmul.f32 %v1643, %v1641
        %v1645 = vmul.f32 %v1643, %v1642
        %v1646 = vadd.f32 %v1638, %v1644
        %v1647 = vadd.f32 %v1639, %v1645
        %s1648 = sld [smem:[#allocation3 + $0x60]]
        %v1649 = vstv %s1648
        %v1650 = vmul.f32 %v1649, %v1641
        %v1651 = vmul.f32 %v1649, %v1642
        %1654 = vrot.lane.b32.xlu0 %v1650, 127
        %v1655 = vpop.permute.xlu0 %1654
        %1656 = vrot.lane.b32.xlu0 %v1651, 127
        %v1657 = vpop.permute.xlu0 %1656
        %v1660 = vadd.f32 %v1646, %v1655
        %v1661 = vadd.f32 %v1647, %v1657
        %s1662 = sld [smem:[#allocation3 + $0x61]]
        %v1663 = vstv %s1662
        %v1664 = vmul.f32 %v1663, %v1641
        %v1665 = vmul.f32 %v1663, %v1642
        %1668 = vrot.lane.b32.xlu0 %v1664, 126
        %v1669 = vpop.permute.xlu0 %1668
        %1670 = vrot.lane.b32.xlu0 %v1665, 126
        %v1671 = vpop.permute.xlu0 %1670
        %v1674 = vadd.f32 %v1660, %v1669
        %v1675 = vadd.f32 %v1661, %v1671
        %s1676 = sld [smem:[#allocation3 + $0x62]]
        %v1677 = vstv %s1676
        %v1678 = vmul.f32 %v1677, %v1641
        %v1679 = vmul.f32 %v1677, %v1642
        %1682 = vrot.lane.b32.xlu0 %v1678, 125
        %v1683 = vpop.permute.xlu0 %1682
        %1684 = vrot.lane.b32.xlu0 %v1679, 125
        %v1685 = vpop.permute.xlu0 %1684
        %v1688 = vadd.f32 %v1674, %v1683
        %v1689 = vadd.f32 %v1675, %v1685
        %s1690 = sld [smem:[#allocation3 + $0x63]]
        %v1691 = vstv %s1690
        %v1692 = vmul.f32 %v1691, %v1641
        %v1693 = vmul.f32 %v1691, %v1642
        %1696 = vrot.lane.b32.xlu0 %v1692, 124
        %v1697 = vpop.permute.xlu0 %1696
        %1698 = vrot.lane.b32.xlu0 %v1693, 124
        %v1699 = vpop.permute.xlu0 %1698
        %v1702 = vadd.f32 %v1688, %v1697
        %v1703 = vadd.f32 %v1689, %v1699
        %s1704 = sld [smem:[#allocation6 + $0x3]]
        %v1705 = vstv %s1704
        %v1706 = vadd.f32 %v1702, %v1705
        %v1707 = vadd.f32 %v1703, %v1705
        %1710 = vrot.lane.b32.xlu0 %v1706, 9
        %v1711 = vpop.permute.xlu0 %1710
        %1712 = vrot.lane.b32.xlu0 %v1707, 9
        %v1713 = vpop.permute.xlu0 %1712
        %s1716 = scalar_lea.vmem [#allocation2], 120
        %1717 = vst.msk [vmem:[%s1716 + $0x9] sm:$0xff] %vm708, %v1711
        %1718 = vst.msk [vmem:[%s1716 + $0x11] sm:$0xff] %vm708, %v1713
        %s1719 = sld [smem:[#allocation8]]
        %v1720 = vld [vmem:[#allocation2] sm:$0xff]
        %v1721 = vld [vmem:[#allocation2 + $0x8] sm:$0xff]
        %v1722 = vstv %s1719
        %v1723 = vmul.f32 %v1722, %v1720
        %v1724 = vmul.f32 %v1722, %v1721
        %v1725 = vadd.f32 %v1723, 0.0
        %v1726 = vadd.f32 %v1724, 0.0
        %s1727 = sld [smem:[#allocation8 + $0x1]]
        %v1728 = vstv %s1727
        %v1729 = vmul.f32 %v1728, %v1720
        %v1730 = vmul.f32 %v1728, %v1721
        %1733 = vrot.lane.b32.xlu0 %v1729, 125
        %v1734 = vpop.permute.xlu0 %1733
        %1735 = vrot.lane.b32.xlu0 %v1730, 125
        %v1736 = vpop.permute.xlu0 %1735
        %v1739 = vadd.f32 %v1725, %v1734
        %v1740 = vadd.f32 %v1726, %v1736
        %s1741 = sld [smem:[#allocation8 + $0x2]]
        %v1742 = vstv %s1741
        %v1743 = vmul.f32 %v1742, %v1720
        %v1744 = vmul.f32 %v1742, %v1721
        %1747 = vrot.lane.b32.xlu0 %v1743, 122
        %v1748 = vpop.permute.xlu0 %1747
        %1749 = vrot.lane.b32.xlu0 %v1744, 122
        %v1750 = vpop.permute.xlu0 %1749
        %v1753 = vadd.f32 %v1739, %v1748
        %v1754 = vadd.f32 %v1740, %v1750
        %s1755 = sld [smem:[#allocation8 + $0x3]]
        %v1756 = vstv %s1755
        %v1757 = vmul.f32 %v1756, %v1720
        %v1758 = vmul.f32 %v1756, %v1721
        %1761 = vrot.lane.b32.xlu0 %v1757, 119
        %v1762 = vpop.permute.xlu0 %1761
        %1763 = vrot.lane.b32.xlu0 %v1758, 119
        %v1764 = vpop.permute.xlu0 %1763
        %v1767 = vadd.f32 %v1753, %v1762
        %v1768 = vadd.f32 %v1754, %v1764
        %s1769 = sld [smem:[#allocation8 + $0x4]]
        %v1770 = vstv %s1769
        %v1771 = vmul.f32 %v1770, %v1720
        %v1772 = vmul.f32 %v1770, %v1721
        %1775 = vrot.lane.b32.xlu0 %v1771, 116
        %v1776 = vpop.permute.xlu0 %1775
        %1777 = vrot.lane.b32.xlu0 %v1772, 116
        %v1778 = vpop.permute.xlu0 %1777
        %v1781 = vadd.f32 %v1767, %v1776
        %v1782 = vadd.f32 %v1768, %v1778
        %s1783 = sld [smem:[#allocation8 + $0x5]]
        %v1784 = vstv %s1783
        %v1785 = vmul.f32 %v1784, %v1720
        %v1786 = vmul.f32 %v1784, %v1721
        %1789 = vrot.lane.b32.xlu0 %v1785, 113
        %v1790 = vpop.permute.xlu0 %1789
        %1791 = vrot.lane.b32.xlu0 %v1786, 113
        %v1792 = vpop.permute.xlu0 %1791
        %v1795 = vadd.f32 %v1781, %v1790
        %v1796 = vadd.f32 %v1782, %v1792
        %s1797 = sld [smem:[#allocation8 + $0x6]]
        %v1798 = vstv %s1797
        %v1799 = vmul.f32 %v1798, %v1720
        %v1800 = vmul.f32 %v1798, %v1721
        %1803 = vrot.lane.b32.xlu0 %v1799, 110
        %v1804 = vpop.permute.xlu0 %1803
        %1805 = vrot.lane.b32.xlu0 %v1800, 110
        %v1806 = vpop.permute.xlu0 %1805
        %v1809 = vadd.f32 %v1795, %v1804
        %v1810 = vadd.f32 %v1796, %v1806
        %s1811 = sld [smem:[#allocation8 + $0x7]]
        %v1812 = vld [vmem:[#allocation2 + $0x3] sm:$0xff]
        %v1813 = vld [vmem:[#allocation2 + $0xb] sm:$0xff]
        %v1814 = vstv %s1811
        %v1815 = vmul.f32 %v1814, %v1812
        %v1816 = vmul.f32 %v1814, %v1813
        %v1817 = vadd.f32 %v1809, %v1815
        %v1818 = vadd.f32 %v1810, %v1816
        %s1819 = sld [smem:[#allocation8 + $0x8]]
        %v1820 = vstv %s1819
        %v1821 = vmul.f32 %v1820, %v1812
        %v1822 = vmul.f32 %v1820, %v1813
        %1825 = vrot.lane.b32.xlu0 %v1821, 125
        %v1826 = vpop.permute.xlu0 %1825
        %1827 = vrot.lane.b32.xlu0 %v1822, 125
        %v1828 = vpop.permute.xlu0 %1827
        %v1831 = vadd.f32 %v1817, %v1826
        %v1832 = vadd.f32 %v1818, %v1828
        %s1833 = sld [smem:[#allocation8 + $0x9]]
        %v1834 = vstv %s1833
        %v1835 = vmul.f32 %v1834, %v1812
        %v1836 = vmul.f32 %v1834, %v1813
        %1839 = vrot.lane.b32.xlu0 %v1835, 122
        %v1840 = vpop.permute.xlu0 %1839
        %1841 = vrot.lane.b32.xlu0 %v1836, 122
        %v1842 = vpop.permute.xlu0 %1841
        %v1845 = vadd.f32 %v1831, %v1840
        %v1846 = vadd.f32 %v1832, %v1842
        %s1847 = sld [smem:[#allocation8 + $0xa]]
        %v1848 = vstv %s1847
        %v1849 = vmul.f32 %v1848, %v1812
        %v1850 = vmul.f32 %v1848, %v1813
        %1853 = vrot.lane.b32.xlu0 %v1849, 119
        %v1854 = vpop.permute.xlu0 %1853
        %1855 = vrot.lane.b32.xlu0 %v1850, 119
        %v1856 = vpop.permute.xlu0 %1855
        %v1859 = vadd.f32 %v1845, %v1854
        %v1860 = vadd.f32 %v1846, %v1856
        %s1861 = sld [smem:[#allocation8 + $0xb]]
        %v1862 = vstv %s1861
        %v1863 = vmul.f32 %v1862, %v1812
        %v1864 = vmul.f32 %v1862, %v1813
        %1867 = vrot.lane.b32.xlu0 %v1863, 116
        %v1868 = vpop.permute.xlu0 %1867
        %1869 = vrot.lane.b32.xlu0 %v1864, 116
        %v1870 = vpop.permute.xlu0 %1869
        %v1873 = vadd.f32 %v1859, %v1868
        %v1874 = vadd.f32 %v1860, %v1870
        %s1875 = sld [smem:[#allocation8 + $0xc]]
        %v1876 = vstv %s1875
        %v1877 = vmul.f32 %v1876, %v1812
        %v1878 = vmul.f32 %v1876, %v1813
        %1881 = vrot.lane.b32.xlu0 %v1877, 113
        %v1882 = vpop.permute.xlu0 %1881
        %1883 = vrot.lane.b32.xlu0 %v1878, 113
        %v1884 = vpop.permute.xlu0 %1883
        %v1887 = vadd.f32 %v1873, %v1882
        %v1888 = vadd.f32 %v1874, %v1884
        %s1889 = sld [smem:[#allocation8 + $0xd]]
        %v1890 = vstv %s1889
        %v1891 = vmul.f32 %v1890, %v1812
        %v1892 = vmul.f32 %v1890, %v1813
        %1895 = vrot.lane.b32.xlu0 %v1891, 110
        %v1896 = vpop.permute.xlu0 %1895
        %1897 = vrot.lane.b32.xlu0 %v1892, 110
        %v1898 = vpop.permute.xlu0 %1897
        %v1901 = vadd.f32 %v1887, %v1896
        %v1902 = vadd.f32 %v1888, %v1898
        %s1903 = sld [smem:[#allocation8 + $0xe]]
        %v1904 = vld [vmem:[#allocation2 + $0x6] sm:$0xff]
        %v1905 = vld [vmem:[#allocation2 + $0xe] sm:$0xff]
        %v1906 = vstv %s1903
        %v1907 = vmul.f32 %v1906, %v1904
        %v1908 = vmul.f32 %v1906, %v1905
        %v1909 = vadd.f32 %v1901, %v1907
        %v1910 = vadd.f32 %v1902, %v1908
        %s1911 = sld [smem:[#allocation8 + $0xf]]
        %v1912 = vstv %s1911
        %v1913 = vmul.f32 %v1912, %v1904
        %v1914 = vmul.f32 %v1912, %v1905
        %1917 = vrot.lane.b32.xlu0 %v1913, 125
        %v1918 = vpop.permute.xlu0 %1917
        %1919 = vrot.lane.b32.xlu0 %v1914, 125
        %v1920 = vpop.permute.xlu0 %1919
        %v1923 = vadd.f32 %v1909, %v1918
        %v1924 = vadd.f32 %v1910, %v1920
        %s1925 = sld [smem:[#allocation8 + $0x10]]
        %v1926 = vstv %s1925
        %v1927 = vmul.f32 %v1926, %v1904
        %v1928 = vmul.f32 %v1926, %v1905
        %1931 = vrot.lane.b32.xlu0 %v1927, 122
        %v1932 = vpop.permute.xlu0 %1931
        %1933 = vrot.lane.b32.xlu0 %v1928, 122
        %v1934 = vpop.permute.xlu0 %1933
        %v1937 = vadd.f32 %v1923, %v1932
        %v1938 = vadd.f32 %v1924, %v1934
        %s1939 = sld [smem:[#allocation8 + $0x11]]
        %v1940 = vstv %s1939
        %v1941 = vmul.f32 %v1940, %v1904
        %v1942 = vmul.f32 %v1940, %v1905
        %1945 = vrot.lane.b32.xlu0 %v1941, 119
        %v1946 = vpop.permute.xlu0 %1945
        %1947 = vrot.lane.b32.xlu0 %v1942, 119
        %v1948 = vpop.permute.xlu0 %1947
        %v1951 = vadd.f32 %v1937, %v1946
        %v1952 = vadd.f32 %v1938, %v1948
        %s1953 = sld [smem:[#allocation8 + $0x12]]
        %v1954 = vstv %s1953
        %v1955 = vmul.f32 %v1954, %v1904
        %v1956 = vmul.f32 %v1954, %v1905
        %1959 = vrot.lane.b32.xlu0 %v1955, 116
        %v1960 = vpop.permute.xlu0 %1959
        %1961 = vrot.lane.b32.xlu0 %v1956, 116
        %v1962 = vpop.permute.xlu0 %1961
        %v1965 = vadd.f32 %v1951, %v1960
        %v1966 = vadd.f32 %v1952, %v1962
        %s1967 = sld [smem:[#allocation8 + $0x13]]
        %v1968 = vstv %s1967
        %v1969 = vmul.f32 %v1968, %v1904
        %v1970 = vmul.f32 %v1968, %v1905
        %1973 = vrot.lane.b32.xlu0 %v1969, 113
        %v1974 = vpop.permute.xlu0 %1973
        %1975 = vrot.lane.b32.xlu0 %v1970, 113
        %v1976 = vpop.permute.xlu0 %1975
        %v1979 = vadd.f32 %v1965, %v1974
        %v1980 = vadd.f32 %v1966, %v1976
        %s1981 = sld [smem:[#allocation8 + $0x14]]
        %v1982 = vstv %s1981
        %v1983 = vmul.f32 %v1982, %v1904
        %v1984 = vmul.f32 %v1982, %v1905
        %1987 = vrot.lane.b32.xlu0 %v1983, 110
        %v1988 = vpop.permute.xlu0 %1987
        %1989 = vrot.lane.b32.xlu0 %v1984, 110
        %v1990 = vpop.permute.xlu0 %1989
        %v1993 = vadd.f32 %v1979, %v1988
        %v1994 = vadd.f32 %v1980, %v1990
        %s1995 = sld [smem:[#allocation8 + $0x15]]
        %v1996 = vld [vmem:[#allocation2 + $0x9] sm:$0xff]
        %v1997 = vld [vmem:[#allocation2 + $0x11] sm:$0xff]
        %v1998 = vstv %s1995
        %v1999 = vmul.f32 %v1998, %v1996
        %v2000 = vmul.f32 %v1998, %v1997
        %v2001 = vadd.f32 %v1993, %v1999
        %v2002 = vadd.f32 %v1994, %v2000
        %s2003 = sld [smem:[#allocation8 + $0x16]]
        %v2004 = vstv %s2003
        %v2005 = vmul.f32 %v2004, %v1996
        %v2006 = vmul.f32 %v2004, %v1997
        %2009 = vrot.lane.b32.xlu0 %v2005, 125
        %v2010 = vpop.permute.xlu0 %2009
        %2011 = vrot.lane.b32.xlu0 %v2006, 125
        %v2012 = vpop.permute.xlu0 %2011
        %v2015 = vadd.f32 %v2001, %v2010
        %v2016 = vadd.f32 %v2002, %v2012
        %s2017 = sld [smem:[#allocation8 + $0x17]]
        %v2018 = vstv %s2017
        %v2019 = vmul.f32 %v2018, %v1996
        %v2020 = vmul.f32 %v2018, %v1997
        %2023 = vrot.lane.b32.xlu0 %v2019, 122
        %v2024 = vpop.permute.xlu0 %2023
        %2025 = vrot.lane.b32.xlu0 %v2020, 122
        %v2026 = vpop.permute.xlu0 %2025
        %v2029 = vadd.f32 %v2015, %v2024
        %v2030 = vadd.f32 %v2016, %v2026
        %s2031 = sld [smem:[#allocation8 + $0x18]]
        %v2032 = vstv %s2031
        %v2033 = vmul.f32 %v2032, %v1996
        %v2034 = vmul.f32 %v2032, %v1997
        %2037 = vrot.lane.b32.xlu0 %v2033, 119
        %v2038 = vpop.permute.xlu0 %2037
        %2039 = vrot.lane.b32.xlu0 %v2034, 119
        %v2040 = vpop.permute.xlu0 %2039
        %v2043 = vadd.f32 %v2029, %v2038
        %v2044 = vadd.f32 %v2030, %v2040
        %s2045 = sld [smem:[#allocation8 + $0x19]]
        %v2046 = vstv %s2045
        %v2047 = vmul.f32 %v2046, %v1996
        %v2048 = vmul.f32 %v2046, %v1997
        %2051 = vrot.lane.b32.xlu0 %v2047, 116
        %v2052 = vpop.permute.xlu0 %2051
        %2053 = vrot.lane.b32.xlu0 %v2048, 116
        %v2054 = vpop.permute.xlu0 %2053
        %v2057 = vadd.f32 %v2043, %v2052
        %v2058 = vadd.f32 %v2044, %v2054
        %s2059 = sld [smem:[#allocation8 + $0x1a]]
        %v2060 = vstv %s2059
        %v2061 = vmul.f32 %v2060, %v1996
        %v2062 = vmul.f32 %v2060, %v1997
        %2065 = vrot.lane.b32.xlu0 %v2061, 113
        %v2066 = vpop.permute.xlu0 %2065
        %2067 = vrot.lane.b32.xlu0 %v2062, 113
        %v2068 = vpop.permute.xlu0 %2067
        %v2071 = vadd.f32 %v2057, %v2066
        %v2072 = vadd.f32 %v2058, %v2068
        %s2073 = sld [smem:[#allocation8 + $0x1b]]
        %v2074 = vstv %s2073
        %v2075 = vmul.f32 %v2074, %v1996
        %v2076 = vmul.f32 %v2074, %v1997
        %2079 = vrot.lane.b32.xlu0 %v2075, 110
        %v2080 = vpop.permute.xlu0 %2079
        %2081 = vrot.lane.b32.xlu0 %v2076, 110
        %v2082 = vpop.permute.xlu0 %2081
        %v2085 = vadd.f32 %v2071, %v2080
        %v2086 = vadd.f32 %v2072, %v2082
        %s2087 = sld [smem:[#allocation8 + $0x1c]]
        %v2088 = vld [vmem:[#allocation2 + $0xc] sm:$0xff]
        %v2089 = vld [vmem:[#allocation2 + $0x14] sm:$0xff]
        %v2090 = vstv %s2087
        %v2091 = vmul.f32 %v2090, %v2088
        %v2092 = vmul.f32 %v2090, %v2089
        %v2093 = vadd.f32 %v2085, %v2091
        %v2094 = vadd.f32 %v2086, %v2092
        %s2095 = sld [smem:[#allocation8 + $0x1d]]
        %v2096 = vstv %s2095
        %v2097 = vmul.f32 %v2096, %v2088
        %v2098 = vmul.f32 %v2096, %v2089
        %2101 = vrot.lane.b32.xlu0 %v2097, 125
        %v2102 = vpop.permute.xlu0 %2101
        %2103 = vrot.lane.b32.xlu0 %v2098, 125
        %v2104 = vpop.permute.xlu0 %2103
        %v2107 = vadd.f32 %v2093, %v2102
        %v2108 = vadd.f32 %v2094, %v2104
        %s2109 = sld [smem:[#allocation8 + $0x1e]]
        %v2110 = vstv %s2109
        %v2111 = vmul.f32 %v2110, %v2088
        %v2112 = vmul.f32 %v2110, %v2089
        %2115 = vrot.lane.b32.xlu0 %v2111, 122
        %v2116 = vpop.permute.xlu0 %2115
        %2117 = vrot.lane.b32.xlu0 %v2112, 122
        %v2118 = vpop.permute.xlu0 %2117
        %v2121 = vadd.f32 %v2107, %v2116
        %v2122 = vadd.f32 %v2108, %v2118
        %s2123 = sld [smem:[#allocation8 + $0x1f]]
        %v2124 = vstv %s2123
        %v2125 = vmul.f32 %v2124, %v2088
        %v2126 = vmul.f32 %v2124, %v2089
        %2129 = vrot.lane.b32.xlu0 %v2125, 119
        %v2130 = vpop.permute.xlu0 %2129
        %2131 = vrot.lane.b32.xlu0 %v2126, 119
        %v2132 = vpop.permute.xlu0 %2131
        %v2135 = vadd.f32 %v2121, %v2130
        %v2136 = vadd.f32 %v2122, %v2132
        %s2137 = sld [smem:[#allocation8 + $0x20]]
        %v2138 = vstv %s2137
        %v2139 = vmul.f32 %v2138, %v2088
        %v2140 = vmul.f32 %v2138, %v2089
        %2143 = vrot.lane.b32.xlu0 %v2139, 116
        %v2144 = vpop.permute.xlu0 %2143
        %2145 = vrot.lane.b32.xlu0 %v2140, 116
        %v2146 = vpop.permute.xlu0 %2145
        %v2149 = vadd.f32 %v2135, %v2144
        %v2150 = vadd.f32 %v2136, %v2146
        %s2151 = sld [smem:[#allocation8 + $0x21]]
        %v2152 = vstv %s2151
        %v2153 = vmul.f32 %v2152, %v2088
        %v2154 = vmul.f32 %v2152, %v2089
        %2157 = vrot.lane.b32.xlu0 %v2153, 113
        %v2158 = vpop.permute.xlu0 %2157
        %2159 = vrot.lane.b32.xlu0 %v2154, 113
        %v2160 = vpop.permute.xlu0 %2159
        %v2163 = vadd.f32 %v2149, %v2158
        %v2164 = vadd.f32 %v2150, %v2160
        %s2165 = sld [smem:[#allocation8 + $0x22]]
        %v2166 = vstv %s2165
        %v2167 = vmul.f32 %v2166, %v2088
        %v2168 = vmul.f32 %v2166, %v2089
        %2171 = vrot.lane.b32.xlu0 %v2167, 110
        %v2172 = vpop.permute.xlu0 %2171
        %2173 = vrot.lane.b32.xlu0 %v2168, 110
        %v2174 = vpop.permute.xlu0 %2173
        %v2177 = vadd.f32 %v2163, %v2172
        %v2178 = vadd.f32 %v2164, %v2174
        %s2179 = sld [smem:[#allocation8 + $0x23]]
        %v2180 = vld [vmem:[#allocation2 + $0xf] sm:$0xff]
        %v2181 = vld [vmem:[#allocation2 + $0x17] sm:$0xff]
        %v2182 = vstv %s2179
        %v2183 = vmul.f32 %v2182, %v2180
        %v2184 = vmul.f32 %v2182, %v2181
        %v2185 = vadd.f32 %v2177, %v2183
        %v2186 = vadd.f32 %v2178, %v2184
        %s2187 = sld [smem:[#allocation8 + $0x24]]
        %v2188 = vstv %s2187
        %v2189 = vmul.f32 %v2188, %v2180
        %v2190 = vmul.f32 %v2188, %v2181
        %2193 = vrot.lane.b32.xlu0 %v2189, 125
        %v2194 = vpop.permute.xlu0 %2193
        %2195 = vrot.lane.b32.xlu0 %v2190, 125
        %v2196 = vpop.permute.xlu0 %2195
        %v2199 = vadd.f32 %v2185, %v2194
        %v2200 = vadd.f32 %v2186, %v2196
        %s2201 = sld [smem:[#allocation8 + $0x25]]
        %v2202 = vstv %s2201
        %v2203 = vmul.f32 %v2202, %v2180
        %v2204 = vmul.f32 %v2202, %v2181
        %2207 = vrot.lane.b32.xlu0 %v2203, 122
        %v2208 = vpop.permute.xlu0 %2207
        %2209 = vrot.lane.b32.xlu0 %v2204, 122
        %v2210 = vpop.permute.xlu0 %2209
        %v2213 = vadd.f32 %v2199, %v2208
        %v2214 = vadd.f32 %v2200, %v2210
        %s2215 = sld [smem:[#allocation8 + $0x26]]
        %v2216 = vstv %s2215
        %v2217 = vmul.f32 %v2216, %v2180
        %v2218 = vmul.f32 %v2216, %v2181
        %2221 = vrot.lane.b32.xlu0 %v2217, 119
        %v2222 = vpop.permute.xlu0 %2221
        %2223 = vrot.lane.b32.xlu0 %v2218, 119
        %v2224 = vpop.permute.xlu0 %2223
        %v2227 = vadd.f32 %v2213, %v2222
        %v2228 = vadd.f32 %v2214, %v2224
        %s2229 = sld [smem:[#allocation8 + $0x27]]
        %v2230 = vstv %s2229
        %v2231 = vmul.f32 %v2230, %v2180
        %v2232 = vmul.f32 %v2230, %v2181
        %2235 = vrot.lane.b32.xlu0 %v2231, 116
        %v2236 = vpop.permute.xlu0 %2235
        %2237 = vrot.lane.b32.xlu0 %v2232, 116
        %v2238 = vpop.permute.xlu0 %2237
        %v2241 = vadd.f32 %v2227, %v2236
        %v2242 = vadd.f32 %v2228, %v2238
        %s2243 = sld [smem:[#allocation8 + $0x28]]
        %v2244 = vstv %s2243
        %v2245 = vmul.f32 %v2244, %v2180
        %v2246 = vmul.f32 %v2244, %v2181
        %2249 = vrot.lane.b32.xlu0 %v2245, 113
        %v2250 = vpop.permute.xlu0 %2249
        %2251 = vrot.lane.b32.xlu0 %v2246, 113
        %v2252 = vpop.permute.xlu0 %2251
        %v2255 = vadd.f32 %v2241, %v2250
        %v2256 = vadd.f32 %v2242, %v2252
        %s2257 = sld [smem:[#allocation8 + $0x29]]
        %v2258 = vstv %s2257
        %v2259 = vmul.f32 %v2258, %v2180
        %v2260 = vmul.f32 %v2258, %v2181
        %2263 = vrot.lane.b32.xlu0 %v2259, 110
        %v2264 = vpop.permute.xlu0 %2263
        %2265 = vrot.lane.b32.xlu0 %v2260, 110
        %v2266 = vpop.permute.xlu0 %2265
        %v2269 = vadd.f32 %v2255, %v2264
        %v2270 = vadd.f32 %v2256, %v2266
        %s2271 = sld [smem:[#allocation8 + $0x2a]]
        %v2272 = vld [vmem:[#allocation2 + $0x12] sm:$0xff]
        %v2273 = vld [vmem:[#allocation2 + $0x1a] sm:$0xff]
        %v2274 = vstv %s2271
        %v2275 = vmul.f32 %v2274, %v2272
        %v2276 = vmul.f32 %v2274, %v2273
        %v2277 = vadd.f32 %v2269, %v2275
        %v2278 = vadd.f32 %v2270, %v2276
        %s2279 = sld [smem:[#allocation8 + $0x2b]]
        %v2280 = vstv %s2279
        %v2281 = vmul.f32 %v2280, %v2272
        %v2282 = vmul.f32 %v2280, %v2273
        %2285 = vrot.lane.b32.xlu0 %v2281, 125
        %v2286 = vpop.permute.xlu0 %2285
        %2287 = vrot.lane.b32.xlu0 %v2282, 125
        %v2288 = vpop.permute.xlu0 %2287
        %v2291 = vadd.f32 %v2277, %v2286
        %v2292 = vadd.f32 %v2278, %v2288
        %s2293 = sld [smem:[#allocation8 + $0x2c]]
        %v2294 = vstv %s2293
        %v2295 = vmul.f32 %v2294, %v2272
        %v2296 = vmul.f32 %v2294, %v2273
        %2299 = vrot.lane.b32.xlu0 %v2295, 122
        %v2300 = vpop.permute.xlu0 %2299
        %2301 = vrot.lane.b32.xlu0 %v2296, 122
        %v2302 = vpop.permute.xlu0 %2301
        %v2305 = vadd.f32 %v2291, %v2300
        %v2306 = vadd.f32 %v2292, %v2302
        %s2307 = sld [smem:[#allocation8 + $0x2d]]
        %v2308 = vstv %s2307
        %v2309 = vmul.f32 %v2308, %v2272
        %v2310 = vmul.f32 %v2308, %v2273
        %2313 = vrot.lane.b32.xlu0 %v2309, 119
        %v2314 = vpop.permute.xlu0 %2313
        %2315 = vrot.lane.b32.xlu0 %v2310, 119
        %v2316 = vpop.permute.xlu0 %2315
        %v2319 = vadd.f32 %v2305, %v2314
        %v2320 = vadd.f32 %v2306, %v2316
        %s2321 = sld [smem:[#allocation8 + $0x2e]]
        %v2322 = vstv %s2321
        %v2323 = vmul.f32 %v2322, %v2272
        %v2324 = vmul.f32 %v2322, %v2273
        %2327 = vrot.lane.b32.xlu0 %v2323, 116
        %v2328 = vpop.permute.xlu0 %2327
        %2329 = vrot.lane.b32.xlu0 %v2324, 116
        %v2330 = vpop.permute.xlu0 %2329
        %v2333 = vadd.f32 %v2319, %v2328
        %v2334 = vadd.f32 %v2320, %v2330
        %s2335 = sld [smem:[#allocation8 + $0x2f]]
        %v2336 = vstv %s2335
        %v2337 = vmul.f32 %v2336, %v2272
        %v2338 = vmul.f32 %v2336, %v2273
        %2341 = vrot.lane.b32.xlu0 %v2337, 113
        %v2342 = vpop.permute.xlu0 %2341
        %2343 = vrot.lane.b32.xlu0 %v2338, 113
        %v2344 = vpop.permute.xlu0 %2343
        %v2347 = vadd.f32 %v2333, %v2342
        %v2348 = vadd.f32 %v2334, %v2344
        %s2349 = sld [smem:[#allocation8 + $0x30]]
        %v2350 = vstv %s2349
        %v2351 = vmul.f32 %v2350, %v2272
        %v2352 = vmul.f32 %v2350, %v2273
        %2355 = vrot.lane.b32.xlu0 %v2351, 110
        %v2356 = vpop.permute.xlu0 %2355
        %2357 = vrot.lane.b32.xlu0 %v2352, 110
        %v2358 = vpop.permute.xlu0 %2357
        %v2361 = vadd.f32 %v2347, %v2356
        %v2362 = vadd.f32 %v2348, %v2358
        %s2363 = sld [smem:[#allocation9]]
        %v2364 = vstv %s2363
        %v2365 = vadd.f32 %v2361, %v2364
        %v2366 = vadd.f32 %v2362, %v2364
        %s2367 = sld [smem:[#allocation8 + $0x31]]
        %v2368 = vld [vmem:[%s1044] sm:$0xff]
        %v2369 = vld [vmem:[%s1044 + $0x8] sm:$0xff]
        %v2370 = vstv %s2367
        %v2371 = vmul.f32 %v2370, %v2368
        %v2372 = vmul.f32 %v2370, %v2369
        %v2373 = vadd.f32 %v2371, 0.0
        %v2374 = vadd.f32 %v2372, 0.0
        %s2375 = sld [smem:[#allocation8 + $0x32]]
        %v2376 = vstv %s2375
        %v2377 = vmul.f32 %v2376, %v2368
        %v2378 = vmul.f32 %v2376, %v2369
        %2381 = vrot.lane.b32.xlu0 %v2377, 125
        %v2382 = vpop.permute.xlu0 %2381
        %2383 = vrot.lane.b32.xlu0 %v2378, 125
        %v2384 = vpop.permute.xlu0 %2383
        %v2387 = vadd.f32 %v2373, %v2382
        %v2388 = vadd.f32 %v2374, %v2384
        %s2389 = sld [smem:[#allocation8 + $0x33]]
        %v2390 = vstv %s2389
        %v2391 = vmul.f32 %v2390, %v2368
        %v2392 = vmul.f32 %v2390, %v2369
        %2395 = vrot.lane.b32.xlu0 %v2391, 122
        %v2396 = vpop.permute.xlu0 %2395
        %2397 = vrot.lane.b32.xlu0 %v2392, 122
        %v2398 = vpop.permute.xlu0 %2397
        %v2401 = vadd.f32 %v2387, %v2396
        %v2402 = vadd.f32 %v2388, %v2398
        %s2403 = sld [smem:[#allocation8 + $0x34]]
        %v2404 = vstv %s2403
        %v2405 = vmul.f32 %v2404, %v2368
        %v2406 = vmul.f32 %v2404, %v2369
        %2409 = vrot.lane.b32.xlu0 %v2405, 119
        %v2410 = vpop.permute.xlu0 %2409
        %2411 = vrot.lane.b32.xlu0 %v2406, 119
        %v2412 = vpop.permute.xlu0 %2411
        %v2415 = vadd.f32 %v2401, %v2410
        %v2416 = vadd.f32 %v2402, %v2412
        %s2417 = sld [smem:[#allocation8 + $0x35]]
        %v2418 = vstv %s2417
        %v2419 = vmul.f32 %v2418, %v2368
        %v2420 = vmul.f32 %v2418, %v2369
        %2423 = vrot.lane.b32.xlu0 %v2419, 116
        %v2424 = vpop.permute.xlu0 %2423
        %2425 = vrot.lane.b32.xlu0 %v2420, 116
        %v2426 = vpop.permute.xlu0 %2425
        %v2429 = vadd.f32 %v2415, %v2424
        %v2430 = vadd.f32 %v2416, %v2426
        %s2431 = sld [smem:[#allocation8 + $0x36]]
        %v2432 = vstv %s2431
        %v2433 = vmul.f32 %v2432, %v2368
        %v2434 = vmul.f32 %v2432, %v2369
        %2437 = vrot.lane.b32.xlu0 %v2433, 113
        %v2438 = vpop.permute.xlu0 %2437
        %2439 = vrot.lane.b32.xlu0 %v2434, 113
        %v2440 = vpop.permute.xlu0 %2439
        %v2443 = vadd.f32 %v2429, %v2438
        %v2444 = vadd.f32 %v2430, %v2440
        %s2445 = sld [smem:[#allocation8 + $0x37]]
        %v2446 = vstv %s2445
        %v2447 = vmul.f32 %v2446, %v2368
        %v2448 = vmul.f32 %v2446, %v2369
        %2451 = vrot.lane.b32.xlu0 %v2447, 110
        %v2452 = vpop.permute.xlu0 %2451
        %2453 = vrot.lane.b32.xlu0 %v2448, 110
        %v2454 = vpop.permute.xlu0 %2453
        %v2457 = vadd.f32 %v2443, %v2452
        %v2458 = vadd.f32 %v2444, %v2454
        %s2459 = sld [smem:[#allocation8 + $0x38]]
        %v2460 = vld [vmem:[%s1044 + $0x3] sm:$0xff]
        %v2461 = vld [vmem:[%s1044 + $0xb] sm:$0xff]
        %v2462 = vstv %s2459
        %v2463 = vmul.f32 %v2462, %v2460
        %v2464 = vmul.f32 %v2462, %v2461
        %v2465 = vadd.f32 %v2457, %v2463
        %v2466 = vadd.f32 %v2458, %v2464
        %s2467 = sld [smem:[#allocation8 + $0x39]]
        %v2468 = vstv %s2467
        %v2469 = vmul.f32 %v2468, %v2460
        %v2470 = vmul.f32 %v2468, %v2461
        %2473 = vrot.lane.b32.xlu0 %v2469, 125
        %v2474 = vpop.permute.xlu0 %2473
        %2475 = vrot.lane.b32.xlu0 %v2470, 125
        %v2476 = vpop.permute.xlu0 %2475
        %v2479 = vadd.f32 %v2465, %v2474
        %v2480 = vadd.f32 %v2466, %v2476
        %s2481 = sld [smem:[#allocation8 + $0x3a]]
        %v2482 = vstv %s2481
        %v2483 = vmul.f32 %v2482, %v2460
        %v2484 = vmul.f32 %v2482, %v2461
        %2487 = vrot.lane.b32.xlu0 %v2483, 122
        %v2488 = vpop.permute.xlu0 %2487
        %2489 = vrot.lane.b32.xlu0 %v2484, 122
        %v2490 = vpop.permute.xlu0 %2489
        %v2493 = vadd.f32 %v2479, %v2488
        %v2494 = vadd.f32 %v2480, %v2490
        %s2495 = sld [smem:[#allocation8 + $0x3b]]
        %v2496 = vstv %s2495
        %v2497 = vmul.f32 %v2496, %v2460
        %v2498 = vmul.f32 %v2496, %v2461
        %2501 = vrot.lane.b32.xlu0 %v2497, 119
        %v2502 = vpop.permute.xlu0 %2501
        %2503 = vrot.lane.b32.xlu0 %v2498, 119
        %v2504 = vpop.permute.xlu0 %2503
        %v2507 = vadd.f32 %v2493, %v2502
        %v2508 = vadd.f32 %v2494, %v2504
        %s2509 = sld [smem:[#allocation8 + $0x3c]]
        %v2510 = vstv %s2509
        %v2511 = vmul.f32 %v2510, %v2460
        %v2512 = vmul.f32 %v2510, %v2461
        %2515 = vrot.lane.b32.xlu0 %v2511, 116
        %v2516 = vpop.permute.xlu0 %2515
        %2517 = vrot.lane.b32.xlu0 %v2512, 116
        %v2518 = vpop.permute.xlu0 %2517
        %v2521 = vadd.f32 %v2507, %v2516
        %v2522 = vadd.f32 %v2508, %v2518
        %s2523 = sld [smem:[#allocation8 + $0x3d]]
        %v2524 = vstv %s2523
        %v2525 = vmul.f32 %v2524, %v2460
        %v2526 = vmul.f32 %v2524, %v2461
        %2529 = vrot.lane.b32.xlu0 %v2525, 113
        %v2530 = vpop.permute.xlu0 %2529
        %2531 = vrot.lane.b32.xlu0 %v2526, 113
        %v2532 = vpop.permute.xlu0 %2531
        %v2535 = vadd.f32 %v2521, %v2530
        %v2536 = vadd.f32 %v2522, %v2532
        %s2537 = sld [smem:[#allocation8 + $0x3e]]
        %v2538 = vstv %s2537
        %v2539 = vmul.f32 %v2538, %v2460
        %v2540 = vmul.f32 %v2538, %v2461
        %2543 = vrot.lane.b32.xlu0 %v2539, 110
        %v2544 = vpop.permute.xlu0 %2543
        %2545 = vrot.lane.b32.xlu0 %v2540, 110
        %v2546 = vpop.permute.xlu0 %2545
        %v2549 = vadd.f32 %v2535, %v2544
        %v2550 = vadd.f32 %v2536, %v2546
        %s2551 = sld [smem:[#allocation8 + $0x3f]]
        %v2552 = vld [vmem:[%s1044 + $0x6] sm:$0xff]
        %v2553 = vld [vmem:[%s1044 + $0xe] sm:$0xff]
        %v2554 = vstv %s2551
        %v2555 = vmul.f32 %v2554, %v2552
        %v2556 = vmul.f32 %v2554, %v2553
        %v2557 = vadd.f32 %v2549, %v2555
        %v2558 = vadd.f32 %v2550, %v2556
        %s2559 = sld [smem:[#allocation8 + $0x40]]
        %v2560 = vstv %s2559
        %v2561 = vmul.f32 %v2560, %v2552
        %v2562 = vmul.f32 %v2560, %v2553
        %2565 = vrot.lane.b32.xlu0 %v2561, 125
        %v2566 = vpop.permute.xlu0 %2565
        %2567 = vrot.lane.b32.xlu0 %v2562, 125
        %v2568 = vpop.permute.xlu0 %2567
        %v2571 = vadd.f32 %v2557, %v2566
        %v2572 = vadd.f32 %v2558, %v2568
        %s2573 = sld [smem:[#allocation8 + $0x41]]
        %v2574 = vstv %s2573
        %v2575 = vmul.f32 %v2574, %v2552
        %v2576 = vmul.f32 %v2574, %v2553
        %2579 = vrot.lane.b32.xlu0 %v2575, 122
        %v2580 = vpop.permute.xlu0 %2579
        %2581 = vrot.lane.b32.xlu0 %v2576, 122
        %v2582 = vpop.permute.xlu0 %2581
        %v2585 = vadd.f32 %v2571, %v2580
        %v2586 = vadd.f32 %v2572, %v2582
        %s2587 = sld [smem:[#allocation8 + $0x42]]
        %v2588 = vstv %s2587
        %v2589 = vmul.f32 %v2588, %v2552
        %v2590 = vmul.f32 %v2588, %v2553
        %2593 = vrot.lane.b32.xlu0 %v2589, 119
        %v2594 = vpop.permute.xlu0 %2593
        %2595 = vrot.lane.b32.xlu0 %v2590, 119
        %v2596 = vpop.permute.xlu0 %2595
        %v2599 = vadd.f32 %v2585, %v2594
        %v2600 = vadd.f32 %v2586, %v2596
        %s2601 = sld [smem:[#allocation8 + $0x43]]
        %v2602 = vstv %s2601
        %v2603 = vmul.f32 %v2602, %v2552
        %v2604 = vmul.f32 %v2602, %v2553
        %2607 = vrot.lane.b32.xlu0 %v2603, 116
        %v2608 = vpop.permute.xlu0 %2607
        %2609 = vrot.lane.b32.xlu0 %v2604, 116
        %v2610 = vpop.permute.xlu0 %2609
        %v2613 = vadd.f32 %v2599, %v2608
        %v2614 = vadd.f32 %v2600, %v2610
        %s2615 = sld [smem:[#allocation8 + $0x44]]
        %v2616 = vstv %s2615
        %v2617 = vmul.f32 %v2616, %v2552
        %v2618 = vmul.f32 %v2616, %v2553
        %2621 = vrot.lane.b32.xlu0 %v2617, 113
        %v2622 = vpop.permute.xlu0 %2621
        %2623 = vrot.lane.b32.xlu0 %v2618, 113
        %v2624 = vpop.permute.xlu0 %2623
        %v2627 = vadd.f32 %v2613, %v2622
        %v2628 = vadd.f32 %v2614, %v2624
        %s2629 = sld [smem:[#allocation8 + $0x45]]
        %v2630 = vstv %s2629
        %v2631 = vmul.f32 %v2630, %v2552
        %v2632 = vmul.f32 %v2630, %v2553
        %2635 = vrot.lane.b32.xlu0 %v2631, 110
        %v2636 = vpop.permute.xlu0 %2635
        %2637 = vrot.lane.b32.xlu0 %v2632, 110
        %v2638 = vpop.permute.xlu0 %2637
        %v2641 = vadd.f32 %v2627, %v2636
        %v2642 = vadd.f32 %v2628, %v2638
        %s2643 = sld [smem:[#allocation8 + $0x46]]
        %v2644 = vld [vmem:[%s1044 + $0x9] sm:$0xff]
        %v2645 = vld [vmem:[%s1044 + $0x11] sm:$0xff]
        %v2646 = vstv %s2643
        %v2647 = vmul.f32 %v2646, %v2644
        %v2648 = vmul.f32 %v2646, %v2645
        %v2649 = vadd.f32 %v2641, %v2647
        %v2650 = vadd.f32 %v2642, %v2648
        %s2651 = sld [smem:[#allocation8 + $0x47]]
        %v2652 = vstv %s2651
        %v2653 = vmul.f32 %v2652, %v2644
        %v2654 = vmul.f32 %v2652, %v2645
        %2657 = vrot.lane.b32.xlu0 %v2653, 125
        %v2658 = vpop.permute.xlu0 %2657
        %2659 = vrot.lane.b32.xlu0 %v2654, 125
        %v2660 = vpop.permute.xlu0 %2659
        %v2663 = vadd.f32 %v2649, %v2658
        %v2664 = vadd.f32 %v2650, %v2660
        %s2665 = sld [smem:[#allocation8 + $0x48]]
        %v2666 = vstv %s2665
        %v2667 = vmul.f32 %v2666, %v2644
        %v2668 = vmul.f32 %v2666, %v2645
        %2671 = vrot.lane.b32.xlu0 %v2667, 122
        %v2672 = vpop.permute.xlu0 %2671
        %2673 = vrot.lane.b32.xlu0 %v2668, 122
        %v2674 = vpop.permute.xlu0 %2673
        %v2677 = vadd.f32 %v2663, %v2672
        %v2678 = vadd.f32 %v2664, %v2674
        %s2679 = sld [smem:[#allocation8 + $0x49]]
        %v2680 = vstv %s2679
        %v2681 = vmul.f32 %v2680, %v2644
        %v2682 = vmul.f32 %v2680, %v2645
        %2685 = vrot.lane.b32.xlu0 %v2681, 119
        %v2686 = vpop.permute.xlu0 %2685
        %2687 = vrot.lane.b32.xlu0 %v2682, 119
        %v2688 = vpop.permute.xlu0 %2687
        %v2691 = vadd.f32 %v2677, %v2686
        %v2692 = vadd.f32 %v2678, %v2688
        %s2693 = sld [smem:[#allocation8 + $0x4a]]
        %v2694 = vstv %s2693
        %v2695 = vmul.f32 %v2694, %v2644
        %v2696 = vmul.f32 %v2694, %v2645
        %2699 = vrot.lane.b32.xlu0 %v2695, 116
        %v2700 = vpop.permute.xlu0 %2699
        %2701 = vrot.lane.b32.xlu0 %v2696, 116
        %v2702 = vpop.permute.xlu0 %2701
        %v2705 = vadd.f32 %v2691, %v2700
        %v2706 = vadd.f32 %v2692, %v2702
        %s2707 = sld [smem:[#allocation8 + $0x4b]]
        %v2708 = vstv %s2707
        %v2709 = vmul.f32 %v2708, %v2644
        %v2710 = vmul.f32 %v2708, %v2645
        %2713 = vrot.lane.b32.xlu0 %v2709, 113
        %v2714 = vpop.permute.xlu0 %2713
        %2715 = vrot.lane.b32.xlu0 %v2710, 113
        %v2716 = vpop.permute.xlu0 %2715
        %v2719 = vadd.f32 %v2705, %v2714
        %v2720 = vadd.f32 %v2706, %v2716
        %s2721 = sld [smem:[#allocation8 + $0x4c]]
        %v2722 = vstv %s2721
        %v2723 = vmul.f32 %v2722, %v2644
        %v2724 = vmul.f32 %v2722, %v2645
        %2727 = vrot.lane.b32.xlu0 %v2723, 110
        %v2728 = vpop.permute.xlu0 %2727
        %2729 = vrot.lane.b32.xlu0 %v2724, 110
        %v2730 = vpop.permute.xlu0 %2729
        %v2733 = vadd.f32 %v2719, %v2728
        %v2734 = vadd.f32 %v2720, %v2730
        %s2735 = sld [smem:[#allocation8 + $0x4d]]
        %v2736 = vld [vmem:[%s1044 + $0xc] sm:$0xff]
        %v2737 = vld [vmem:[%s1044 + $0x14] sm:$0xff]
        %v2738 = vstv %s2735
        %v2739 = vmul.f32 %v2738, %v2736
        %v2740 = vmul.f32 %v2738, %v2737
        %v2741 = vadd.f32 %v2733, %v2739
        %v2742 = vadd.f32 %v2734, %v2740
        %s2743 = sld [smem:[#allocation8 + $0x4e]]
        %v2744 = vstv %s2743
        %v2745 = vmul.f32 %v2744, %v2736
        %v2746 = vmul.f32 %v2744, %v2737
        %2749 = vrot.lane.b32.xlu0 %v2745, 125
        %v2750 = vpop.permute.xlu0 %2749
        %2751 = vrot.lane.b32.xlu0 %v2746, 125
        %v2752 = vpop.permute.xlu0 %2751
        %v2755 = vadd.f32 %v2741, %v2750
        %v2756 = vadd.f32 %v2742, %v2752
        %s2757 = sld [smem:[#allocation8 + $0x4f]]
        %v2758 = vstv %s2757
        %v2759 = vmul.f32 %v2758, %v2736
        %v2760 = vmul.f32 %v2758, %v2737
        %2763 = vrot.lane.b32.xlu0 %v2759, 122
        %v2764 = vpop.permute.xlu0 %2763
        %2765 = vrot.lane.b32.xlu0 %v2760, 122
        %v2766 = vpop.permute.xlu0 %2765
        %v2769 = vadd.f32 %v2755, %v2764
        %v2770 = vadd.f32 %v2756, %v2766
        %s2771 = sld [smem:[#allocation8 + $0x50]]
        %v2772 = vstv %s2771
        %v2773 = vmul.f32 %v2772, %v2736
        %v2774 = vmul.f32 %v2772, %v2737
        %2777 = vrot.lane.b32.xlu0 %v2773, 119
        %v2778 = vpop.permute.xlu0 %2777
        %2779 = vrot.lane.b32.xlu0 %v2774, 119
        %v2780 = vpop.permute.xlu0 %2779
        %v2783 = vadd.f32 %v2769, %v2778
        %v2784 = vadd.f32 %v2770, %v2780
        %s2785 = sld [smem:[#allocation8 + $0x51]]
        %v2786 = vstv %s2785
        %v2787 = vmul.f32 %v2786, %v2736
        %v2788 = vmul.f32 %v2786, %v2737
        %2791 = vrot.lane.b32.xlu0 %v2787, 116
        %v2792 = vpop.permute.xlu0 %2791
        %2793 = vrot.lane.b32.xlu0 %v2788, 116
        %v2794 = vpop.permute.xlu0 %2793
        %v2797 = vadd.f32 %v2783, %v2792
        %v2798 = vadd.f32 %v2784, %v2794
        %s2799 = sld [smem:[#allocation8 + $0x52]]
        %v2800 = vstv %s2799
        %v2801 = vmul.f32 %v2800, %v2736
        %v2802 = vmul.f32 %v2800, %v2737
        %2805 = vrot.lane.b32.xlu0 %v2801, 113
        %v2806 = vpop.permute.xlu0 %2805
        %2807 = vrot.lane.b32.xlu0 %v2802, 113
        %v2808 = vpop.permute.xlu0 %2807
        %v2811 = vadd.f32 %v2797, %v2806
        %v2812 = vadd.f32 %v2798, %v2808
        %s2813 = sld [smem:[#allocation8 + $0x53]]
        %v2814 = vstv %s2813
        %v2815 = vmul.f32 %v2814, %v2736
        %v2816 = vmul.f32 %v2814, %v2737
        %2819 = vrot.lane.b32.xlu0 %v2815, 110
        %v2820 = vpop.permute.xlu0 %2819
        %2821 = vrot.lane.b32.xlu0 %v2816, 110
        %v2822 = vpop.permute.xlu0 %2821
        %v2825 = vadd.f32 %v2811, %v2820
        %v2826 = vadd.f32 %v2812, %v2822
        %s2827 = sld [smem:[#allocation8 + $0x54]]
        %v2828 = vld [vmem:[%s1044 + $0xf] sm:$0xff]
        %v2829 = vld [vmem:[%s1044 + $0x17] sm:$0xff]
        %v2830 = vstv %s2827
        %v2831 = vmul.f32 %v2830, %v2828
        %v2832 = vmul.f32 %v2830, %v2829
        %v2833 = vadd.f32 %v2825, %v2831
        %v2834 = vadd.f32 %v2826, %v2832
        %s2835 = sld [smem:[#allocation8 + $0x55]]
        %v2836 = vstv %s2835
        %v2837 = vmul.f32 %v2836, %v2828
        %v2838 = vmul.f32 %v2836, %v2829
        %2841 = vrot.lane.b32.xlu0 %v2837, 125
        %v2842 = vpop.permute.xlu0 %2841
        %2843 = vrot.lane.b32.xlu0 %v2838, 125
        %v2844 = vpop.permute.xlu0 %2843
        %v2847 = vadd.f32 %v2833, %v2842
        %v2848 = vadd.f32 %v2834, %v2844
        %s2849 = sld [smem:[#allocation8 + $0x56]]
        %v2850 = vstv %s2849
        %v2851 = vmul.f32 %v2850, %v2828
        %v2852 = vmul.f32 %v2850, %v2829
        %2855 = vrot.lane.b32.xlu0 %v2851, 122
        %v2856 = vpop.permute.xlu0 %2855
        %2857 = vrot.lane.b32.xlu0 %v2852, 122
        %v2858 = vpop.permute.xlu0 %2857
        %v2861 = vadd.f32 %v2847, %v2856
        %v2862 = vadd.f32 %v2848, %v2858
        %s2863 = sld [smem:[#allocation8 + $0x57]]
        %v2864 = vstv %s2863
        %v2865 = vmul.f32 %v2864, %v2828
        %v2866 = vmul.f32 %v2864, %v2829
        %2869 = vrot.lane.b32.xlu0 %v2865, 119
        %v2870 = vpop.permute.xlu0 %2869
        %2871 = vrot.lane.b32.xlu0 %v2866, 119
        %v2872 = vpop.permute.xlu0 %2871
        %v2875 = vadd.f32 %v2861, %v2870
        %v2876 = vadd.f32 %v2862, %v2872
        %s2877 = sld [smem:[#allocation8 + $0x58]]
        %v2878 = vstv %s2877
        %v2879 = vmul.f32 %v2878, %v2828
        %v2880 = vmul.f32 %v2878, %v2829
        %2883 = vrot.lane.b32.xlu0 %v2879, 116
        %v2884 = vpop.permute.xlu0 %2883
        %2885 = vrot.lane.b32.xlu0 %v2880, 116
        %v2886 = vpop.permute.xlu0 %2885
        %v2889 = vadd.f32 %v2875, %v2884
        %v2890 = vadd.f32 %v2876, %v2886
        %s2891 = sld [smem:[#allocation8 + $0x59]]
        %v2892 = vstv %s2891
        %v2893 = vmul.f32 %v2892, %v2828
        %v2894 = vmul.f32 %v2892, %v2829
        %2897 = vrot.lane.b32.xlu0 %v2893, 113
        %v2898 = vpop.permute.xlu0 %2897
        %2899 = vrot.lane.b32.xlu0 %v2894, 113
        %v2900 = vpop.permute.xlu0 %2899
        %v2903 = vadd.f32 %v2889, %v2898
        %v2904 = vadd.f32 %v2890, %v2900
        %s2905 = sld [smem:[#allocation8 + $0x5a]]
        %v2906 = vstv %s2905
        %v2907 = vmul.f32 %v2906, %v2828
        %v2908 = vmul.f32 %v2906, %v2829
        %2911 = vrot.lane.b32.xlu0 %v2907, 110
        %v2912 = vpop.permute.xlu0 %2911
        %2913 = vrot.lane.b32.xlu0 %v2908, 110
        %v2914 = vpop.permute.xlu0 %2913
        %v2917 = vadd.f32 %v2903, %v2912
        %v2918 = vadd.f32 %v2904, %v2914
        %s2919 = sld [smem:[#allocation8 + $0x5b]]
        %v2920 = vld [vmem:[%s1044 + $0x12] sm:$0xff]
        %v2921 = vld [vmem:[%s1044 + $0x1a] sm:$0xff]
        %v2922 = vstv %s2919
        %v2923 = vmul.f32 %v2922, %v2920
        %v2924 = vmul.f32 %v2922, %v2921
        %v2925 = vadd.f32 %v2917, %v2923
        %v2926 = vadd.f32 %v2918, %v2924
        %s2927 = sld [smem:[#allocation8 + $0x5c]]
        %v2928 = vstv %s2927
        %v2929 = vmul.f32 %v2928, %v2920
        %v2930 = vmul.f32 %v2928, %v2921
        %2933 = vrot.lane.b32.xlu0 %v2929, 125
        %v2934 = vpop.permute.xlu0 %2933
        %2935 = vrot.lane.b32.xlu0 %v2930, 125
        %v2936 = vpop.permute.xlu0 %2935
        %v2939 = vadd.f32 %v2925, %v2934
        %v2940 = vadd.f32 %v2926, %v2936
        %s2941 = sld [smem:[#allocation8 + $0x5d]]
        %v2942 = vstv %s2941
        %v2943 = vmul.f32 %v2942, %v2920
        %v2944 = vmul.f32 %v2942, %v2921
        %2947 = vrot.lane.b32.xlu0 %v2943, 122
        %v2948 = vpop.permute.xlu0 %2947
        %2949 = vrot.lane.b32.xlu0 %v2944, 122
        %v2950 = vpop.permute.xlu0 %2949
        %v2953 = vadd.f32 %v2939, %v2948
        %v2954 = vadd.f32 %v2940, %v2950
        %s2955 = sld [smem:[#allocation8 + $0x5e]]
        %v2956 = vstv %s2955
        %v2957 = vmul.f32 %v2956, %v2920
        %v2958 = vmul.f32 %v2956, %v2921
        %2961 = vrot.lane.b32.xlu0 %v2957, 119
        %v2962 = vpop.permute.xlu0 %2961
        %2963 = vrot.lane.b32.xlu0 %v2958, 119
        %v2964 = vpop.permute.xlu0 %2963
        %v2967 = vadd.f32 %v2953, %v2962
        %v2968 = vadd.f32 %v2954, %v2964
        %s2969 = sld [smem:[#allocation8 + $0x5f]]
        %v2970 = vstv %s2969
        %v2971 = vmul.f32 %v2970, %v2920
        %v2972 = vmul.f32 %v2970, %v2921
        %2975 = vrot.lane.b32.xlu0 %v2971, 116
        %v2976 = vpop.permute.xlu0 %2975
        %2977 = vrot.lane.b32.xlu0 %v2972, 116
        %v2978 = vpop.permute.xlu0 %2977
        %v2981 = vadd.f32 %v2967, %v2976
        %v2982 = vadd.f32 %v2968, %v2978
        %s2983 = sld [smem:[#allocation8 + $0x60]]
        %v2984 = vstv %s2983
        %v2985 = vmul.f32 %v2984, %v2920
        %v2986 = vmul.f32 %v2984, %v2921
        %2989 = vrot.lane.b32.xlu0 %v2985, 113
        %v2990 = vpop.permute.xlu0 %2989
        %2991 = vrot.lane.b32.xlu0 %v2986, 113
        %v2992 = vpop.permute.xlu0 %2991
        %v2995 = vadd.f32 %v2981, %v2990
        %v2996 = vadd.f32 %v2982, %v2992
        %s2997 = sld [smem:[#allocation8 + $0x61]]
        %v2998 = vstv %s2997
        %v2999 = vmul.f32 %v2998, %v2920
        %v3000 = vmul.f32 %v2998, %v2921
        %3003 = vrot.lane.b32.xlu0 %v2999, 110
        %v3004 = vpop.permute.xlu0 %3003
        %3005 = vrot.lane.b32.xlu0 %v3000, 110
        %v3006 = vpop.permute.xlu0 %3005
        %v3009 = vadd.f32 %v2995, %v3004
        %v3010 = vadd.f32 %v2996, %v3006
        %s3011 = sld [smem:[#allocation9 + $0x1]]
        %v3012 = vstv %s3011
        %v3013 = vadd.f32 %v3009, %v3012
        %v3014 = vadd.f32 %v3010, %v3012
        %s3015 = sld [smem:[#allocation8 + $0x62]]
        %v3016 = vld [vmem:[%s1380] sm:$0xff]
        %v3017 = vld [vmem:[%s1380 + $0x8] sm:$0xff]
        %v3018 = vstv %s3015
        %v3019 = vmul.f32 %v3018, %v3016
        %v3020 = vmul.f32 %v3018, %v3017
        %v3021 = vadd.f32 %v3019, 0.0
        %v3022 = vadd.f32 %v3020, 0.0
        %s3023 = sld [smem:[#allocation8 + $0x63]]
        %v3024 = vstv %s3023
        %v3025 = vmul.f32 %v3024, %v3016
        %v3026 = vmul.f32 %v3024, %v3017
        %3029 = vrot.lane.b32.xlu0 %v3025, 125
        %v3030 = vpop.permute.xlu0 %3029
        %3031 = vrot.lane.b32.xlu0 %v3026, 125
        %v3032 = vpop.permute.xlu0 %3031
        %v3035 = vadd.f32 %v3021, %v3030
        %v3036 = vadd.f32 %v3022, %v3032
        %s3037 = sld [smem:[#allocation8 + $0x64]]
        %v3038 = vstv %s3037
        %v3039 = vmul.f32 %v3038, %v3016
        %v3040 = vmul.f32 %v3038, %v3017
        %3043 = vrot.lane.b32.xlu0 %v3039, 122
        %v3044 = vpop.permute.xlu0 %3043
        %3045 = vrot.lane.b32.xlu0 %v3040, 122
        %v3046 = vpop.permute.xlu0 %3045
        %v3049 = vadd.f32 %v3035, %v3044
        %v3050 = vadd.f32 %v3036, %v3046
        %s3051 = sld [smem:[#allocation8 + $0x65]]
        %v3052 = vstv %s3051
        %v3053 = vmul.f32 %v3052, %v3016
        %v3054 = vmul.f32 %v3052, %v3017
        %3057 = vrot.lane.b32.xlu0 %v3053, 119
        %v3058 = vpop.permute.xlu0 %3057
        %3059 = vrot.lane.b32.xlu0 %v3054, 119
        %v3060 = vpop.permute.xlu0 %3059
        %v3063 = vadd.f32 %v3049, %v3058
        %v3064 = vadd.f32 %v3050, %v3060
        %s3065 = sld [smem:[#allocation8 + $0x66]]
        %v3066 = vstv %s3065
        %v3067 = vmul.f32 %v3066, %v3016
        %v3068 = vmul.f32 %v3066, %v3017
        %3071 = vrot.lane.b32.xlu0 %v3067, 116
        %v3072 = vpop.permute.xlu0 %3071
        %3073 = vrot.lane.b32.xlu0 %v3068, 116
        %v3074 = vpop.permute.xlu0 %3073
        %v3077 = vadd.f32 %v3063, %v3072
        %v3078 = vadd.f32 %v3064, %v3074
        %s3079 = sld [smem:[#allocation8 + $0x67]]
        %v3080 = vstv %s3079
        %v3081 = vmul.f32 %v3080, %v3016
        %v3082 = vmul.f32 %v3080, %v3017
        %3085 = vrot.lane.b32.xlu0 %v3081, 113
        %v3086 = vpop.permute.xlu0 %3085
        %3087 = vrot.lane.b32.xlu0 %v3082, 113
        %v3088 = vpop.permute.xlu0 %3087
        %v3091 = vadd.f32 %v3077, %v3086
        %v3092 = vadd.f32 %v3078, %v3088
        %s3093 = sld [smem:[#allocation8 + $0x68]]
        %v3094 = vstv %s3093
        %v3095 = vmul.f32 %v3094, %v3016
        %v3096 = vmul.f32 %v3094, %v3017
        %3099 = vrot.lane.b32.xlu0 %v3095, 110
        %v3100 = vpop.permute.xlu0 %3099
        %3101 = vrot.lane.b32.xlu0 %v3096, 110
        %v3102 = vpop.permute.xlu0 %3101
        %v3105 = vadd.f32 %v3091, %v3100
        %v3106 = vadd.f32 %v3092, %v3102
        %s3107 = sld [smem:[#allocation8 + $0x69]]
        %v3108 = vld [vmem:[%s1380 + $0x3] sm:$0xff]
        %v3109 = vld [vmem:[%s1380 + $0xb] sm:$0xff]
        %v3110 = vstv %s3107
        %v3111 = vmul.f32 %v3110, %v3108
        %v3112 = vmul.f32 %v3110, %v3109
        %v3113 = vadd.f32 %v3105, %v3111
        %v3114 = vadd.f32 %v3106, %v3112
        %s3115 = sld [smem:[#allocation8 + $0x6a]]
        %v3116 = vstv %s3115
        %v3117 = vmul.f32 %v3116, %v3108
        %v3118 = vmul.f32 %v3116, %v3109
        %3121 = vrot.lane.b32.xlu0 %v3117, 125
        %v3122 = vpop.permute.xlu0 %3121
        %3123 = vrot.lane.b32.xlu0 %v3118, 125
        %v3124 = vpop.permute.xlu0 %3123
        %v3127 = vadd.f32 %v3113, %v3122
        %v3128 = vadd.f32 %v3114, %v3124
        %s3129 = sld [smem:[#allocation8 + $0x6b]]
        %v3130 = vstv %s3129
        %v3131 = vmul.f32 %v3130, %v3108
        %v3132 = vmul.f32 %v3130, %v3109
        %3135 = vrot.lane.b32.xlu0 %v3131, 122
        %v3136 = vpop.permute.xlu0 %3135
        %3137 = vrot.lane.b32.xlu0 %v3132, 122
        %v3138 = vpop.permute.xlu0 %3137
        %v3141 = vadd.f32 %v3127, %v3136
        %v3142 = vadd.f32 %v3128, %v3138
        %s3143 = sld [smem:[#allocation8 + $0x6c]]
        %v3144 = vstv %s3143
        %v3145 = vmul.f32 %v3144, %v3108
        %v3146 = vmul.f32 %v3144, %v3109
        %3149 = vrot.lane.b32.xlu0 %v3145, 119
        %v3150 = vpop.permute.xlu0 %3149
        %3151 = vrot.lane.b32.xlu0 %v3146, 119
        %v3152 = vpop.permute.xlu0 %3151
        %v3155 = vadd.f32 %v3141, %v3150
        %v3156 = vadd.f32 %v3142, %v3152
        %s3157 = sld [smem:[#allocation8 + $0x6d]]
        %v3158 = vstv %s3157
        %v3159 = vmul.f32 %v3158, %v3108
        %v3160 = vmul.f32 %v3158, %v3109
        %3163 = vrot.lane.b32.xlu0 %v3159, 116
        %v3164 = vpop.permute.xlu0 %3163
        %3165 = vrot.lane.b32.xlu0 %v3160, 116
        %v3166 = vpop.permute.xlu0 %3165
        %v3169 = vadd.f32 %v3155, %v3164
        %v3170 = vadd.f32 %v3156, %v3166
        %s3171 = sld [smem:[#allocation8 + $0x6e]]
        %v3172 = vstv %s3171
        %v3173 = vmul.f32 %v3172, %v3108
        %v3174 = vmul.f32 %v3172, %v3109
        %3177 = vrot.lane.b32.xlu0 %v3173, 113
        %v3178 = vpop.permute.xlu0 %3177
        %3179 = vrot.lane.b32.xlu0 %v3174, 113
        %v3180 = vpop.permute.xlu0 %3179
        %v3183 = vadd.f32 %v3169, %v3178
        %v3184 = vadd.f32 %v3170, %v3180
        %s3185 = sld [smem:[#allocation8 + $0x6f]]
        %v3186 = vstv %s3185
        %v3187 = vmul.f32 %v3186, %v3108
        %v3188 = vmul.f32 %v3186, %v3109
        %3191 = vrot.lane.b32.xlu0 %v3187, 110
        %v3192 = vpop.permute.xlu0 %3191
        %3193 = vrot.lane.b32.xlu0 %v3188, 110
        %v3194 = vpop.permute.xlu0 %3193
        %v3197 = vadd.f32 %v3183, %v3192
        %v3198 = vadd.f32 %v3184, %v3194
        %s3199 = sld [smem:[#allocation8 + $0x70]]
        %v3200 = vld [vmem:[%s1380 + $0x6] sm:$0xff]
        %v3201 = vld [vmem:[%s1380 + $0xe] sm:$0xff]
        %v3202 = vstv %s3199
        %v3203 = vmul.f32 %v3202, %v3200
        %v3204 = vmul.f32 %v3202, %v3201
        %v3205 = vadd.f32 %v3197, %v3203
        %v3206 = vadd.f32 %v3198, %v3204
        %s3207 = sld [smem:[#allocation8 + $0x71]]
        %v3208 = vstv %s3207
        %v3209 = vmul.f32 %v3208, %v3200
        %v3210 = vmul.f32 %v3208, %v3201
        %3213 = vrot.lane.b32.xlu0 %v3209, 125
        %v3214 = vpop.permute.xlu0 %3213
        %3215 = vrot.lane.b32.xlu0 %v3210, 125
        %v3216 = vpop.permute.xlu0 %3215
        %v3219 = vadd.f32 %v3205, %v3214
        %v3220 = vadd.f32 %v3206, %v3216
        %s3221 = sld [smem:[#allocation8 + $0x72]]
        %v3222 = vstv %s3221
        %v3223 = vmul.f32 %v3222, %v3200
        %v3224 = vmul.f32 %v3222, %v3201
        %3227 = vrot.lane.b32.xlu0 %v3223, 122
        %v3228 = vpop.permute.xlu0 %3227
        %3229 = vrot.lane.b32.xlu0 %v3224, 122
        %v3230 = vpop.permute.xlu0 %3229
        %v3233 = vadd.f32 %v3219, %v3228
        %v3234 = vadd.f32 %v3220, %v3230
        %s3235 = sld [smem:[#allocation8 + $0x73]]
        %v3236 = vstv %s3235
        %v3237 = vmul.f32 %v3236, %v3200
        %v3238 = vmul.f32 %v3236, %v3201
        %3241 = vrot.lane.b32.xlu0 %v3237, 119
        %v3242 = vpop.permute.xlu0 %3241
        %3243 = vrot.lane.b32.xlu0 %v3238, 119
        %v3244 = vpop.permute.xlu0 %3243
        %v3247 = vadd.f32 %v3233, %v3242
        %v3248 = vadd.f32 %v3234, %v3244
        %s3249 = sld [smem:[#allocation8 + $0x74]]
        %v3250 = vstv %s3249
        %v3251 = vmul.f32 %v3250, %v3200
        %v3252 = vmul.f32 %v3250, %v3201
        %3255 = vrot.lane.b32.xlu0 %v3251, 116
        %v3256 = vpop.permute.xlu0 %3255
        %3257 = vrot.lane.b32.xlu0 %v3252, 116
        %v3258 = vpop.permute.xlu0 %3257
        %v3261 = vadd.f32 %v3247, %v3256
        %v3262 = vadd.f32 %v3248, %v3258
        %s3263 = sld [smem:[#allocation8 + $0x75]]
        %v3264 = vstv %s3263
        %v3265 = vmul.f32 %v3264, %v3200
        %v3266 = vmul.f32 %v3264, %v3201
        %3269 = vrot.lane.b32.xlu0 %v3265, 113
        %v3270 = vpop.permute.xlu0 %3269
        %3271 = vrot.lane.b32.xlu0 %v3266, 113
        %v3272 = vpop.permute.xlu0 %3271
        %v3275 = vadd.f32 %v3261, %v3270
        %v3276 = vadd.f32 %v3262, %v3272
        %s3277 = sld [smem:[#allocation8 + $0x76]]
        %v3278 = vstv %s3277
        %v3279 = vmul.f32 %v3278, %v3200
        %v3280 = vmul.f32 %v3278, %v3201
        %3283 = vrot.lane.b32.xlu0 %v3279, 110
        %v3284 = vpop.permute.xlu0 %3283
        %3285 = vrot.lane.b32.xlu0 %v3280, 110
        %v3286 = vpop.permute.xlu0 %3285
        %v3289 = vadd.f32 %v3275, %v3284
        %v3290 = vadd.f32 %v3276, %v3286
        %s3291 = sld [smem:[#allocation8 + $0x77]]
        %v3292 = vld [vmem:[%s1380 + $0x9] sm:$0xff]
        %v3293 = vld [vmem:[%s1380 + $0x11] sm:$0xff]
        %v3294 = vstv %s3291
        %v3295 = vmul.f32 %v3294, %v3292
        %v3296 = vmul.f32 %v3294, %v3293
        %v3297 = vadd.f32 %v3289, %v3295
        %v3298 = vadd.f32 %v3290, %v3296
        %s3299 = sld [smem:[#allocation8 + $0x78]]
        %v3300 = vstv %s3299
        %v3301 = vmul.f32 %v3300, %v3292
        %v3302 = vmul.f32 %v3300, %v3293
        %3305 = vrot.lane.b32.xlu0 %v3301, 125
        %v3306 = vpop.permute.xlu0 %3305
        %3307 = vrot.lane.b32.xlu0 %v3302, 125
        %v3308 = vpop.permute.xlu0 %3307
        %v3311 = vadd.f32 %v3297, %v3306
        %v3312 = vadd.f32 %v3298, %v3308
        %s3313 = sld [smem:[#allocation8 + $0x79]]
        %v3314 = vstv %s3313
        %v3315 = vmul.f32 %v3314, %v3292
        %v3316 = vmul.f32 %v3314, %v3293
        %3319 = vrot.lane.b32.xlu0 %v3315, 122
        %v3320 = vpop.permute.xlu0 %3319
        %3321 = vrot.lane.b32.xlu0 %v3316, 122
        %v3322 = vpop.permute.xlu0 %3321
        %v3325 = vadd.f32 %v3311, %v3320
        %v3326 = vadd.f32 %v3312, %v3322
        %s3327 = sld [smem:[#allocation8 + $0x7a]]
        %v3328 = vstv %s3327
        %v3329 = vmul.f32 %v3328, %v3292
        %v3330 = vmul.f32 %v3328, %v3293
        %3333 = vrot.lane.b32.xlu0 %v3329, 119
        %v3334 = vpop.permute.xlu0 %3333
        %3335 = vrot.lane.b32.xlu0 %v3330, 119
        %v3336 = vpop.permute.xlu0 %3335
        %v3339 = vadd.f32 %v3325, %v3334
        %v3340 = vadd.f32 %v3326, %v3336
        %s3341 = sld [smem:[#allocation8 + $0x7b]]
        %v3342 = vstv %s3341
        %v3343 = vmul.f32 %v3342, %v3292
        %v3344 = vmul.f32 %v3342, %v3293
        %3347 = vrot.lane.b32.xlu0 %v3343, 116
        %v3348 = vpop.permute.xlu0 %3347
        %3349 = vrot.lane.b32.xlu0 %v3344, 116
        %v3350 = vpop.permute.xlu0 %3349
        %v3353 = vadd.f32 %v3339, %v3348
        %v3354 = vadd.f32 %v3340, %v3350
        %s3355 = sld [smem:[#allocation8 + $0x7c]]
        %v3356 = vstv %s3355
        %v3357 = vmul.f32 %v3356, %v3292
        %v3358 = vmul.f32 %v3356, %v3293
        %3361 = vrot.lane.b32.xlu0 %v3357, 113
        %v3362 = vpop.permute.xlu0 %3361
        %3363 = vrot.lane.b32.xlu0 %v3358, 113
        %v3364 = vpop.permute.xlu0 %3363
        %v3367 = vadd.f32 %v3353, %v3362
        %v3368 = vadd.f32 %v3354, %v3364
        %s3369 = sld [smem:[#allocation8 + $0x7d]]
        %v3370 = vstv %s3369
        %v3371 = vmul.f32 %v3370, %v3292
        %v3372 = vmul.f32 %v3370, %v3293
        %3375 = vrot.lane.b32.xlu0 %v3371, 110
        %v3376 = vpop.permute.xlu0 %3375
        %3377 = vrot.lane.b32.xlu0 %v3372, 110
        %v3378 = vpop.permute.xlu0 %3377
        %v3381 = vadd.f32 %v3367, %v3376
        %v3382 = vadd.f32 %v3368, %v3378
        %s3383 = sld [smem:[#allocation8 + $0x7e]]
        %v3384 = vld [vmem:[%s1380 + $0xc] sm:$0xff]
        %v3385 = vld [vmem:[%s1380 + $0x14] sm:$0xff]
        %v3386 = vstv %s3383
        %v3387 = vmul.f32 %v3386, %v3384
        %v3388 = vmul.f32 %v3386, %v3385
        %v3389 = vadd.f32 %v3381, %v3387
        %v3390 = vadd.f32 %v3382, %v3388
        %s3391 = sld [smem:[#allocation8 + $0x7f]]
        %v3392 = vstv %s3391
        %v3393 = vmul.f32 %v3392, %v3384
        %v3394 = vmul.f32 %v3392, %v3385
        %3397 = vrot.lane.b32.xlu0 %v3393, 125
        %v3398 = vpop.permute.xlu0 %3397
        %3399 = vrot.lane.b32.xlu0 %v3394, 125
        %v3400 = vpop.permute.xlu0 %3399
        %v3403 = vadd.f32 %v3389, %v3398
        %v3404 = vadd.f32 %v3390, %v3400
        %s3405 = sld [smem:[#allocation8 + $0x80]]
        %v3406 = vstv %s3405
        %v3407 = vmul.f32 %v3406, %v3384
        %v3408 = vmul.f32 %v3406, %v3385
        %3411 = vrot.lane.b32.xlu0 %v3407, 122
        %v3412 = vpop.permute.xlu0 %3411
        %3413 = vrot.lane.b32.xlu0 %v3408, 122
        %v3414 = vpop.permute.xlu0 %3413
        %v3417 = vadd.f32 %v3403, %v3412
        %v3418 = vadd.f32 %v3404, %v3414
        %s3419 = sld [smem:[#allocation8 + $0x81]]
        %v3420 = vstv %s3419
        %v3421 = vmul.f32 %v3420, %v3384
        %v3422 = vmul.f32 %v3420, %v3385
        %3425 = vrot.lane.b32.xlu0 %v3421, 119
        %v3426 = vpop.permute.xlu0 %3425
        %3427 = vrot.lane.b32.xlu0 %v3422, 119
        %v3428 = vpop.permute.xlu0 %3427
        %v3431 = vadd.f32 %v3417, %v3426
        %v3432 = vadd.f32 %v3418, %v3428
        %s3433 = sld [smem:[#allocation8 + $0x82]]
        %v3434 = vstv %s3433
        %v3435 = vmul.f32 %v3434, %v3384
        %v3436 = vmul.f32 %v3434, %v3385
        %3439 = vrot.lane.b32.xlu0 %v3435, 116
        %v3440 = vpop.permute.xlu0 %3439
        %3441 = vrot.lane.b32.xlu0 %v3436, 116
        %v3442 = vpop.permute.xlu0 %3441
        %v3445 = vadd.f32 %v3431, %v3440
        %v3446 = vadd.f32 %v3432, %v3442
        %s3447 = sld [smem:[#allocation8 + $0x83]]
        %v3448 = vstv %s3447
        %v3449 = vmul.f32 %v3448, %v3384
        %v3450 = vmul.f32 %v3448, %v3385
        %3453 = vrot.lane.b32.xlu0 %v3449, 113
        %v3454 = vpop.permute.xlu0 %3453
        %3455 = vrot.lane.b32.xlu0 %v3450, 113
        %v3456 = vpop.permute.xlu0 %3455
        %v3459 = vadd.f32 %v3445, %v3454
        %v3460 = vadd.f32 %v3446, %v3456
        %s3461 = sld [smem:[#allocation8 + $0x84]]
        %v3462 = vstv %s3461
        %v3463 = vmul.f32 %v3462, %v3384
        %v3464 = vmul.f32 %v3462, %v3385
        %3467 = vrot.lane.b32.xlu0 %v3463, 110
        %v3468 = vpop.permute.xlu0 %3467
        %3469 = vrot.lane.b32.xlu0 %v3464, 110
        %v3470 = vpop.permute.xlu0 %3469
        %v3473 = vadd.f32 %v3459, %v3468
        %v3474 = vadd.f32 %v3460, %v3470
        %s3475 = sld [smem:[#allocation8 + $0x85]]
        %v3476 = vld [vmem:[%s1380 + $0xf] sm:$0xff]
        %v3477 = vld [vmem:[%s1380 + $0x17] sm:$0xff]
        %v3478 = vstv %s3475
        %v3479 = vmul.f32 %v3478, %v3476
        %v3480 = vmul.f32 %v3478, %v3477
        %v3481 = vadd.f32 %v3473, %v3479
        %v3482 = vadd.f32 %v3474, %v3480
        %s3483 = sld [smem:[#allocation8 + $0x86]]
        %v3484 = vstv %s3483
        %v3485 = vmul.f32 %v3484, %v3476
        %v3486 = vmul.f32 %v3484, %v3477
        %3489 = vrot.lane.b32.xlu0 %v3485, 125
        %v3490 = vpop.permute.xlu0 %3489
        %3491 = vrot.lane.b32.xlu0 %v3486, 125
        %v3492 = vpop.permute.xlu0 %3491
        %v3495 = vadd.f32 %v3481, %v3490
        %v3496 = vadd.f32 %v3482, %v3492
        %s3497 = sld [smem:[#allocation8 + $0x87]]
        %v3498 = vstv %s3497
        %v3499 = vmul.f32 %v3498, %v3476
        %v3500 = vmul.f32 %v3498, %v3477
        %3503 = vrot.lane.b32.xlu0 %v3499, 122
        %v3504 = vpop.permute.xlu0 %3503
        %3505 = vrot.lane.b32.xlu0 %v3500, 122
        %v3506 = vpop.permute.xlu0 %3505
        %v3509 = vadd.f32 %v3495, %v3504
        %v3510 = vadd.f32 %v3496, %v3506
        %s3511 = sld [smem:[#allocation8 + $0x88]]
        %v3512 = vstv %s3511
        %v3513 = vmul.f32 %v3512, %v3476
        %v3514 = vmul.f32 %v3512, %v3477
        %3517 = vrot.lane.b32.xlu0 %v3513, 119
        %v3518 = vpop.permute.xlu0 %3517
        %3519 = vrot.lane.b32.xlu0 %v3514, 119
        %v3520 = vpop.permute.xlu0 %3519
        %v3523 = vadd.f32 %v3509, %v3518
        %v3524 = vadd.f32 %v3510, %v3520
        %s3525 = sld [smem:[#allocation8 + $0x89]]
        %v3526 = vstv %s3525
        %v3527 = vmul.f32 %v3526, %v3476
        %v3528 = vmul.f32 %v3526, %v3477
        %3531 = vrot.lane.b32.xlu0 %v3527, 116
        %v3532 = vpop.permute.xlu0 %3531
        %3533 = vrot.lane.b32.xlu0 %v3528, 116
        %v3534 = vpop.permute.xlu0 %3533
        %v3537 = vadd.f32 %v3523, %v3532
        %v3538 = vadd.f32 %v3524, %v3534
        %s3539 = sld [smem:[#allocation8 + $0x8a]]
        %v3540 = vstv %s3539
        %v3541 = vmul.f32 %v3540, %v3476
        %v3542 = vmul.f32 %v3540, %v3477
        %3545 = vrot.lane.b32.xlu0 %v3541, 113
        %v3546 = vpop.permute.xlu0 %3545
        %3547 = vrot.lane.b32.xlu0 %v3542, 113
        %v3548 = vpop.permute.xlu0 %3547
        %v3551 = vadd.f32 %v3537, %v3546
        %v3552 = vadd.f32 %v3538, %v3548
        %s3553 = sld [smem:[#allocation8 + $0x8b]]
        %v3554 = vstv %s3553
        %v3555 = vmul.f32 %v3554, %v3476
        %v3556 = vmul.f32 %v3554, %v3477
        %3559 = vrot.lane.b32.xlu0 %v3555, 110
        %v3560 = vpop.permute.xlu0 %3559
        %3561 = vrot.lane.b32.xlu0 %v3556, 110
        %v3562 = vpop.permute.xlu0 %3561
        %v3565 = vadd.f32 %v3551, %v3560
        %v3566 = vadd.f32 %v3552, %v3562
        %s3567 = sld [smem:[#allocation8 + $0x8c]]
        %v3568 = vld [vmem:[%s1380 + $0x12] sm:$0xff]
        %v3569 = vld [vmem:[%s1380 + $0x1a] sm:$0xff]
        %v3570 = vstv %s3567
        %v3571 = vmul.f32 %v3570, %v3568
        %v3572 = vmul.f32 %v3570, %v3569
        %v3573 = vadd.f32 %v3565, %v3571
        %v3574 = vadd.f32 %v3566, %v3572
        %s3575 = sld [smem:[#allocation8 + $0x8d]]
        %v3576 = vstv %s3575
        %v3577 = vmul.f32 %v3576, %v3568
        %v3578 = vmul.f32 %v3576, %v3569
        %3581 = vrot.lane.b32.xlu0 %v3577, 125
        %v3582 = vpop.permute.xlu0 %3581
        %3583 = vrot.lane.b32.xlu0 %v3578, 125
        %v3584 = vpop.permute.xlu0 %3583
        %v3587 = vadd.f32 %v3573, %v3582
        %v3588 = vadd.f32 %v3574, %v3584
        %s3589 = sld [smem:[#allocation8 + $0x8e]]
        %v3590 = vstv %s3589
        %v3591 = vmul.f32 %v3590, %v3568
        %v3592 = vmul.f32 %v3590, %v3569
        %3595 = vrot.lane.b32.xlu0 %v3591, 122
        %v3596 = vpop.permute.xlu0 %3595
        %3597 = vrot.lane.b32.xlu0 %v3592, 122
        %v3598 = vpop.permute.xlu0 %3597
        %v3601 = vadd.f32 %v3587, %v3596
        %v3602 = vadd.f32 %v3588, %v3598
        %s3603 = sld [smem:[#allocation8 + $0x8f]]
        %v3604 = vstv %s3603
        %v3605 = vmul.f32 %v3604, %v3568
        %v3606 = vmul.f32 %v3604, %v3569
        %3609 = vrot.lane.b32.xlu0 %v3605, 119
        %v3610 = vpop.permute.xlu0 %3609
        %3611 = vrot.lane.b32.xlu0 %v3606, 119
        %v3612 = vpop.permute.xlu0 %3611
        %v3615 = vadd.f32 %v3601, %v3610
        %v3616 = vadd.f32 %v3602, %v3612
        %s3617 = sld [smem:[#allocation8 + $0x90]]
        %v3618 = vstv %s3617
        %v3619 = vmul.f32 %v3618, %v3568
        %v3620 = vmul.f32 %v3618, %v3569
        %3623 = vrot.lane.b32.xlu0 %v3619, 116
        %v3624 = vpop.permute.xlu0 %3623
        %3625 = vrot.lane.b32.xlu0 %v3620, 116
        %v3626 = vpop.permute.xlu0 %3625
        %v3629 = vadd.f32 %v3615, %v3624
        %v3630 = vadd.f32 %v3616, %v3626
        %s3631 = sld [smem:[#allocation8 + $0x91]]
        %v3632 = vstv %s3631
        %v3633 = vmul.f32 %v3632, %v3568
        %v3634 = vmul.f32 %v3632, %v3569
        %3637 = vrot.lane.b32.xlu0 %v3633, 113
        %v3638 = vpop.permute.xlu0 %3637
        %3639 = vrot.lane.b32.xlu0 %v3634, 113
        %v3640 = vpop.permute.xlu0 %3639
        %v3643 = vadd.f32 %v3629, %v3638
        %v3644 = vadd.f32 %v3630, %v3640
        %s3645 = sld [smem:[#allocation8 + $0x92]]
        %v3646 = vstv %s3645
        %v3647 = vmul.f32 %v3646, %v3568
        %v3648 = vmul.f32 %v3646, %v3569
        %3651 = vrot.lane.b32.xlu0 %v3647, 110
        %v3652 = vpop.permute.xlu0 %3651
        %3653 = vrot.lane.b32.xlu0 %v3648, 110
        %v3654 = vpop.permute.xlu0 %3653
        %v3657 = vadd.f32 %v3643, %v3652
        %v3658 = vadd.f32 %v3644, %v3654
        %s3659 = sld [smem:[#allocation9 + $0x2]]
        %v3660 = vstv %s3659
        %v3661 = vadd.f32 %v3657, %v3660
        %v3662 = vadd.f32 %v3658, %v3660
        %s3663 = sld [smem:[#allocation8 + $0x93]]
        %v3664 = vld [vmem:[%s1716] sm:$0xff]
        %v3665 = vld [vmem:[%s1716 + $0x8] sm:$0xff]
        %v3666 = vstv %s3663
        %v3667 = vmul.f32 %v3666, %v3664
        %v3668 = vmul.f32 %v3666, %v3665
        %v3669 = vadd.f32 %v3667, 0.0
        %v3670 = vadd.f32 %v3668, 0.0
        %s3671 = sld [smem:[#allocation8 + $0x94]]
        %v3672 = vstv %s3671
        %v3673 = vmul.f32 %v3672, %v3664
        %v3674 = vmul.f32 %v3672, %v3665
        %3677 = vrot.lane.b32.xlu0 %v3673, 125
        %v3678 = vpop.permute.xlu0 %3677
        %3679 = vrot.lane.b32.xlu0 %v3674, 125
        %v3680 = vpop.permute.xlu0 %3679
        %v3683 = vadd.f32 %v3669, %v3678
        %v3684 = vadd.f32 %v3670, %v3680
        %s3685 = sld [smem:[#allocation8 + $0x95]]
        %v3686 = vstv %s3685
        %v3687 = vmul.f32 %v3686, %v3664
        %v3688 = vmul.f32 %v3686, %v3665
        %3691 = vrot.lane.b32.xlu0 %v3687, 122
        %v3692 = vpop.permute.xlu0 %3691
        %3693 = vrot.lane.b32.xlu0 %v3688, 122
        %v3694 = vpop.permute.xlu0 %3693
        %v3697 = vadd.f32 %v3683, %v3692
        %v3698 = vadd.f32 %v3684, %v3694
        %s3699 = sld [smem:[#allocation8 + $0x96]]
        %v3700 = vstv %s3699
        %v3701 = vmul.f32 %v3700, %v3664
        %v3702 = vmul.f32 %v3700, %v3665
        %3705 = vrot.lane.b32.xlu0 %v3701, 119
        %v3706 = vpop.permute.xlu0 %3705
        %3707 = vrot.lane.b32.xlu0 %v3702, 119
        %v3708 = vpop.permute.xlu0 %3707
        %v3711 = vadd.f32 %v3697, %v3706
        %v3712 = vadd.f32 %v3698, %v3708
        %s3713 = sld [smem:[#allocation8 + $0x97]]
        %v3714 = vstv %s3713
        %v3715 = vmul.f32 %v3714, %v3664
        %v3716 = vmul.f32 %v3714, %v3665
        %3719 = vrot.lane.b32.xlu0 %v3715, 116
        %v3720 = vpop.permute.xlu0 %3719
        %3721 = vrot.lane.b32.xlu0 %v3716, 116
        %v3722 = vpop.permute.xlu0 %3721
        %v3725 = vadd.f32 %v3711, %v3720
        %v3726 = vadd.f32 %v3712, %v3722
        %s3727 = sld [smem:[#allocation8 + $0x98]]
        %v3728 = vstv %s3727
        %v3729 = vmul.f32 %v3728, %v3664
        %v3730 = vmul.f32 %v3728, %v3665
        %3733 = vrot.lane.b32.xlu0 %v3729, 113
        %v3734 = vpop.permute.xlu0 %3733
        %3735 = vrot.lane.b32.xlu0 %v3730, 113
        %v3736 = vpop.permute.xlu0 %3735
        %v3739 = vadd.f32 %v3725, %v3734
        %v3740 = vadd.f32 %v3726, %v3736
        %s3741 = sld [smem:[#allocation8 + $0x99]]
        %v3742 = vstv %s3741
        %v3743 = vmul.f32 %v3742, %v3664
        %v3744 = vmul.f32 %v3742, %v3665
        %3747 = vrot.lane.b32.xlu0 %v3743, 110
        %v3748 = vpop.permute.xlu0 %3747
        %3749 = vrot.lane.b32.xlu0 %v3744, 110
        %v3750 = vpop.permute.xlu0 %3749
        %v3753 = vadd.f32 %v3739, %v3748
        %v3754 = vadd.f32 %v3740, %v3750
        %s3755 = sld [smem:[#allocation8 + $0x9a]]
        %v3756 = vld [vmem:[%s1716 + $0x3] sm:$0xff]
        %v3757 = vld [vmem:[%s1716 + $0xb] sm:$0xff]
        %v3758 = vstv %s3755
        %v3759 = vmul.f32 %v3758, %v3756
        %v3760 = vmul.f32 %v3758, %v3757
        %v3761 = vadd.f32 %v3753, %v3759
        %v3762 = vadd.f32 %v3754, %v3760
        %s3763 = sld [smem:[#allocation8 + $0x9b]]
        %v3764 = vstv %s3763
        %v3765 = vmul.f32 %v3764, %v3756
        %v3766 = vmul.f32 %v3764, %v3757
        %3769 = vrot.lane.b32.xlu0 %v3765, 125
        %v3770 = vpop.permute.xlu0 %3769
        %3771 = vrot.lane.b32.xlu0 %v3766, 125
        %v3772 = vpop.permute.xlu0 %3771
        %v3775 = vadd.f32 %v3761, %v3770
        %v3776 = vadd.f32 %v3762, %v3772
        %s3777 = sld [smem:[#allocation8 + $0x9c]]
        %v3778 = vstv %s3777
        %v3779 = vmul.f32 %v3778, %v3756
        %v3780 = vmul.f32 %v3778, %v3757
        %3783 = vrot.lane.b32.xlu0 %v3779, 122
        %v3784 = vpop.permute.xlu0 %3783
        %3785 = vrot.lane.b32.xlu0 %v3780, 122
        %v3786 = vpop.permute.xlu0 %3785
        %v3789 = vadd.f32 %v3775, %v3784
        %v3790 = vadd.f32 %v3776, %v3786
        %s3791 = sld [smem:[#allocation8 + $0x9d]]
        %v3792 = vstv %s3791
        %v3793 = vmul.f32 %v3792, %v3756
        %v3794 = vmul.f32 %v3792, %v3757
        %3797 = vrot.lane.b32.xlu0 %v3793, 119
        %v3798 = vpop.permute.xlu0 %3797
        %3799 = vrot.lane.b32.xlu0 %v3794, 119
        %v3800 = vpop.permute.xlu0 %3799
        %v3803 = vadd.f32 %v3789, %v3798
        %v3804 = vadd.f32 %v3790, %v3800
        %s3805 = sld [smem:[#allocation8 + $0x9e]]
        %v3806 = vstv %s3805
        %v3807 = vmul.f32 %v3806, %v3756
        %v3808 = vmul.f32 %v3806, %v3757
        %3811 = vrot.lane.b32.xlu0 %v3807, 116
        %v3812 = vpop.permute.xlu0 %3811
        %3813 = vrot.lane.b32.xlu0 %v3808, 116
        %v3814 = vpop.permute.xlu0 %3813
        %v3817 = vadd.f32 %v3803, %v3812
        %v3818 = vadd.f32 %v3804, %v3814
        %s3819 = sld [smem:[#allocation8 + $0x9f]]
        %v3820 = vstv %s3819
        %v3821 = vmul.f32 %v3820, %v3756
        %v3822 = vmul.f32 %v3820, %v3757
        %3825 = vrot.lane.b32.xlu0 %v3821, 113
        %v3826 = vpop.permute.xlu0 %3825
        %3827 = vrot.lane.b32.xlu0 %v3822, 113
        %v3828 = vpop.permute.xlu0 %3827
        %v3831 = vadd.f32 %v3817, %v3826
        %v3832 = vadd.f32 %v3818, %v3828
        %s3833 = sld [smem:[#allocation8 + $0xa0]]
        %v3834 = vstv %s3833
        %v3835 = vmul.f32 %v3834, %v3756
        %v3836 = vmul.f32 %v3834, %v3757
        %3839 = vrot.lane.b32.xlu0 %v3835, 110
        %v3840 = vpop.permute.xlu0 %3839
        %3841 = vrot.lane.b32.xlu0 %v3836, 110
        %v3842 = vpop.permute.xlu0 %3841
        %v3845 = vadd.f32 %v3831, %v3840
        %v3846 = vadd.f32 %v3832, %v3842
        %s3847 = sld [smem:[#allocation8 + $0xa1]]
        %v3848 = vld [vmem:[%s1716 + $0x6] sm:$0xff]
        %v3849 = vld [vmem:[%s1716 + $0xe] sm:$0xff]
        %v3850 = vstv %s3847
        %v3851 = vmul.f32 %v3850, %v3848
        %v3852 = vmul.f32 %v3850, %v3849
        %v3853 = vadd.f32 %v3845, %v3851
        %v3854 = vadd.f32 %v3846, %v3852
        %s3855 = sld [smem:[#allocation8 + $0xa2]]
        %v3856 = vstv %s3855
        %v3857 = vmul.f32 %v3856, %v3848
        %v3858 = vmul.f32 %v3856, %v3849
        %3861 = vrot.lane.b32.xlu0 %v3857, 125
        %v3862 = vpop.permute.xlu0 %3861
        %3863 = vrot.lane.b32.xlu0 %v3858, 125
        %v3864 = vpop.permute.xlu0 %3863
        %v3867 = vadd.f32 %v3853, %v3862
        %v3868 = vadd.f32 %v3854, %v3864
        %s3869 = sld [smem:[#allocation8 + $0xa3]]
        %v3870 = vstv %s3869
        %v3871 = vmul.f32 %v3870, %v3848
        %v3872 = vmul.f32 %v3870, %v3849
        %3875 = vrot.lane.b32.xlu0 %v3871, 122
        %v3876 = vpop.permute.xlu0 %3875
        %3877 = vrot.lane.b32.xlu0 %v3872, 122
        %v3878 = vpop.permute.xlu0 %3877
        %v3881 = vadd.f32 %v3867, %v3876
        %v3882 = vadd.f32 %v3868, %v3878
        %s3883 = sld [smem:[#allocation8 + $0xa4]]
        %v3884 = vstv %s3883
        %v3885 = vmul.f32 %v3884, %v3848
        %v3886 = vmul.f32 %v3884, %v3849
        %3889 = vrot.lane.b32.xlu0 %v3885, 119
        %v3890 = vpop.permute.xlu0 %3889
        %3891 = vrot.lane.b32.xlu0 %v3886, 119
        %v3892 = vpop.permute.xlu0 %3891
        %v3895 = vadd.f32 %v3881, %v3890
        %v3896 = vadd.f32 %v3882, %v3892
        %s3897 = sld [smem:[#allocation8 + $0xa5]]
        %v3898 = vstv %s3897
        %v3899 = vmul.f32 %v3898, %v3848
        %v3900 = vmul.f32 %v3898, %v3849
        %3903 = vrot.lane.b32.xlu0 %v3899, 116
        %v3904 = vpop.permute.xlu0 %3903
        %3905 = vrot.lane.b32.xlu0 %v3900, 116
        %v3906 = vpop.permute.xlu0 %3905
        %v3909 = vadd.f32 %v3895, %v3904
        %v3910 = vadd.f32 %v3896, %v3906
        %s3911 = sld [smem:[#allocation8 + $0xa6]]
        %v3912 = vstv %s3911
        %v3913 = vmul.f32 %v3912, %v3848
        %v3914 = vmul.f32 %v3912, %v3849
        %3917 = vrot.lane.b32.xlu0 %v3913, 113
        %v3918 = vpop.permute.xlu0 %3917
        %3919 = vrot.lane.b32.xlu0 %v3914, 113
        %v3920 = vpop.permute.xlu0 %3919
        %v3923 = vadd.f32 %v3909, %v3918
        %v3924 = vadd.f32 %v3910, %v3920
        %s3925 = sld [smem:[#allocation8 + $0xa7]]
        %v3926 = vstv %s3925
        %v3927 = vmul.f32 %v3926, %v3848
        %v3928 = vmul.f32 %v3926, %v3849
        %3931 = vrot.lane.b32.xlu0 %v3927, 110
        %v3932 = vpop.permute.xlu0 %3931
        %3933 = vrot.lane.b32.xlu0 %v3928, 110
        %v3934 = vpop.permute.xlu0 %3933
        %v3937 = vadd.f32 %v3923, %v3932
        %v3938 = vadd.f32 %v3924, %v3934
        %s3939 = sld [smem:[#allocation8 + $0xa8]]
        %v3940 = vld [vmem:[%s1716 + $0x9] sm:$0xff]
        %v3941 = vld [vmem:[%s1716 + $0x11] sm:$0xff]
        %v3942 = vstv %s3939
        %v3943 = vmul.f32 %v3942, %v3940
        %v3944 = vmul.f32 %v3942, %v3941
        %v3945 = vadd.f32 %v3937, %v3943
        %v3946 = vadd.f32 %v3938, %v3944
        %s3947 = sld [smem:[#allocation8 + $0xa9]]
        %v3948 = vstv %s3947
        %v3949 = vmul.f32 %v3948, %v3940
        %v3950 = vmul.f32 %v3948, %v3941
        %3953 = vrot.lane.b32.xlu0 %v3949, 125
        %v3954 = vpop.permute.xlu0 %3953
        %3955 = vrot.lane.b32.xlu0 %v3950, 125
        %v3956 = vpop.permute.xlu0 %3955
        %v3959 = vadd.f32 %v3945, %v3954
        %v3960 = vadd.f32 %v3946, %v3956
        %s3961 = sld [smem:[#allocation8 + $0xaa]]
        %v3962 = vstv %s3961
        %v3963 = vmul.f32 %v3962, %v3940
        %v3964 = vmul.f32 %v3962, %v3941
        %3967 = vrot.lane.b32.xlu0 %v3963, 122
        %v3968 = vpop.permute.xlu0 %3967
        %3969 = vrot.lane.b32.xlu0 %v3964, 122
        %v3970 = vpop.permute.xlu0 %3969
        %v3973 = vadd.f32 %v3959, %v3968
        %v3974 = vadd.f32 %v3960, %v3970
        %s3975 = sld [smem:[#allocation8 + $0xab]]
        %v3976 = vstv %s3975
        %v3977 = vmul.f32 %v3976, %v3940
        %v3978 = vmul.f32 %v3976, %v3941
        %3981 = vrot.lane.b32.xlu0 %v3977, 119
        %v3982 = vpop.permute.xlu0 %3981
        %3983 = vrot.lane.b32.xlu0 %v3978, 119
        %v3984 = vpop.permute.xlu0 %3983
        %v3987 = vadd.f32 %v3973, %v3982
        %v3988 = vadd.f32 %v3974, %v3984
        %s3989 = sld [smem:[#allocation8 + $0xac]]
        %v3990 = vstv %s3989
        %v3991 = vmul.f32 %v3990, %v3940
        %v3992 = vmul.f32 %v3990, %v3941
        %3995 = vrot.lane.b32.xlu0 %v3991, 116
        %v3996 = vpop.permute.xlu0 %3995
        %3997 = vrot.lane.b32.xlu0 %v3992, 116
        %v3998 = vpop.permute.xlu0 %3997
        %v4001 = vadd.f32 %v3987, %v3996
        %v4002 = vadd.f32 %v3988, %v3998
        %s4003 = sld [smem:[#allocation8 + $0xad]]
        %v4004 = vstv %s4003
        %v4005 = vmul.f32 %v4004, %v3940
        %v4006 = vmul.f32 %v4004, %v3941
        %4009 = vrot.lane.b32.xlu0 %v4005, 113
        %v4010 = vpop.permute.xlu0 %4009
        %4011 = vrot.lane.b32.xlu0 %v4006, 113
        %v4012 = vpop.permute.xlu0 %4011
        %v4015 = vadd.f32 %v4001, %v4010
        %v4016 = vadd.f32 %v4002, %v4012
        %s4017 = sld [smem:[#allocation8 + $0xae]]
        %v4018 = vstv %s4017
        %v4019 = vmul.f32 %v4018, %v3940
        %v4020 = vmul.f32 %v4018, %v3941
        %4023 = vrot.lane.b32.xlu0 %v4019, 110
        %v4024 = vpop.permute.xlu0 %4023
        %4025 = vrot.lane.b32.xlu0 %v4020, 110
        %v4026 = vpop.permute.xlu0 %4025
        %v4029 = vadd.f32 %v4015, %v4024
        %v4030 = vadd.f32 %v4016, %v4026
        %s4031 = sld [smem:[#allocation8 + $0xaf]]
        %v4032 = vld [vmem:[%s1716 + $0xc] sm:$0xff]
        %v4033 = vld [vmem:[%s1716 + $0x14] sm:$0xff]
        %v4034 = vstv %s4031
        %v4035 = vmul.f32 %v4034, %v4032
        %v4036 = vmul.f32 %v4034, %v4033
        %v4037 = vadd.f32 %v4029, %v4035
        %v4038 = vadd.f32 %v4030, %v4036
        %s4039 = sld [smem:[#allocation8 + $0xb0]]
        %v4040 = vstv %s4039
        %v4041 = vmul.f32 %v4040, %v4032
        %v4042 = vmul.f32 %v4040, %v4033
        %4045 = vrot.lane.b32.xlu0 %v4041, 125
        %v4046 = vpop.permute.xlu0 %4045
        %4047 = vrot.lane.b32.xlu0 %v4042, 125
        %v4048 = vpop.permute.xlu0 %4047
        %v4051 = vadd.f32 %v4037, %v4046
        %v4052 = vadd.f32 %v4038, %v4048
        %s4053 = sld [smem:[#allocation8 + $0xb1]]
        %v4054 = vstv %s4053
        %v4055 = vmul.f32 %v4054, %v4032
        %v4056 = vmul.f32 %v4054, %v4033
        %4059 = vrot.lane.b32.xlu0 %v4055, 122
        %v4060 = vpop.permute.xlu0 %4059
        %4061 = vrot.lane.b32.xlu0 %v4056, 122
        %v4062 = vpop.permute.xlu0 %4061
        %v4065 = vadd.f32 %v4051, %v4060
        %v4066 = vadd.f32 %v4052, %v4062
        %s4067 = sld [smem:[#allocation8 + $0xb2]]
        %v4068 = vstv %s4067
        %v4069 = vmul.f32 %v4068, %v4032
        %v4070 = vmul.f32 %v4068, %v4033
        %4073 = vrot.lane.b32.xlu0 %v4069, 119
        %v4074 = vpop.permute.xlu0 %4073
        %4075 = vrot.lane.b32.xlu0 %v4070, 119
        %v4076 = vpop.permute.xlu0 %4075
        %v4079 = vadd.f32 %v4065, %v4074
        %v4080 = vadd.f32 %v4066, %v4076
        %s4081 = sld [smem:[#allocation8 + $0xb3]]
        %v4082 = vstv %s4081
        %v4083 = vmul.f32 %v4082, %v4032
        %v4084 = vmul.f32 %v4082, %v4033
        %4087 = vrot.lane.b32.xlu0 %v4083, 116
        %v4088 = vpop.permute.xlu0 %4087
        %4089 = vrot.lane.b32.xlu0 %v4084, 116
        %v4090 = vpop.permute.xlu0 %4089
        %v4093 = vadd.f32 %v4079, %v4088
        %v4094 = vadd.f32 %v4080, %v4090
        %s4095 = sld [smem:[#allocation8 + $0xb4]]
        %v4096 = vstv %s4095
        %v4097 = vmul.f32 %v4096, %v4032
        %v4098 = vmul.f32 %v4096, %v4033
        %4101 = vrot.lane.b32.xlu0 %v4097, 113
        %v4102 = vpop.permute.xlu0 %4101
        %4103 = vrot.lane.b32.xlu0 %v4098, 113
        %v4104 = vpop.permute.xlu0 %4103
        %v4107 = vadd.f32 %v4093, %v4102
        %v4108 = vadd.f32 %v4094, %v4104
        %s4109 = sld [smem:[#allocation8 + $0xb5]]
        %v4110 = vstv %s4109
        %v4111 = vmul.f32 %v4110, %v4032
        %v4112 = vmul.f32 %v4110, %v4033
        %4115 = vrot.lane.b32.xlu0 %v4111, 110
        %v4116 = vpop.permute.xlu0 %4115
        %4117 = vrot.lane.b32.xlu0 %v4112, 110
        %v4118 = vpop.permute.xlu0 %4117
        %v4121 = vadd.f32 %v4107, %v4116
        %v4122 = vadd.f32 %v4108, %v4118
        %s4123 = sld [smem:[#allocation8 + $0xb6]]
        %v4124 = vld [vmem:[%s1716 + $0xf] sm:$0xff]
        %v4125 = vld [vmem:[%s1716 + $0x17] sm:$0xff]
        %v4126 = vstv %s4123
        %v4127 = vmul.f32 %v4126, %v4124
        %v4128 = vmul.f32 %v4126, %v4125
        %v4129 = vadd.f32 %v4121, %v4127
        %v4130 = vadd.f32 %v4122, %v4128
        %s4131 = sld [smem:[#allocation8 + $0xb7]]
        %v4132 = vstv %s4131
        %v4133 = vmul.f32 %v4132, %v4124
        %v4134 = vmul.f32 %v4132, %v4125
        %4137 = vrot.lane.b32.xlu0 %v4133, 125
        %v4138 = vpop.permute.xlu0 %4137
        %4139 = vrot.lane.b32.xlu0 %v4134, 125
        %v4140 = vpop.permute.xlu0 %4139
        %v4143 = vadd.f32 %v4129, %v4138
        %v4144 = vadd.f32 %v4130, %v4140
        %s4145 = sld [smem:[#allocation8 + $0xb8]]
        %v4146 = vstv %s4145
        %v4147 = vmul.f32 %v4146, %v4124
        %v4148 = vmul.f32 %v4146, %v4125
        %4151 = vrot.lane.b32.xlu0 %v4147, 122
        %v4152 = vpop.permute.xlu0 %4151
        %4153 = vrot.lane.b32.xlu0 %v4148, 122
        %v4154 = vpop.permute.xlu0 %4153
        %v4157 = vadd.f32 %v4143, %v4152
        %v4158 = vadd.f32 %v4144, %v4154
        %s4159 = sld [smem:[#allocation8 + $0xb9]]
        %v4160 = vstv %s4159
        %v4161 = vmul.f32 %v4160, %v4124
        %v4162 = vmul.f32 %v4160, %v4125
        %4165 = vrot.lane.b32.xlu0 %v4161, 119
        %v4166 = vpop.permute.xlu0 %4165
        %4167 = vrot.lane.b32.xlu0 %v4162, 119
        %v4168 = vpop.permute.xlu0 %4167
        %v4171 = vadd.f32 %v4157, %v4166
        %v4172 = vadd.f32 %v4158, %v4168
        %s4173 = sld [smem:[#allocation8 + $0xba]]
        %v4174 = vstv %s4173
        %v4175 = vmul.f32 %v4174, %v4124
        %v4176 = vmul.f32 %v4174, %v4125
        %4179 = vrot.lane.b32.xlu0 %v4175, 116
        %v4180 = vpop.permute.xlu0 %4179
        %4181 = vrot.lane.b32.xlu0 %v4176, 116
        %v4182 = vpop.permute.xlu0 %4181
        %v4185 = vadd.f32 %v4171, %v4180
        %v4186 = vadd.f32 %v4172, %v4182
        %s4187 = sld [smem:[#allocation8 + $0xbb]]
        %v4188 = vstv %s4187
        %v4189 = vmul.f32 %v4188, %v4124
        %v4190 = vmul.f32 %v4188, %v4125
        %4193 = vrot.lane.b32.xlu0 %v4189, 113
        %v4194 = vpop.permute.xlu0 %4193
        %4195 = vrot.lane.b32.xlu0 %v4190, 113
        %v4196 = vpop.permute.xlu0 %4195
        %v4199 = vadd.f32 %v4185, %v4194
        %v4200 = vadd.f32 %v4186, %v4196
        %s4201 = sld [smem:[#allocation8 + $0xbc]]
        %v4202 = vstv %s4201
        %v4203 = vmul.f32 %v4202, %v4124
        %v4204 = vmul.f32 %v4202, %v4125
        %4207 = vrot.lane.b32.xlu0 %v4203, 110
        %v4208 = vpop.permute.xlu0 %4207
        %4209 = vrot.lane.b32.xlu0 %v4204, 110
        %v4210 = vpop.permute.xlu0 %4209
        %v4213 = vadd.f32 %v4199, %v4208
        %v4214 = vadd.f32 %v4200, %v4210
        %s4215 = sld [smem:[#allocation8 + $0xbd]]
        %v4216 = vld [vmem:[%s1716 + $0x12] sm:$0xff]
        %v4217 = vld [vmem:[%s1716 + $0x1a] sm:$0xff]
        %v4218 = vstv %s4215
        %v4219 = vmul.f32 %v4218, %v4216
        %v4220 = vmul.f32 %v4218, %v4217
        %v4221 = vadd.f32 %v4213, %v4219
        %v4222 = vadd.f32 %v4214, %v4220
        %s4223 = sld [smem:[#allocation8 + $0xbe]]
        %v4224 = vstv %s4223
        %v4225 = vmul.f32 %v4224, %v4216
        %v4226 = vmul.f32 %v4224, %v4217
        %4229 = vrot.lane.b32.xlu0 %v4225, 125
        %v4230 = vpop.permute.xlu0 %4229
        %4231 = vrot.lane.b32.xlu0 %v4226, 125
        %v4232 = vpop.permute.xlu0 %4231
        %v4235 = vadd.f32 %v4221, %v4230
        %v4236 = vadd.f32 %v4222, %v4232
        %s4237 = sld [smem:[#allocation8 + $0xbf]]
        %v4238 = vstv %s4237
        %v4239 = vmul.f32 %v4238, %v4216
        %v4240 = vmul.f32 %v4238, %v4217
        %4243 = vrot.lane.b32.xlu0 %v4239, 122
        %v4244 = vpop.permute.xlu0 %4243
        %4245 = vrot.lane.b32.xlu0 %v4240, 122
        %v4246 = vpop.permute.xlu0 %4245
        %v4249 = vadd.f32 %v4235, %v4244
        %v4250 = vadd.f32 %v4236, %v4246
        %s4251 = sld [smem:[#allocation8 + $0xc0]]
        %v4252 = vstv %s4251
        %v4253 = vmul.f32 %v4252, %v4216
        %v4254 = vmul.f32 %v4252, %v4217
        %4257 = vrot.lane.b32.xlu0 %v4253, 119
        %v4258 = vpop.permute.xlu0 %4257
        %4259 = vrot.lane.b32.xlu0 %v4254, 119
        %v4260 = vpop.permute.xlu0 %4259
        %v4263 = vadd.f32 %v4249, %v4258
        %v4264 = vadd.f32 %v4250, %v4260
        %s4265 = sld [smem:[#allocation8 + $0xc1]]
        %v4266 = vstv %s4265
        %v4267 = vmul.f32 %v4266, %v4216
        %v4268 = vmul.f32 %v4266, %v4217
        %4271 = vrot.lane.b32.xlu0 %v4267, 116
        %v4272 = vpop.permute.xlu0 %4271
        %4273 = vrot.lane.b32.xlu0 %v4268, 116
        %v4274 = vpop.permute.xlu0 %4273
        %v4277 = vadd.f32 %v4263, %v4272
        %v4278 = vadd.f32 %v4264, %v4274
        %s4279 = sld [smem:[#allocation8 + $0xc2]]
        %v4280 = vstv %s4279
        %v4281 = vmul.f32 %v4280, %v4216
        %v4282 = vmul.f32 %v4280, %v4217
        %4285 = vrot.lane.b32.xlu0 %v4281, 113
        %v4286 = vpop.permute.xlu0 %4285
        %4287 = vrot.lane.b32.xlu0 %v4282, 113
        %v4288 = vpop.permute.xlu0 %4287
        %v4291 = vadd.f32 %v4277, %v4286
        %v4292 = vadd.f32 %v4278, %v4288
        %s4293 = sld [smem:[#allocation8 + $0xc3]]
        %v4294 = vstv %s4293
        %v4295 = vmul.f32 %v4294, %v4216
        %v4296 = vmul.f32 %v4294, %v4217
        %4299 = vrot.lane.b32.xlu0 %v4295, 110
        %v4300 = vpop.permute.xlu0 %4299
        %4301 = vrot.lane.b32.xlu0 %v4296, 110
        %v4302 = vpop.permute.xlu0 %4301
        %v4305 = vadd.f32 %v4291, %v4300
        %v4306 = vadd.f32 %v4292, %v4302
        %s4307 = sld [smem:[#allocation9 + $0x3]]
        %v4308 = vstv %s4307
        %v4309 = vadd.f32 %v4305, %v4308
        %v4310 = vadd.f32 %v4306, %v4308
        %s4311 = sld [smem:[#allocation11]]
        %v4312 = vstv %s4311
        %v4313 = vmul.f32 %v4312, %v2365
        %v4314 = vmul.f32 %v4312, %v2366
        %v4315 = vadd.f32 %v4313, 0.0
        %v4316 = vadd.f32 %v4314, 0.0
        %s4317 = sld [smem:[#allocation11 + $0x1]]
        %v4318 = vstv %s4317
        %v4319 = vmul.f32 %v4318, %v3013
        %v4320 = vmul.f32 %v4318, %v3014
        %v4321 = vadd.f32 %v4315, %v4319
        %v4322 = vadd.f32 %v4316, %v4320
        %s4323 = sld [smem:[#allocation11 + $0x2]]
        %v4324 = vstv %s4323
        %v4325 = vmul.f32 %v4324, %v3661
        %v4326 = vmul.f32 %v4324, %v3662
        %v4327 = vadd.f32 %v4321, %v4325
        %v4328 = vadd.f32 %v4322, %v4326
        %s4329 = sld [smem:[#allocation11 + $0x3]]
        %v4330 = vstv %s4329
        %v4331 = vmul.f32 %v4330, %v4309
        %v4332 = vmul.f32 %v4330, %v4310
        %v4333 = vadd.f32 %v4327, %v4331
        %v4334 = vadd.f32 %v4328, %v4332
        %s4335 = sld [smem:[#allocation12]]
        %v4336 = vstv %s4335
        %v4337 = vadd.f32 %v4333, %v4336
        %v4338 = vadd.f32 %v4334, %v4336
        %v4339 = vld [vmem:[%s353 + $0x2] sm:$0xff]
        %v4340 = vld [vmem:[%s353 + $0xa] sm:$0xff]
        %4343 = vrot.lane.b32.xlu0 %v4337, 2
        %v4344 = vpop.permute.xlu0 %4343
        %4345 = vrot.lane.b32.xlu0 %v4338, 2
        %v4346 = vpop.permute.xlu0 %4345
        %v4349 = vmul.f32 %v4339, %v4344
        %v4350 = vmul.f32 %v4340, %v4346
        %4353 = vrot.lane.b32.xlu0 %v4349, 126
        %v4354 = vpop.permute.xlu0 %4353
        %4355 = vrot.lane.b32.xlu0 %v4350, 126
        %v4356 = vpop.permute.xlu0 %4355
        %vm4359 = vcmask 130048
        %4360 = vst.msk [vmem:[%s348] sm:$0xff] %vm4359, %v4354
        %4361 = vst.msk [vmem:[%s348 + $0x8] sm:$0xff] %vm4359, %v4356
        %s4362 = sld [smem:[#allocation11 + $0x4]]
        %v4363 = vstv %s4362
        %v4364 = vmul.f32 %v4363, %v2365
        %v4365 = vmul.f32 %v4363, %v2366
        %v4366 = vadd.f32 %v4364, 0.0
        %v4367 = vadd.f32 %v4365, 0.0
        %s4368 = sld [smem:[#allocation11 + $0x5]]
        %v4369 = vstv %s4368
        %v4370 = vmul.f32 %v4369, %v3013
        %v4371 = vmul.f32 %v4369, %v3014
        %v4372 = vadd.f32 %v4366, %v4370
        %v4373 = vadd.f32 %v4367, %v4371
        %s4374 = sld [smem:[#allocation11 + $0x6]]
        %v4375 = vstv %s4374
        %v4376 = vmul.f32 %v4375, %v3661
        %v4377 = vmul.f32 %v4375, %v3662
        %v4378 = vadd.f32 %v4372, %v4376
        %v4379 = vadd.f32 %v4373, %v4377
        %s4380 = sld [smem:[#allocation11 + $0x7]]
        %v4381 = vstv %s4380
        %v4382 = vmul.f32 %v4381, %v4309
        %v4383 = vmul.f32 %v4381, %v4310
        %v4384 = vadd.f32 %v4378, %v4382
        %v4385 = vadd.f32 %v4379, %v4383
        %s4386 = sld [smem:[#allocation12 + $0x1]]
        %v4387 = vstv %s4386
        %v4388 = vadd.f32 %v4384, %v4387
        %v4389 = vadd.f32 %v4385, %v4387
        %v4390 = vld [vmem:[%s712 + $0x2] sm:$0xff]
        %v4391 = vld [vmem:[%s712 + $0xa] sm:$0xff]
        %4394 = vrot.lane.b32.xlu0 %v4388, 2
        %v4395 = vpop.permute.xlu0 %4394
        %4396 = vrot.lane.b32.xlu0 %v4389, 2
        %v4397 = vpop.permute.xlu0 %4396
        %v4400 = vmul.f32 %v4390, %v4395
        %v4401 = vmul.f32 %v4391, %v4397
        %4404 = vrot.lane.b32.xlu0 %v4400, 126
        %v4405 = vpop.permute.xlu0 %4404
        %4406 = vrot.lane.b32.xlu0 %v4401, 126
        %v4407 = vpop.permute.xlu0 %4406
        %s4410 = scalar_lea.vmem %s348, 16 [#allocation14]
        %4411 = vst.msk [vmem:[%s4410] sm:$0xff] %vm4359, %v4405
        %4412 = vst.msk [vmem:[%s4410 + $0x8] sm:$0xff] %vm4359, %v4407
        %s4413 = sld [smem:[#allocation11 + $0x8]]
        %v4414 = vstv %s4413
        %v4415 = vmul.f32 %v4414, %v2365
        %v4416 = vmul.f32 %v4414, %v2366
        %v4417 = vadd.f32 %v4415, 0.0
        %v4418 = vadd.f32 %v4416, 0.0
        %s4419 = sld [smem:[#allocation11 + $0x9]]
        %v4420 = vstv %s4419
        %v4421 = vmul.f32 %v4420, %v3013
        %v4422 = vmul.f32 %v4420, %v3014
        %v4423 = vadd.f32 %v4417, %v4421
        %v4424 = vadd.f32 %v4418, %v4422
        %s4425 = sld [smem:[#allocation11 + $0xa]]
        %v4426 = vstv %s4425
        %v4427 = vmul.f32 %v4426, %v3661
        %v4428 = vmul.f32 %v4426, %v3662
        %v4429 = vadd.f32 %v4423, %v4427
        %v4430 = vadd.f32 %v4424, %v4428
        %s4431 = sld [smem:[#allocation11 + $0xb]]
        %v4432 = vstv %s4431
        %v4433 = vmul.f32 %v4432, %v4309
        %v4434 = vmul.f32 %v4432, %v4310
        %v4435 = vadd.f32 %v4429, %v4433
        %v4436 = vadd.f32 %v4430, %v4434
        %s4437 = sld [smem:[#allocation12 + $0x2]]
        %v4438 = vstv %s4437
        %v4439 = vadd.f32 %v4435, %v4438
        %v4440 = vadd.f32 %v4436, %v4438
        %v4441 = vld [vmem:[%s1048 + $0x2] sm:$0xff]
        %v4442 = vld [vmem:[%s1048 + $0xa] sm:$0xff]
        %4445 = vrot.lane.b32.xlu0 %v4439, 2
        %v4446 = vpop.permute.xlu0 %4445
        %4447 = vrot.lane.b32.xlu0 %v4440, 2
        %v4448 = vpop.permute.xlu0 %4447
        %v4451 = vmul.f32 %v4441, %v4446
        %v4452 = vmul.f32 %v4442, %v4448
        %4455 = vrot.lane.b32.xlu0 %v4451, 126
        %v4456 = vpop.permute.xlu0 %4455
        %4457 = vrot.lane.b32.xlu0 %v4452, 126
        %v4458 = vpop.permute.xlu0 %4457
        %s4461 = scalar_lea.vmem %s348, 32 [#allocation14]
        %4462 = vst.msk [vmem:[%s4461] sm:$0xff] %vm4359, %v4456
        %4463 = vst.msk [vmem:[%s4461 + $0x8] sm:$0xff] %vm4359, %v4458
        %s4464 = sld [smem:[#allocation11 + $0xc]]
        %v4465 = vstv %s4464
        %v4466 = vmul.f32 %v4465, %v2365
        %v4467 = vmul.f32 %v4465, %v2366
        %v4468 = vadd.f32 %v4466, 0.0
        %v4469 = vadd.f32 %v4467, 0.0
        %s4470 = sld [smem:[#allocation11 + $0xd]]
        %v4471 = vstv %s4470
        %v4472 = vmul.f32 %v4471, %v3013
        %v4473 = vmul.f32 %v4471, %v3014
        %v4474 = vadd.f32 %v4468, %v4472
        %v4475 = vadd.f32 %v4469, %v4473
        %s4476 = sld [smem:[#allocation11 + $0xe]]
        %v4477 = vstv %s4476
        %v4478 = vmul.f32 %v4477, %v3661
        %v4479 = vmul.f32 %v4477, %v3662
        %v4480 = vadd.f32 %v4474, %v4478
        %v4481 = vadd.f32 %v4475, %v4479
        %s4482 = sld [smem:[#allocation11 + $0xf]]
        %v4483 = vstv %s4482
        %v4484 = vmul.f32 %v4483, %v4309
        %v4485 = vmul.f32 %v4483, %v4310
        %v4486 = vadd.f32 %v4480, %v4484
        %v4487 = vadd.f32 %v4481, %v4485
        %s4488 = sld [smem:[#allocation12 + $0x3]]
        %v4489 = vstv %s4488
        %v4490 = vadd.f32 %v4486, %v4489
        %v4491 = vadd.f32 %v4487, %v4489
        %v4492 = vld [vmem:[%s1384 + $0x2] sm:$0xff]
        %v4493 = vld [vmem:[%s1384 + $0xa] sm:$0xff]
        %4496 = vrot.lane.b32.xlu0 %v4490, 2
        %v4497 = vpop.permute.xlu0 %4496
        %4498 = vrot.lane.b32.xlu0 %v4491, 2
        %v4499 = vpop.permute.xlu0 %4498
        %v4502 = vmul.f32 %v4492, %v4497
        %v4503 = vmul.f32 %v4493, %v4499
        %4506 = vrot.lane.b32.xlu0 %v4502, 126
        %v4507 = vpop.permute.xlu0 %4506
        %4508 = vrot.lane.b32.xlu0 %v4503, 126
        %v4509 = vpop.permute.xlu0 %4508
        %s4512 = scalar_lea.vmem %s348, 48 [#allocation14]
        %4513 = vst.msk [vmem:[%s4512] sm:$0xff] %vm4359, %v4507
        %4514 = vst.msk [vmem:[%s4512 + $0x8] sm:$0xff] %vm4359, %v4509
        %s4515 = sand.u32 %s185, 1
        %s4516 = scalar_lea.sflag [#allocation4], %s4515
        %s4517 = sand.u32 %s185, 1
        %s4518 = smul.addr %s4517, 64
        %s4519 = scalar_lea.vmem [#allocation14], %s4518
        // Predicated region
        $region73: #{tpu_custom_call.1} parent=47 // pred_check
          %p4520 = pneg %p195
        $region74: #{tpu_custom_call.1} parent=47 // pred_check_branch
          %4522 = sbr.rel (%p4520) target = $region76
        $region75: #{tpu_custom_call.1} parent=47 // pred_region
          %4524 = vsyncadd %s4516, 0
          %s4525 = smul.addr %s25, 8
          %s4526 = smul.addr %s4525, 8
          %s4527 = scalar_lea.hbm %s7, %s4526
          %s4528 = sshll.u32 %s4519, 4
          %s4529 = int_to_ptr.vmem [resolvable:$true] %s4528
          %s4530 = sshll.u32 %s4527, 4
          %s4531 = int_to_ptr.hbm [resolvable:$true] %s4530
          %4536 = dma.vmem_to_hbm [thread:$0]  %s4529, 1024, %s4531, %s4516, 128, 128, 8
        $region76: #{tpu_custom_call.1} parent=47 // pred_fallthru
          _
      $region48: #{tpu_custom_call.1} parent=5 // pred_fallthru
        _
      %p4537 = scmp.le.s32.totalorder 2, %s20
      // Predicated region
      $region77: #{tpu_custom_call.1} parent=5 // pred_check
        %p4538 = pneg %p4537
      $region78: #{tpu_custom_call.1} parent=5 // pred_check_branch
        %4540 = sbr.rel (%p4538) target = $region80
      $region79: #{tpu_custom_call.1} parent=5 // pred_region
        %s4541 = ssub.s32 %s20, 2
        // Predicated region
        $region81: #{tpu_custom_call.1} parent=79 // pred_check
          %p4542 = pneg %p201
        $region82: #{tpu_custom_call.1} parent=79 // pred_check_branch
          %4544 = sbr.rel (%p4542) target = $region84
        $region83: #{tpu_custom_call.1} parent=79 // pred_region
          %s4545 = sand.u32 %s186, 1
          %s4546 = scalar_lea.sflag [#allocation4], %s4545
          %s4547 = sand.u32 %s186, 1
          %s4548 = smul.addr %s4547, 64
          %s4549 = scalar_lea.vmem [#allocation14], %s4548
          %4551 = dma.done %s4546, 1024
        $region84: #{tpu_custom_call.1} parent=79 // pred_fallthru
          _
      $region80: #{tpu_custom_call.1} parent=5 // pred_fallthru
        _
    $region6: #{tpu_custom_call.1} parent=1 // loop_footer
      %s24 = sadd.s32 1, %s20
    $region7: #{tpu_custom_call.1} parent=1 // loop_footer_branch
      %19 = sbr.rel target = $region3
    $region8: #{tpu_custom_call.1} parent=1 // loop_exit
      _
    %4552 = vsyncpa [#allocation4], 1
    %s4553 = scalar_lea.sflag [#allocation4], 1
    %4554 = vsyncpa %s4553, 1
    %4555 = vsyncpa [#allocation5], 1
    %s4556 = scalar_lea.sflag [#allocation5], 1
    %4557 = vsyncpa %s4556, 1
    %4558 = vsyncpa [#allocation7], 1
    %4559 = vsyncpa [#allocation10], 1
    %4560 = vsyncpa [#allocation13], 1

</llo_original>
